<compile_context>
chip_gen: v7x
topology: tpu7x:2x2x1
jax: 0.10.0
libtpu: 0.0.40
codegen_flags: <defaults>
</compile_context>

<pallas_src>
import functools

import jax
import jax.numpy as jnp
import numpy as np
from jax.experimental import pallas as pl
from jax.experimental.pallas import tpu as pltpu


def _elu(v):
    # Exact ELU; one EUP transcendental per element.  The minimum() keeps the untaken
    # branch of the select from overflowing exp for large positive v.
    return jnp.where(v > 0, v, jnp.exp(jnp.minimum(v, 0.0)) - 1.0)


def p_a_x_kernel(x_ref, a_t_ref, w_in_ref, b_in_ref, w_h_ref, b_h_ref,
                 w_out_ref, b_out_ref, y_ref, *, nh, compute_dtype):
    tn, Fp = x_ref.shape           # sample tile, padded feature dim
    ti = a_t_ref.shape[0]          # gene tile
    Hp = w_in_ref.shape[1]         # padded hidden dim

    x = x_ref[...]                 # (tn, Fp)  compute_dtype
    a_t = a_t_ref[...]             # (ti, Fp)  compute_dtype, a_t[ii, j] = A[j, i0 + ii]

    # Masked per-gene inputs for this (gene, sample) tile only:
    #   m[(t, ii), j] = x[t, j] * A[j, i0 + ii]
    m = (x[:, None, :] * a_t[None, :, :]).reshape(tn * ti, Fp)

    # MLP: input layer + nh hidden layers, ELU.  compute_dtype MXU operands, f32 acc.
    h = _elu(jnp.dot(m, w_in_ref[...], preferred_element_type=jnp.float32)
             + b_in_ref[...])
    for k in range(nh):
        h = _elu(jnp.dot(h.astype(compute_dtype), w_h_ref[k],
                         preferred_element_type=jnp.float32) + b_h_ref[k:k + 1, :])

    # Fused Linear_out + torch.diagonal (no (rows, F) matmul, no mask/iota):
    #   y[t, ii] = sum_h h[t, ii, h] * W_out[i0 + ii, h] + b_out[i0 + ii]
    h3 = h.reshape(tn, ti, Hp)
    y = jnp.sum(h3 * w_out_ref[...][None, :, :], axis=-1) + b_out_ref[...]
    y_ref[...] = y                 # lane-dense (tn, ti) store


def _round_up(v, m):
    return ((v + m - 1) // m) * m


def p_a_x_forward(x, a_param, w_in, b_in, w_h, b_h, w_out, b_out, *,
                  tf_len, nh, sample_tile=8, gene_tile=128,
                  compute_dtype=jnp.bfloat16):
    """x: (N, F). Weights in torch convention (out, in); biases 1-D. Returns (A, y)."""
    N, F = x.shape
    H = w_in.shape[0]
    assert sample_tile % 8 == 0 and gene_tile % 128 == 0
    assert nh >= 1 and nh == w_h.shape[0]
    assert tf_len <= F

    # A = pad(sigmoid(A_param)) with zeroed diagonal (tiny elementwise preprocessing).
    a = jax.nn.sigmoid(a_param.astype(jnp.float32))
    a = jnp.concatenate([a, jnp.zeros((F - tf_len, F), jnp.float32)], axis=0)
    a = a * (1.0 - jnp.eye(F, dtype=jnp.float32))

    # Zero-pad everything to hardware-friendly sizes (exact; stripped on return).
    Np = _round_up(N, sample_tile)
    Fp = _round_up(F, gene_tile)
    Hp = _round_up(H, 128)

    f32 = jnp.float32
    x_p = jnp.zeros((Np, Fp), f32).at[:N, :F].set(x.astype(f32))
    a_t_p = jnp.zeros((Fp, Fp), f32).at[:F, :F].set(a.T)              # a_t[i, j] = A[j, i]
    w_in_p = jnp.zeros((Fp, Hp), f32).at[:F, :H].set(w_in.T.astype(f32))
    b_in_p = jnp.zeros((1, Hp), f32).at[0, :H].set(b_in.astype(f32))
    w_h_p = jnp.zeros((nh, Hp, Hp), f32).at[:, :H, :H].set(
        jnp.transpose(w_h, (0, 2, 1)).astype(f32))
    b_h_p = jnp.zeros((nh, Hp), f32).at[:, :H].set(b_h.astype(f32))
    w_out_p = jnp.zeros((Fp, Hp), f32).at[:F, :H].set(w_out.astype(f32))
    b_out_p = jnp.zeros((1, Fp), f32).at[0, :F].set(b_out.astype(f32))

    kernel = functools.partial(p_a_x_kernel, nh=nh, compute_dtype=compute_dtype)
    # Gene tiles OUTER, sample tiles INNER: large A^T / W_out gene blocks stay resident
    # across the inner loop; only the small (sample_tile, Fp) x block streams.
    grid = (Fp // gene_tile, Np // sample_tile)

    rows = Np * Fp
    cbytes = jnp.dtype(compute_dtype).itemsize
    cost = pl.CostEstimate(
        flops=int(2 * rows * (Fp * Hp + nh * Hp * Hp + Hp)),
        transcendentals=int(rows * Hp * (nh + 1)),
        bytes_accessed=int((Fp // gene_tile) * Np * Fp * cbytes    # x re-streamed per gene tile
                           + Fp * Fp * cbytes                      # A^T
                           + (Fp * Hp + nh * Hp * Hp) * cbytes     # MLP weights
                           + Fp * Hp * 4 + Fp * 4                  # W_out rows, b_out
                           + Np * Fp * 4),                         # y
    )

    y_p = pl.pallas_call(
        kernel,
        out_shape=jax.ShapeDtypeStruct((Np, Fp), jnp.float32),
        grid=grid,
        in_specs=[
            pl.BlockSpec((sample_tile, Fp), lambda i, n: (n, 0)),   # x       (per sample tile)
            pl.BlockSpec((gene_tile, Fp), lambda i, n: (i, 0)),     # A^T     (per gene tile)
            pl.BlockSpec((Fp, Hp), lambda i, n: (0, 0)),            # W_in^T  (VMEM-resident)
            pl.BlockSpec((1, Hp), lambda i, n: (0, 0)),             # b_in
            pl.BlockSpec((nh, Hp, Hp), lambda i, n: (0, 0, 0)),     # W_hid^T stack
            pl.BlockSpec((nh, Hp), lambda i, n: (0, 0)),            # b_hid stack
            pl.BlockSpec((gene_tile, Hp), lambda i, n: (i, 0)),     # W_out rows (per gene tile)
            pl.BlockSpec((1, gene_tile), lambda i, n: (0, i)),      # b_out slice
        ],
        out_specs=pl.BlockSpec((sample_tile, gene_tile), lambda i, n: (n, i)),
        compiler_params=pltpu.CompilerParams(
            dimension_semantics=("parallel", "parallel"),
            vmem_limit_bytes=48 * 1024 * 1024,
        ),
        cost_estimate=cost,
    )(
        x_p.astype(compute_dtype),
        a_t_p.astype(compute_dtype),
        w_in_p.astype(compute_dtype),
        b_in_p,
        w_h_p.astype(compute_dtype),
        b_h_p,
        w_out_p,
        b_out_p,
    )
    return a, y_p[:N, :F]


def reference(x, a_param, w_in, b_in, w_h, b_h, w_out, b_out, *, tf_len):
    """Pure-JAX re-implementation of the PyTorch forward."""
    F = w_in.shape[1]
    a = jax.nn.sigmoid(a_param)
    a = jnp.concatenate([a, jnp.zeros((F - tf_len, F), a.dtype)], axis=0)
    a = a * (1.0 - jnp.eye(F, dtype=a.dtype))
    p = x[:, None, :] * a.T[None, :, :]                  # (N, F, F): p[n,i,j]=x[n,j]*A[j,i]
    h = jax.nn.elu(p @ w_in.T + b_in)
    for k in range(w_h.shape[0]):
        h = jax.nn.elu(h @ w_h[k].T + b_h[k])
    out = h @ w_out.T + b_out                            # (N, F, F)
    y = jnp.diagonal(out, 0, 1, 2)                       # (N, F)
    return a, y


def _make_inputs(key, N, F, tf_len, H, nh):
    ks = jax.random.split(key, 8)
    x = jax.random.normal(ks[0], (N, F), jnp.float32)
    # Random A_param (instead of the torch init of ones) so gene-tile indexing errors
    # cannot cancel out in the test.
    a_param = jax.random.normal(ks[7], (tf_len, F), jnp.float32)
    w_in = 0.1 * jax.random.normal(ks[1], (H, F), jnp.float32)
    b_in = 0.1 * jax.random.normal(ks[2], (H,), jnp.float32)
    w_h = 0.1 * jax.random.normal(ks[3], (nh, H, H), jnp.float32)
    b_h = 0.1 * jax.random.normal(ks[4], (nh, H), jnp.float32)
    w_out = 0.1 * jax.random.normal(ks[5], (F, H), jnp.float32)
    b_out = 0.1 * jax.random.normal(ks[6], (F,), jnp.float32)
    return x, a_param, w_in, b_in, w_h, b_h, w_out, b_out


if __name__ == "__main__":
    key = jax.random.PRNGKey(0)
    k1, k2 = jax.random.split(key)

    # 1) Lane-aligned shapes, f32 MXU operands: strict check of tiling / index maps.
    N, F, tf_len, H, nh = 16, 256, 192, 128, 2
    args = _make_inputs(k1, N, F, tf_len, H, nh)
    a_r, y_r = reference(*args, tf_len=tf_len)
    a_k, y_k = p_a_x_forward(*args, tf_len=tf_len, nh=nh, compute_dtype=jnp.float32)
    jax.block_until_ready((a_k, y_k))
    assert a_k.shape == (F, F) and y_k.shape == (N, F)
    np.testing.assert_allclose(np.asarray(a_k), np.asarray(a_r), atol=1e-6, rtol=1e-6)
    np.testing.assert_allclose(np.asarray(y_k), np.asarray(y_r), atol=2e-3, rtol=2e-3)

    # 2) Ragged shapes (N, F, H all unaligned) -> exercises the zero-padding path
    #    that makes real DREAM5 sizes (dim_feat ~ 4511, dim_h = 512) usable.
    N2, F2, tf2, H2, nh2 = 10, 200, 60, 96, 2
    args2 = _make_inputs(k2, N2, F2, tf2, H2, nh2)
    a_r2, y_r2 = reference(*args2, tf_len=tf2)
    a_k2, y_k2 = p_a_x_forward(*args2, tf_len=tf2, nh=nh2, compute_dtype=jnp.float32)
    jax.block_until_ready((a_k2, y_k2))
    assert a_k2.shape == (F2, F2) and y_k2.shape == (N2, F2)
    np.testing.assert_allclose(np.asarray(a_k2), np.asarray(a_r2), atol=1e-6, rtol=1e-6)
    np.testing.assert_allclose(np.asarray(y_k2), np.asarray(y_r2), atol=2e-3, rtol=2e-3)

    # 3) Default fast path: bf16 MXU operands with f32 accumulation -> looser tolerance.
    a_b, y_b = p_a_x_forward(*args, tf_len=tf_len, nh=nh)
    jax.block_until_ready((a_b, y_b))
    np.testing.assert_allclose(np.asarray(y_b), np.asarray(y_r), atol=1e-1, rtol=1e-1)

    print("KERNEL_OK")
</pallas_src>

<mosaic_0001>
module attributes {stable_mosaic.version = 11 : i64} {
  func.func @p_a_x_kernel(%arg0: i32, %arg1: i32, %arg2: memref<8x256xf32, #tpu.memory_space<vmem>>, %arg3: memref<128x256xf32, #tpu.memory_space<vmem>>, %arg4: memref<256x128xf32, #tpu.memory_space<vmem>>, %arg5: memref<1x128xf32, #tpu.memory_space<vmem>>, %arg6: memref<2x128x128xf32, #tpu.memory_space<vmem>>, %arg7: memref<2x128xf32, #tpu.memory_space<vmem>>, %arg8: memref<128x128xf32, #tpu.memory_space<vmem>>, %arg9: memref<1x128xf32, #tpu.memory_space<vmem>>, %arg10: memref<8x128xf32, #tpu.memory_space<vmem>>) attributes {dimension_semantics = [#tpu.dimension_semantics<parallel>, #tpu.dimension_semantics<parallel>], iteration_bounds = array<i64: 2, 2>, scalar_prefetch = 0 : i64, scratch_operands = 0 : i64, tpu.core_type = #tpu.core_type<tc>, window_params = [{transform_indices = @transform_0, window_bounds = array<i64: 8, 256>}, {transform_indices = @transform_1, window_bounds = array<i64: 128, 256>}, {pipeline_mode = #tpu.pipeline_mode<synchronous>, transform_indices = @transform_2, window_bounds = array<i64: 256, 128>}, {pipeline_mode = #tpu.pipeline_mode<synchronous>, transform_indices = @transform_3, window_bounds = array<i64: 1, 128>}, {pipeline_mode = #tpu.pipeline_mode<synchronous>, transform_indices = @transform_4, window_bounds = array<i64: 2, 128, 128>}, {pipeline_mode = #tpu.pipeline_mode<synchronous>, transform_indices = @transform_5, window_bounds = array<i64: 2, 128>}, {transform_indices = @transform_6, window_bounds = array<i64: 128, 128>}, {transform_indices = @transform_7, window_bounds = array<i64: 1, 128>}, {transform_indices = @transform_8, window_bounds = array<i64: 8, 128>}]} {
    %c0 = arith.constant 0 : index
    %c0_0 = arith.constant 0 : index
    %0 = vector.load %arg2[%c0, %c0_0] : memref<8x256xf32, #tpu.memory_space<vmem>>, vector<8x256xf32>
    %c0_1 = arith.constant 0 : index
    %c0_2 = arith.constant 0 : index
    %1 = vector.load %arg3[%c0_1, %c0_2] : memref<128x256xf32, #tpu.memory_space<vmem>>, vector<128x256xf32>
    %2 = vector.shape_cast %0 : vector<8x256xf32> to vector<8x1x256xf32>
    %3 = vector.shape_cast %1 : vector<128x256xf32> to vector<1x128x256xf32>
    %4 = vector.broadcast %2 : vector<8x1x256xf32> to vector<8x128x256xf32>
    %5 = vector.broadcast %3 : vector<1x128x256xf32> to vector<8x128x256xf32>
    %6 = arith.mulf %4, %5 : vector<8x128x256xf32>
    %7 = vector.shape_cast %6 : vector<8x128x256xf32> to vector<1024x256xf32>
    %c0_3 = arith.constant 0 : index
    %c0_4 = arith.constant 0 : index
    %8 = vector.load %arg4[%c0_3, %c0_4] : memref<256x128xf32, #tpu.memory_space<vmem>>, vector<256x128xf32>
    %cst = arith.constant dense<0.000000e+00> : vector<1024x128xf32>
    %9 = tpu.matmul %7, %8, %cst {dimension_numbers = #tpu.dot_dimension_numbers<[1], [0], [0], [1], [0, 0, 1, 1], [], []>} : vector<1024x256xf32>, vector<256x128xf32>, vector<1024x128xf32> -> vector<1024x128xf32>
    %c0_5 = arith.constant 0 : index
    %c0_6 = arith.constant 0 : index
    %10 = vector.load %arg5[%c0_5, %c0_6] : memref<1x128xf32, #tpu.memory_space<vmem>>, vector<1x128xf32>
    %11 = vector.broadcast %10 : vector<1x128xf32> to vector<1024x128xf32>
    %12 = arith.addf %9, %11 : vector<1024x128xf32>
    %cst_7 = arith.constant 0.000000e+00 : f32
    %13 = vector.broadcast %cst_7 : f32 to vector<1024x128xf32>
    %14 = arith.cmpf ogt, %12, %13 : vector<1024x128xf32>
    %cst_8 = arith.constant 0.000000e+00 : f32
    %15 = vector.broadcast %cst_8 : f32 to vector<1024x128xf32>
    %16 = arith.minimumf %12, %15 : vector<1024x128xf32>
    %17 = math.exp %16 : vector<1024x128xf32>
    %cst_9 = arith.constant 1.000000e+00 : f32
    %18 = vector.broadcast %cst_9 : f32 to vector<1024x128xf32>
    %19 = arith.subf %17, %18 : vector<1024x128xf32>
    %20 = arith.select %14, %12, %19 : vector<1024x128xi1>, vector<1024x128xf32>
    %c0_10 = arith.constant 0 : index
    %c0_11 = arith.constant 0 : index
    %c0_12 = arith.constant 0 : index
    %21 = vector.load %arg6[%c0_10, %c0_11, %c0_12] : memref<2x128x128xf32, #tpu.memory_space<vmem>>, vector<1x128x128xf32>
    %22 = vector.shape_cast %21 : vector<1x128x128xf32> to vector<128x128xf32>
    %cst_13 = arith.constant dense<0.000000e+00> : vector<1024x128xf32>
    %23 = tpu.matmul %20, %22, %cst_13 {dimension_numbers = #tpu.dot_dimension_numbers<[1], [0], [0], [1], [0, 0, 1, 1], [], []>} : vector<1024x128xf32>, vector<128x128xf32>, vector<1024x128xf32> -> vector<1024x128xf32>
    %c0_14 = arith.constant 0 : index
    %c0_15 = arith.constant 0 : index
    %24 = vector.load %arg7[%c0_14, %c0_15] : memref<2x128xf32, #tpu.memory_space<vmem>>, vector<1x128xf32>
    %25 = vector.broadcast %24 : vector<1x128xf32> to vector<1024x128xf32>
    %26 = arith.addf %23, %25 : vector<1024x128xf32>
    %cst_16 = arith.constant 0.000000e+00 : f32
    %27 = vector.broadcast %cst_16 : f32 to vector<1024x128xf32>
    %28 = arith.cmpf ogt, %26, %27 : vector<1024x128xf32>
    %cst_17 = arith.constant 0.000000e+00 : f32
    %29 = vector.broadcast %cst_17 : f32 to vector<1024x128xf32>
    %30 = arith.minimumf %26, %29 : vector<1024x128xf32>
    %31 = math.exp %30 : vector<1024x128xf32>
    %cst_18 = arith.constant 1.000000e+00 : f32
    %32 = vector.broadcast %cst_18 : f32 to vector<1024x128xf32>
    %33 = arith.subf %31, %32 : vector<1024x128xf32>
    %34 = arith.select %28, %26, %33 : vector<1024x128xi1>, vector<1024x128xf32>
    %c1 = arith.constant 1 : index
    %c0_19 = arith.constant 0 : index
    %c0_20 = arith.constant 0 : index
    %35 = vector.load %arg6[%c1, %c0_19, %c0_20] : memref<2x128x128xf32, #tpu.memory_space<vmem>>, vector<1x128x128xf32>
    %36 = vector.shape_cast %35 : vector<1x128x128xf32> to vector<128x128xf32>
    %cst_21 = arith.constant dense<0.000000e+00> : vector<1024x128xf32>
    %37 = tpu.matmul %34, %36, %cst_21 {dimension_numbers = #tpu.dot_dimension_numbers<[1], [0], [0], [1], [0, 0, 1, 1], [], []>} : vector<1024x128xf32>, vector<128x128xf32>, vector<1024x128xf32> -> vector<1024x128xf32>
    %c1_22 = arith.constant 1 : index
    %c0_23 = arith.constant 0 : index
    %38 = vector.load %arg7[%c1_22, %c0_23] : memref<2x128xf32, #tpu.memory_space<vmem>>, vector<1x128xf32>
    %39 = vector.broadcast %38 : vector<1x128xf32> to vector<1024x128xf32>
    %40 = arith.addf %37, %39 : vector<1024x128xf32>
    %cst_24 = arith.constant 0.000000e+00 : f32
    %41 = vector.broadcast %cst_24 : f32 to vector<1024x128xf32>
    %42 = arith.cmpf ogt, %40, %41 : vector<1024x128xf32>
    %cst_25 = arith.constant 0.000000e+00 : f32
    %43 = vector.broadcast %cst_25 : f32 to vector<1024x128xf32>
    %44 = arith.minimumf %40, %43 : vector<1024x128xf32>
    %45 = math.exp %44 : vector<1024x128xf32>
    %cst_26 = arith.constant 1.000000e+00 : f32
    %46 = vector.broadcast %cst_26 : f32 to vector<1024x128xf32>
    %47 = arith.subf %45, %46 : vector<1024x128xf32>
    %48 = arith.select %42, %40, %47 : vector<1024x128xi1>, vector<1024x128xf32>
    %49 = vector.shape_cast %48 : vector<1024x128xf32> to vector<8x128x128xf32>
    %c0_27 = arith.constant 0 : index
    %c0_28 = arith.constant 0 : index
    %50 = vector.load %arg8[%c0_27, %c0_28] : memref<128x128xf32, #tpu.memory_space<vmem>>, vector<128x128xf32>
    %51 = vector.shape_cast %50 : vector<128x128xf32> to vector<1x128x128xf32>
    %52 = vector.broadcast %51 : vector<1x128x128xf32> to vector<8x128x128xf32>
    %53 = arith.mulf %49, %52 : vector<8x128x128xf32>
    %cst_29 = arith.constant dense<0.000000e+00> : vector<8x128xf32>
    %54 = vector.multi_reduction <add>, %53, %cst_29 [2] : vector<8x128x128xf32> to vector<8x128xf32>
    %c0_30 = arith.constant 0 : index
    %c0_31 = arith.constant 0 : index
    %55 = vector.load %arg9[%c0_30, %c0_31] : memref<1x128xf32, #tpu.memory_space<vmem>>, vector<1x128xf32>
    %56 = vector.broadcast %55 : vector<1x128xf32> to vector<8x128xf32>
    %57 = arith.addf %54, %56 : vector<8x128xf32>
    %c0_32 = arith.constant 0 : index
    %c0_33 = arith.constant 0 : index
    %58 = vector.load %arg10[%c0_32, %c0_33] : memref<8x128xf32, #tpu.memory_space<vmem>>, vector<8x128xf32>
    tpu.vector_store %arg10[%c0_32, %c0_33], %57 {strides = array<i32>} : memref<8x128xf32, #tpu.memory_space<vmem>>, vector<8x128xf32>,
    return
  }
  func.func @transform_0(%arg0: i32, %arg1: i32) -> (i32, i32) {
    %c0_i32 = arith.constant 0 : i32
    %c0_i32_0 = arith.constant 0 : i32
    return %arg1, %c0_i32 : i32, i32
  }
  func.func @transform_1(%arg0: i32, %arg1: i32) -> (i32, i32) {
    %c0_i32 = arith.constant 0 : i32
    %c0_i32_0 = arith.constant 0 : i32
    return %arg0, %c0_i32 : i32, i32
  }
  func.func @transform_2(%arg0: i32, %arg1: i32) -> (i32, i32) {
    %c0_i32 = arith.constant 0 : i32
    %c0_i32_0 = arith.constant 0 : i32
    %c0_i32_1 = arith.constant 0 : i32
    return %c0_i32, %c0_i32_0 : i32, i32
  }
  func.func @transform_3(%arg0: i32, %arg1: i32) -> (i32, i32) {
    %c0_i32 = arith.constant 0 : i32
    %c0_i32_0 = arith.constant 0 : i32
    %c0_i32_1 = arith.constant 0 : i32
    return %c0_i32, %c0_i32_0 : i32, i32
  }
  func.func @transform_4(%arg0: i32, %arg1: i32) -> (i32, i32, i32) {
    %c0_i32 = arith.constant 0 : i32
    %c0_i32_0 = arith.constant 0 : i32
    %c0_i32_1 = arith.constant 0 : i32
    %c0_i32_2 = arith.constant 0 : i32
    return %c0_i32, %c0_i32_0, %c0_i32_1 : i32, i32, i32
  }
  func.func @transform_5(%arg0: i32, %arg1: i32) -> (i32, i32) {
    %c0_i32 = arith.constant 0 : i32
    %c0_i32_0 = arith.constant 0 : i32
    %c0_i32_1 = arith.constant 0 : i32
    return %c0_i32, %c0_i32_0 : i32, i32
  }
  func.func @transform_6(%arg0: i32, %arg1: i32) -> (i32, i32) {
    %c0_i32 = arith.constant 0 : i32
    %c0_i32_0 = arith.constant 0 : i32
    return %arg0, %c0_i32 : i32, i32
  }
  func.func @transform_7(%arg0: i32, %arg1: i32) -> (i32, i32) {
    %c0_i32 = arith.constant 0 : i32
    %c0_i32_0 = arith.constant 0 : i32
    return %c0_i32, %arg0 : i32, i32
  }
  func.func @transform_8(%arg0: i32, %arg1: i32) -> (i32, i32) {
    %c0_i32 = arith.constant 0 : i32
    return %arg1, %arg0 : i32, i32
  }
}

</mosaic_0001>

<llo_original>
// kernel: tpu_custom_call.1
$region0: #{tpu_custom_call.1}
  #allocation0 [shape = 'u32[]', space=smem, size = 0x4, offset = 0x4, fixed_abs, tag = 'smem constant byte address 0x4 - core index']
  #allocation1 [shape = 'u32[144,128]{1,0:T(1,128)}', space=vmem, size = 0x12000, scoped, tag = 'internal scratch']
  %s0 = inlined_call_operand.hbm [shape: f32[16,256], index: 0, kind: input, shape index: {}]
  %s1 = inlined_call_operand.hbm [shape: f32[256,256], index: 1, kind: input, shape index: {}]
  %s2 = inlined_call_operand.hbm [shape: f32[256,128], index: 2, kind: input, shape index: {}]
  %s3 = inlined_call_operand.vmem [shape: f32[1,128], index: 3, kind: input, shape index: {}]
  %s4 = inlined_call_operand.hbm [shape: f32[2,128,128], index: 4, kind: input, shape index: {}]
  %s5 = inlined_call_operand.vmem [shape: f32[2,128], index: 5, kind: input, shape index: {}]
  %s6 = inlined_call_operand.hbm [shape: f32[256,128], index: 6, kind: input, shape index: {}]
  %s7 = inlined_call_operand.vmem [shape: f32[1,256], index: 7, kind: input, shape index: {}]
  %s8 = inlined_call_operand.hbm [shape: f32[16,256], index: 8, kind: output, shape index: {}]
  %s9 = sld [smem:[#allocation0]]
  $region85: #{tpu_custom_call.1} parent=0
    _
  %s11 = ssub.s32 1, %s9
  %s12 = scalar_select 0, %s11, %s9
  $region1: #{tpu_custom_call.1} parent=0
    #allocation2 [shape = 'u8[16384]{0}', space=vmem, size = 0x4000, scoped, tag = 'input window, operand 0']
    #allocation3 [shape = 's32[2]{0}', space=sflag, size = 0x8, scoped, tag = 'scoped memory for tpu_custom_call.1']
    #allocation4 [shape = 's32[2]{0}', space=sflag, size = 0x8, scoped, tag = 'scoped memory for tpu_custom_call.1']
    #allocation5 [shape = 'u8[262144]{0}', space=vmem, size = 0x40000, scoped, tag = 'input window, operand 1']
    #allocation6 [shape = 's32[2]{0}', space=sflag, size = 0x8, scoped, tag = 'scoped memory for tpu_custom_call.1']
    #allocation7 [shape = 'u8[131072]{0}', space=vmem, size = 0x20000, scoped, tag = 'input window, operand 2, single buffered']
    #allocation8 [shape = 'u8[131072]{0}', space=vmem, size = 0x20000, scoped, tag = 'input window, operand 4, single buffered']
    #allocation9 [shape = 's32[1]{0}', space=sflag, size = 0x4, scoped, tag = 'scoped memory for tpu_custom_call.1']
    #allocation10 [shape = 'u8[131072]{0}', space=vmem, size = 0x20000, scoped, tag = 'input window, operand 6']
    #allocation11 [shape = 'u8[8192]{0}', space=vmem, size = 0x2000, scoped, tag = 'output window, operand 0']
    %13 = vsyncpa [#allocation3], 0
    %s14 = scalar_lea.sflag [#allocation3], 1
    %15 = vsyncpa %s14, 0
    %16 = vsyncpa [#allocation6], 0
    %s17 = scalar_lea.sflag [#allocation6], 1
    %18 = vsyncpa %s17, 0
    %19 = vsyncpa [#allocation9], 0
    %20 = vsyncpa [#allocation4], 0
    %s21 = scalar_lea.sflag [#allocation4], 1
    %22 = vsyncpa %s21, 0
    loop: start=0, step=1, limit=6
    $region2: #{tpu_custom_call.1} parent=1 // loop_pre_header
      _
    $region3: #{tpu_custom_call.1} parent=1 // loop_header
      %s24 = sphi 0, %s28
      %p25 = scmp.ge.s32.totalorder %s24, 6
      %s31 = sphi 0, %s43
      %s32 = sphi 0, %s39
      %s33 = sphi 0, %s31
      %s34 = sphi 0, %s32
      %s35 = sphi 0, %s33
      %s36 = sphi 0, %s34
      %s46 = sphi 0, %s48
      %s49 = sphi 0, %s46
      %s50 = sphi 0, %s49
      %s66 = sphi 0, %s50
      %s72 = sphi 0, %s74
      %s75 = sphi 0, %s72
      %s76 = sphi 0, %s75
      %s92 = sphi 0, %s76
      %s96 = sphi 0, %s96
      %s98 = sphi 0, %s96
      %s99 = sphi 0, %s98
      %s113 = sphi 0, %s99
      %s117 = sphi 0, %s117
      %s119 = sphi 0, %s117
      %s120 = sphi 0, %s119
      %s134 = sphi 0, %s120
      %s138 = sphi 0, %s138
      %s140 = sphi 0, %s138
      %s141 = sphi 0, %s140
      %s155 = sphi 0, %s141
      %s159 = sphi 0, %s159
      %s161 = sphi 0, %s159
      %s162 = sphi 0, %s161
      %s176 = sphi 0, %s162
      %s182 = sphi 0, %s184
      %s185 = sphi 0, %s182
      %s186 = sphi 0, %s185
      %s202 = sphi 0, %s186
      %s208 = sphi 0, %s210
      %s211 = sphi 0, %s208
      %s212 = sphi 0, %s211
      %s228 = sphi 0, %s212
      %s236 = sphi 0, %s238
      %s239 = sphi 0, %s236
      %s240 = sphi 0, %s239
      %s256 = sphi 0, %s240
    $region4: #{tpu_custom_call.1} parent=1 // loop_header_branch
      %27 = sbr.rel (%p25) target = $region8
    $region5: #{tpu_custom_call.1} parent=1 // loop_body
      %s29 = ssub.s32 %s24, 1
      %s30 = ssub.s32 %s24, 2
      %s37 = sadd.s32 1, %s32
      %p38 = scmp.ge.s32.totalorder %s37, 2
      %s39 = scalar_select %p38, 0, %s37
      %s40 = sadd.s32 1, %s31
      %s41 = scalar_select %p38, %s40, %s31
      %p42 = scmp.ge.s32.totalorder %s41, 2
      %s43 = scalar_select %p42, 0, %s41
      %s44 = ssub.s32 %s32, %s39
      %p45 = scmp.eq.s32.totalorder %s44, 0
      %s47 = sadd.s32 %s46, 1
      %s48 = scalar_select %p45, %s46, %s47
      %p51 = pneg %p45
      %p52 = scmp.eq.s32.totalorder %s24, 3
      %p53 = por %p51, %p52
      %p54 = scmp.ne.s32.totalorder %s46, %s49
      %p55 = scmp.eq.s32.totalorder %s24, 0
      %p56 = por %p54, %p55
      %p57 = scmp.ne.s32.totalorder %s46, %s49
      %p58 = scmp.eq.s32.totalorder %s29, 3
      %p59 = por %p57, %p58
      %p60 = scmp.ne.s32.totalorder %s49, %s50
      %p61 = scmp.eq.s32.totalorder %s29, 0
      %p62 = por %p60, %p61
      %p63 = scmp.ne.s32.totalorder %s49, %s50
      %p64 = scmp.eq.s32.totalorder %s30, 3
      %p65 = por %p63, %p64
      %p67 = scmp.ne.s32.totalorder %s50, %s66
      %p68 = scmp.eq.s32.totalorder %s30, 0
      %p69 = por %p67, %p68
      %s70 = ssub.s32 %s31, %s43
      %p71 = scmp.eq.s32.totalorder %s70, 0
      %s73 = sadd.s32 %s72, 1
      %s74 = scalar_select %p71, %s72, %s73
      %p77 = pneg %p71
      %p78 = scmp.eq.s32.totalorder %s24, 3
      %p79 = por %p77, %p78
      %p80 = scmp.ne.s32.totalorder %s72, %s75
      %p81 = scmp.eq.s32.totalorder %s24, 0
      %p82 = por %p80, %p81
      %p83 = scmp.ne.s32.totalorder %s72, %s75
      %p84 = scmp.eq.s32.totalorder %s29, 3
      %p85 = por %p83, %p84
      %p86 = scmp.ne.s32.totalorder %s75, %s76
      %p87 = scmp.eq.s32.totalorder %s29, 0
      %p88 = por %p86, %p87
      %p89 = scmp.ne.s32.totalorder %s75, %s76
      %p90 = scmp.eq.s32.totalorder %s30, 3
      %p91 = por %p89, %p90
      %p93 = scmp.ne.s32.totalorder %s76, %s92
      %p94 = scmp.eq.s32.totalorder %s30, 0
      %p95 = por %p93, %p94
      %s97 = sadd.s32 %s96, 1
      %p100 = scmp.eq.s32.totalorder %s24, 3
      %p101 = scmp.ne.s32.totalorder %s96, %s98
      %p102 = scmp.eq.s32.totalorder %s24, 0
      %p103 = por %p101, %p102
      %p104 = scmp.ne.s32.totalorder %s96, %s98
      %p105 = scmp.eq.s32.totalorder %s29, 3
      %p106 = por %p104, %p105
      %p107 = scmp.ne.s32.totalorder %s98, %s99
      %p108 = scmp.eq.s32.totalorder %s29, 0
      %p109 = por %p107, %p108
      %p110 = scmp.ne.s32.totalorder %s98, %s99
      %p111 = scmp.eq.s32.totalorder %s30, 3
      %p112 = por %p110, %p111
      %p114 = scmp.ne.s32.totalorder %s99, %s113
      %p115 = scmp.eq.s32.totalorder %s30, 0
      %p116 = por %p114, %p115
      %s118 = sadd.s32 %s117, 1
      %p121 = scmp.eq.s32.totalorder %s24, 3
      %p122 = scmp.ne.s32.totalorder %s117, %s119
      %p123 = scmp.eq.s32.totalorder %s24, 0
      %p124 = por %p122, %p123
      %p125 = scmp.ne.s32.totalorder %s117, %s119
      %p126 = scmp.eq.s32.totalorder %s29, 3
      %p127 = por %p125, %p126
      %p128 = scmp.ne.s32.totalorder %s119, %s120
      %p129 = scmp.eq.s32.totalorder %s29, 0
      %p130 = por %p128, %p129
      %p131 = scmp.ne.s32.totalorder %s119, %s120
      %p132 = scmp.eq.s32.totalorder %s30, 3
      %p133 = por %p131, %p132
      %p135 = scmp.ne.s32.totalorder %s120, %s134
      %p136 = scmp.eq.s32.totalorder %s30, 0
      %p137 = por %p135, %p136
      %s139 = sadd.s32 %s138, 1
      %p142 = scmp.eq.s32.totalorder %s24, 3
      %p143 = scmp.ne.s32.totalorder %s138, %s140
      %p144 = scmp.eq.s32.totalorder %s24, 0
      %p145 = por %p143, %p144
      %p146 = scmp.ne.s32.totalorder %s138, %s140
      %p147 = scmp.eq.s32.totalorder %s29, 3
      %p148 = por %p146, %p147
      %p149 = scmp.ne.s32.totalorder %s140, %s141
      %p150 = scmp.eq.s32.totalorder %s29, 0
      %p151 = por %p149, %p150
      %p152 = scmp.ne.s32.totalorder %s140, %s141
      %p153 = scmp.eq.s32.totalorder %s30, 3
      %p154 = por %p152, %p153
      %p156 = scmp.ne.s32.totalorder %s141, %s155
      %p157 = scmp.eq.s32.totalorder %s30, 0
      %p158 = por %p156, %p157
      %s160 = sadd.s32 %s159, 1
      %p163 = scmp.eq.s32.totalorder %s24, 3
      %p164 = scmp.ne.s32.totalorder %s159, %s161
      %p165 = scmp.eq.s32.totalorder %s24, 0
      %p166 = por %p164, %p165
      %p167 = scmp.ne.s32.totalorder %s159, %s161
      %p168 = scmp.eq.s32.totalorder %s29, 3
      %p169 = por %p167, %p168
      %p170 = scmp.ne.s32.totalorder %s161, %s162
      %p171 = scmp.eq.s32.totalorder %s29, 0
      %p172 = por %p170, %p171
      %p173 = scmp.ne.s32.totalorder %s161, %s162
      %p174 = scmp.eq.s32.totalorder %s30, 3
      %p175 = por %p173, %p174
      %p177 = scmp.ne.s32.totalorder %s162, %s176
      %p178 = scmp.eq.s32.totalorder %s30, 0
      %p179 = por %p177, %p178
      %s180 = ssub.s32 %s31, %s43
      %p181 = scmp.eq.s32.totalorder %s180, 0
      %s183 = sadd.s32 %s182, 1
      %s184 = scalar_select %p181, %s182, %s183
      %p187 = pneg %p181
      %p188 = scmp.eq.s32.totalorder %s24, 3
      %p189 = por %p187, %p188
      %p190 = scmp.ne.s32.totalorder %s182, %s185
      %p191 = scmp.eq.s32.totalorder %s24, 0
      %p192 = por %p190, %p191
      %p193 = scmp.ne.s32.totalorder %s182, %s185
      %p194 = scmp.eq.s32.totalorder %s29, 3
      %p195 = por %p193, %p194
      %p196 = scmp.ne.s32.totalorder %s185, %s186
      %p197 = scmp.eq.s32.totalorder %s29, 0
      %p198 = por %p196, %p197
      %p199 = scmp.ne.s32.totalorder %s185, %s186
      %p200 = scmp.eq.s32.totalorder %s30, 3
      %p201 = por %p199, %p200
      %p203 = scmp.ne.s32.totalorder %s186, %s202
      %p204 = scmp.eq.s32.totalorder %s30, 0
      %p205 = por %p203, %p204
      %s206 = ssub.s32 %s31, %s43
      %p207 = scmp.eq.s32.totalorder %s206, 0
      %s209 = sadd.s32 %s208, 1
      %s210 = scalar_select %p207, %s208, %s209
      %p213 = pneg %p207
      %p214 = scmp.eq.s32.totalorder %s24, 3
      %p215 = por %p213, %p214
      %p216 = scmp.ne.s32.totalorder %s208, %s211
      %p217 = scmp.eq.s32.totalorder %s24, 0
      %p218 = por %p216, %p217
      %p219 = scmp.ne.s32.totalorder %s208, %s211
      %p220 = scmp.eq.s32.totalorder %s29, 3
      %p221 = por %p219, %p220
      %p222 = scmp.ne.s32.totalorder %s211, %s212
      %p223 = scmp.eq.s32.totalorder %s29, 0
      %p224 = por %p222, %p223
      %p225 = scmp.ne.s32.totalorder %s211, %s212
      %p226 = scmp.eq.s32.totalorder %s30, 3
      %p227 = por %p225, %p226
      %p229 = scmp.ne.s32.totalorder %s212, %s228
      %p230 = scmp.eq.s32.totalorder %s30, 0
      %p231 = por %p229, %p230
      %s232 = ssub.s32 %s32, %s39
      %s233 = ssub.s32 %s31, %s43
      %s234 = sor.u32 %s232, %s233
      %p235 = scmp.eq.s32.totalorder %s234, 0
      %s237 = sadd.s32 %s236, 1
      %s238 = scalar_select %p235, %s236, %s237
      %p241 = pneg %p235
      %p242 = scmp.eq.s32.totalorder %s24, 3
      %p243 = por %p241, %p242
      %p244 = scmp.ne.s32.totalorder %s236, %s239
      %p245 = scmp.eq.s32.totalorder %s24, 0
      %p246 = por %p244, %p245
      %p247 = scmp.ne.s32.totalorder %s236, %s239
      %p248 = scmp.eq.s32.totalorder %s29, 3
      %p249 = por %p247, %p248
      %p250 = scmp.ne.s32.totalorder %s239, %s240
      %p251 = scmp.eq.s32.totalorder %s29, 0
      %p252 = por %p250, %p251
      %p253 = scmp.ne.s32.totalorder %s239, %s240
      %p254 = scmp.eq.s32.totalorder %s30, 3
      %p255 = por %p253, %p254
      %p257 = scmp.ne.s32.totalorder %s240, %s256
      %p258 = scmp.eq.s32.totalorder %s30, 0
      %p259 = por %p257, %p258
      %p260 = scmp.le.s32.totalorder 1, %s24
      %p261 = scmp.lt.s32.totalorder %s24, 5
      %p262 = pnand %p260, %p261
      %p263 = pneg %p262
      // Predicated region
      $region9: #{tpu_custom_call.1} parent=5 // pred_check
        _
      $region10: #{tpu_custom_call.1} parent=5 // pred_check_branch
        %265 = sbr.rel (%p262) target = $region12
      $region11: #{tpu_custom_call.1} parent=5 // pred_region
        %s266 = ssub.s32 %s24, 1
        // Predicated region
        $region13: #{tpu_custom_call.1} parent=11 // pred_check
          %p267 = pneg %p109
        $region14: #{tpu_custom_call.1} parent=11 // pred_check_branch
          %269 = sbr.rel (%p267) target = $region16
        $region15: #{tpu_custom_call.1} parent=11 // pred_region
          %s271 = ssub.s32 4096, 4096
          %272 = vsyncadd [#allocation6], %s271
          %s273 = sshll.u32 [#allocation7], 4
          %s274 = int_to_ptr.vmem [resolvable:$true] %s273
          %279 = dma.hbm_to_vmem [thread:$0]  %s2, 4096, %s274, [#allocation6], 128, 128, 8
        $region16: #{tpu_custom_call.1} parent=11 // pred_fallthru
          _
        // Predicated region
        $region17: #{tpu_custom_call.1} parent=11 // pred_check
          %p280 = pneg %p130
        $region18: #{tpu_custom_call.1} parent=11 // pred_check_branch
          %282 = sbr.rel (%p280) target = $region20
        $region19: #{tpu_custom_call.1} parent=11 // pred_region
          _
        $region20: #{tpu_custom_call.1} parent=11 // pred_fallthru
          _
        // Predicated region
        $region21: #{tpu_custom_call.1} parent=11 // pred_check
          %p283 = pneg %p151
        $region22: #{tpu_custom_call.1} parent=11 // pred_check_branch
          %285 = sbr.rel (%p283) target = $region24
        $region23: #{tpu_custom_call.1} parent=11 // pred_region
          %s287 = ssub.s32 4096, 4096
          %288 = vsyncadd [#allocation9], %s287
          %s289 = sshll.u32 [#allocation8], 4
          %s290 = int_to_ptr.vmem [resolvable:$true] %s289
          %295 = dma.hbm_to_vmem [thread:$0]  %s4, 4096, %s290, [#allocation9], 128, 128, 8
        $region24: #{tpu_custom_call.1} parent=11 // pred_fallthru
          _
        // Predicated region
        $region25: #{tpu_custom_call.1} parent=11 // pred_check
          %p296 = pneg %p172
        $region26: #{tpu_custom_call.1} parent=11 // pred_check_branch
          %298 = sbr.rel (%p296) target = $region28
        $region27: #{tpu_custom_call.1} parent=11 // pred_region
          _
        $region28: #{tpu_custom_call.1} parent=11 // pred_fallthru
          _
      $region12: #{tpu_custom_call.1} parent=5 // pred_fallthru
        _
      %p299 = scmp.lt.s32.totalorder %s24, 4
      // Predicated region
      $region29: #{tpu_custom_call.1} parent=5 // pred_check
        %p300 = pneg %p299
      $region30: #{tpu_custom_call.1} parent=5 // pred_check_branch
        %302 = sbr.rel (%p300) target = $region32
      $region31: #{tpu_custom_call.1} parent=5 // pred_region
        // Predicated region
        $region33: #{tpu_custom_call.1} parent=31 // pred_check
          %p303 = pneg %p56
        $region34: #{tpu_custom_call.1} parent=31 // pred_check_branch
          %305 = sbr.rel (%p303) target = $region36
        $region35: #{tpu_custom_call.1} parent=31 // pred_region
          %s306 = sand.u32 %s24, 1
          %s307 = scalar_lea.sflag [#allocation3], %s306
          %s308 = sand.u32 %s46, 1
          %s309 = smul.addr %s308, 16
          %s310 = scalar_lea.vmem [#allocation2], %s309
          %s312 = ssub.s32 256, 256
          %313 = vsyncadd %s307, %s312
          %s314 = smul.addr %s32, 2
          %s315 = smul.addr %s314, 128
          %s316 = scalar_lea.hbm %s0, %s315
          %s318 = sshll.u32 %s310, 4
          %s319 = int_to_ptr.vmem [resolvable:$true] %s318
          %321 = dma.hbm_to_vmem [thread:$0]  %s316, 256, %s319, %s307
        $region36: #{tpu_custom_call.1} parent=31 // pred_fallthru
          _
        // Predicated region
        $region37: #{tpu_custom_call.1} parent=31 // pred_check
          %p322 = pneg %p82
        $region38: #{tpu_custom_call.1} parent=31 // pred_check_branch
          %324 = sbr.rel (%p322) target = $region40
        $region39: #{tpu_custom_call.1} parent=31 // pred_region
          %s325 = sand.u32 %s24, 1
          %s326 = scalar_lea.sflag [#allocation6], %s325
          %s327 = sand.u32 %s72, 1
          %s328 = smul.addr %s327, 256
          %s329 = scalar_lea.vmem [#allocation5], %s328
          %s330 = smul.u32 16, %s31
          %s332 = ssub.s32 4096, 4096
          %333 = vsyncadd %s326, %s332
          %s334 = smul.addr %s330, 2
          %s335 = smul.addr %s334, 128
          %s336 = scalar_lea.hbm %s1, %s335
          %s337 = sshll.u32 %s329, 4
          %s338 = int_to_ptr.vmem [resolvable:$true] %s337
          %343 = dma.hbm_to_vmem [thread:$0]  %s336, 4096, %s338, %s326, 256, 256, 16
        $region40: #{tpu_custom_call.1} parent=31 // pred_fallthru
          _
        // Predicated region
        $region41: #{tpu_custom_call.1} parent=31 // pred_check
          %p344 = pneg %p192
        $region42: #{tpu_custom_call.1} parent=31 // pred_check_branch
          %346 = sbr.rel (%p344) target = $region44
        $region43: #{tpu_custom_call.1} parent=31 // pred_region
          %s347 = sand.u32 %s24, 1
          %s348 = scalar_lea.sflag [#allocation3], %s347
          %s349 = sand.u32 %s182, 1
          %s350 = smul.addr %s349, 128
          %s351 = scalar_lea.vmem [#allocation10], %s350
          %s352 = smul.u32 16, %s31
          %s354 = ssub.s32 2048, 2048
          %355 = vsyncadd %s348, %s354
          %s356 = smul.addr %s352, 128
          %s357 = scalar_lea.hbm %s6, %s356
          %s358 = sshll.u32 %s351, 4
          %s359 = int_to_ptr.vmem [resolvable:$true] %s358
          %364 = dma.hbm_to_vmem [thread:$0]  %s357, 2048, %s359, %s348, 128, 128, 8
        $region44: #{tpu_custom_call.1} parent=31 // pred_fallthru
          _
        // Predicated region
        $region45: #{tpu_custom_call.1} parent=31 // pred_check
          %p365 = pneg %p218
        $region46: #{tpu_custom_call.1} parent=31 // pred_check_branch
          %367 = sbr.rel (%p365) target = $region48
        $region47: #{tpu_custom_call.1} parent=31 // pred_region
          %p368 = scmp.lt.s32.totalorder %s31, 1
          %s369 = scalar_select %p368, %s31, 1
          %s370 = scalar_lea.vmem %s7, %s369
        $region48: #{tpu_custom_call.1} parent=31 // pred_fallthru
          _
      $region32: #{tpu_custom_call.1} parent=5 // pred_fallthru
        _
      %p371 = scmp.le.s32.totalorder 1, %s24
      %p372 = scmp.lt.s32.totalorder %s24, 5
      %p373 = pnand %p371, %p372
      %p374 = pneg %p373
      // Predicated region
      $region49: #{tpu_custom_call.1} parent=5 // pred_check
        _
      $region50: #{tpu_custom_call.1} parent=5 // pred_check_branch
        %376 = sbr.rel (%p373) target = $region52
      $region51: #{tpu_custom_call.1} parent=5 // pred_region
        %s377 = ssub.s32 %s24, 1
        %s378 = sand.u32 %s29, 1
        %s379 = scalar_lea.sflag [#allocation3], %s378
        %s380 = sand.u32 %s49, 1
        %s381 = smul.addr %s380, 16
        %s382 = scalar_lea.vmem [#allocation2], %s381
        // Predicated region
        $region53: #{tpu_custom_call.1} parent=51 // pred_check
          %p383 = pneg %p62
        $region54: #{tpu_custom_call.1} parent=51 // pred_check_branch
          %385 = sbr.rel (%p383) target = $region56
        $region55: #{tpu_custom_call.1} parent=51 // pred_region
          %386 = dma.done %s379, 256
        $region56: #{tpu_custom_call.1} parent=51 // pred_fallthru
          _
        %s387 = sand.u32 %s29, 1
        %s388 = scalar_lea.sflag [#allocation6], %s387
        %s389 = sand.u32 %s75, 1
        %s390 = smul.addr %s389, 256
        %s391 = scalar_lea.vmem [#allocation5], %s390
        // Predicated region
        $region57: #{tpu_custom_call.1} parent=51 // pred_check
          %p392 = pneg %p88
        $region58: #{tpu_custom_call.1} parent=51 // pred_check_branch
          %394 = sbr.rel (%p392) target = $region60
        $region59: #{tpu_custom_call.1} parent=51 // pred_region
          %395 = dma.done %s388, 4096
        $region60: #{tpu_custom_call.1} parent=51 // pred_fallthru
          _
        // Predicated region
        $region61: #{tpu_custom_call.1} parent=51 // pred_check
          %p396 = pneg %p109
        $region62: #{tpu_custom_call.1} parent=51 // pred_check_branch
          %398 = sbr.rel (%p396) target = $region64
        $region63: #{tpu_custom_call.1} parent=51 // pred_region
          %399 = dma.done [#allocation6], 4096
        $region64: #{tpu_custom_call.1} parent=51 // pred_fallthru
          _
        // Predicated region
        $region65: #{tpu_custom_call.1} parent=51 // pred_check
          %p400 = pneg %p151
        $region66: #{tpu_custom_call.1} parent=51 // pred_check_branch
          %402 = sbr.rel (%p400) target = $region68
        $region67: #{tpu_custom_call.1} parent=51 // pred_region
          %403 = dma.done [#allocation9], 4096
        $region68: #{tpu_custom_call.1} parent=51 // pred_fallthru
          _
        %s404 = sand.u32 %s29, 1
        %s405 = scalar_lea.sflag [#allocation3], %s404
        %s406 = sand.u32 %s185, 1
        %s407 = smul.addr %s406, 128
        %s408 = scalar_lea.vmem [#allocation10], %s407
        // Predicated region
        $region69: #{tpu_custom_call.1} parent=51 // pred_check
          %p409 = pneg %p198
        $region70: #{tpu_custom_call.1} parent=51 // pred_check_branch
          %411 = sbr.rel (%p409) target = $region72
        $region71: #{tpu_custom_call.1} parent=51 // pred_region
          %412 = dma.done %s405, 2048
        $region72: #{tpu_custom_call.1} parent=51 // pred_fallthru
          _
        %s413 = sand.u32 %s29, 1
        %s414 = scalar_lea.sflag [#allocation3], %s413
        %s415 = sand.u32 %s49, 1
        %s416 = smul.addr %s415, 16
        %s417 = scalar_lea.vmem [#allocation2], %s416
        %p418 = pneg %p62
        %p419 = pneg %p59
        %s420 = sand.u32 %s29, 1
        %s421 = scalar_lea.sflag [#allocation6], %s420
        %s422 = sand.u32 %s75, 1
        %s423 = smul.addr %s422, 256
        %s424 = scalar_lea.vmem [#allocation5], %s423
        %p425 = pneg %p88
        %p426 = pneg %p85
        %p427 = pneg %p109
        %p428 = pneg %p106
        %p429 = pneg %p130
        %p430 = pneg %p127
        %p431 = pneg %p151
        %p432 = pneg %p148
        %p433 = pneg %p172
        %p434 = pneg %p169
        %s435 = sand.u32 %s29, 1
        %s436 = scalar_lea.sflag [#allocation3], %s435
        %s437 = sand.u32 %s185, 1
        %s438 = smul.addr %s437, 128
        %s439 = scalar_lea.vmem [#allocation10], %s438
        %p440 = pneg %p198
        %p441 = pneg %p195
        %p442 = scmp.lt.s32.totalorder %s33, 1
        %s443 = scalar_select %p442, %s33, 1
        %s444 = scalar_lea.vmem %s7, %s443
        %p445 = pneg %p224
        %p446 = pneg %p221
        %p447 = pneg %p252
        %p448 = pneg %p249
        %s449 = sand.u32 %s239, 1
        %s450 = scalar_lea.sflag [#allocation4], %s449
        %s451 = sand.u32 %s239, 1
        %s452 = smul.addr %s451, 8
        %s453 = scalar_lea.vmem [#allocation11], %s452
        %s454 = smul.u32 16, %s33
        %s455 = smul.u32 16, %s33
        %p456 = scmp.lt.s32.totalorder %s33, 1
        %s457 = scalar_select %p456, %s33, 1
        %s458 = scalar_lea.vmem %s7, %s457
        %v459 = vld [vmem:[%s382] sm:$0xff]
        %v460 = vld [vmem:[%s382 + $0x8] sm:$0xff]
        %v461 = vld [vmem:[%s391] sm:$0xff]
        %v462 = vld [vmem:[%s391 + $0x8] sm:$0xff]
        %v463 = vld [vmem:[%s391 + $0x10] sm:$0xff]
        %v464 = vld [vmem:[%s391 + $0x18] sm:$0xff]
        %v465 = vld [vmem:[%s391 + $0x20] sm:$0xff]
        %v466 = vld [vmem:[%s391 + $0x28] sm:$0xff]
        %v467 = vld [vmem:[%s391 + $0x30] sm:$0xff]
        %v468 = vld [vmem:[%s391 + $0x38] sm:$0xff]
        %v469 = vld [vmem:[%s391 + $0x40] sm:$0xff]
        %v470 = vld [vmem:[%s391 + $0x48] sm:$0xff]
        %v471 = vld [vmem:[%s391 + $0x50] sm:$0xff]
        %v472 = vld [vmem:[%s391 + $0x58] sm:$0xff]
        %v473 = vld [vmem:[%s391 + $0x60] sm:$0xff]
        %v474 = vld [vmem:[%s391 + $0x68] sm:$0xff]
        %v475 = vld [vmem:[%s391 + $0x70] sm:$0xff]
        %v476 = vld [vmem:[%s391 + $0x78] sm:$0xff]
        %v477 = vld [vmem:[%s391 + $0x80] sm:$0xff]
        %v478 = vld [vmem:[%s391 + $0x88] sm:$0xff]
        %v479 = vld [vmem:[%s391 + $0x90] sm:$0xff]
        %v480 = vld [vmem:[%s391 + $0x98] sm:$0xff]
        %v481 = vld [vmem:[%s391 + $0xa0] sm:$0xff]
        %v482 = vld [vmem:[%s391 + $0xa8] sm:$0xff]
        %v483 = vld [vmem:[%s391 + $0xb0] sm:$0xff]
        %v484 = vld [vmem:[%s391 + $0xb8] sm:$0xff]
        %v485 = vld [vmem:[%s391 + $0xc0] sm:$0xff]
        %v486 = vld [vmem:[%s391 + $0xc8] sm:$0xff]
        %v487 = vld [vmem:[%s391 + $0xd0] sm:$0xff]
        %v488 = vld [vmem:[%s391 + $0xd8] sm:$0xff]
        %v489 = vld [vmem:[%s391 + $0xe0] sm:$0xff]
        %v490 = vld [vmem:[%s391 + $0xe8] sm:$0xff]
        %v491 = vld [vmem:[%s391 + $0xf0] sm:$0xff]
        %v492 = vld [vmem:[%s391 + $0xf8] sm:$0xff]
        %v495 = vcombine.low %v459, %v460
        %v496 = vcombine.high %v459, %v460
        %v498 = vunpack.c.l.s4 1966171168
        %v499 = vunpack.c.0.s8 %v498
        %v500 = vlaneseq
        %v501 = vshrl.u32 %v500, 7
        %v502 = vsub.s32 %v499, %v501
        %v503 = vrot.slane %v495, %v502
        %v505 = vunpack.c.l.s4 1966171168
        %v506 = vunpack.c.0.s8 %v505
        %v507 = vlaneseq
        %v508 = vshrl.u32 %v507, 7
        %v509 = vsub.s32 %v506, %v508
        %v510 = vrot.slane %v496, %v509
        %v511 = vcombine.high %v503, %v503
        %v512 = vcombine.high %v510, %v510
        %v514 = vunpack.c.l.s4 1966171168
        %v515 = vunpack.c.0.s8 %v514
        %v516 = vlaneseq
        %v517 = vshrl.u32 %v516, 7
        %v518 = vsub.s32 %v515, %v517
        %v519 = vrot.slane %v503, %v518
        %v521 = vunpack.c.l.s4 1966171168
        %v522 = vunpack.c.0.s8 %v521
        %v523 = vlaneseq
        %v524 = vshrl.u32 %v523, 7
        %v525 = vsub.s32 %v522, %v524
        %v526 = vrot.slane %v510, %v525
        %v528 = vunpack.c.l.s4 1966171168
        %v529 = vunpack.c.0.s8 %v528
        %v530 = vlaneseq
        %v531 = vshrl.u32 %v530, 7
        %v532 = vsub.s32 %v529, %v531
        %v533 = vrot.slane %v511, %v532
        %v535 = vunpack.c.l.s4 1966171168
        %v536 = vunpack.c.0.s8 %v535
        %v537 = vlaneseq
        %v538 = vshrl.u32 %v537, 7
        %v539 = vsub.s32 %v536, %v538
        %v540 = vrot.slane %v512, %v539
        %v541 = vcombine.high %v519, %v519
        %v542 = vcombine.high %v526, %v526
        %v543 = vcombine.high %v533, %v533
        %v544 = vcombine.high %v540, %v540
        %v545 = vlaneseq
        %v546 = vshrl.u32 %v545, 7
        %v547 = vsub.s32 0, %v546
        %v548 = vrot.slane %v519, %v547
        %v549 = vlaneseq
        %v550 = vshrl.u32 %v549, 7
        %v551 = vsub.s32 1, %v550
        %v552 = vrot.slane %v519, %v551
        %v553 = vlaneseq
        %v554 = vshrl.u32 %v553, 7
        %v555 = vsub.s32 0, %v554
        %v556 = vrot.slane %v533, %v555
        %v557 = vlaneseq
        %v558 = vshrl.u32 %v557, 7
        %v559 = vsub.s32 1, %v558
        %v560 = vrot.slane %v533, %v559
        %v561 = vlaneseq
        %v562 = vshrl.u32 %v561, 7
        %v563 = vsub.s32 0, %v562
        %v564 = vrot.slane %v541, %v563
        %v565 = vlaneseq
        %v566 = vshrl.u32 %v565, 7
        %v567 = vsub.s32 1, %v566
        %v568 = vrot.slane %v541, %v567
        %v569 = vlaneseq
        %v570 = vshrl.u32 %v569, 7
        %v571 = vsub.s32 0, %v570
        %v572 = vrot.slane %v543, %v571
        %v573 = vlaneseq
        %v574 = vshrl.u32 %v573, 7
        %v575 = vsub.s32 1, %v574
        %v576 = vrot.slane %v543, %v575
        %v577 = vlaneseq
        %v578 = vshrl.u32 %v577, 7
        %v579 = vsub.s32 0, %v578
        %v580 = vrot.slane %v526, %v579
        %v581 = vlaneseq
        %v582 = vshrl.u32 %v581, 7
        %v583 = vsub.s32 1, %v582
        %v584 = vrot.slane %v526, %v583
        %v585 = vlaneseq
        %v586 = vshrl.u32 %v585, 7
        %v587 = vsub.s32 0, %v586
        %v588 = vrot.slane %v540, %v587
        %v589 = vlaneseq
        %v590 = vshrl.u32 %v589, 7
        %v591 = vsub.s32 1, %v590
        %v592 = vrot.slane %v540, %v591
        %v593 = vlaneseq
        %v594 = vshrl.u32 %v593, 7
        %v595 = vsub.s32 0, %v594
        %v596 = vrot.slane %v542, %v595
        %v597 = vlaneseq
        %v598 = vshrl.u32 %v597, 7
        %v599 = vsub.s32 1, %v598
        %v600 = vrot.slane %v542, %v599
        %v601 = vlaneseq
        %v602 = vshrl.u32 %v601, 7
        %v603 = vsub.s32 0, %v602
        %v604 = vrot.slane %v544, %v603
        %v605 = vlaneseq
        %v606 = vshrl.u32 %v605, 7
        %v607 = vsub.s32 1, %v606
        %v608 = vrot.slane %v544, %v607
        %v625 = vmul.f32 %v548, %v461
        %v626 = vmul.f32 %v552, %v462
        %v627 = vmul.f32 %v548, %v463
        %v628 = vmul.f32 %v552, %v464
        %v629 = vmul.f32 %v548, %v465
        %v630 = vmul.f32 %v552, %v466
        %v631 = vmul.f32 %v548, %v467
        %v632 = vmul.f32 %v552, %v468
        %v633 = vmul.f32 %v548, %v469
        %v634 = vmul.f32 %v552, %v470
        %v635 = vmul.f32 %v548, %v471
        %v636 = vmul.f32 %v552, %v472
        %v637 = vmul.f32 %v548, %v473
        %v638 = vmul.f32 %v552, %v474
        %v639 = vmul.f32 %v548, %v475
        %v640 = vmul.f32 %v552, %v476
        %v641 = vmul.f32 %v548, %v477
        %v642 = vmul.f32 %v552, %v478
        %v643 = vmul.f32 %v548, %v479
        %v644 = vmul.f32 %v552, %v480
        %v645 = vmul.f32 %v548, %v481
        %v646 = vmul.f32 %v552, %v482
        %v647 = vmul.f32 %v548, %v483
        %v648 = vmul.f32 %v552, %v484
        %v649 = vmul.f32 %v548, %v485
        %v650 = vmul.f32 %v552, %v486
        %v651 = vmul.f32 %v548, %v487
        %v652 = vmul.f32 %v552, %v488
        %v653 = vmul.f32 %v548, %v489
        %v654 = vmul.f32 %v552, %v490
        %v655 = vmul.f32 %v548, %v491
        %v656 = vmul.f32 %v552, %v492
        %v657 = vmul.f32 %v556, %v461
        %v658 = vmul.f32 %v560, %v462
        %v659 = vmul.f32 %v556, %v463
        %v660 = vmul.f32 %v560, %v464
        %v661 = vmul.f32 %v556, %v465
        %v662 = vmul.f32 %v560, %v466
        %v663 = vmul.f32 %v556, %v467
        %v664 = vmul.f32 %v560, %v468
        %v665 = vmul.f32 %v556, %v469
        %v666 = vmul.f32 %v560, %v470
        %v667 = vmul.f32 %v556, %v471
        %v668 = vmul.f32 %v560, %v472
        %v669 = vmul.f32 %v556, %v473
        %v670 = vmul.f32 %v560, %v474
        %v671 = vmul.f32 %v556, %v475
        %v672 = vmul.f32 %v560, %v476
        %v673 = vmul.f32 %v556, %v477
        %v674 = vmul.f32 %v560, %v478
        %v675 = vmul.f32 %v556, %v479
        %v676 = vmul.f32 %v560, %v480
        %v677 = vmul.f32 %v556, %v481
        %v678 = vmul.f32 %v560, %v482
        %v679 = vmul.f32 %v556, %v483
        %v680 = vmul.f32 %v560, %v484
        %v681 = vmul.f32 %v556, %v485
        %v682 = vmul.f32 %v560, %v486
        %v683 = vmul.f32 %v556, %v487
        %v684 = vmul.f32 %v560, %v488
        %v685 = vmul.f32 %v556, %v489
        %v686 = vmul.f32 %v560, %v490
        %v687 = vmul.f32 %v556, %v491
        %v688 = vmul.f32 %v560, %v492
        %v689 = vmul.f32 %v564, %v461
        %v690 = vmul.f32 %v568, %v462
        %v691 = vmul.f32 %v564, %v463
        %v692 = vmul.f32 %v568, %v464
        %v693 = vmul.f32 %v564, %v465
        %v694 = vmul.f32 %v568, %v466
        %v695 = vmul.f32 %v564, %v467
        %v696 = vmul.f32 %v568, %v468
        %v697 = vmul.f32 %v564, %v469
        %v698 = vmul.f32 %v568, %v470
        %v699 = vmul.f32 %v564, %v471
        %v700 = vmul.f32 %v568, %v472
        %v701 = vmul.f32 %v564, %v473
        %v702 = vmul.f32 %v568, %v474
        %v703 = vmul.f32 %v564, %v475
        %v704 = vmul.f32 %v568, %v476
        %v705 = vmul.f32 %v564, %v477
        %v706 = vmul.f32 %v568, %v478
        %v707 = vmul.f32 %v564, %v479
        %v708 = vmul.f32 %v568, %v480
        %v709 = vmul.f32 %v564, %v481
        %v710 = vmul.f32 %v568, %v482
        %v711 = vmul.f32 %v564, %v483
        %v712 = vmul.f32 %v568, %v484
        %v713 = vmul.f32 %v564, %v485
        %v714 = vmul.f32 %v568, %v486
        %v715 = vmul.f32 %v564, %v487
        %v716 = vmul.f32 %v568, %v488
        %v717 = vmul.f32 %v564, %v489
        %v718 = vmul.f32 %v568, %v490
        %v719 = vmul.f32 %v564, %v491
        %v720 = vmul.f32 %v568, %v492
        %v721 = vmul.f32 %v572, %v461
        %v722 = vmul.f32 %v576, %v462
        %v723 = vmul.f32 %v572, %v463
        %v724 = vmul.f32 %v576, %v464
        %v725 = vmul.f32 %v572, %v465
        %v726 = vmul.f32 %v576, %v466
        %v727 = vmul.f32 %v572, %v467
        %v728 = vmul.f32 %v576, %v468
        %v729 = vmul.f32 %v572, %v469
        %v730 = vmul.f32 %v576, %v470
        %v731 = vmul.f32 %v572, %v471
        %v732 = vmul.f32 %v576, %v472
        %v733 = vmul.f32 %v572, %v473
        %v734 = vmul.f32 %v576, %v474
        %v735 = vmul.f32 %v572, %v475
        %v736 = vmul.f32 %v576, %v476
        %v737 = vmul.f32 %v572, %v477
        %v738 = vmul.f32 %v576, %v478
        %v739 = vmul.f32 %v572, %v479
        %v740 = vmul.f32 %v576, %v480
        %v741 = vmul.f32 %v572, %v481
        %v742 = vmul.f32 %v576, %v482
        %v743 = vmul.f32 %v572, %v483
        %v744 = vmul.f32 %v576, %v484
        %v745 = vmul.f32 %v572, %v485
        %v746 = vmul.f32 %v576, %v486
        %v747 = vmul.f32 %v572, %v487
        %v748 = vmul.f32 %v576, %v488
        %v749 = vmul.f32 %v572, %v489
        %v750 = vmul.f32 %v576, %v490
        %v751 = vmul.f32 %v572, %v491
        %v752 = vmul.f32 %v576, %v492
        %v753 = vmul.f32 %v580, %v461
        %v754 = vmul.f32 %v584, %v462
        %v755 = vmul.f32 %v580, %v463
        %v756 = vmul.f32 %v584, %v464
        %v757 = vmul.f32 %v580, %v465
        %v758 = vmul.f32 %v584, %v466
        %v759 = vmul.f32 %v580, %v467
        %v760 = vmul.f32 %v584, %v468
        %v761 = vmul.f32 %v580, %v469
        %v762 = vmul.f32 %v584, %v470
        %v763 = vmul.f32 %v580, %v471
        %v764 = vmul.f32 %v584, %v472
        %v765 = vmul.f32 %v580, %v473
        %v766 = vmul.f32 %v584, %v474
        %v767 = vmul.f32 %v580, %v475
        %v768 = vmul.f32 %v584, %v476
        %v769 = vmul.f32 %v580, %v477
        %v770 = vmul.f32 %v584, %v478
        %v771 = vmul.f32 %v580, %v479
        %v772 = vmul.f32 %v584, %v480
        %v773 = vmul.f32 %v580, %v481
        %v774 = vmul.f32 %v584, %v482
        %v775 = vmul.f32 %v580, %v483
        %v776 = vmul.f32 %v584, %v484
        %v777 = vmul.f32 %v580, %v485
        %v778 = vmul.f32 %v584, %v486
        %v779 = vmul.f32 %v580, %v487
        %v780 = vmul.f32 %v584, %v488
        %v781 = vmul.f32 %v580, %v489
        %v782 = vmul.f32 %v584, %v490
        %v783 = vmul.f32 %v580, %v491
        %v784 = vmul.f32 %v584, %v492
        %v785 = vmul.f32 %v588, %v461
        %v786 = vmul.f32 %v592, %v462
        %v787 = vmul.f32 %v588, %v463
        %v788 = vmul.f32 %v592, %v464
        %v789 = vmul.f32 %v588, %v465
        %v790 = vmul.f32 %v592, %v466
        %v791 = vmul.f32 %v588, %v467
        %v792 = vmul.f32 %v592, %v468
        %v793 = vmul.f32 %v588, %v469
        %v794 = vmul.f32 %v592, %v470
        %v795 = vmul.f32 %v588, %v471
        %v796 = vmul.f32 %v592, %v472
        %v797 = vmul.f32 %v588, %v473
        %v798 = vmul.f32 %v592, %v474
        %v799 = vmul.f32 %v588, %v475
        %v800 = vmul.f32 %v592, %v476
        %v801 = vmul.f32 %v588, %v477
        %v802 = vmul.f32 %v592, %v478
        %v803 = vmul.f32 %v588, %v479
        %v804 = vmul.f32 %v592, %v480
        %v805 = vmul.f32 %v588, %v481
        %v806 = vmul.f32 %v592, %v482
        %v807 = vmul.f32 %v588, %v483
        %v808 = vmul.f32 %v592, %v484
        %v809 = vmul.f32 %v588, %v485
        %v810 = vmul.f32 %v592, %v486
        %v811 = vmul.f32 %v588, %v487
        %v812 = vmul.f32 %v592, %v488
        %v813 = vmul.f32 %v588, %v489
        %v814 = vmul.f32 %v592, %v490
        %v815 = vmul.f32 %v588, %v491
        %v816 = vmul.f32 %v592, %v492
        %v817 = vmul.f32 %v596, %v461
        %v818 = vmul.f32 %v600, %v462
        %v819 = vmul.f32 %v596, %v463
        %v820 = vmul.f32 %v600, %v464
        %v821 = vmul.f32 %v596, %v465
        %v822 = vmul.f32 %v600, %v466
        %v823 = vmul.f32 %v596, %v467
        %v824 = vmul.f32 %v600, %v468
        %v825 = vmul.f32 %v596, %v469
        %v826 = vmul.f32 %v600, %v470
        %v827 = vmul.f32 %v596, %v471
        %v828 = vmul.f32 %v600, %v472
        %v829 = vmul.f32 %v596, %v473
        %v830 = vmul.f32 %v600, %v474
        %v831 = vmul.f32 %v596, %v475
        %v832 = vmul.f32 %v600, %v476
        %v833 = vmul.f32 %v596, %v477
        %v834 = vmul.f32 %v600, %v478
        %v835 = vmul.f32 %v596, %v479
        %v836 = vmul.f32 %v600, %v480
        %v837 = vmul.f32 %v596, %v481
        %v838 = vmul.f32 %v600, %v482
        %v839 = vmul.f32 %v596, %v483
        %v840 = vmul.f32 %v600, %v484
        %v841 = vmul.f32 %v596, %v485
        %v842 = vmul.f32 %v600, %v486
        %v843 = vmul.f32 %v596, %v487
        %v844 = vmul.f32 %v600, %v488
        %v845 = vmul.f32 %v596, %v489
        %v846 = vmul.f32 %v600, %v490
        %v847 = vmul.f32 %v596, %v491
        %v848 = vmul.f32 %v600, %v492
        %v849 = vmul.f32 %v604, %v461
        %v850 = vmul.f32 %v608, %v462
        %v851 = vmul.f32 %v604, %v463
        %v852 = vmul.f32 %v608, %v464
        %v853 = vmul.f32 %v604, %v465
        %v854 = vmul.f32 %v608, %v466
        %v855 = vmul.f32 %v604, %v467
        %v856 = vmul.f32 %v608, %v468
        %v857 = vmul.f32 %v604, %v469
        %v858 = vmul.f32 %v608, %v470
        %v859 = vmul.f32 %v604, %v471
        %v860 = vmul.f32 %v608, %v472
        %v861 = vmul.f32 %v604, %v473
        %v862 = vmul.f32 %v608, %v474
        %v863 = vmul.f32 %v604, %v475
        %v864 = vmul.f32 %v608, %v476
        %v865 = vmul.f32 %v604, %v477
        %v866 = vmul.f32 %v608, %v478
        %v867 = vmul.f32 %v604, %v479
        %v868 = vmul.f32 %v608, %v480
        %v869 = vmul.f32 %v604, %v481
        %v870 = vmul.f32 %v608, %v482
        %v871 = vmul.f32 %v604, %v483
        %v872 = vmul.f32 %v608, %v484
        %v873 = vmul.f32 %v604, %v485
        %v874 = vmul.f32 %v608, %v486
        %v875 = vmul.f32 %v604, %v487
        %v876 = vmul.f32 %v608, %v488
        %v877 = vmul.f32 %v604, %v489
        %v878 = vmul.f32 %v608, %v490
        %v879 = vmul.f32 %v604, %v491
        %v880 = vmul.f32 %v608, %v492
        %v881 = vld [vmem:[#allocation7] sm:$0xff]
        %v882 = vld [vmem:[#allocation7 + $0x8] sm:$0xff]
        %v883 = vld [vmem:[#allocation7 + $0x10] sm:$0xff]
        %v884 = vld [vmem:[#allocation7 + $0x18] sm:$0xff]
        %v885 = vld [vmem:[#allocation7 + $0x20] sm:$0xff]
        %v886 = vld [vmem:[#allocation7 + $0x28] sm:$0xff]
        %v887 = vld [vmem:[#allocation7 + $0x30] sm:$0xff]
        %v888 = vld [vmem:[#allocation7 + $0x38] sm:$0xff]
        %v889 = vld [vmem:[#allocation7 + $0x40] sm:$0xff]
        %v890 = vld [vmem:[#allocation7 + $0x48] sm:$0xff]
        %v891 = vld [vmem:[#allocation7 + $0x50] sm:$0xff]
        %v892 = vld [vmem:[#allocation7 + $0x58] sm:$0xff]
        %v893 = vld [vmem:[#allocation7 + $0x60] sm:$0xff]
        %v894 = vld [vmem:[#allocation7 + $0x68] sm:$0xff]
        %v895 = vld [vmem:[#allocation7 + $0x70] sm:$0xff]
        %v896 = vld [vmem:[#allocation7 + $0x78] sm:$0xff]
        %v897 = vld [vmem:[#allocation7 + $0x80] sm:$0xff]
        %v898 = vld [vmem:[#allocation7 + $0x88] sm:$0xff]
        %v899 = vld [vmem:[#allocation7 + $0x90] sm:$0xff]
        %v900 = vld [vmem:[#allocation7 + $0x98] sm:$0xff]
        %v901 = vld [vmem:[#allocation7 + $0xa0] sm:$0xff]
        %v902 = vld [vmem:[#allocation7 + $0xa8] sm:$0xff]
        %v903 = vld [vmem:[#allocation7 + $0xb0] sm:$0xff]
        %v904 = vld [vmem:[#allocation7 + $0xb8] sm:$0xff]
        %v905 = vld [vmem:[#allocation7 + $0xc0] sm:$0xff]
        %v906 = vld [vmem:[#allocation7 + $0xc8] sm:$0xff]
        %v907 = vld [vmem:[#allocation7 + $0xd0] sm:$0xff]
        %v908 = vld [vmem:[#allocation7 + $0xd8] sm:$0xff]
        %v909 = vld [vmem:[#allocation7 + $0xe0] sm:$0xff]
        %v910 = vld [vmem:[#allocation7 + $0xe8] sm:$0xff]
        %v911 = vld [vmem:[#allocation7 + $0xf0] sm:$0xff]
        %v912 = vld [vmem:[#allocation7 + $0xf8] sm:$0xff]
        %v913 = vld [vmem:[%s3] sm:$0x1]
        %v915 = vlaneseq
        %v916 = vshrl.u32 %v915, 7
        %v917 = vsub.s32 0, %v916
        %v918 = vrot.slane %v913, %v917
        %920 = vmatprep.subr.mxu0 0.0
        %921 = vmatpush1.msra.mxu0 %v881
        %922 = vmatprep.subr.mxu0 0.0
        %923 = vmatpush1.msra.mxu0 %v882
        %924 = vmatprep.subr.mxu0 0.0
        %925 = vmatpush1.msra.mxu0 %v883
        %926 = vmatprep.subr.mxu0 0.0
        %927 = vmatpush1.msra.mxu0 %v884
        %928 = vmatprep.subr.mxu0 0.0
        %929 = vmatpush1.msra.mxu0 %v885
        %930 = vmatprep.subr.mxu0 0.0
        %931 = vmatpush1.msra.mxu0 %v886
        %932 = vmatprep.subr.mxu0 0.0
        %933 = vmatpush1.msra.mxu0 %v887
        %934 = vmatprep.subr.mxu0 0.0
        %935 = vmatpush1.msra.mxu0 %v888
        %936 = vmatprep.subr.mxu0 0.0
        %937 = vmatpush1.msra.mxu0 %v889
        %938 = vmatprep.subr.mxu0 0.0
        %939 = vmatpush1.msra.mxu0 %v890
        %940 = vmatprep.subr.mxu0 0.0
        %941 = vmatpush1.msra.mxu0 %v891
        %942 = vmatprep.subr.mxu0 0.0
        %943 = vmatpush1.msra.mxu0 %v892
        %944 = vmatprep.subr.mxu0 0.0
        %945 = vmatpush1.msra.mxu0 %v893
        %946 = vmatprep.subr.mxu0 0.0
        %947 = vmatpush1.msra.mxu0 %v894
        %948 = vmatprep.subr.mxu0 0.0
        %949 = vmatpush1.msra.mxu0 %v895
        %950 = vmatprep.subr.mxu0 0.0
        %951 = vmatpush1.msra.mxu0 %v896
        %952 = vmatprep.subr.mxu0 0.0
        %953 = vmatpush1.msra.mxu0 %v897
        %954 = vmatprep.subr.mxu0 0.0
        %955 = vmatpush1.msra.mxu0 %v898
        %956 = vmatprep.subr.mxu0 0.0
        %957 = vmatpush1.msra.mxu0 %v899
        %958 = vmatprep.subr.mxu0 0.0
        %959 = vmatpush1.msra.mxu0 %v900
        %960 = vmatprep.subr.mxu0 0.0
        %961 = vmatpush1.msra.mxu0 %v901
        %962 = vmatprep.subr.mxu0 0.0
        %963 = vmatpush1.msra.mxu0 %v902
        %964 = vmatprep.subr.mxu0 0.0
        %965 = vmatpush1.msra.mxu0 %v903
        %966 = vmatprep.subr.mxu0 0.0
        %967 = vmatpush1.msra.mxu0 %v904
        %968 = vmatprep.subr.mxu0 0.0
        %969 = vmatpush1.msra.mxu0 %v905
        %970 = vmatprep.subr.mxu0 0.0
        %971 = vmatpush1.msra.mxu0 %v906
        %972 = vmatprep.subr.mxu0 0.0
        %973 = vmatpush1.msra.mxu0 %v907
        %974 = vmatprep.subr.mxu0 0.0
        %975 = vmatpush1.msra.mxu0 %v908
        %976 = vmatprep.subr.mxu0 0.0
        %977 = vmatpush1.msra.mxu0 %v909
        %978 = vmatprep.subr.mxu0 0.0
        %979 = vmatpush1.msra.mxu0 %v910
        %980 = vmatprep.subr.mxu0 0.0
        %981 = vmatpush1.msra.mxu0 %v911
        %982 = vmatprep.subr.mxu0 0.0
        %983 = vmatpush1.msra.mxu0 %v912
        %984 = vmatprep.mubr.f32.mxu0 %v626
        %985 = vmatmul.mubr.f32.gmra.mrb[0].mxu0 %v625
        %v986 = vpop.f32.mrb[0].mxu0
        %v987 = vadd.f32 %v918, %v986
        %v988 = vpop.f32.mrb[0].mxu0
        %989 = vmatprep.mubr.f32.mxu0 %v628
        %990 = vmatmul.mubr.f32.gmra.mrb[0].mxu0 %v627
        %v991 = vpop.f32.mrb[0].mxu0
        %v992 = vadd.f32 %v918, %v991
        %v993 = vpop.f32.mrb[0].mxu0
        %994 = vmatprep.mubr.f32.mxu0 %v630
        %995 = vmatmul.mubr.f32.gmra.mrb[0].mxu0 %v629
        %v996 = vpop.f32.mrb[0].mxu0
        %v997 = vadd.f32 %v918, %v996
        %v998 = vpop.f32.mrb[0].mxu0
        %999 = vmatprep.mubr.f32.mxu0 %v632
        %1000 = vmatmul.mubr.f32.gmra.mrb[0].mxu0 %v631
        %v1001 = vpop.f32.mrb[0].mxu0
        %v1002 = vadd.f32 %v918, %v1001
        %v1003 = vpop.f32.mrb[0].mxu0
        %1004 = vmatprep.mubr.f32.mxu0 %v634
        %1005 = vmatmul.mubr.f32.gmra.mrb[0].mxu0 %v633
        %v1006 = vpop.f32.mrb[0].mxu0
        %v1007 = vadd.f32 %v918, %v1006
        %v1008 = vpop.f32.mrb[0].mxu0
        %1009 = vmatprep.mubr.f32.mxu0 %v636
        %1010 = vmatmul.mubr.f32.gmra.mrb[0].mxu0 %v635
        %v1011 = vpop.f32.mrb[0].mxu0
        %v1012 = vadd.f32 %v918, %v1011
        %v1013 = vpop.f32.mrb[0].mxu0
        %1014 = vmatprep.mubr.f32.mxu0 %v638
        %1015 = vmatmul.mubr.f32.gmra.mrb[0].mxu0 %v637
        %v1016 = vpop.f32.mrb[0].mxu0
        %v1017 = vadd.f32 %v918, %v1016
        %v1018 = vpop.f32.mrb[0].mxu0
        %1019 = vmatprep.mubr.f32.mxu0 %v640
        %1020 = vmatmul.mubr.f32.gmra.mrb[0].mxu0 %v639
        %v1021 = vpop.f32.mrb[0].mxu0
        %v1022 = vadd.f32 %v918, %v1021
        %v1023 = vpop.f32.mrb[0].mxu0
        %1024 = vmatprep.mubr.f32.mxu0 %v642
        %1025 = vmatmul.mubr.f32.gmra.mrb[0].mxu0 %v641
        %v1026 = vpop.f32.mrb[0].mxu0
        %v1027 = vadd.f32 %v918, %v1026
        %v1028 = vpop.f32.mrb[0].mxu0
        %1029 = vmatprep.mubr.f32.mxu0 %v644
        %1030 = vmatmul.mubr.f32.gmra.mrb[0].mxu0 %v643
        %v1031 = vpop.f32.mrb[0].mxu0
        %v1032 = vadd.f32 %v918, %v1031
        %v1033 = vpop.f32.mrb[0].mxu0
        %1034 = vmatprep.mubr.f32.mxu0 %v646
        %1035 = vmatmul.mubr.f32.gmra.mrb[0].mxu0 %v645
        %v1036 = vpop.f32.mrb[0].mxu0
        %v1037 = vadd.f32 %v918, %v1036
        %v1038 = vpop.f32.mrb[0].mxu0
        %1039 = vmatprep.mubr.f32.mxu0 %v648
        %1040 = vmatmul.mubr.f32.gmra.mrb[0].mxu0 %v647
        %v1041 = vpop.f32.mrb[0].mxu0
        %v1042 = vadd.f32 %v918, %v1041
        %v1043 = vpop.f32.mrb[0].mxu0
        %1044 = vmatprep.mubr.f32.mxu0 %v650
        %1045 = vmatmul.mubr.f32.gmra.mrb[0].mxu0 %v649
        %v1046 = vpop.f32.mrb[0].mxu0
        %v1047 = vadd.f32 %v918, %v1046
        %v1048 = vpop.f32.mrb[0].mxu0
        %1049 = vmatprep.mubr.f32.mxu0 %v652
        %1050 = vmatmul.mubr.f32.gmra.mrb[0].mxu0 %v651
        %v1051 = vpop.f32.mrb[0].mxu0
        %v1052 = vadd.f32 %v918, %v1051
        %v1053 = vpop.f32.mrb[0].mxu0
        %1054 = vmatprep.mubr.f32.mxu0 %v654
        %1055 = vmatmul.mubr.f32.gmra.mrb[0].mxu0 %v653
        %v1056 = vpop.f32.mrb[0].mxu0
        %v1057 = vadd.f32 %v918, %v1056
        %v1058 = vpop.f32.mrb[0].mxu0
        %1059 = vmatprep.mubr.f32.mxu0 %v656
        %1060 = vmatmul.mubr.f32.gmra.mrb[0].mxu0 %v655
        %v1061 = vpop.f32.mrb[0].mxu0
        %v1062 = vadd.f32 %v918, %v1061
        %v1063 = vpop.f32.mrb[0].mxu0
        %1064 = vmatprep.mubr.f32.mxu0 %v658
        %1065 = vmatmul.mubr.f32.gmra.mrb[0].mxu0 %v657
        %v1066 = vpop.f32.mrb[0].mxu0
        %v1067 = vadd.f32 %v918, %v1066
        %v1068 = vpop.f32.mrb[0].mxu0
        %1069 = vmatprep.mubr.f32.mxu0 %v660
        %1070 = vmatmul.mubr.f32.gmra.mrb[0].mxu0 %v659
        %v1071 = vpop.f32.mrb[0].mxu0
        %v1072 = vadd.f32 %v918, %v1071
        %v1073 = vpop.f32.mrb[0].mxu0
        %1074 = vmatprep.mubr.f32.mxu0 %v662
        %1075 = vmatmul.mubr.f32.gmra.mrb[0].mxu0 %v661
        %v1076 = vpop.f32.mrb[0].mxu0
        %v1077 = vadd.f32 %v918, %v1076
        %v1078 = vpop.f32.mrb[0].mxu0
        %1079 = vmatprep.mubr.f32.mxu0 %v664
        %1080 = vmatmul.mubr.f32.gmra.mrb[0].mxu0 %v663
        %v1081 = vpop.f32.mrb[0].mxu0
        %v1082 = vadd.f32 %v918, %v1081
        %v1083 = vpop.f32.mrb[0].mxu0
        %1084 = vmatprep.mubr.f32.mxu0 %v666
        %1085 = vmatmul.mubr.f32.gmra.mrb[0].mxu0 %v665
        %v1086 = vpop.f32.mrb[0].mxu0
        %v1087 = vadd.f32 %v918, %v1086
        %v1088 = vpop.f32.mrb[0].mxu0
        %1089 = vmatprep.mubr.f32.mxu0 %v668
        %1090 = vmatmul.mubr.f32.gmra.mrb[0].mxu0 %v667
        %v1091 = vpop.f32.mrb[0].mxu0
        %v1092 = vadd.f32 %v918, %v1091
        %v1093 = vpop.f32.mrb[0].mxu0
        %1094 = vmatprep.mubr.f32.mxu0 %v670
        %1095 = vmatmul.mubr.f32.gmra.mrb[0].mxu0 %v669
        %v1096 = vpop.f32.mrb[0].mxu0
        %v1097 = vadd.f32 %v918, %v1096
        %v1098 = vpop.f32.mrb[0].mxu0
        %1099 = vmatprep.mubr.f32.mxu0 %v672
        %1100 = vmatmul.mubr.f32.gmra.mrb[0].mxu0 %v671
        %v1101 = vpop.f32.mrb[0].mxu0
        %v1102 = vadd.f32 %v918, %v1101
        %v1103 = vpop.f32.mrb[0].mxu0
        %1104 = vmatprep.mubr.f32.mxu0 %v674
        %1105 = vmatmul.mubr.f32.gmra.mrb[0].mxu0 %v673
        %v1106 = vpop.f32.mrb[0].mxu0
        %v1107 = vadd.f32 %v918, %v1106
        %v1108 = vpop.f32.mrb[0].mxu0
        %1109 = vmatprep.mubr.f32.mxu0 %v676
        %1110 = vmatmul.mubr.f32.gmra.mrb[0].mxu0 %v675
        %v1111 = vpop.f32.mrb[0].mxu0
        %v1112 = vadd.f32 %v918, %v1111
        %v1113 = vpop.f32.mrb[0].mxu0
        %1114 = vmatprep.mubr.f32.mxu0 %v678
        %1115 = vmatmul.mubr.f32.gmra.mrb[0].mxu0 %v677
        %v1116 = vpop.f32.mrb[0].mxu0
        %v1117 = vadd.f32 %v918, %v1116
        %v1118 = vpop.f32.mrb[0].mxu0
        %1119 = vmatprep.mubr.f32.mxu0 %v680
        %1120 = vmatmul.mubr.f32.gmra.mrb[0].mxu0 %v679
        %v1121 = vpop.f32.mrb[0].mxu0
        %v1122 = vadd.f32 %v918, %v1121
        %v1123 = vpop.f32.mrb[0].mxu0
        %1124 = vmatprep.mubr.f32.mxu0 %v682
        %1125 = vmatmul.mubr.f32.gmra.mrb[0].mxu0 %v681
        %v1126 = vpop.f32.mrb[0].mxu0
        %v1127 = vadd.f32 %v918, %v1126
        %v1128 = vpop.f32.mrb[0].mxu0
        %1129 = vmatprep.mubr.f32.mxu0 %v684
        %1130 = vmatmul.mubr.f32.gmra.mrb[0].mxu0 %v683
        %v1131 = vpop.f32.mrb[0].mxu0
        %v1132 = vadd.f32 %v918, %v1131
        %v1133 = vpop.f32.mrb[0].mxu0
        %1134 = vmatprep.mubr.f32.mxu0 %v686
        %1135 = vmatmul.mubr.f32.gmra.mrb[0].mxu0 %v685
        %v1136 = vpop.f32.mrb[0].mxu0
        %v1137 = vadd.f32 %v918, %v1136
        %v1138 = vpop.f32.mrb[0].mxu0
        %1139 = vmatprep.mubr.f32.mxu0 %v688
        %1140 = vmatmul.mubr.f32.gmra.mrb[0].mxu0 %v687
        %v1141 = vpop.f32.mrb[0].mxu0
        %v1142 = vadd.f32 %v918, %v1141
        %v1143 = vpop.f32.mrb[0].mxu0
        %1144 = vmatprep.mubr.f32.mxu0 %v690
        %1145 = vmatmul.mubr.f32.gmra.mrb[0].mxu0 %v689
        %v1146 = vpop.f32.mrb[0].mxu0
        %v1147 = vadd.f32 %v918, %v1146
        %v1148 = vpop.f32.mrb[0].mxu0
        %1149 = vmatprep.mubr.f32.mxu0 %v692
        %1150 = vmatmul.mubr.f32.gmra.mrb[0].mxu0 %v691
        %v1151 = vpop.f32.mrb[0].mxu0
        %v1152 = vadd.f32 %v918, %v1151
        %v1153 = vpop.f32.mrb[0].mxu0
        %1154 = vmatprep.mubr.f32.mxu0 %v694
        %1155 = vmatmul.mubr.f32.gmra.mrb[0].mxu0 %v693
        %v1156 = vpop.f32.mrb[0].mxu0
        %v1157 = vadd.f32 %v918, %v1156
        %v1158 = vpop.f32.mrb[0].mxu0
        %1159 = vmatprep.mubr.f32.mxu0 %v696
        %1160 = vmatmul.mubr.f32.gmra.mrb[0].mxu0 %v695
        %v1161 = vpop.f32.mrb[0].mxu0
        %v1162 = vadd.f32 %v918, %v1161
        %v1163 = vpop.f32.mrb[0].mxu0
        %1164 = vmatprep.mubr.f32.mxu0 %v698
        %1165 = vmatmul.mubr.f32.gmra.mrb[0].mxu0 %v697
        %v1166 = vpop.f32.mrb[0].mxu0
        %v1167 = vadd.f32 %v918, %v1166
        %v1168 = vpop.f32.mrb[0].mxu0
        %1169 = vmatprep.mubr.f32.mxu0 %v700
        %1170 = vmatmul.mubr.f32.gmra.mrb[0].mxu0 %v699
        %v1171 = vpop.f32.mrb[0].mxu0
        %v1172 = vadd.f32 %v918, %v1171
        %v1173 = vpop.f32.mrb[0].mxu0
        %1174 = vmatprep.mubr.f32.mxu0 %v702
        %1175 = vmatmul.mubr.f32.gmra.mrb[0].mxu0 %v701
        %v1176 = vpop.f32.mrb[0].mxu0
        %v1177 = vadd.f32 %v918, %v1176
        %v1178 = vpop.f32.mrb[0].mxu0
        %1179 = vmatprep.mubr.f32.mxu0 %v704
        %1180 = vmatmul.mubr.f32.gmra.mrb[0].mxu0 %v703
        %v1181 = vpop.f32.mrb[0].mxu0
        %v1182 = vadd.f32 %v918, %v1181
        %v1183 = vpop.f32.mrb[0].mxu0
        %1184 = vmatprep.mubr.f32.mxu0 %v706
        %1185 = vmatmul.mubr.f32.gmra.mrb[0].mxu0 %v705
        %v1186 = vpop.f32.mrb[0].mxu0
        %v1187 = vadd.f32 %v918, %v1186
        %v1188 = vpop.f32.mrb[0].mxu0
        %1189 = vmatprep.mubr.f32.mxu0 %v708
        %1190 = vmatmul.mubr.f32.gmra.mrb[0].mxu0 %v707
        %v1191 = vpop.f32.mrb[0].mxu0
        %v1192 = vadd.f32 %v918, %v1191
        %v1193 = vpop.f32.mrb[0].mxu0
        %1194 = vmatprep.mubr.f32.mxu0 %v710
        %1195 = vmatmul.mubr.f32.gmra.mrb[0].mxu0 %v709
        %v1196 = vpop.f32.mrb[0].mxu0
        %v1197 = vadd.f32 %v918, %v1196
        %v1198 = vpop.f32.mrb[0].mxu0
        %1199 = vmatprep.mubr.f32.mxu0 %v712
        %1200 = vmatmul.mubr.f32.gmra.mrb[0].mxu0 %v711
        %v1201 = vpop.f32.mrb[0].mxu0
        %v1202 = vadd.f32 %v918, %v1201
        %v1203 = vpop.f32.mrb[0].mxu0
        %1204 = vmatprep.mubr.f32.mxu0 %v714
        %1205 = vmatmul.mubr.f32.gmra.mrb[0].mxu0 %v713
        %v1206 = vpop.f32.mrb[0].mxu0
        %v1207 = vadd.f32 %v918, %v1206
        %v1208 = vpop.f32.mrb[0].mxu0
        %1209 = vmatprep.mubr.f32.mxu0 %v716
        %1210 = vmatmul.mubr.f32.gmra.mrb[0].mxu0 %v715
        %v1211 = vpop.f32.mrb[0].mxu0
        %v1212 = vadd.f32 %v918, %v1211
        %v1213 = vpop.f32.mrb[0].mxu0
        %1214 = vmatprep.mubr.f32.mxu0 %v718
        %1215 = vmatmul.mubr.f32.gmra.mrb[0].mxu0 %v717
        %v1216 = vpop.f32.mrb[0].mxu0
        %v1217 = vadd.f32 %v918, %v1216
        %v1218 = vpop.f32.mrb[0].mxu0
        %1219 = vmatprep.mubr.f32.mxu0 %v720
        %1220 = vmatmul.mubr.f32.gmra.mrb[0].mxu0 %v719
        %v1221 = vpop.f32.mrb[0].mxu0
        %v1222 = vadd.f32 %v918, %v1221
        %v1223 = vpop.f32.mrb[0].mxu0
        %1224 = vmatprep.mubr.f32.mxu0 %v722
        %1225 = vmatmul.mubr.f32.gmra.mrb[0].mxu0 %v721
        %v1226 = vpop.f32.mrb[0].mxu0
        %v1227 = vadd.f32 %v918, %v1226
        %v1228 = vpop.f32.mrb[0].mxu0
        %1229 = vmatprep.mubr.f32.mxu0 %v724
        %1230 = vmatmul.mubr.f32.gmra.mrb[0].mxu0 %v723
        %v1231 = vpop.f32.mrb[0].mxu0
        %v1232 = vadd.f32 %v918, %v1231
        %v1233 = vpop.f32.mrb[0].mxu0
        %1234 = vmatprep.mubr.f32.mxu0 %v726
        %1235 = vmatmul.mubr.f32.gmra.mrb[0].mxu0 %v725
        %v1236 = vpop.f32.mrb[0].mxu0
        %v1237 = vadd.f32 %v918, %v1236
        %v1238 = vpop.f32.mrb[0].mxu0
        %1239 = vmatprep.mubr.f32.mxu0 %v728
        %1240 = vmatmul.mubr.f32.gmra.mrb[0].mxu0 %v727
        %v1241 = vpop.f32.mrb[0].mxu0
        %v1242 = vadd.f32 %v918, %v1241
        %v1243 = vpop.f32.mrb[0].mxu0
        %1244 = vmatprep.mubr.f32.mxu0 %v730
        %1245 = vmatmul.mubr.f32.gmra.mrb[0].mxu0 %v729
        %v1246 = vpop.f32.mrb[0].mxu0
        %v1247 = vadd.f32 %v918, %v1246
        %v1248 = vpop.f32.mrb[0].mxu0
        %1249 = vmatprep.mubr.f32.mxu0 %v732
        %1250 = vmatmul.mubr.f32.gmra.mrb[0].mxu0 %v731
        %v1251 = vpop.f32.mrb[0].mxu0
        %v1252 = vadd.f32 %v918, %v1251
        %v1253 = vpop.f32.mrb[0].mxu0
        %1254 = vmatprep.mubr.f32.mxu0 %v734
        %1255 = vmatmul.mubr.f32.gmra.mrb[0].mxu0 %v733
        %v1256 = vpop.f32.mrb[0].mxu0
        %v1257 = vadd.f32 %v918, %v1256
        %v1258 = vpop.f32.mrb[0].mxu0
        %1259 = vmatprep.mubr.f32.mxu0 %v736
        %1260 = vmatmul.mubr.f32.gmra.mrb[0].mxu0 %v735
        %v1261 = vpop.f32.mrb[0].mxu0
        %v1262 = vadd.f32 %v918, %v1261
        %v1263 = vpop.f32.mrb[0].mxu0
        %1264 = vmatprep.mubr.f32.mxu0 %v738
        %1265 = vmatmul.mubr.f32.gmra.mrb[0].mxu0 %v737
        %v1266 = vpop.f32.mrb[0].mxu0
        %v1267 = vadd.f32 %v918, %v1266
        %v1268 = vpop.f32.mrb[0].mxu0
        %1269 = vmatprep.mubr.f32.mxu0 %v740
        %1270 = vmatmul.mubr.f32.gmra.mrb[0].mxu0 %v739
        %v1271 = vpop.f32.mrb[0].mxu0
        %v1272 = vadd.f32 %v918, %v1271
        %v1273 = vpop.f32.mrb[0].mxu0
        %1274 = vmatprep.mubr.f32.mxu0 %v742
        %1275 = vmatmul.mubr.f32.gmra.mrb[0].mxu0 %v741
        %v1276 = vpop.f32.mrb[0].mxu0
        %v1277 = vadd.f32 %v918, %v1276
        %v1278 = vpop.f32.mrb[0].mxu0
        %1279 = vmatprep.mubr.f32.mxu0 %v744
        %1280 = vmatmul.mubr.f32.gmra.mrb[0].mxu0 %v743
        %v1281 = vpop.f32.mrb[0].mxu0
        %v1282 = vadd.f32 %v918, %v1281
        %v1283 = vpop.f32.mrb[0].mxu0
        %1284 = vmatprep.mubr.f32.mxu0 %v746
        %1285 = vmatmul.mubr.f32.gmra.mrb[0].mxu0 %v745
        %v1286 = vpop.f32.mrb[0].mxu0
        %v1287 = vadd.f32 %v918, %v1286
        %v1288 = vpop.f32.mrb[0].mxu0
        %1289 = vmatprep.mubr.f32.mxu0 %v748
        %1290 = vmatmul.mubr.f32.gmra.mrb[0].mxu0 %v747
        %v1291 = vpop.f32.mrb[0].mxu0
        %v1292 = vadd.f32 %v918, %v1291
        %v1293 = vpop.f32.mrb[0].mxu0
        %1294 = vmatprep.mubr.f32.mxu0 %v750
        %1295 = vmatmul.mubr.f32.gmra.mrb[0].mxu0 %v749
        %v1296 = vpop.f32.mrb[0].mxu0
        %v1297 = vadd.f32 %v918, %v1296
        %v1298 = vpop.f32.mrb[0].mxu0
        %1299 = vmatprep.mubr.f32.mxu0 %v752
        %1300 = vmatmul.mubr.f32.gmra.mrb[0].mxu0 %v751
        %v1301 = vpop.f32.mrb[0].mxu0
        %v1302 = vadd.f32 %v918, %v1301
        %v1303 = vpop.f32.mrb[0].mxu0
        %1304 = vmatprep.mubr.f32.mxu0 %v754
        %1305 = vmatmul.mubr.f32.gmra.mrb[0].mxu0 %v753
        %v1306 = vpop.f32.mrb[0].mxu0
        %v1307 = vadd.f32 %v918, %v1306
        %v1308 = vpop.f32.mrb[0].mxu0
        %1309 = vmatprep.mubr.f32.mxu0 %v756
        %1310 = vmatmul.mubr.f32.gmra.mrb[0].mxu0 %v755
        %v1311 = vpop.f32.mrb[0].mxu0
        %v1312 = vadd.f32 %v918, %v1311
        %v1313 = vpop.f32.mrb[0].mxu0
        %1314 = vmatprep.mubr.f32.mxu0 %v758
        %1315 = vmatmul.mubr.f32.gmra.mrb[0].mxu0 %v757
        %v1316 = vpop.f32.mrb[0].mxu0
        %v1317 = vadd.f32 %v918, %v1316
        %v1318 = vpop.f32.mrb[0].mxu0
        %1319 = vmatprep.mubr.f32.mxu0 %v760
        %1320 = vmatmul.mubr.f32.gmra.mrb[0].mxu0 %v759
        %v1321 = vpop.f32.mrb[0].mxu0
        %v1322 = vadd.f32 %v918, %v1321
        %v1323 = vpop.f32.mrb[0].mxu0
        %1324 = vmatprep.mubr.f32.mxu0 %v762
        %1325 = vmatmul.mubr.f32.gmra.mrb[0].mxu0 %v761
        %v1326 = vpop.f32.mrb[0].mxu0
        %v1327 = vadd.f32 %v918, %v1326
        %v1328 = vpop.f32.mrb[0].mxu0
        %1329 = vmatprep.mubr.f32.mxu0 %v764
        %1330 = vmatmul.mubr.f32.gmra.mrb[0].mxu0 %v763
        %v1331 = vpop.f32.mrb[0].mxu0
        %v1332 = vadd.f32 %v918, %v1331
        %v1333 = vpop.f32.mrb[0].mxu0
        %1334 = vmatprep.mubr.f32.mxu0 %v766
        %1335 = vmatmul.mubr.f32.gmra.mrb[0].mxu0 %v765
        %v1336 = vpop.f32.mrb[0].mxu0
        %v1337 = vadd.f32 %v918, %v1336
        %v1338 = vpop.f32.mrb[0].mxu0
        %1339 = vmatprep.mubr.f32.mxu0 %v768
        %1340 = vmatmul.mubr.f32.gmra.mrb[0].mxu0 %v767
        %v1341 = vpop.f32.mrb[0].mxu0
        %v1342 = vadd.f32 %v918, %v1341
        %v1343 = vpop.f32.mrb[0].mxu0
        %1344 = vmatprep.mubr.f32.mxu0 %v770
        %1345 = vmatmul.mubr.f32.gmra.mrb[0].mxu0 %v769
        %v1346 = vpop.f32.mrb[0].mxu0
        %v1347 = vadd.f32 %v918, %v1346
        %v1348 = vpop.f32.mrb[0].mxu0
        %1349 = vmatprep.mubr.f32.mxu0 %v772
        %1350 = vmatmul.mubr.f32.gmra.mrb[0].mxu0 %v771
        %v1351 = vpop.f32.mrb[0].mxu0
        %v1352 = vadd.f32 %v918, %v1351
        %v1353 = vpop.f32.mrb[0].mxu0
        %1354 = vmatprep.mubr.f32.mxu0 %v774
        %1355 = vmatmul.mubr.f32.gmra.mrb[0].mxu0 %v773
        %v1356 = vpop.f32.mrb[0].mxu0
        %v1357 = vadd.f32 %v918, %v1356
        %v1358 = vpop.f32.mrb[0].mxu0
        %1359 = vmatprep.mubr.f32.mxu0 %v776
        %1360 = vmatmul.mubr.f32.gmra.mrb[0].mxu0 %v775
        %v1361 = vpop.f32.mrb[0].mxu0
        %v1362 = vadd.f32 %v918, %v1361
        %v1363 = vpop.f32.mrb[0].mxu0
        %1364 = vmatprep.mubr.f32.mxu0 %v778
        %1365 = vmatmul.mubr.f32.gmra.mrb[0].mxu0 %v777
        %v1366 = vpop.f32.mrb[0].mxu0
        %v1367 = vadd.f32 %v918, %v1366
        %v1368 = vpop.f32.mrb[0].mxu0
        %1369 = vmatprep.mubr.f32.mxu0 %v780
        %1370 = vmatmul.mubr.f32.gmra.mrb[0].mxu0 %v779
        %v1371 = vpop.f32.mrb[0].mxu0
        %v1372 = vadd.f32 %v918, %v1371
        %v1373 = vpop.f32.mrb[0].mxu0
        %1374 = vmatprep.mubr.f32.mxu0 %v782
        %1375 = vmatmul.mubr.f32.gmra.mrb[0].mxu0 %v781
        %v1376 = vpop.f32.mrb[0].mxu0
        %v1377 = vadd.f32 %v918, %v1376
        %v1378 = vpop.f32.mrb[0].mxu0
        %1379 = vmatprep.mubr.f32.mxu0 %v784
        %1380 = vmatmul.mubr.f32.gmra.mrb[0].mxu0 %v783
        %v1381 = vpop.f32.mrb[0].mxu0
        %v1382 = vadd.f32 %v918, %v1381
        %v1383 = vpop.f32.mrb[0].mxu0
        %1384 = vmatprep.mubr.f32.mxu0 %v786
        %1385 = vmatmul.mubr.f32.gmra.mrb[0].mxu0 %v785
        %v1386 = vpop.f32.mrb[0].mxu0
        %v1387 = vadd.f32 %v918, %v1386
        %v1388 = vpop.f32.mrb[0].mxu0
        %1389 = vmatprep.mubr.f32.mxu0 %v788
        %1390 = vmatmul.mubr.f32.gmra.mrb[0].mxu0 %v787
        %v1391 = vpop.f32.mrb[0].mxu0
        %v1392 = vadd.f32 %v918, %v1391
        %v1393 = vpop.f32.mrb[0].mxu0
        %1394 = vmatprep.mubr.f32.mxu0 %v790
        %1395 = vmatmul.mubr.f32.gmra.mrb[0].mxu0 %v789
        %v1396 = vpop.f32.mrb[0].mxu0
        %v1397 = vadd.f32 %v918, %v1396
        %v1398 = vpop.f32.mrb[0].mxu0
        %1399 = vmatprep.mubr.f32.mxu0 %v792
        %1400 = vmatmul.mubr.f32.gmra.mrb[0].mxu0 %v791
        %v1401 = vpop.f32.mrb[0].mxu0
        %v1402 = vadd.f32 %v918, %v1401
        %v1403 = vpop.f32.mrb[0].mxu0
        %1404 = vmatprep.mubr.f32.mxu0 %v794
        %1405 = vmatmul.mubr.f32.gmra.mrb[0].mxu0 %v793
        %v1406 = vpop.f32.mrb[0].mxu0
        %v1407 = vadd.f32 %v918, %v1406
        %v1408 = vpop.f32.mrb[0].mxu0
        %1409 = vmatprep.mubr.f32.mxu0 %v796
        %1410 = vmatmul.mubr.f32.gmra.mrb[0].mxu0 %v795
        %v1411 = vpop.f32.mrb[0].mxu0
        %v1412 = vadd.f32 %v918, %v1411
        %v1413 = vpop.f32.mrb[0].mxu0
        %1414 = vmatprep.mubr.f32.mxu0 %v798
        %1415 = vmatmul.mubr.f32.gmra.mrb[0].mxu0 %v797
        %v1416 = vpop.f32.mrb[0].mxu0
        %v1417 = vadd.f32 %v918, %v1416
        %v1418 = vpop.f32.mrb[0].mxu0
        %1419 = vmatprep.mubr.f32.mxu0 %v800
        %1420 = vmatmul.mubr.f32.gmra.mrb[0].mxu0 %v799
        %v1421 = vpop.f32.mrb[0].mxu0
        %v1422 = vadd.f32 %v918, %v1421
        %v1423 = vpop.f32.mrb[0].mxu0
        %1424 = vmatprep.mubr.f32.mxu0 %v802
        %1425 = vmatmul.mubr.f32.gmra.mrb[0].mxu0 %v801
        %v1426 = vpop.f32.mrb[0].mxu0
        %v1427 = vadd.f32 %v918, %v1426
        %v1428 = vpop.f32.mrb[0].mxu0
        %1429 = vmatprep.mubr.f32.mxu0 %v804
        %1430 = vmatmul.mubr.f32.gmra.mrb[0].mxu0 %v803
        %v1431 = vpop.f32.mrb[0].mxu0
        %v1432 = vadd.f32 %v918, %v1431
        %v1433 = vpop.f32.mrb[0].mxu0
        %1434 = vmatprep.mubr.f32.mxu0 %v806
        %1435 = vmatmul.mubr.f32.gmra.mrb[0].mxu0 %v805
        %v1436 = vpop.f32.mrb[0].mxu0
        %v1437 = vadd.f32 %v918, %v1436
        %v1438 = vpop.f32.mrb[0].mxu0
        %1439 = vmatprep.mubr.f32.mxu0 %v808
        %1440 = vmatmul.mubr.f32.gmra.mrb[0].mxu0 %v807
        %v1441 = vpop.f32.mrb[0].mxu0
        %v1442 = vadd.f32 %v918, %v1441
        %v1443 = vpop.f32.mrb[0].mxu0
        %1444 = vmatprep.mubr.f32.mxu0 %v810
        %1445 = vmatmul.mubr.f32.gmra.mrb[0].mxu0 %v809
        %v1446 = vpop.f32.mrb[0].mxu0
        %v1447 = vadd.f32 %v918, %v1446
        %v1448 = vpop.f32.mrb[0].mxu0
        %1449 = vmatprep.mubr.f32.mxu0 %v812
        %1450 = vmatmul.mubr.f32.gmra.mrb[0].mxu0 %v811
        %v1451 = vpop.f32.mrb[0].mxu0
        %v1452 = vadd.f32 %v918, %v1451
        %v1453 = vpop.f32.mrb[0].mxu0
        %1454 = vmatprep.mubr.f32.mxu0 %v814
        %1455 = vmatmul.mubr.f32.gmra.mrb[0].mxu0 %v813
        %v1456 = vpop.f32.mrb[0].mxu0
        %v1457 = vadd.f32 %v918, %v1456
        %v1458 = vpop.f32.mrb[0].mxu0
        %1459 = vmatprep.mubr.f32.mxu0 %v816
        %1460 = vmatmul.mubr.f32.gmra.mrb[0].mxu0 %v815
        %v1461 = vpop.f32.mrb[0].mxu0
        %v1462 = vadd.f32 %v918, %v1461
        %v1463 = vpop.f32.mrb[0].mxu0
        %1464 = vmatprep.mubr.f32.mxu0 %v818
        %1465 = vmatmul.mubr.f32.gmra.mrb[0].mxu0 %v817
        %v1466 = vpop.f32.mrb[0].mxu0
        %v1467 = vadd.f32 %v918, %v1466
        %v1468 = vpop.f32.mrb[0].mxu0
        %1469 = vmatprep.mubr.f32.mxu0 %v820
        %1470 = vmatmul.mubr.f32.gmra.mrb[0].mxu0 %v819
        %v1471 = vpop.f32.mrb[0].mxu0
        %v1472 = vadd.f32 %v918, %v1471
        %v1473 = vpop.f32.mrb[0].mxu0
        %1474 = vmatprep.mubr.f32.mxu0 %v822
        %1475 = vmatmul.mubr.f32.gmra.mrb[0].mxu0 %v821
        %v1476 = vpop.f32.mrb[0].mxu0
        %v1477 = vadd.f32 %v918, %v1476
        %v1478 = vpop.f32.mrb[0].mxu0
        %1479 = vmatprep.mubr.f32.mxu0 %v824
        %1480 = vmatmul.mubr.f32.gmra.mrb[0].mxu0 %v823
        %v1481 = vpop.f32.mrb[0].mxu0
        %v1482 = vadd.f32 %v918, %v1481
        %v1483 = vpop.f32.mrb[0].mxu0
        %1484 = vmatprep.mubr.f32.mxu0 %v826
        %1485 = vmatmul.mubr.f32.gmra.mrb[0].mxu0 %v825
        %v1486 = vpop.f32.mrb[0].mxu0
        %v1487 = vadd.f32 %v918, %v1486
        %v1488 = vpop.f32.mrb[0].mxu0
        %1489 = vmatprep.mubr.f32.mxu0 %v828
        %1490 = vmatmul.mubr.f32.gmra.mrb[0].mxu0 %v827
        %v1491 = vpop.f32.mrb[0].mxu0
        %v1492 = vadd.f32 %v918, %v1491
        %v1493 = vpop.f32.mrb[0].mxu0
        %1494 = vmatprep.mubr.f32.mxu0 %v830
        %1495 = vmatmul.mubr.f32.gmra.mrb[0].mxu0 %v829
        %v1496 = vpop.f32.mrb[0].mxu0
        %v1497 = vadd.f32 %v918, %v1496
        %v1498 = vpop.f32.mrb[0].mxu0
        %1499 = vmatprep.mubr.f32.mxu0 %v832
        %1500 = vmatmul.mubr.f32.gmra.mrb[0].mxu0 %v831
        %v1501 = vpop.f32.mrb[0].mxu0
        %v1502 = vadd.f32 %v918, %v1501
        %v1503 = vpop.f32.mrb[0].mxu0
        %1504 = vmatprep.mubr.f32.mxu0 %v834
        %1505 = vmatmul.mubr.f32.gmra.mrb[0].mxu0 %v833
        %v1506 = vpop.f32.mrb[0].mxu0
        %v1507 = vadd.f32 %v918, %v1506
        %v1508 = vpop.f32.mrb[0].mxu0
        %1509 = vmatprep.mubr.f32.mxu0 %v836
        %1510 = vmatmul.mubr.f32.gmra.mrb[0].mxu0 %v835
        %v1511 = vpop.f32.mrb[0].mxu0
        %v1512 = vadd.f32 %v918, %v1511
        %v1513 = vpop.f32.mrb[0].mxu0
        %1514 = vmatprep.mubr.f32.mxu0 %v838
        %1515 = vmatmul.mubr.f32.gmra.mrb[0].mxu0 %v837
        %v1516 = vpop.f32.mrb[0].mxu0
        %v1517 = vadd.f32 %v918, %v1516
        %v1518 = vpop.f32.mrb[0].mxu0
        %1519 = vmatprep.mubr.f32.mxu0 %v840
        %1520 = vmatmul.mubr.f32.gmra.mrb[0].mxu0 %v839
        %v1521 = vpop.f32.mrb[0].mxu0
        %v1522 = vadd.f32 %v918, %v1521
        %v1523 = vpop.f32.mrb[0].mxu0
        %1524 = vmatprep.mubr.f32.mxu0 %v842
        %1525 = vmatmul.mubr.f32.gmra.mrb[0].mxu0 %v841
        %v1526 = vpop.f32.mrb[0].mxu0
        %v1527 = vadd.f32 %v918, %v1526
        %v1528 = vpop.f32.mrb[0].mxu0
        %1529 = vmatprep.mubr.f32.mxu0 %v844
        %1530 = vmatmul.mubr.f32.gmra.mrb[0].mxu0 %v843
        %v1531 = vpop.f32.mrb[0].mxu0
        %v1532 = vadd.f32 %v918, %v1531
        %v1533 = vpop.f32.mrb[0].mxu0
        %1534 = vmatprep.mubr.f32.mxu0 %v846
        %1535 = vmatmul.mubr.f32.gmra.mrb[0].mxu0 %v845
        %v1536 = vpop.f32.mrb[0].mxu0
        %v1537 = vadd.f32 %v918, %v1536
        %v1538 = vpop.f32.mrb[0].mxu0
        %1539 = vmatprep.mubr.f32.mxu0 %v848
        %1540 = vmatmul.mubr.f32.gmra.mrb[0].mxu0 %v847
        %v1541 = vpop.f32.mrb[0].mxu0
        %v1542 = vadd.f32 %v918, %v1541
        %v1543 = vpop.f32.mrb[0].mxu0
        %1544 = vmatprep.mubr.f32.mxu0 %v850
        %1545 = vmatmul.mubr.f32.gmra.mrb[0].mxu0 %v849
        %v1546 = vpop.f32.mrb[0].mxu0
        %v1547 = vadd.f32 %v918, %v1546
        %v1548 = vpop.f32.mrb[0].mxu0
        %1549 = vmatprep.mubr.f32.mxu0 %v852
        %1550 = vmatmul.mubr.f32.gmra.mrb[0].mxu0 %v851
        %v1551 = vpop.f32.mrb[0].mxu0
        %v1552 = vadd.f32 %v918, %v1551
        %v1553 = vpop.f32.mrb[0].mxu0
        %1554 = vmatprep.mubr.f32.mxu0 %v854
        %1555 = vmatmul.mubr.f32.gmra.mrb[0].mxu0 %v853
        %v1556 = vpop.f32.mrb[0].mxu0
        %v1557 = vadd.f32 %v918, %v1556
        %v1558 = vpop.f32.mrb[0].mxu0
        %1559 = vmatprep.mubr.f32.mxu0 %v856
        %1560 = vmatmul.mubr.f32.gmra.mrb[0].mxu0 %v855
        %v1561 = vpop.f32.mrb[0].mxu0
        %v1562 = vadd.f32 %v918, %v1561
        %v1563 = vpop.f32.mrb[0].mxu0
        %1564 = vmatprep.mubr.f32.mxu0 %v858
        %1565 = vmatmul.mubr.f32.gmra.mrb[0].mxu0 %v857
        %v1566 = vpop.f32.mrb[0].mxu0
        %v1567 = vadd.f32 %v918, %v1566
        %v1568 = vpop.f32.mrb[0].mxu0
        %1569 = vmatprep.mubr.f32.mxu0 %v860
        %1570 = vmatmul.mubr.f32.gmra.mrb[0].mxu0 %v859
        %v1571 = vpop.f32.mrb[0].mxu0
        %v1572 = vadd.f32 %v918, %v1571
        %v1573 = vpop.f32.mrb[0].mxu0
        %1574 = vmatprep.mubr.f32.mxu0 %v862
        %1575 = vmatmul.mubr.f32.gmra.mrb[0].mxu0 %v861
        %v1576 = vpop.f32.mrb[0].mxu0
        %v1577 = vadd.f32 %v918, %v1576
        %v1578 = vpop.f32.mrb[0].mxu0
        %1579 = vmatprep.mubr.f32.mxu0 %v864
        %1580 = vmatmul.mubr.f32.gmra.mrb[0].mxu0 %v863
        %v1581 = vpop.f32.mrb[0].mxu0
        %v1582 = vadd.f32 %v918, %v1581
        %v1583 = vpop.f32.mrb[0].mxu0
        %1584 = vmatprep.mubr.f32.mxu0 %v866
        %1585 = vmatmul.mubr.f32.gmra.mrb[0].mxu0 %v865
        %v1586 = vpop.f32.mrb[0].mxu0
        %v1587 = vadd.f32 %v918, %v1586
        %v1588 = vpop.f32.mrb[0].mxu0
        %1589 = vmatprep.mubr.f32.mxu0 %v868
        %1590 = vmatmul.mubr.f32.gmra.mrb[0].mxu0 %v867
        %v1591 = vpop.f32.mrb[0].mxu0
        %v1592 = vadd.f32 %v918, %v1591
        %v1593 = vpop.f32.mrb[0].mxu0
        %1594 = vmatprep.mubr.f32.mxu0 %v870
        %1595 = vmatmul.mubr.f32.gmra.mrb[0].mxu0 %v869
        %v1596 = vpop.f32.mrb[0].mxu0
        %v1597 = vadd.f32 %v918, %v1596
        %v1598 = vpop.f32.mrb[0].mxu0
        %1599 = vmatprep.mubr.f32.mxu0 %v872
        %1600 = vmatmul.mubr.f32.gmra.mrb[0].mxu0 %v871
        %v1601 = vpop.f32.mrb[0].mxu0
        %v1602 = vadd.f32 %v918, %v1601
        %v1603 = vpop.f32.mrb[0].mxu0
        %1604 = vmatprep.mubr.f32.mxu0 %v874
        %1605 = vmatmul.mubr.f32.gmra.mrb[0].mxu0 %v873
        %v1606 = vpop.f32.mrb[0].mxu0
        %v1607 = vadd.f32 %v918, %v1606
        %v1608 = vpop.f32.mrb[0].mxu0
        %1609 = vmatprep.mubr.f32.mxu0 %v876
        %1610 = vmatmul.mubr.f32.gmra.mrb[0].mxu0 %v875
        %v1611 = vpop.f32.mrb[0].mxu0
        %v1612 = vadd.f32 %v918, %v1611
        %v1613 = vpop.f32.mrb[0].mxu0
        %1614 = vmatprep.mubr.f32.mxu0 %v878
        %1615 = vmatmul.mubr.f32.gmra.mrb[0].mxu0 %v877
        %v1616 = vpop.f32.mrb[0].mxu0
        %v1617 = vadd.f32 %v918, %v1616
        %v1618 = vpop.f32.mrb[0].mxu0
        %1619 = vmatprep.mubr.f32.mxu0 %v880
        %1620 = vmatmul.mubr.f32.gmra.mrb[0].mxu0 %v879
        %v1621 = vpop.f32.mrb[0].mxu0
        %v1622 = vadd.f32 %v918, %v1621
        %v1623 = vpop.f32.mrb[0].mxu0
        %1624 = vdwg.mxu0
        %vm1625 = vcmp.gt.f32.partialorder %v987, 0.0
        %vm1626 = vcmp.gt.f32.partialorder %v992, 0.0
        %vm1627 = vcmp.gt.f32.partialorder %v997, 0.0
        %vm1628 = vcmp.gt.f32.partialorder %v1002, 0.0
        %vm1629 = vcmp.gt.f32.partialorder %v1007, 0.0
        %vm1630 = vcmp.gt.f32.partialorder %v1012, 0.0
        %vm1631 = vcmp.gt.f32.partialorder %v1017, 0.0
        %vm1632 = vcmp.gt.f32.partialorder %v1022, 0.0
        %vm1633 = vcmp.gt.f32.partialorder %v1027, 0.0
        %vm1634 = vcmp.gt.f32.partialorder %v1032, 0.0
        %vm1635 = vcmp.gt.f32.partialorder %v1037, 0.0
        %vm1636 = vcmp.gt.f32.partialorder %v1042, 0.0
        %vm1637 = vcmp.gt.f32.partialorder %v1047, 0.0
        %vm1638 = vcmp.gt.f32.partialorder %v1052, 0.0
        %vm1639 = vcmp.gt.f32.partialorder %v1057, 0.0
        %vm1640 = vcmp.gt.f32.partialorder %v1062, 0.0
        %vm1641 = vcmp.gt.f32.partialorder %v1067, 0.0
        %vm1642 = vcmp.gt.f32.partialorder %v1072, 0.0
        %vm1643 = vcmp.gt.f32.partialorder %v1077, 0.0
        %vm1644 = vcmp.gt.f32.partialorder %v1082, 0.0
        %vm1645 = vcmp.gt.f32.partialorder %v1087, 0.0
        %vm1646 = vcmp.gt.f32.partialorder %v1092, 0.0
        %vm1647 = vcmp.gt.f32.partialorder %v1097, 0.0
        %vm1648 = vcmp.gt.f32.partialorder %v1102, 0.0
        %vm1649 = vcmp.gt.f32.partialorder %v1107, 0.0
        %vm1650 = vcmp.gt.f32.partialorder %v1112, 0.0
        %vm1651 = vcmp.gt.f32.partialorder %v1117, 0.0
        %vm1652 = vcmp.gt.f32.partialorder %v1122, 0.0
        %vm1653 = vcmp.gt.f32.partialorder %v1127, 0.0
        %vm1654 = vcmp.gt.f32.partialorder %v1132, 0.0
        %vm1655 = vcmp.gt.f32.partialorder %v1137, 0.0
        %vm1656 = vcmp.gt.f32.partialorder %v1142, 0.0
        %vm1657 = vcmp.gt.f32.partialorder %v1147, 0.0
        %vm1658 = vcmp.gt.f32.partialorder %v1152, 0.0
        %vm1659 = vcmp.gt.f32.partialorder %v1157, 0.0
        %vm1660 = vcmp.gt.f32.partialorder %v1162, 0.0
        %vm1661 = vcmp.gt.f32.partialorder %v1167, 0.0
        %vm1662 = vcmp.gt.f32.partialorder %v1172, 0.0
        %vm1663 = vcmp.gt.f32.partialorder %v1177, 0.0
        %vm1664 = vcmp.gt.f32.partialorder %v1182, 0.0
        %vm1665 = vcmp.gt.f32.partialorder %v1187, 0.0
        %vm1666 = vcmp.gt.f32.partialorder %v1192, 0.0
        %vm1667 = vcmp.gt.f32.partialorder %v1197, 0.0
        %vm1668 = vcmp.gt.f32.partialorder %v1202, 0.0
        %vm1669 = vcmp.gt.f32.partialorder %v1207, 0.0
        %vm1670 = vcmp.gt.f32.partialorder %v1212, 0.0
        %vm1671 = vcmp.gt.f32.partialorder %v1217, 0.0
        %vm1672 = vcmp.gt.f32.partialorder %v1222, 0.0
        %vm1673 = vcmp.gt.f32.partialorder %v1227, 0.0
        %vm1674 = vcmp.gt.f32.partialorder %v1232, 0.0
        %vm1675 = vcmp.gt.f32.partialorder %v1237, 0.0
        %vm1676 = vcmp.gt.f32.partialorder %v1242, 0.0
        %vm1677 = vcmp.gt.f32.partialorder %v1247, 0.0
        %vm1678 = vcmp.gt.f32.partialorder %v1252, 0.0
        %vm1679 = vcmp.gt.f32.partialorder %v1257, 0.0
        %vm1680 = vcmp.gt.f32.partialorder %v1262, 0.0
        %vm1681 = vcmp.gt.f32.partialorder %v1267, 0.0
        %vm1682 = vcmp.gt.f32.partialorder %v1272, 0.0
        %vm1683 = vcmp.gt.f32.partialorder %v1277, 0.0
        %vm1684 = vcmp.gt.f32.partialorder %v1282, 0.0
        %vm1685 = vcmp.gt.f32.partialorder %v1287, 0.0
        %vm1686 = vcmp.gt.f32.partialorder %v1292, 0.0
        %vm1687 = vcmp.gt.f32.partialorder %v1297, 0.0
        %vm1688 = vcmp.gt.f32.partialorder %v1302, 0.0
        %vm1689 = vcmp.gt.f32.partialorder %v1307, 0.0
        %vm1690 = vcmp.gt.f32.partialorder %v1312, 0.0
        %vm1691 = vcmp.gt.f32.partialorder %v1317, 0.0
        %vm1692 = vcmp.gt.f32.partialorder %v1322, 0.0
        %vm1693 = vcmp.gt.f32.partialorder %v1327, 0.0
        %vm1694 = vcmp.gt.f32.partialorder %v1332, 0.0
        %vm1695 = vcmp.gt.f32.partialorder %v1337, 0.0
        %vm1696 = vcmp.gt.f32.partialorder %v1342, 0.0
        %vm1697 = vcmp.gt.f32.partialorder %v1347, 0.0
        %vm1698 = vcmp.gt.f32.partialorder %v1352, 0.0
        %vm1699 = vcmp.gt.f32.partialorder %v1357, 0.0
        %vm1700 = vcmp.gt.f32.partialorder %v1362, 0.0
        %vm1701 = vcmp.gt.f32.partialorder %v1367, 0.0
        %vm1702 = vcmp.gt.f32.partialorder %v1372, 0.0
        %vm1703 = vcmp.gt.f32.partialorder %v1377, 0.0
        %vm1704 = vcmp.gt.f32.partialorder %v1382, 0.0
        %vm1705 = vcmp.gt.f32.partialorder %v1387, 0.0
        %vm1706 = vcmp.gt.f32.partialorder %v1392, 0.0
        %vm1707 = vcmp.gt.f32.partialorder %v1397, 0.0
        %vm1708 = vcmp.gt.f32.partialorder %v1402, 0.0
        %vm1709 = vcmp.gt.f32.partialorder %v1407, 0.0
        %vm1710 = vcmp.gt.f32.partialorder %v1412, 0.0
        %vm1711 = vcmp.gt.f32.partialorder %v1417, 0.0
        %vm1712 = vcmp.gt.f32.partialorder %v1422, 0.0
        %vm1713 = vcmp.gt.f32.partialorder %v1427, 0.0
        %vm1714 = vcmp.gt.f32.partialorder %v1432, 0.0
        %vm1715 = vcmp.gt.f32.partialorder %v1437, 0.0
        %vm1716 = vcmp.gt.f32.partialorder %v1442, 0.0
        %vm1717 = vcmp.gt.f32.partialorder %v1447, 0.0
        %vm1718 = vcmp.gt.f32.partialorder %v1452, 0.0
        %vm1719 = vcmp.gt.f32.partialorder %v1457, 0.0
        %vm1720 = vcmp.gt.f32.partialorder %v1462, 0.0
        %vm1721 = vcmp.gt.f32.partialorder %v1467, 0.0
        %vm1722 = vcmp.gt.f32.partialorder %v1472, 0.0
        %vm1723 = vcmp.gt.f32.partialorder %v1477, 0.0
        %vm1724 = vcmp.gt.f32.partialorder %v1482, 0.0
        %vm1725 = vcmp.gt.f32.partialorder %v1487, 0.0
        %vm1726 = vcmp.gt.f32.partialorder %v1492, 0.0
        %vm1727 = vcmp.gt.f32.partialorder %v1497, 0.0
        %vm1728 = vcmp.gt.f32.partialorder %v1502, 0.0
        %vm1729 = vcmp.gt.f32.partialorder %v1507, 0.0
        %vm1730 = vcmp.gt.f32.partialorder %v1512, 0.0
        %vm1731 = vcmp.gt.f32.partialorder %v1517, 0.0
        %vm1732 = vcmp.gt.f32.partialorder %v1522, 0.0
        %vm1733 = vcmp.gt.f32.partialorder %v1527, 0.0
        %vm1734 = vcmp.gt.f32.partialorder %v1532, 0.0
        %vm1735 = vcmp.gt.f32.partialorder %v1537, 0.0
        %vm1736 = vcmp.gt.f32.partialorder %v1542, 0.0
        %vm1737 = vcmp.gt.f32.partialorder %v1547, 0.0
        %vm1738 = vcmp.gt.f32.partialorder %v1552, 0.0
        %vm1739 = vcmp.gt.f32.partialorder %v1557, 0.0
        %vm1740 = vcmp.gt.f32.partialorder %v1562, 0.0
        %vm1741 = vcmp.gt.f32.partialorder %v1567, 0.0
        %vm1742 = vcmp.gt.f32.partialorder %v1572, 0.0
        %vm1743 = vcmp.gt.f32.partialorder %v1577, 0.0
        %vm1744 = vcmp.gt.f32.partialorder %v1582, 0.0
        %vm1745 = vcmp.gt.f32.partialorder %v1587, 0.0
        %vm1746 = vcmp.gt.f32.partialorder %v1592, 0.0
        %vm1747 = vcmp.gt.f32.partialorder %v1597, 0.0
        %vm1748 = vcmp.gt.f32.partialorder %v1602, 0.0
        %vm1749 = vcmp.gt.f32.partialorder %v1607, 0.0
        %vm1750 = vcmp.gt.f32.partialorder %v1612, 0.0
        %vm1751 = vcmp.gt.f32.partialorder %v1617, 0.0
        %vm1752 = vcmp.gt.f32.partialorder %v1622, 0.0
        %v1753 = vmin.f32 %v987, 0.0
        %v1754 = vmin.f32 %v992, 0.0
        %v1755 = vmin.f32 %v997, 0.0
        %v1756 = vmin.f32 %v1002, 0.0
        %v1757 = vmin.f32 %v1007, 0.0
        %v1758 = vmin.f32 %v1012, 0.0
        %v1759 = vmin.f32 %v1017, 0.0
        %v1760 = vmin.f32 %v1022, 0.0
        %v1761 = vmin.f32 %v1027, 0.0
        %v1762 = vmin.f32 %v1032, 0.0
        %v1763 = vmin.f32 %v1037, 0.0
        %v1764 = vmin.f32 %v1042, 0.0
        %v1765 = vmin.f32 %v1047, 0.0
        %v1766 = vmin.f32 %v1052, 0.0
        %v1767 = vmin.f32 %v1057, 0.0
        %v1768 = vmin.f32 %v1062, 0.0
        %v1769 = vmin.f32 %v1067, 0.0
        %v1770 = vmin.f32 %v1072, 0.0
        %v1771 = vmin.f32 %v1077, 0.0
        %v1772 = vmin.f32 %v1082, 0.0
        %v1773 = vmin.f32 %v1087, 0.0
        %v1774 = vmin.f32 %v1092, 0.0
        %v1775 = vmin.f32 %v1097, 0.0
        %v1776 = vmin.f32 %v1102, 0.0
        %v1777 = vmin.f32 %v1107, 0.0
        %v1778 = vmin.f32 %v1112, 0.0
        %v1779 = vmin.f32 %v1117, 0.0
        %v1780 = vmin.f32 %v1122, 0.0
        %v1781 = vmin.f32 %v1127, 0.0
        %v1782 = vmin.f32 %v1132, 0.0
        %v1783 = vmin.f32 %v1137, 0.0
        %v1784 = vmin.f32 %v1142, 0.0
        %v1785 = vmin.f32 %v1147, 0.0
        %v1786 = vmin.f32 %v1152, 0.0
        %v1787 = vmin.f32 %v1157, 0.0
        %v1788 = vmin.f32 %v1162, 0.0
        %v1789 = vmin.f32 %v1167, 0.0
        %v1790 = vmin.f32 %v1172, 0.0
        %v1791 = vmin.f32 %v1177, 0.0
        %v1792 = vmin.f32 %v1182, 0.0
        %v1793 = vmin.f32 %v1187, 0.0
        %v1794 = vmin.f32 %v1192, 0.0
        %v1795 = vmin.f32 %v1197, 0.0
        %v1796 = vmin.f32 %v1202, 0.0
        %v1797 = vmin.f32 %v1207, 0.0
        %v1798 = vmin.f32 %v1212, 0.0
        %v1799 = vmin.f32 %v1217, 0.0
        %v1800 = vmin.f32 %v1222, 0.0
        %v1801 = vmin.f32 %v1227, 0.0
        %v1802 = vmin.f32 %v1232, 0.0
        %v1803 = vmin.f32 %v1237, 0.0
        %v1804 = vmin.f32 %v1242, 0.0
        %v1805 = vmin.f32 %v1247, 0.0
        %v1806 = vmin.f32 %v1252, 0.0
        %v1807 = vmin.f32 %v1257, 0.0
        %v1808 = vmin.f32 %v1262, 0.0
        %v1809 = vmin.f32 %v1267, 0.0
        %v1810 = vmin.f32 %v1272, 0.0
        %v1811 = vmin.f32 %v1277, 0.0
        %v1812 = vmin.f32 %v1282, 0.0
        %v1813 = vmin.f32 %v1287, 0.0
        %v1814 = vmin.f32 %v1292, 0.0
        %v1815 = vmin.f32 %v1297, 0.0
        %v1816 = vmin.f32 %v1302, 0.0
        %v1817 = vmin.f32 %v1307, 0.0
        %v1818 = vmin.f32 %v1312, 0.0
        %v1819 = vmin.f32 %v1317, 0.0
        %v1820 = vmin.f32 %v1322, 0.0
        %v1821 = vmin.f32 %v1327, 0.0
        %v1822 = vmin.f32 %v1332, 0.0
        %v1823 = vmin.f32 %v1337, 0.0
        %v1824 = vmin.f32 %v1342, 0.0
        %v1825 = vmin.f32 %v1347, 0.0
        %v1826 = vmin.f32 %v1352, 0.0
        %v1827 = vmin.f32 %v1357, 0.0
        %v1828 = vmin.f32 %v1362, 0.0
        %v1829 = vmin.f32 %v1367, 0.0
        %v1830 = vmin.f32 %v1372, 0.0
        %v1831 = vmin.f32 %v1377, 0.0
        %v1832 = vmin.f32 %v1382, 0.0
        %v1833 = vmin.f32 %v1387, 0.0
        %v1834 = vmin.f32 %v1392, 0.0
        %v1835 = vmin.f32 %v1397, 0.0
        %v1836 = vmin.f32 %v1402, 0.0
        %v1837 = vmin.f32 %v1407, 0.0
        %v1838 = vmin.f32 %v1412, 0.0
        %v1839 = vmin.f32 %v1417, 0.0
        %v1840 = vmin.f32 %v1422, 0.0
        %v1841 = vmin.f32 %v1427, 0.0
        %v1842 = vmin.f32 %v1432, 0.0
        %v1843 = vmin.f32 %v1437, 0.0
        %v1844 = vmin.f32 %v1442, 0.0
        %v1845 = vmin.f32 %v1447, 0.0
        %v1846 = vmin.f32 %v1452, 0.0
        %v1847 = vmin.f32 %v1457, 0.0
        %v1848 = vmin.f32 %v1462, 0.0
        %v1849 = vmin.f32 %v1467, 0.0
        %v1850 = vmin.f32 %v1472, 0.0
        %v1851 = vmin.f32 %v1477, 0.0
        %v1852 = vmin.f32 %v1482, 0.0
        %v1853 = vmin.f32 %v1487, 0.0
        %v1854 = vmin.f32 %v1492, 0.0
        %v1855 = vmin.f32 %v1497, 0.0
        %v1856 = vmin.f32 %v1502, 0.0
        %v1857 = vmin.f32 %v1507, 0.0
        %v1858 = vmin.f32 %v1512, 0.0
        %v1859 = vmin.f32 %v1517, 0.0
        %v1860 = vmin.f32 %v1522, 0.0
        %v1861 = vmin.f32 %v1527, 0.0
        %v1862 = vmin.f32 %v1532, 0.0
        %v1863 = vmin.f32 %v1537, 0.0
        %v1864 = vmin.f32 %v1542, 0.0
        %v1865 = vmin.f32 %v1547, 0.0
        %v1866 = vmin.f32 %v1552, 0.0
        %v1867 = vmin.f32 %v1557, 0.0
        %v1868 = vmin.f32 %v1562, 0.0
        %v1869 = vmin.f32 %v1567, 0.0
        %v1870 = vmin.f32 %v1572, 0.0
        %v1871 = vmin.f32 %v1577, 0.0
        %v1872 = vmin.f32 %v1582, 0.0
        %v1873 = vmin.f32 %v1587, 0.0
        %v1874 = vmin.f32 %v1592, 0.0
        %v1875 = vmin.f32 %v1597, 0.0
        %v1876 = vmin.f32 %v1602, 0.0
        %v1877 = vmin.f32 %v1607, 0.0
        %v1878 = vmin.f32 %v1612, 0.0
        %v1879 = vmin.f32 %v1617, 0.0
        %v1880 = vmin.f32 %v1622, 0.0
        %v1881 = vmul.f32 %v1753, 1.442695
        %v1882 = vpow.pop %v1881
        %v1883 = vmul.f32 %v1754, 1.442695
        %v1884 = vpow.pop %v1883
        %v1885 = vmul.f32 %v1755, 1.442695
        %v1886 = vpow.pop %v1885
        %v1887 = vmul.f32 %v1756, 1.442695
        %v1888 = vpow.pop %v1887
        %v1889 = vmul.f32 %v1757, 1.442695
        %v1890 = vpow.pop %v1889
        %v1891 = vmul.f32 %v1758, 1.442695
        %v1892 = vpow.pop %v1891
        %v1893 = vmul.f32 %v1759, 1.442695
        %v1894 = vpow.pop %v1893
        %v1895 = vmul.f32 %v1760, 1.442695
        %v1896 = vpow.pop %v1895
        %v1897 = vmul.f32 %v1761, 1.442695
        %v1898 = vpow.pop %v1897
        %v1899 = vmul.f32 %v1762, 1.442695
        %v1900 = vpow.pop %v1899
        %v1901 = vmul.f32 %v1763, 1.442695
        %v1902 = vpow.pop %v1901
        %v1903 = vmul.f32 %v1764, 1.442695
        %v1904 = vpow.pop %v1903
        %v1905 = vmul.f32 %v1765, 1.442695
        %v1906 = vpow.pop %v1905
        %v1907 = vmul.f32 %v1766, 1.442695
        %v1908 = vpow.pop %v1907
        %v1909 = vmul.f32 %v1767, 1.442695
        %v1910 = vpow.pop %v1909
        %v1911 = vmul.f32 %v1768, 1.442695
        %v1912 = vpow.pop %v1911
        %v1913 = vmul.f32 %v1769, 1.442695
        %v1914 = vpow.pop %v1913
        %v1915 = vmul.f32 %v1770, 1.442695
        %v1916 = vpow.pop %v1915
        %v1917 = vmul.f32 %v1771, 1.442695
        %v1918 = vpow.pop %v1917
        %v1919 = vmul.f32 %v1772, 1.442695
        %v1920 = vpow.pop %v1919
        %v1921 = vmul.f32 %v1773, 1.442695
        %v1922 = vpow.pop %v1921
        %v1923 = vmul.f32 %v1774, 1.442695
        %v1924 = vpow.pop %v1923
        %v1925 = vmul.f32 %v1775, 1.442695
        %v1926 = vpow.pop %v1925
        %v1927 = vmul.f32 %v1776, 1.442695
        %v1928 = vpow.pop %v1927
        %v1929 = vmul.f32 %v1777, 1.442695
        %v1930 = vpow.pop %v1929
        %v1931 = vmul.f32 %v1778, 1.442695
        %v1932 = vpow.pop %v1931
        %v1933 = vmul.f32 %v1779, 1.442695
        %v1934 = vpow.pop %v1933
        %v1935 = vmul.f32 %v1780, 1.442695
        %v1936 = vpow.pop %v1935
        %v1937 = vmul.f32 %v1781, 1.442695
        %v1938 = vpow.pop %v1937
        %v1939 = vmul.f32 %v1782, 1.442695
        %v1940 = vpow.pop %v1939
        %v1941 = vmul.f32 %v1783, 1.442695
        %v1942 = vpow.pop %v1941
        %v1943 = vmul.f32 %v1784, 1.442695
        %v1944 = vpow.pop %v1943
        %v1945 = vmul.f32 %v1785, 1.442695
        %v1946 = vpow.pop %v1945
        %v1947 = vmul.f32 %v1786, 1.442695
        %v1948 = vpow.pop %v1947
        %v1949 = vmul.f32 %v1787, 1.442695
        %v1950 = vpow.pop %v1949
        %v1951 = vmul.f32 %v1788, 1.442695
        %v1952 = vpow.pop %v1951
        %v1953 = vmul.f32 %v1789, 1.442695
        %v1954 = vpow.pop %v1953
        %v1955 = vmul.f32 %v1790, 1.442695
        %v1956 = vpow.pop %v1955
        %v1957 = vmul.f32 %v1791, 1.442695
        %v1958 = vpow.pop %v1957
        %v1959 = vmul.f32 %v1792, 1.442695
        %v1960 = vpow.pop %v1959
        %v1961 = vmul.f32 %v1793, 1.442695
        %v1962 = vpow.pop %v1961
        %v1963 = vmul.f32 %v1794, 1.442695
        %v1964 = vpow.pop %v1963
        %v1965 = vmul.f32 %v1795, 1.442695
        %v1966 = vpow.pop %v1965
        %v1967 = vmul.f32 %v1796, 1.442695
        %v1968 = vpow.pop %v1967
        %v1969 = vmul.f32 %v1797, 1.442695
        %v1970 = vpow.pop %v1969
        %v1971 = vmul.f32 %v1798, 1.442695
        %v1972 = vpow.pop %v1971
        %v1973 = vmul.f32 %v1799, 1.442695
        %v1974 = vpow.pop %v1973
        %v1975 = vmul.f32 %v1800, 1.442695
        %v1976 = vpow.pop %v1975
        %v1977 = vmul.f32 %v1801, 1.442695
        %v1978 = vpow.pop %v1977
        %v1979 = vmul.f32 %v1802, 1.442695
        %v1980 = vpow.pop %v1979
        %v1981 = vmul.f32 %v1803, 1.442695
        %v1982 = vpow.pop %v1981
        %v1983 = vmul.f32 %v1804, 1.442695
        %v1984 = vpow.pop %v1983
        %v1985 = vmul.f32 %v1805, 1.442695
        %v1986 = vpow.pop %v1985
        %v1987 = vmul.f32 %v1806, 1.442695
        %v1988 = vpow.pop %v1987
        %v1989 = vmul.f32 %v1807, 1.442695
        %v1990 = vpow.pop %v1989
        %v1991 = vmul.f32 %v1808, 1.442695
        %v1992 = vpow.pop %v1991
        %v1993 = vmul.f32 %v1809, 1.442695
        %v1994 = vpow.pop %v1993
        %v1995 = vmul.f32 %v1810, 1.442695
        %v1996 = vpow.pop %v1995
        %v1997 = vmul.f32 %v1811, 1.442695
        %v1998 = vpow.pop %v1997
        %v1999 = vmul.f32 %v1812, 1.442695
        %v2000 = vpow.pop %v1999
        %v2001 = vmul.f32 %v1813, 1.442695
        %v2002 = vpow.pop %v2001
        %v2003 = vmul.f32 %v1814, 1.442695
        %v2004 = vpow.pop %v2003
        %v2005 = vmul.f32 %v1815, 1.442695
        %v2006 = vpow.pop %v2005
        %v2007 = vmul.f32 %v1816, 1.442695
        %v2008 = vpow.pop %v2007
        %v2009 = vmul.f32 %v1817, 1.442695
        %v2010 = vpow.pop %v2009
        %v2011 = vmul.f32 %v1818, 1.442695
        %v2012 = vpow.pop %v2011
        %v2013 = vmul.f32 %v1819, 1.442695
        %v2014 = vpow.pop %v2013
        %v2015 = vmul.f32 %v1820, 1.442695
        %v2016 = vpow.pop %v2015
        %v2017 = vmul.f32 %v1821, 1.442695
        %v2018 = vpow.pop %v2017
        %v2019 = vmul.f32 %v1822, 1.442695
        %v2020 = vpow.pop %v2019
        %v2021 = vmul.f32 %v1823, 1.442695
        %v2022 = vpow.pop %v2021
        %v2023 = vmul.f32 %v1824, 1.442695
        %v2024 = vpow.pop %v2023
        %v2025 = vmul.f32 %v1825, 1.442695
        %v2026 = vpow.pop %v2025
        %v2027 = vmul.f32 %v1826, 1.442695
        %v2028 = vpow.pop %v2027
        %v2029 = vmul.f32 %v1827, 1.442695
        %v2030 = vpow.pop %v2029
        %v2031 = vmul.f32 %v1828, 1.442695
        %v2032 = vpow.pop %v2031
        %v2033 = vmul.f32 %v1829, 1.442695
        %v2034 = vpow.pop %v2033
        %v2035 = vmul.f32 %v1830, 1.442695
        %v2036 = vpow.pop %v2035
        %v2037 = vmul.f32 %v1831, 1.442695
        %v2038 = vpow.pop %v2037
        %v2039 = vmul.f32 %v1832, 1.442695
        %v2040 = vpow.pop %v2039
        %v2041 = vmul.f32 %v1833, 1.442695
        %v2042 = vpow.pop %v2041
        %v2043 = vmul.f32 %v1834, 1.442695
        %v2044 = vpow.pop %v2043
        %v2045 = vmul.f32 %v1835, 1.442695
        %v2046 = vpow.pop %v2045
        %v2047 = vmul.f32 %v1836, 1.442695
        %v2048 = vpow.pop %v2047
        %v2049 = vmul.f32 %v1837, 1.442695
        %v2050 = vpow.pop %v2049
        %v2051 = vmul.f32 %v1838, 1.442695
        %v2052 = vpow.pop %v2051
        %v2053 = vmul.f32 %v1839, 1.442695
        %v2054 = vpow.pop %v2053
        %v2055 = vmul.f32 %v1840, 1.442695
        %v2056 = vpow.pop %v2055
        %v2057 = vmul.f32 %v1841, 1.442695
        %v2058 = vpow.pop %v2057
        %v2059 = vmul.f32 %v1842, 1.442695
        %v2060 = vpow.pop %v2059
        %v2061 = vmul.f32 %v1843, 1.442695
        %v2062 = vpow.pop %v2061
        %v2063 = vmul.f32 %v1844, 1.442695
        %v2064 = vpow.pop %v2063
        %v2065 = vmul.f32 %v1845, 1.442695
        %v2066 = vpow.pop %v2065
        %v2067 = vmul.f32 %v1846, 1.442695
        %v2068 = vpow.pop %v2067
        %v2069 = vmul.f32 %v1847, 1.442695
        %v2070 = vpow.pop %v2069
        %v2071 = vmul.f32 %v1848, 1.442695
        %v2072 = vpow.pop %v2071
        %v2073 = vmul.f32 %v1849, 1.442695
        %v2074 = vpow.pop %v2073
        %v2075 = vmul.f32 %v1850, 1.442695
        %v2076 = vpow.pop %v2075
        %v2077 = vmul.f32 %v1851, 1.442695
        %v2078 = vpow.pop %v2077
        %v2079 = vmul.f32 %v1852, 1.442695
        %v2080 = vpow.pop %v2079
        %v2081 = vmul.f32 %v1853, 1.442695
        %v2082 = vpow.pop %v2081
        %v2083 = vmul.f32 %v1854, 1.442695
        %v2084 = vpow.pop %v2083
        %v2085 = vmul.f32 %v1855, 1.442695
        %v2086 = vpow.pop %v2085
        %v2087 = vmul.f32 %v1856, 1.442695
        %v2088 = vpow.pop %v2087
        %v2089 = vmul.f32 %v1857, 1.442695
        %v2090 = vpow.pop %v2089
        %v2091 = vmul.f32 %v1858, 1.442695
        %v2092 = vpow.pop %v2091
        %v2093 = vmul.f32 %v1859, 1.442695
        %v2094 = vpow.pop %v2093
        %v2095 = vmul.f32 %v1860, 1.442695
        %v2096 = vpow.pop %v2095
        %v2097 = vmul.f32 %v1861, 1.442695
        %v2098 = vpow.pop %v2097
        %v2099 = vmul.f32 %v1862, 1.442695
        %v2100 = vpow.pop %v2099
        %v2101 = vmul.f32 %v1863, 1.442695
        %v2102 = vpow.pop %v2101
        %v2103 = vmul.f32 %v1864, 1.442695
        %v2104 = vpow.pop %v2103
        %v2105 = vmul.f32 %v1865, 1.442695
        %v2106 = vpow.pop %v2105
        %v2107 = vmul.f32 %v1866, 1.442695
        %v2108 = vpow.pop %v2107
        %v2109 = vmul.f32 %v1867, 1.442695
        %v2110 = vpow.pop %v2109
        %v2111 = vmul.f32 %v1868, 1.442695
        %v2112 = vpow.pop %v2111
        %v2113 = vmul.f32 %v1869, 1.442695
        %v2114 = vpow.pop %v2113
        %v2115 = vmul.f32 %v1870, 1.442695
        %v2116 = vpow.pop %v2115
        %v2117 = vmul.f32 %v1871, 1.442695
        %v2118 = vpow.pop %v2117
        %v2119 = vmul.f32 %v1872, 1.442695
        %v2120 = vpow.pop %v2119
        %v2121 = vmul.f32 %v1873, 1.442695
        %v2122 = vpow.pop %v2121
        %v2123 = vmul.f32 %v1874, 1.442695
        %v2124 = vpow.pop %v2123
        %v2125 = vmul.f32 %v1875, 1.442695
        %v2126 = vpow.pop %v2125
        %v2127 = vmul.f32 %v1876, 1.442695
        %v2128 = vpow.pop %v2127
        %v2129 = vmul.f32 %v1877, 1.442695
        %v2130 = vpow.pop %v2129
        %v2131 = vmul.f32 %v1878, 1.442695
        %v2132 = vpow.pop %v2131
        %v2133 = vmul.f32 %v1879, 1.442695
        %v2134 = vpow.pop %v2133
        %v2135 = vmul.f32 %v1880, 1.442695
        %v2136 = vpow.pop %v2135
        %v2137 = vsub.f32 %v1882, 1.0
        %v2138 = vsub.f32 %v1884, 1.0
        %v2139 = vsub.f32 %v1886, 1.0
        %v2140 = vsub.f32 %v1888, 1.0
        %v2141 = vsub.f32 %v1890, 1.0
        %v2142 = vsub.f32 %v1892, 1.0
        %v2143 = vsub.f32 %v1894, 1.0
        %v2144 = vsub.f32 %v1896, 1.0
        %v2145 = vsub.f32 %v1898, 1.0
        %v2146 = vsub.f32 %v1900, 1.0
        %v2147 = vsub.f32 %v1902, 1.0
        %v2148 = vsub.f32 %v1904, 1.0
        %v2149 = vsub.f32 %v1906, 1.0
        %v2150 = vsub.f32 %v1908, 1.0
        %v2151 = vsub.f32 %v1910, 1.0
        %v2152 = vsub.f32 %v1912, 1.0
        %v2153 = vsub.f32 %v1914, 1.0
        %v2154 = vsub.f32 %v1916, 1.0
        %v2155 = vsub.f32 %v1918, 1.0
        %v2156 = vsub.f32 %v1920, 1.0
        %v2157 = vsub.f32 %v1922, 1.0
        %v2158 = vsub.f32 %v1924, 1.0
        %v2159 = vsub.f32 %v1926, 1.0
        %v2160 = vsub.f32 %v1928, 1.0
        %v2161 = vsub.f32 %v1930, 1.0
        %v2162 = vsub.f32 %v1932, 1.0
        %v2163 = vsub.f32 %v1934, 1.0
        %v2164 = vsub.f32 %v1936, 1.0
        %v2165 = vsub.f32 %v1938, 1.0
        %v2166 = vsub.f32 %v1940, 1.0
        %v2167 = vsub.f32 %v1942, 1.0
        %v2168 = vsub.f32 %v1944, 1.0
        %v2169 = vsub.f32 %v1946, 1.0
        %v2170 = vsub.f32 %v1948, 1.0
        %v2171 = vsub.f32 %v1950, 1.0
        %v2172 = vsub.f32 %v1952, 1.0
        %v2173 = vsub.f32 %v1954, 1.0
        %v2174 = vsub.f32 %v1956, 1.0
        %v2175 = vsub.f32 %v1958, 1.0
        %v2176 = vsub.f32 %v1960, 1.0
        %v2177 = vsub.f32 %v1962, 1.0
        %v2178 = vsub.f32 %v1964, 1.0
        %v2179 = vsub.f32 %v1966, 1.0
        %v2180 = vsub.f32 %v1968, 1.0
        %v2181 = vsub.f32 %v1970, 1.0
        %v2182 = vsub.f32 %v1972, 1.0
        %v2183 = vsub.f32 %v1974, 1.0
        %v2184 = vsub.f32 %v1976, 1.0
        %v2185 = vsub.f32 %v1978, 1.0
        %v2186 = vsub.f32 %v1980, 1.0
        %v2187 = vsub.f32 %v1982, 1.0
        %v2188 = vsub.f32 %v1984, 1.0
        %v2189 = vsub.f32 %v1986, 1.0
        %v2190 = vsub.f32 %v1988, 1.0
        %v2191 = vsub.f32 %v1990, 1.0
        %v2192 = vsub.f32 %v1992, 1.0
        %v2193 = vsub.f32 %v1994, 1.0
        %v2194 = vsub.f32 %v1996, 1.0
        %v2195 = vsub.f32 %v1998, 1.0
        %v2196 = vsub.f32 %v2000, 1.0
        %v2197 = vsub.f32 %v2002, 1.0
        %v2198 = vsub.f32 %v2004, 1.0
        %v2199 = vsub.f32 %v2006, 1.0
        %v2200 = vsub.f32 %v2008, 1.0
        %v2201 = vsub.f32 %v2010, 1.0
        %v2202 = vsub.f32 %v2012, 1.0
        %v2203 = vsub.f32 %v2014, 1.0
        %v2204 = vsub.f32 %v2016, 1.0
        %v2205 = vsub.f32 %v2018, 1.0
        %v2206 = vsub.f32 %v2020, 1.0
        %v2207 = vsub.f32 %v2022, 1.0
        %v2208 = vsub.f32 %v2024, 1.0
        %v2209 = vsub.f32 %v2026, 1.0
        %v2210 = vsub.f32 %v2028, 1.0
        %v2211 = vsub.f32 %v2030, 1.0
        %v2212 = vsub.f32 %v2032, 1.0
        %v2213 = vsub.f32 %v2034, 1.0
        %v2214 = vsub.f32 %v2036, 1.0
        %v2215 = vsub.f32 %v2038, 1.0
        %v2216 = vsub.f32 %v2040, 1.0
        %v2217 = vsub.f32 %v2042, 1.0
        %v2218 = vsub.f32 %v2044, 1.0
        %v2219 = vsub.f32 %v2046, 1.0
        %v2220 = vsub.f32 %v2048, 1.0
        %v2221 = vsub.f32 %v2050, 1.0
        %v2222 = vsub.f32 %v2052, 1.0
        %v2223 = vsub.f32 %v2054, 1.0
        %v2224 = vsub.f32 %v2056, 1.0
        %v2225 = vsub.f32 %v2058, 1.0
        %v2226 = vsub.f32 %v2060, 1.0
        %v2227 = vsub.f32 %v2062, 1.0
        %v2228 = vsub.f32 %v2064, 1.0
        %v2229 = vsub.f32 %v2066, 1.0
        %v2230 = vsub.f32 %v2068, 1.0
        %v2231 = vsub.f32 %v2070, 1.0
        %v2232 = vsub.f32 %v2072, 1.0
        %v2233 = vsub.f32 %v2074, 1.0
        %v2234 = vsub.f32 %v2076, 1.0
        %v2235 = vsub.f32 %v2078, 1.0
        %v2236 = vsub.f32 %v2080, 1.0
        %v2237 = vsub.f32 %v2082, 1.0
        %v2238 = vsub.f32 %v2084, 1.0
        %v2239 = vsub.f32 %v2086, 1.0
        %v2240 = vsub.f32 %v2088, 1.0
        %v2241 = vsub.f32 %v2090, 1.0
        %v2242 = vsub.f32 %v2092, 1.0
        %v2243 = vsub.f32 %v2094, 1.0
        %v2244 = vsub.f32 %v2096, 1.0
        %v2245 = vsub.f32 %v2098, 1.0
        %v2246 = vsub.f32 %v2100, 1.0
        %v2247 = vsub.f32 %v2102, 1.0
        %v2248 = vsub.f32 %v2104, 1.0
        %v2249 = vsub.f32 %v2106, 1.0
        %v2250 = vsub.f32 %v2108, 1.0
        %v2251 = vsub.f32 %v2110, 1.0
        %v2252 = vsub.f32 %v2112, 1.0
        %v2253 = vsub.f32 %v2114, 1.0
        %v2254 = vsub.f32 %v2116, 1.0
        %v2255 = vsub.f32 %v2118, 1.0
        %v2256 = vsub.f32 %v2120, 1.0
        %v2257 = vsub.f32 %v2122, 1.0
        %v2258 = vsub.f32 %v2124, 1.0
        %v2259 = vsub.f32 %v2126, 1.0
        %v2260 = vsub.f32 %v2128, 1.0
        %v2261 = vsub.f32 %v2130, 1.0
        %v2262 = vsub.f32 %v2132, 1.0
        %v2263 = vsub.f32 %v2134, 1.0
        %v2264 = vsub.f32 %v2136, 1.0
        %v2265 = vsel %vm1625, %v987, %v2137
        %v2266 = vsel %vm1626, %v992, %v2138
        %v2267 = vsel %vm1627, %v997, %v2139
        %v2268 = vsel %vm1628, %v1002, %v2140
        %v2269 = vsel %vm1629, %v1007, %v2141
        %v2270 = vsel %vm1630, %v1012, %v2142
        %v2271 = vsel %vm1631, %v1017, %v2143
        %v2272 = vsel %vm1632, %v1022, %v2144
        %v2273 = vsel %vm1633, %v1027, %v2145
        %v2274 = vsel %vm1634, %v1032, %v2146
        %v2275 = vsel %vm1635, %v1037, %v2147
        %v2276 = vsel %vm1636, %v1042, %v2148
        %v2277 = vsel %vm1637, %v1047, %v2149
        %v2278 = vsel %vm1638, %v1052, %v2150
        %v2279 = vsel %vm1639, %v1057, %v2151
        %v2280 = vsel %vm1640, %v1062, %v2152
        %v2281 = vsel %vm1641, %v1067, %v2153
        %v2282 = vsel %vm1642, %v1072, %v2154
        %v2283 = vsel %vm1643, %v1077, %v2155
        %v2284 = vsel %vm1644, %v1082, %v2156
        %v2285 = vsel %vm1645, %v1087, %v2157
        %v2286 = vsel %vm1646, %v1092, %v2158
        %v2287 = vsel %vm1647, %v1097, %v2159
        %v2288 = vsel %vm1648, %v1102, %v2160
        %v2289 = vsel %vm1649, %v1107, %v2161
        %v2290 = vsel %vm1650, %v1112, %v2162
        %v2291 = vsel %vm1651, %v1117, %v2163
        %v2292 = vsel %vm1652, %v1122, %v2164
        %v2293 = vsel %vm1653, %v1127, %v2165
        %v2294 = vsel %vm1654, %v1132, %v2166
        %v2295 = vsel %vm1655, %v1137, %v2167
        %v2296 = vsel %vm1656, %v1142, %v2168
        %v2297 = vsel %vm1657, %v1147, %v2169
        %v2298 = vsel %vm1658, %v1152, %v2170
        %v2299 = vsel %vm1659, %v1157, %v2171
        %v2300 = vsel %vm1660, %v1162, %v2172
        %v2301 = vsel %vm1661, %v1167, %v2173
        %v2302 = vsel %vm1662, %v1172, %v2174
        %v2303 = vsel %vm1663, %v1177, %v2175
        %v2304 = vsel %vm1664, %v1182, %v2176
        %v2305 = vsel %vm1665, %v1187, %v2177
        %v2306 = vsel %vm1666, %v1192, %v2178
        %v2307 = vsel %vm1667, %v1197, %v2179
        %v2308 = vsel %vm1668, %v1202, %v2180
        %v2309 = vsel %vm1669, %v1207, %v2181
        %v2310 = vsel %vm1670, %v1212, %v2182
        %v2311 = vsel %vm1671, %v1217, %v2183
        %v2312 = vsel %vm1672, %v1222, %v2184
        %v2313 = vsel %vm1673, %v1227, %v2185
        %v2314 = vsel %vm1674, %v1232, %v2186
        %v2315 = vsel %vm1675, %v1237, %v2187
        %v2316 = vsel %vm1676, %v1242, %v2188
        %v2317 = vsel %vm1677, %v1247, %v2189
        %v2318 = vsel %vm1678, %v1252, %v2190
        %v2319 = vsel %vm1679, %v1257, %v2191
        %v2320 = vsel %vm1680, %v1262, %v2192
        %v2321 = vsel %vm1681, %v1267, %v2193
        %v2322 = vsel %vm1682, %v1272, %v2194
        %v2323 = vsel %vm1683, %v1277, %v2195
        %v2324 = vsel %vm1684, %v1282, %v2196
        %v2325 = vsel %vm1685, %v1287, %v2197
        %v2326 = vsel %vm1686, %v1292, %v2198
        %v2327 = vsel %vm1687, %v1297, %v2199
        %v2328 = vsel %vm1688, %v1302, %v2200
        %v2329 = vsel %vm1689, %v1307, %v2201
        %v2330 = vsel %vm1690, %v1312, %v2202
        %v2331 = vsel %vm1691, %v1317, %v2203
        %v2332 = vsel %vm1692, %v1322, %v2204
        %v2333 = vsel %vm1693, %v1327, %v2205
        %v2334 = vsel %vm1694, %v1332, %v2206
        %v2335 = vsel %vm1695, %v1337, %v2207
        %v2336 = vsel %vm1696, %v1342, %v2208
        %v2337 = vsel %vm1697, %v1347, %v2209
        %v2338 = vsel %vm1698, %v1352, %v2210
        %v2339 = vsel %vm1699, %v1357, %v2211
        %v2340 = vsel %vm1700, %v1362, %v2212
        %v2341 = vsel %vm1701, %v1367, %v2213
        %v2342 = vsel %vm1702, %v1372, %v2214
        %v2343 = vsel %vm1703, %v1377, %v2215
        %v2344 = vsel %vm1704, %v1382, %v2216
        %v2345 = vsel %vm1705, %v1387, %v2217
        %v2346 = vsel %vm1706, %v1392, %v2218
        %v2347 = vsel %vm1707, %v1397, %v2219
        %v2348 = vsel %vm1708, %v1402, %v2220
        %v2349 = vsel %vm1709, %v1407, %v2221
        %v2350 = vsel %vm1710, %v1412, %v2222
        %v2351 = vsel %vm1711, %v1417, %v2223
        %v2352 = vsel %vm1712, %v1422, %v2224
        %v2353 = vsel %vm1713, %v1427, %v2225
        %v2354 = vsel %vm1714, %v1432, %v2226
        %v2355 = vsel %vm1715, %v1437, %v2227
        %v2356 = vsel %vm1716, %v1442, %v2228
        %v2357 = vsel %vm1717, %v1447, %v2229
        %v2358 = vsel %vm1718, %v1452, %v2230
        %v2359 = vsel %vm1719, %v1457, %v2231
        %v2360 = vsel %vm1720, %v1462, %v2232
        %v2361 = vsel %vm1721, %v1467, %v2233
        %v2362 = vsel %vm1722, %v1472, %v2234
        %v2363 = vsel %vm1723, %v1477, %v2235
        %v2364 = vsel %vm1724, %v1482, %v2236
        %v2365 = vsel %vm1725, %v1487, %v2237
        %v2366 = vsel %vm1726, %v1492, %v2238
        %v2367 = vsel %vm1727, %v1497, %v2239
        %v2368 = vsel %vm1728, %v1502, %v2240
        %v2369 = vsel %vm1729, %v1507, %v2241
        %v2370 = vsel %vm1730, %v1512, %v2242
        %v2371 = vsel %vm1731, %v1517, %v2243
        %v2372 = vsel %vm1732, %v1522, %v2244
        %v2373 = vsel %vm1733, %v1527, %v2245
        %v2374 = vsel %vm1734, %v1532, %v2246
        %v2375 = vsel %vm1735, %v1537, %v2247
        %v2376 = vsel %vm1736, %v1542, %v2248
        %v2377 = vsel %vm1737, %v1547, %v2249
        %v2378 = vsel %vm1738, %v1552, %v2250
        %v2379 = vsel %vm1739, %v1557, %v2251
        %v2380 = vsel %vm1740, %v1562, %v2252
        %v2381 = vsel %vm1741, %v1567, %v2253
        %v2382 = vsel %vm1742, %v1572, %v2254
        %v2383 = vsel %vm1743, %v1577, %v2255
        %v2384 = vsel %vm1744, %v1582, %v2256
        %v2385 = vsel %vm1745, %v1587, %v2257
        %v2386 = vsel %vm1746, %v1592, %v2258
        %v2387 = vsel %vm1747, %v1597, %v2259
        %v2388 = vsel %vm1748, %v1602, %v2260
        %v2389 = vsel %vm1749, %v1607, %v2261
        %v2390 = vsel %vm1750, %v1612, %v2262
        %v2391 = vsel %vm1751, %v1617, %v2263
        %v2392 = vsel %vm1752, %v1622, %v2264
        %v2393 = vld [vmem:[#allocation8] sm:$0xff]
        %v2394 = vld [vmem:[#allocation8 + $0x8] sm:$0xff]
        %v2395 = vld [vmem:[#allocation8 + $0x10] sm:$0xff]
        %v2396 = vld [vmem:[#allocation8 + $0x18] sm:$0xff]
        %v2397 = vld [vmem:[#allocation8 + $0x20] sm:$0xff]
        %v2398 = vld [vmem:[#allocation8 + $0x28] sm:$0xff]
        %v2399 = vld [vmem:[#allocation8 + $0x30] sm:$0xff]
        %v2400 = vld [vmem:[#allocation8 + $0x38] sm:$0xff]
        %v2401 = vld [vmem:[#allocation8 + $0x40] sm:$0xff]
        %v2402 = vld [vmem:[#allocation8 + $0x48] sm:$0xff]
        %v2403 = vld [vmem:[#allocation8 + $0x50] sm:$0xff]
        %v2404 = vld [vmem:[#allocation8 + $0x58] sm:$0xff]
        %v2405 = vld [vmem:[#allocation8 + $0x60] sm:$0xff]
        %v2406 = vld [vmem:[#allocation8 + $0x68] sm:$0xff]
        %v2407 = vld [vmem:[#allocation8 + $0x70] sm:$0xff]
        %v2408 = vld [vmem:[#allocation8 + $0x78] sm:$0xff]
        %v2409 = vld [vmem:[%s5] sm:$0x1]
        %v2410 = vlaneseq
        %v2411 = vshrl.u32 %v2410, 7
        %v2412 = vsub.s32 0, %v2411
        %v2413 = vrot.slane %v2409, %v2412
        %2414 = vmatprep.subr.mxu0 0.0
        %2415 = vmatpush1.msra.mxu0 %v2393
        %2416 = vmatprep.subr.mxu0 0.0
        %2417 = vmatpush1.msra.mxu0 %v2394
        %2418 = vmatprep.subr.mxu0 0.0
        %2419 = vmatpush1.msra.mxu0 %v2395
        %2420 = vmatprep.subr.mxu0 0.0
        %2421 = vmatpush1.msra.mxu0 %v2396
        %2422 = vmatprep.subr.mxu0 0.0
        %2423 = vmatpush1.msra.mxu0 %v2397
        %2424 = vmatprep.subr.mxu0 0.0
        %2425 = vmatpush1.msra.mxu0 %v2398
        %2426 = vmatprep.subr.mxu0 0.0
        %2427 = vmatpush1.msra.mxu0 %v2399
        %2428 = vmatprep.subr.mxu0 0.0
        %2429 = vmatpush1.msra.mxu0 %v2400
        %2430 = vmatprep.subr.mxu0 0.0
        %2431 = vmatpush1.msra.mxu0 %v2401
        %2432 = vmatprep.subr.mxu0 0.0
        %2433 = vmatpush1.msra.mxu0 %v2402
        %2434 = vmatprep.subr.mxu0 0.0
        %2435 = vmatpush1.msra.mxu0 %v2403
        %2436 = vmatprep.subr.mxu0 0.0
        %2437 = vmatpush1.msra.mxu0 %v2404
        %2438 = vmatprep.subr.mxu0 0.0
        %2439 = vmatpush1.msra.mxu0 %v2405
        %2440 = vmatprep.subr.mxu0 0.0
        %2441 = vmatpush1.msra.mxu0 %v2406
        %2442 = vmatprep.subr.mxu0 0.0
        %2443 = vmatpush1.msra.mxu0 %v2407
        %2444 = vmatprep.subr.mxu0 0.0
        %2445 = vmatpush1.msra.mxu0 %v2408
        %2446 = vmatprep.subr.mxu0 0.0
        %2447 = vmatpush1.msra.mxu0 0.0
        %2448 = vmatprep.subr.mxu0 0.0
        %2449 = vmatpush1.msra.mxu0 0.0
        %2450 = vmatprep.subr.mxu0 0.0
        %2451 = vmatpush1.msra.mxu0 0.0
        %2452 = vmatprep.subr.mxu0 0.0
        %2453 = vmatpush1.msra.mxu0 0.0
        %2454 = vmatprep.subr.mxu0 0.0
        %2455 = vmatpush1.msra.mxu0 0.0
        %2456 = vmatprep.subr.mxu0 0.0
        %2457 = vmatpush1.msra.mxu0 0.0
        %2458 = vmatprep.subr.mxu0 0.0
        %2459 = vmatpush1.msra.mxu0 0.0
        %2460 = vmatprep.subr.mxu0 0.0
        %2461 = vmatpush1.msra.mxu0 0.0
        %2462 = vmatprep.subr.mxu0 0.0
        %2463 = vmatpush1.msra.mxu0 0.0
        %2464 = vmatprep.subr.mxu0 0.0
        %2465 = vmatpush1.msra.mxu0 0.0
        %2466 = vmatprep.subr.mxu0 0.0
        %2467 = vmatpush1.msra.mxu0 0.0
        %2468 = vmatprep.subr.mxu0 0.0
        %2469 = vmatpush1.msra.mxu0 0.0
        %2470 = vmatprep.subr.mxu0 0.0
        %2471 = vmatpush1.msra.mxu0 0.0
        %2472 = vmatprep.subr.mxu0 0.0
        %2473 = vmatpush1.msra.mxu0 0.0
        %2474 = vmatprep.subr.mxu0 0.0
        %2475 = vmatpush1.msra.mxu0 0.0
        %2476 = vmatprep.subr.mxu0 0.0
        %2477 = vmatpush1.msra.mxu0 0.0
        %2478 = vmatprep.mubr.f32.mxu0 0.0
        %2479 = vmatmul.mubr.f32.gmra.mrb[0].mxu0 %v2265
        %v2480 = vpop.f32.mrb[0].mxu0
        %v2481 = vadd.f32 %v2413, %v2480
        %v2482 = vpop.f32.mrb[0].mxu0
        %2483 = vmatprep.mubr.f32.mxu0 0.0
        %2484 = vmatmul.mubr.f32.gmra.mrb[0].mxu0 %v2266
        %v2485 = vpop.f32.mrb[0].mxu0
        %v2486 = vadd.f32 %v2413, %v2485
        %v2487 = vpop.f32.mrb[0].mxu0
        %2488 = vmatprep.mubr.f32.mxu0 0.0
        %2489 = vmatmul.mubr.f32.gmra.mrb[0].mxu0 %v2267
        %v2490 = vpop.f32.mrb[0].mxu0
        %v2491 = vadd.f32 %v2413, %v2490
        %v2492 = vpop.f32.mrb[0].mxu0
        %2493 = vmatprep.mubr.f32.mxu0 0.0
        %2494 = vmatmul.mubr.f32.gmra.mrb[0].mxu0 %v2268
        %v2495 = vpop.f32.mrb[0].mxu0
        %v2496 = vadd.f32 %v2413, %v2495
        %v2497 = vpop.f32.mrb[0].mxu0
        %2498 = vmatprep.mubr.f32.mxu0 0.0
        %2499 = vmatmul.mubr.f32.gmra.mrb[0].mxu0 %v2269
        %v2500 = vpop.f32.mrb[0].mxu0
        %v2501 = vadd.f32 %v2413, %v2500
        %v2502 = vpop.f32.mrb[0].mxu0
        %2503 = vmatprep.mubr.f32.mxu0 0.0
        %2504 = vmatmul.mubr.f32.gmra.mrb[0].mxu0 %v2270
        %v2505 = vpop.f32.mrb[0].mxu0
        %v2506 = vadd.f32 %v2413, %v2505
        %v2507 = vpop.f32.mrb[0].mxu0
        %2508 = vmatprep.mubr.f32.mxu0 0.0
        %2509 = vmatmul.mubr.f32.gmra.mrb[0].mxu0 %v2271
        %v2510 = vpop.f32.mrb[0].mxu0
        %v2511 = vadd.f32 %v2413, %v2510
        %v2512 = vpop.f32.mrb[0].mxu0
        %2513 = vmatprep.mubr.f32.mxu0 0.0
        %2514 = vmatmul.mubr.f32.gmra.mrb[0].mxu0 %v2272
        %v2515 = vpop.f32.mrb[0].mxu0
        %v2516 = vadd.f32 %v2413, %v2515
        %v2517 = vpop.f32.mrb[0].mxu0
        %2518 = vmatprep.mubr.f32.mxu0 0.0
        %2519 = vmatmul.mubr.f32.gmra.mrb[0].mxu0 %v2273
        %v2520 = vpop.f32.mrb[0].mxu0
        %v2521 = vadd.f32 %v2413, %v2520
        %v2522 = vpop.f32.mrb[0].mxu0
        %2523 = vmatprep.mubr.f32.mxu0 0.0
        %2524 = vmatmul.mubr.f32.gmra.mrb[0].mxu0 %v2274
        %v2525 = vpop.f32.mrb[0].mxu0
        %v2526 = vadd.f32 %v2413, %v2525
        %v2527 = vpop.f32.mrb[0].mxu0
        %2528 = vmatprep.mubr.f32.mxu0 0.0
        %2529 = vmatmul.mubr.f32.gmra.mrb[0].mxu0 %v2275
        %v2530 = vpop.f32.mrb[0].mxu0
        %v2531 = vadd.f32 %v2413, %v2530
        %v2532 = vpop.f32.mrb[0].mxu0
        %2533 = vmatprep.mubr.f32.mxu0 0.0
        %2534 = vmatmul.mubr.f32.gmra.mrb[0].mxu0 %v2276
        %v2535 = vpop.f32.mrb[0].mxu0
        %v2536 = vadd.f32 %v2413, %v2535
        %v2537 = vpop.f32.mrb[0].mxu0
        %2538 = vmatprep.mubr.f32.mxu0 0.0
        %2539 = vmatmul.mubr.f32.gmra.mrb[0].mxu0 %v2277
        %v2540 = vpop.f32.mrb[0].mxu0
        %v2541 = vadd.f32 %v2413, %v2540
        %v2542 = vpop.f32.mrb[0].mxu0
        %2543 = vmatprep.mubr.f32.mxu0 0.0
        %2544 = vmatmul.mubr.f32.gmra.mrb[0].mxu0 %v2278
        %v2545 = vpop.f32.mrb[0].mxu0
        %v2546 = vadd.f32 %v2413, %v2545
        %v2547 = vpop.f32.mrb[0].mxu0
        %2548 = vmatprep.mubr.f32.mxu0 0.0
        %2549 = vmatmul.mubr.f32.gmra.mrb[0].mxu0 %v2279
        %v2550 = vpop.f32.mrb[0].mxu0
        %v2551 = vadd.f32 %v2413, %v2550
        %v2552 = vpop.f32.mrb[0].mxu0
        %2553 = vmatprep.mubr.f32.mxu0 0.0
        %2554 = vmatmul.mubr.f32.gmra.mrb[0].mxu0 %v2280
        %v2555 = vpop.f32.mrb[0].mxu0
        %v2556 = vadd.f32 %v2413, %v2555
        %v2557 = vpop.f32.mrb[0].mxu0
        %2558 = vmatprep.mubr.f32.mxu0 0.0
        %2559 = vmatmul.mubr.f32.gmra.mrb[0].mxu0 %v2281
        %v2560 = vpop.f32.mrb[0].mxu0
        %v2561 = vadd.f32 %v2413, %v2560
        %v2562 = vpop.f32.mrb[0].mxu0
        %2563 = vmatprep.mubr.f32.mxu0 0.0
        %2564 = vmatmul.mubr.f32.gmra.mrb[0].mxu0 %v2282
        %v2565 = vpop.f32.mrb[0].mxu0
        %v2566 = vadd.f32 %v2413, %v2565
        %v2567 = vpop.f32.mrb[0].mxu0
        %2568 = vmatprep.mubr.f32.mxu0 0.0
        %2569 = vmatmul.mubr.f32.gmra.mrb[0].mxu0 %v2283
        %v2570 = vpop.f32.mrb[0].mxu0
        %v2571 = vadd.f32 %v2413, %v2570
        %v2572 = vpop.f32.mrb[0].mxu0
        %2573 = vmatprep.mubr.f32.mxu0 0.0
        %2574 = vmatmul.mubr.f32.gmra.mrb[0].mxu0 %v2284
        %v2575 = vpop.f32.mrb[0].mxu0
        %v2576 = vadd.f32 %v2413, %v2575
        %v2577 = vpop.f32.mrb[0].mxu0
        %2578 = vmatprep.mubr.f32.mxu0 0.0
        %2579 = vmatmul.mubr.f32.gmra.mrb[0].mxu0 %v2285
        %v2580 = vpop.f32.mrb[0].mxu0
        %v2581 = vadd.f32 %v2413, %v2580
        %v2582 = vpop.f32.mrb[0].mxu0
        %2583 = vmatprep.mubr.f32.mxu0 0.0
        %2584 = vmatmul.mubr.f32.gmra.mrb[0].mxu0 %v2286
        %v2585 = vpop.f32.mrb[0].mxu0
        %v2586 = vadd.f32 %v2413, %v2585
        %v2587 = vpop.f32.mrb[0].mxu0
        %2588 = vmatprep.mubr.f32.mxu0 0.0
        %2589 = vmatmul.mubr.f32.gmra.mrb[0].mxu0 %v2287
        %v2590 = vpop.f32.mrb[0].mxu0
        %v2591 = vadd.f32 %v2413, %v2590
        %v2592 = vpop.f32.mrb[0].mxu0
        %2593 = vmatprep.mubr.f32.mxu0 0.0
        %2594 = vmatmul.mubr.f32.gmra.mrb[0].mxu0 %v2288
        %v2595 = vpop.f32.mrb[0].mxu0
        %v2596 = vadd.f32 %v2413, %v2595
        %v2597 = vpop.f32.mrb[0].mxu0
        %2598 = vmatprep.mubr.f32.mxu0 0.0
        %2599 = vmatmul.mubr.f32.gmra.mrb[0].mxu0 %v2289
        %v2600 = vpop.f32.mrb[0].mxu0
        %v2601 = vadd.f32 %v2413, %v2600
        %v2602 = vpop.f32.mrb[0].mxu0
        %2603 = vmatprep.mubr.f32.mxu0 0.0
        %2604 = vmatmul.mubr.f32.gmra.mrb[0].mxu0 %v2290
        %v2605 = vpop.f32.mrb[0].mxu0
        %v2606 = vadd.f32 %v2413, %v2605
        %v2607 = vpop.f32.mrb[0].mxu0
        %2608 = vmatprep.mubr.f32.mxu0 0.0
        %2609 = vmatmul.mubr.f32.gmra.mrb[0].mxu0 %v2291
        %v2610 = vpop.f32.mrb[0].mxu0
        %v2611 = vadd.f32 %v2413, %v2610
        %v2612 = vpop.f32.mrb[0].mxu0
        %2613 = vmatprep.mubr.f32.mxu0 0.0
        %2614 = vmatmul.mubr.f32.gmra.mrb[0].mxu0 %v2292
        %v2615 = vpop.f32.mrb[0].mxu0
        %v2616 = vadd.f32 %v2413, %v2615
        %v2617 = vpop.f32.mrb[0].mxu0
        %2618 = vmatprep.mubr.f32.mxu0 0.0
        %2619 = vmatmul.mubr.f32.gmra.mrb[0].mxu0 %v2293
        %v2620 = vpop.f32.mrb[0].mxu0
        %v2621 = vadd.f32 %v2413, %v2620
        %v2622 = vpop.f32.mrb[0].mxu0
        %2623 = vmatprep.mubr.f32.mxu0 0.0
        %2624 = vmatmul.mubr.f32.gmra.mrb[0].mxu0 %v2294
        %v2625 = vpop.f32.mrb[0].mxu0
        %v2626 = vadd.f32 %v2413, %v2625
        %v2627 = vpop.f32.mrb[0].mxu0
        %2628 = vmatprep.mubr.f32.mxu0 0.0
        %2629 = vmatmul.mubr.f32.gmra.mrb[0].mxu0 %v2295
        %v2630 = vpop.f32.mrb[0].mxu0
        %v2631 = vadd.f32 %v2413, %v2630
        %v2632 = vpop.f32.mrb[0].mxu0
        %2633 = vmatprep.mubr.f32.mxu0 0.0
        %2634 = vmatmul.mubr.f32.gmra.mrb[0].mxu0 %v2296
        %v2635 = vpop.f32.mrb[0].mxu0
        %v2636 = vadd.f32 %v2413, %v2635
        %v2637 = vpop.f32.mrb[0].mxu0
        %2638 = vmatprep.mubr.f32.mxu0 0.0
        %2639 = vmatmul.mubr.f32.gmra.mrb[0].mxu0 %v2297
        %v2640 = vpop.f32.mrb[0].mxu0
        %v2641 = vadd.f32 %v2413, %v2640
        %v2642 = vpop.f32.mrb[0].mxu0
        %2643 = vmatprep.mubr.f32.mxu0 0.0
        %2644 = vmatmul.mubr.f32.gmra.mrb[0].mxu0 %v2298
        %v2645 = vpop.f32.mrb[0].mxu0
        %v2646 = vadd.f32 %v2413, %v2645
        %v2647 = vpop.f32.mrb[0].mxu0
        %2648 = vmatprep.mubr.f32.mxu0 0.0
        %2649 = vmatmul.mubr.f32.gmra.mrb[0].mxu0 %v2299
        %v2650 = vpop.f32.mrb[0].mxu0
        %v2651 = vadd.f32 %v2413, %v2650
        %v2652 = vpop.f32.mrb[0].mxu0
        %2653 = vmatprep.mubr.f32.mxu0 0.0
        %2654 = vmatmul.mubr.f32.gmra.mrb[0].mxu0 %v2300
        %v2655 = vpop.f32.mrb[0].mxu0
        %v2656 = vadd.f32 %v2413, %v2655
        %v2657 = vpop.f32.mrb[0].mxu0
        %2658 = vmatprep.mubr.f32.mxu0 0.0
        %2659 = vmatmul.mubr.f32.gmra.mrb[0].mxu0 %v2301
        %v2660 = vpop.f32.mrb[0].mxu0
        %v2661 = vadd.f32 %v2413, %v2660
        %v2662 = vpop.f32.mrb[0].mxu0
        %2663 = vmatprep.mubr.f32.mxu0 0.0
        %2664 = vmatmul.mubr.f32.gmra.mrb[0].mxu0 %v2302
        %v2665 = vpop.f32.mrb[0].mxu0
        %v2666 = vadd.f32 %v2413, %v2665
        %v2667 = vpop.f32.mrb[0].mxu0
        %2668 = vmatprep.mubr.f32.mxu0 0.0
        %2669 = vmatmul.mubr.f32.gmra.mrb[0].mxu0 %v2303
        %v2670 = vpop.f32.mrb[0].mxu0
        %v2671 = vadd.f32 %v2413, %v2670
        %v2672 = vpop.f32.mrb[0].mxu0
        %2673 = vmatprep.mubr.f32.mxu0 0.0
        %2674 = vmatmul.mubr.f32.gmra.mrb[0].mxu0 %v2304
        %v2675 = vpop.f32.mrb[0].mxu0
        %v2676 = vadd.f32 %v2413, %v2675
        %v2677 = vpop.f32.mrb[0].mxu0
        %2678 = vmatprep.mubr.f32.mxu0 0.0
        %2679 = vmatmul.mubr.f32.gmra.mrb[0].mxu0 %v2305
        %v2680 = vpop.f32.mrb[0].mxu0
        %v2681 = vadd.f32 %v2413, %v2680
        %v2682 = vpop.f32.mrb[0].mxu0
        %2683 = vmatprep.mubr.f32.mxu0 0.0
        %2684 = vmatmul.mubr.f32.gmra.mrb[0].mxu0 %v2306
        %v2685 = vpop.f32.mrb[0].mxu0
        %v2686 = vadd.f32 %v2413, %v2685
        %v2687 = vpop.f32.mrb[0].mxu0
        %2688 = vmatprep.mubr.f32.mxu0 0.0
        %2689 = vmatmul.mubr.f32.gmra.mrb[0].mxu0 %v2307
        %v2690 = vpop.f32.mrb[0].mxu0
        %v2691 = vadd.f32 %v2413, %v2690
        %v2692 = vpop.f32.mrb[0].mxu0
        %2693 = vmatprep.mubr.f32.mxu0 0.0
        %2694 = vmatmul.mubr.f32.gmra.mrb[0].mxu0 %v2308
        %v2695 = vpop.f32.mrb[0].mxu0
        %v2696 = vadd.f32 %v2413, %v2695
        %v2697 = vpop.f32.mrb[0].mxu0
        %2698 = vmatprep.mubr.f32.mxu0 0.0
        %2699 = vmatmul.mubr.f32.gmra.mrb[0].mxu0 %v2309
        %v2700 = vpop.f32.mrb[0].mxu0
        %v2701 = vadd.f32 %v2413, %v2700
        %v2702 = vpop.f32.mrb[0].mxu0
        %2703 = vmatprep.mubr.f32.mxu0 0.0
        %2704 = vmatmul.mubr.f32.gmra.mrb[0].mxu0 %v2310
        %v2705 = vpop.f32.mrb[0].mxu0
        %v2706 = vadd.f32 %v2413, %v2705
        %v2707 = vpop.f32.mrb[0].mxu0
        %2708 = vmatprep.mubr.f32.mxu0 0.0
        %2709 = vmatmul.mubr.f32.gmra.mrb[0].mxu0 %v2311
        %v2710 = vpop.f32.mrb[0].mxu0
        %v2711 = vadd.f32 %v2413, %v2710
        %v2712 = vpop.f32.mrb[0].mxu0
        %2713 = vmatprep.mubr.f32.mxu0 0.0
        %2714 = vmatmul.mubr.f32.gmra.mrb[0].mxu0 %v2312
        %v2715 = vpop.f32.mrb[0].mxu0
        %v2716 = vadd.f32 %v2413, %v2715
        %v2717 = vpop.f32.mrb[0].mxu0
        %2718 = vmatprep.mubr.f32.mxu0 0.0
        %2719 = vmatmul.mubr.f32.gmra.mrb[0].mxu0 %v2313
        %v2720 = vpop.f32.mrb[0].mxu0
        %v2721 = vadd.f32 %v2413, %v2720
        %v2722 = vpop.f32.mrb[0].mxu0
        %2723 = vmatprep.mubr.f32.mxu0 0.0
        %2724 = vmatmul.mubr.f32.gmra.mrb[0].mxu0 %v2314
        %v2725 = vpop.f32.mrb[0].mxu0
        %v2726 = vadd.f32 %v2413, %v2725
        %v2727 = vpop.f32.mrb[0].mxu0
        %2728 = vmatprep.mubr.f32.mxu0 0.0
        %2729 = vmatmul.mubr.f32.gmra.mrb[0].mxu0 %v2315
        %v2730 = vpop.f32.mrb[0].mxu0
        %v2731 = vadd.f32 %v2413, %v2730
        %v2732 = vpop.f32.mrb[0].mxu0
        %2733 = vmatprep.mubr.f32.mxu0 0.0
        %2734 = vmatmul.mubr.f32.gmra.mrb[0].mxu0 %v2316
        %v2735 = vpop.f32.mrb[0].mxu0
        %v2736 = vadd.f32 %v2413, %v2735
        %v2737 = vpop.f32.mrb[0].mxu0
        %2738 = vmatprep.mubr.f32.mxu0 0.0
        %2739 = vmatmul.mubr.f32.gmra.mrb[0].mxu0 %v2317
        %v2740 = vpop.f32.mrb[0].mxu0
        %v2741 = vadd.f32 %v2413, %v2740
        %v2742 = vpop.f32.mrb[0].mxu0
        %2743 = vmatprep.mubr.f32.mxu0 0.0
        %2744 = vmatmul.mubr.f32.gmra.mrb[0].mxu0 %v2318
        %v2745 = vpop.f32.mrb[0].mxu0
        %v2746 = vadd.f32 %v2413, %v2745
        %v2747 = vpop.f32.mrb[0].mxu0
        %2748 = vmatprep.mubr.f32.mxu0 0.0
        %2749 = vmatmul.mubr.f32.gmra.mrb[0].mxu0 %v2319
        %v2750 = vpop.f32.mrb[0].mxu0
        %v2751 = vadd.f32 %v2413, %v2750
        %v2752 = vpop.f32.mrb[0].mxu0
        %2753 = vmatprep.mubr.f32.mxu0 0.0
        %2754 = vmatmul.mubr.f32.gmra.mrb[0].mxu0 %v2320
        %v2755 = vpop.f32.mrb[0].mxu0
        %v2756 = vadd.f32 %v2413, %v2755
        %v2757 = vpop.f32.mrb[0].mxu0
        %2758 = vmatprep.mubr.f32.mxu0 0.0
        %2759 = vmatmul.mubr.f32.gmra.mrb[0].mxu0 %v2321
        %v2760 = vpop.f32.mrb[0].mxu0
        %v2761 = vadd.f32 %v2413, %v2760
        %v2762 = vpop.f32.mrb[0].mxu0
        %2763 = vmatprep.mubr.f32.mxu0 0.0
        %2764 = vmatmul.mubr.f32.gmra.mrb[0].mxu0 %v2322
        %v2765 = vpop.f32.mrb[0].mxu0
        %v2766 = vadd.f32 %v2413, %v2765
        %v2767 = vpop.f32.mrb[0].mxu0
        %2768 = vmatprep.mubr.f32.mxu0 0.0
        %2769 = vmatmul.mubr.f32.gmra.mrb[0].mxu0 %v2323
        %v2770 = vpop.f32.mrb[0].mxu0
        %v2771 = vadd.f32 %v2413, %v2770
        %v2772 = vpop.f32.mrb[0].mxu0
        %2773 = vmatprep.mubr.f32.mxu0 0.0
        %2774 = vmatmul.mubr.f32.gmra.mrb[0].mxu0 %v2324
        %v2775 = vpop.f32.mrb[0].mxu0
        %v2776 = vadd.f32 %v2413, %v2775
        %v2777 = vpop.f32.mrb[0].mxu0
        %2778 = vmatprep.mubr.f32.mxu0 0.0
        %2779 = vmatmul.mubr.f32.gmra.mrb[0].mxu0 %v2325
        %v2780 = vpop.f32.mrb[0].mxu0
        %v2781 = vadd.f32 %v2413, %v2780
        %v2782 = vpop.f32.mrb[0].mxu0
        %2783 = vmatprep.mubr.f32.mxu0 0.0
        %2784 = vmatmul.mubr.f32.gmra.mrb[0].mxu0 %v2326
        %v2785 = vpop.f32.mrb[0].mxu0
        %v2786 = vadd.f32 %v2413, %v2785
        %v2787 = vpop.f32.mrb[0].mxu0
        %2788 = vmatprep.mubr.f32.mxu0 0.0
        %2789 = vmatmul.mubr.f32.gmra.mrb[0].mxu0 %v2327
        %v2790 = vpop.f32.mrb[0].mxu0
        %v2791 = vadd.f32 %v2413, %v2790
        %v2792 = vpop.f32.mrb[0].mxu0
        %2793 = vmatprep.mubr.f32.mxu0 0.0
        %2794 = vmatmul.mubr.f32.gmra.mrb[0].mxu0 %v2328
        %v2795 = vpop.f32.mrb[0].mxu0
        %v2796 = vadd.f32 %v2413, %v2795
        %v2797 = vpop.f32.mrb[0].mxu0
        %2798 = vmatprep.mubr.f32.mxu0 0.0
        %2799 = vmatmul.mubr.f32.gmra.mrb[0].mxu0 %v2329
        %v2800 = vpop.f32.mrb[0].mxu0
        %v2801 = vadd.f32 %v2413, %v2800
        %v2802 = vpop.f32.mrb[0].mxu0
        %2803 = vmatprep.mubr.f32.mxu0 0.0
        %2804 = vmatmul.mubr.f32.gmra.mrb[0].mxu0 %v2330
        %v2805 = vpop.f32.mrb[0].mxu0
        %v2806 = vadd.f32 %v2413, %v2805
        %v2807 = vpop.f32.mrb[0].mxu0
        %2808 = vmatprep.mubr.f32.mxu0 0.0
        %2809 = vmatmul.mubr.f32.gmra.mrb[0].mxu0 %v2331
        %v2810 = vpop.f32.mrb[0].mxu0
        %v2811 = vadd.f32 %v2413, %v2810
        %v2812 = vpop.f32.mrb[0].mxu0
        %2813 = vmatprep.mubr.f32.mxu0 0.0
        %2814 = vmatmul.mubr.f32.gmra.mrb[0].mxu0 %v2332
        %v2815 = vpop.f32.mrb[0].mxu0
        %v2816 = vadd.f32 %v2413, %v2815
        %v2817 = vpop.f32.mrb[0].mxu0
        %2818 = vmatprep.mubr.f32.mxu0 0.0
        %2819 = vmatmul.mubr.f32.gmra.mrb[0].mxu0 %v2333
        %v2820 = vpop.f32.mrb[0].mxu0
        %v2821 = vadd.f32 %v2413, %v2820
        %v2822 = vpop.f32.mrb[0].mxu0
        %2823 = vmatprep.mubr.f32.mxu0 0.0
        %2824 = vmatmul.mubr.f32.gmra.mrb[0].mxu0 %v2334
        %v2825 = vpop.f32.mrb[0].mxu0
        %v2826 = vadd.f32 %v2413, %v2825
        %v2827 = vpop.f32.mrb[0].mxu0
        %2828 = vmatprep.mubr.f32.mxu0 0.0
        %2829 = vmatmul.mubr.f32.gmra.mrb[0].mxu0 %v2335
        %v2830 = vpop.f32.mrb[0].mxu0
        %v2831 = vadd.f32 %v2413, %v2830
        %v2832 = vpop.f32.mrb[0].mxu0
        %2833 = vmatprep.mubr.f32.mxu0 0.0
        %2834 = vmatmul.mubr.f32.gmra.mrb[0].mxu0 %v2336
        %v2835 = vpop.f32.mrb[0].mxu0
        %v2836 = vadd.f32 %v2413, %v2835
        %v2837 = vpop.f32.mrb[0].mxu0
        %2838 = vmatprep.mubr.f32.mxu0 0.0
        %2839 = vmatmul.mubr.f32.gmra.mrb[0].mxu0 %v2337
        %v2840 = vpop.f32.mrb[0].mxu0
        %v2841 = vadd.f32 %v2413, %v2840
        %v2842 = vpop.f32.mrb[0].mxu0
        %2843 = vmatprep.mubr.f32.mxu0 0.0
        %2844 = vmatmul.mubr.f32.gmra.mrb[0].mxu0 %v2338
        %v2845 = vpop.f32.mrb[0].mxu0
        %v2846 = vadd.f32 %v2413, %v2845
        %v2847 = vpop.f32.mrb[0].mxu0
        %2848 = vmatprep.mubr.f32.mxu0 0.0
        %2849 = vmatmul.mubr.f32.gmra.mrb[0].mxu0 %v2339
        %v2850 = vpop.f32.mrb[0].mxu0
        %v2851 = vadd.f32 %v2413, %v2850
        %v2852 = vpop.f32.mrb[0].mxu0
        %2853 = vmatprep.mubr.f32.mxu0 0.0
        %2854 = vmatmul.mubr.f32.gmra.mrb[0].mxu0 %v2340
        %v2855 = vpop.f32.mrb[0].mxu0
        %v2856 = vadd.f32 %v2413, %v2855
        %v2857 = vpop.f32.mrb[0].mxu0
        %2858 = vmatprep.mubr.f32.mxu0 0.0
        %2859 = vmatmul.mubr.f32.gmra.mrb[0].mxu0 %v2341
        %v2860 = vpop.f32.mrb[0].mxu0
        %v2861 = vadd.f32 %v2413, %v2860
        %v2862 = vpop.f32.mrb[0].mxu0
        %2863 = vmatprep.mubr.f32.mxu0 0.0
        %2864 = vmatmul.mubr.f32.gmra.mrb[0].mxu0 %v2342
        %v2865 = vpop.f32.mrb[0].mxu0
        %v2866 = vadd.f32 %v2413, %v2865
        %v2867 = vpop.f32.mrb[0].mxu0
        %2868 = vmatprep.mubr.f32.mxu0 0.0
        %2869 = vmatmul.mubr.f32.gmra.mrb[0].mxu0 %v2343
        %v2870 = vpop.f32.mrb[0].mxu0
        %v2871 = vadd.f32 %v2413, %v2870
        %v2872 = vpop.f32.mrb[0].mxu0
        %2873 = vmatprep.mubr.f32.mxu0 0.0
        %2874 = vmatmul.mubr.f32.gmra.mrb[0].mxu0 %v2344
        %v2875 = vpop.f32.mrb[0].mxu0
        %v2876 = vadd.f32 %v2413, %v2875
        %v2877 = vpop.f32.mrb[0].mxu0
        %2878 = vmatprep.mubr.f32.mxu0 0.0
        %2879 = vmatmul.mubr.f32.gmra.mrb[0].mxu0 %v2345
        %v2880 = vpop.f32.mrb[0].mxu0
        %v2881 = vadd.f32 %v2413, %v2880
        %v2882 = vpop.f32.mrb[0].mxu0
        %2883 = vmatprep.mubr.f32.mxu0 0.0
        %2884 = vmatmul.mubr.f32.gmra.mrb[0].mxu0 %v2346
        %v2885 = vpop.f32.mrb[0].mxu0
        %v2886 = vadd.f32 %v2413, %v2885
        %v2887 = vpop.f32.mrb[0].mxu0
        %2888 = vmatprep.mubr.f32.mxu0 0.0
        %2889 = vmatmul.mubr.f32.gmra.mrb[0].mxu0 %v2347
        %v2890 = vpop.f32.mrb[0].mxu0
        %v2891 = vadd.f32 %v2413, %v2890
        %v2892 = vpop.f32.mrb[0].mxu0
        %2893 = vmatprep.mubr.f32.mxu0 0.0
        %2894 = vmatmul.mubr.f32.gmra.mrb[0].mxu0 %v2348
        %v2895 = vpop.f32.mrb[0].mxu0
        %v2896 = vadd.f32 %v2413, %v2895
        %v2897 = vpop.f32.mrb[0].mxu0
        %2898 = vmatprep.mubr.f32.mxu0 0.0
        %2899 = vmatmul.mubr.f32.gmra.mrb[0].mxu0 %v2349
        %v2900 = vpop.f32.mrb[0].mxu0
        %v2901 = vadd.f32 %v2413, %v2900
        %v2902 = vpop.f32.mrb[0].mxu0
        %2903 = vmatprep.mubr.f32.mxu0 0.0
        %2904 = vmatmul.mubr.f32.gmra.mrb[0].mxu0 %v2350
        %v2905 = vpop.f32.mrb[0].mxu0
        %v2906 = vadd.f32 %v2413, %v2905
        %v2907 = vpop.f32.mrb[0].mxu0
        %2908 = vmatprep.mubr.f32.mxu0 0.0
        %2909 = vmatmul.mubr.f32.gmra.mrb[0].mxu0 %v2351
        %v2910 = vpop.f32.mrb[0].mxu0
        %v2911 = vadd.f32 %v2413, %v2910
        %v2912 = vpop.f32.mrb[0].mxu0
        %2913 = vmatprep.mubr.f32.mxu0 0.0
        %2914 = vmatmul.mubr.f32.gmra.mrb[0].mxu0 %v2352
        %v2915 = vpop.f32.mrb[0].mxu0
        %v2916 = vadd.f32 %v2413, %v2915
        %v2917 = vpop.f32.mrb[0].mxu0
        %2918 = vmatprep.mubr.f32.mxu0 0.0
        %2919 = vmatmul.mubr.f32.gmra.mrb[0].mxu0 %v2353
        %v2920 = vpop.f32.mrb[0].mxu0
        %v2921 = vadd.f32 %v2413, %v2920
        %v2922 = vpop.f32.mrb[0].mxu0
        %2923 = vmatprep.mubr.f32.mxu0 0.0
        %2924 = vmatmul.mubr.f32.gmra.mrb[0].mxu0 %v2354
        %v2925 = vpop.f32.mrb[0].mxu0
        %v2926 = vadd.f32 %v2413, %v2925
        %v2927 = vpop.f32.mrb[0].mxu0
        %2928 = vmatprep.mubr.f32.mxu0 0.0
        %2929 = vmatmul.mubr.f32.gmra.mrb[0].mxu0 %v2355
        %v2930 = vpop.f32.mrb[0].mxu0
        %v2931 = vadd.f32 %v2413, %v2930
        %v2932 = vpop.f32.mrb[0].mxu0
        %2933 = vmatprep.mubr.f32.mxu0 0.0
        %2934 = vmatmul.mubr.f32.gmra.mrb[0].mxu0 %v2356
        %v2935 = vpop.f32.mrb[0].mxu0
        %v2936 = vadd.f32 %v2413, %v2935
        %v2937 = vpop.f32.mrb[0].mxu0
        %2938 = vmatprep.mubr.f32.mxu0 0.0
        %2939 = vmatmul.mubr.f32.gmra.mrb[0].mxu0 %v2357
        %v2940 = vpop.f32.mrb[0].mxu0
        %v2941 = vadd.f32 %v2413, %v2940
        %v2942 = vpop.f32.mrb[0].mxu0
        %2943 = vmatprep.mubr.f32.mxu0 0.0
        %2944 = vmatmul.mubr.f32.gmra.mrb[0].mxu0 %v2358
        %v2945 = vpop.f32.mrb[0].mxu0
        %v2946 = vadd.f32 %v2413, %v2945
        %v2947 = vpop.f32.mrb[0].mxu0
        %2948 = vmatprep.mubr.f32.mxu0 0.0
        %2949 = vmatmul.mubr.f32.gmra.mrb[0].mxu0 %v2359
        %v2950 = vpop.f32.mrb[0].mxu0
        %v2951 = vadd.f32 %v2413, %v2950
        %v2952 = vpop.f32.mrb[0].mxu0
        %2953 = vmatprep.mubr.f32.mxu0 0.0
        %2954 = vmatmul.mubr.f32.gmra.mrb[0].mxu0 %v2360
        %v2955 = vpop.f32.mrb[0].mxu0
        %v2956 = vadd.f32 %v2413, %v2955
        %v2957 = vpop.f32.mrb[0].mxu0
        %2958 = vmatprep.mubr.f32.mxu0 0.0
        %2959 = vmatmul.mubr.f32.gmra.mrb[0].mxu0 %v2361
        %v2960 = vpop.f32.mrb[0].mxu0
        %v2961 = vadd.f32 %v2413, %v2960
        %v2962 = vpop.f32.mrb[0].mxu0
        %2963 = vmatprep.mubr.f32.mxu0 0.0
        %2964 = vmatmul.mubr.f32.gmra.mrb[0].mxu0 %v2362
        %v2965 = vpop.f32.mrb[0].mxu0
        %v2966 = vadd.f32 %v2413, %v2965
        %v2967 = vpop.f32.mrb[0].mxu0
        %2968 = vmatprep.mubr.f32.mxu0 0.0
        %2969 = vmatmul.mubr.f32.gmra.mrb[0].mxu0 %v2363
        %v2970 = vpop.f32.mrb[0].mxu0
        %v2971 = vadd.f32 %v2413, %v2970
        %v2972 = vpop.f32.mrb[0].mxu0
        %2973 = vmatprep.mubr.f32.mxu0 0.0
        %2974 = vmatmul.mubr.f32.gmra.mrb[0].mxu0 %v2364
        %v2975 = vpop.f32.mrb[0].mxu0
        %v2976 = vadd.f32 %v2413, %v2975
        %v2977 = vpop.f32.mrb[0].mxu0
        %2978 = vmatprep.mubr.f32.mxu0 0.0
        %2979 = vmatmul.mubr.f32.gmra.mrb[0].mxu0 %v2365
        %v2980 = vpop.f32.mrb[0].mxu0
        %v2981 = vadd.f32 %v2413, %v2980
        %v2982 = vpop.f32.mrb[0].mxu0
        %2983 = vmatprep.mubr.f32.mxu0 0.0
        %2984 = vmatmul.mubr.f32.gmra.mrb[0].mxu0 %v2366
        %v2985 = vpop.f32.mrb[0].mxu0
        %v2986 = vadd.f32 %v2413, %v2985
        %v2987 = vpop.f32.mrb[0].mxu0
        %2988 = vmatprep.mubr.f32.mxu0 0.0
        %2989 = vmatmul.mubr.f32.gmra.mrb[0].mxu0 %v2367
        %v2990 = vpop.f32.mrb[0].mxu0
        %v2991 = vadd.f32 %v2413, %v2990
        %v2992 = vpop.f32.mrb[0].mxu0
        %2993 = vmatprep.mubr.f32.mxu0 0.0
        %2994 = vmatmul.mubr.f32.gmra.mrb[0].mxu0 %v2368
        %v2995 = vpop.f32.mrb[0].mxu0
        %v2996 = vadd.f32 %v2413, %v2995
        %v2997 = vpop.f32.mrb[0].mxu0
        %2998 = vmatprep.mubr.f32.mxu0 0.0
        %2999 = vmatmul.mubr.f32.gmra.mrb[0].mxu0 %v2369
        %v3000 = vpop.f32.mrb[0].mxu0
        %v3001 = vadd.f32 %v2413, %v3000
        %v3002 = vpop.f32.mrb[0].mxu0
        %3003 = vmatprep.mubr.f32.mxu0 0.0
        %3004 = vmatmul.mubr.f32.gmra.mrb[0].mxu0 %v2370
        %v3005 = vpop.f32.mrb[0].mxu0
        %v3006 = vadd.f32 %v2413, %v3005
        %v3007 = vpop.f32.mrb[0].mxu0
        %3008 = vmatprep.mubr.f32.mxu0 0.0
        %3009 = vmatmul.mubr.f32.gmra.mrb[0].mxu0 %v2371
        %v3010 = vpop.f32.mrb[0].mxu0
        %v3011 = vadd.f32 %v2413, %v3010
        %v3012 = vpop.f32.mrb[0].mxu0
        %3013 = vmatprep.mubr.f32.mxu0 0.0
        %3014 = vmatmul.mubr.f32.gmra.mrb[0].mxu0 %v2372
        %v3015 = vpop.f32.mrb[0].mxu0
        %v3016 = vadd.f32 %v2413, %v3015
        %v3017 = vpop.f32.mrb[0].mxu0
        %3018 = vmatprep.mubr.f32.mxu0 0.0
        %3019 = vmatmul.mubr.f32.gmra.mrb[0].mxu0 %v2373
        %v3020 = vpop.f32.mrb[0].mxu0
        %v3021 = vadd.f32 %v2413, %v3020
        %v3022 = vpop.f32.mrb[0].mxu0
        %3023 = vmatprep.mubr.f32.mxu0 0.0
        %3024 = vmatmul.mubr.f32.gmra.mrb[0].mxu0 %v2374
        %v3025 = vpop.f32.mrb[0].mxu0
        %v3026 = vadd.f32 %v2413, %v3025
        %v3027 = vpop.f32.mrb[0].mxu0
        %3028 = vmatprep.mubr.f32.mxu0 0.0
        %3029 = vmatmul.mubr.f32.gmra.mrb[0].mxu0 %v2375
        %v3030 = vpop.f32.mrb[0].mxu0
        %v3031 = vadd.f32 %v2413, %v3030
        %v3032 = vpop.f32.mrb[0].mxu0
        %3033 = vmatprep.mubr.f32.mxu0 0.0
        %3034 = vmatmul.mubr.f32.gmra.mrb[0].mxu0 %v2376
        %v3035 = vpop.f32.mrb[0].mxu0
        %v3036 = vadd.f32 %v2413, %v3035
        %v3037 = vpop.f32.mrb[0].mxu0
        %3038 = vmatprep.mubr.f32.mxu0 0.0
        %3039 = vmatmul.mubr.f32.gmra.mrb[0].mxu0 %v2377
        %v3040 = vpop.f32.mrb[0].mxu0
        %v3041 = vadd.f32 %v2413, %v3040
        %v3042 = vpop.f32.mrb[0].mxu0
        %3043 = vmatprep.mubr.f32.mxu0 0.0
        %3044 = vmatmul.mubr.f32.gmra.mrb[0].mxu0 %v2378
        %v3045 = vpop.f32.mrb[0].mxu0
        %v3046 = vadd.f32 %v2413, %v3045
        %v3047 = vpop.f32.mrb[0].mxu0
        %3048 = vmatprep.mubr.f32.mxu0 0.0
        %3049 = vmatmul.mubr.f32.gmra.mrb[0].mxu0 %v2379
        %v3050 = vpop.f32.mrb[0].mxu0
        %v3051 = vadd.f32 %v2413, %v3050
        %v3052 = vpop.f32.mrb[0].mxu0
        %3053 = vmatprep.mubr.f32.mxu0 0.0
        %3054 = vmatmul.mubr.f32.gmra.mrb[0].mxu0 %v2380
        %v3055 = vpop.f32.mrb[0].mxu0
        %v3056 = vadd.f32 %v2413, %v3055
        %v3057 = vpop.f32.mrb[0].mxu0
        %3058 = vmatprep.mubr.f32.mxu0 0.0
        %3059 = vmatmul.mubr.f32.gmra.mrb[0].mxu0 %v2381
        %v3060 = vpop.f32.mrb[0].mxu0
        %v3061 = vadd.f32 %v2413, %v3060
        %v3062 = vpop.f32.mrb[0].mxu0
        %3063 = vmatprep.mubr.f32.mxu0 0.0
        %3064 = vmatmul.mubr.f32.gmra.mrb[0].mxu0 %v2382
        %v3065 = vpop.f32.mrb[0].mxu0
        %v3066 = vadd.f32 %v2413, %v3065
        %v3067 = vpop.f32.mrb[0].mxu0
        %3068 = vmatprep.mubr.f32.mxu0 0.0
        %3069 = vmatmul.mubr.f32.gmra.mrb[0].mxu0 %v2383
        %v3070 = vpop.f32.mrb[0].mxu0
        %v3071 = vadd.f32 %v2413, %v3070
        %v3072 = vpop.f32.mrb[0].mxu0
        %3073 = vmatprep.mubr.f32.mxu0 0.0
        %3074 = vmatmul.mubr.f32.gmra.mrb[0].mxu0 %v2384
        %v3075 = vpop.f32.mrb[0].mxu0
        %v3076 = vadd.f32 %v2413, %v3075
        %v3077 = vpop.f32.mrb[0].mxu0
        %3078 = vmatprep.mubr.f32.mxu0 0.0
        %3079 = vmatmul.mubr.f32.gmra.mrb[0].mxu0 %v2385
        %v3080 = vpop.f32.mrb[0].mxu0
        %v3081 = vadd.f32 %v2413, %v3080
        %v3082 = vpop.f32.mrb[0].mxu0
        %3083 = vmatprep.mubr.f32.mxu0 0.0
        %3084 = vmatmul.mubr.f32.gmra.mrb[0].mxu0 %v2386
        %v3085 = vpop.f32.mrb[0].mxu0
        %v3086 = vadd.f32 %v2413, %v3085
        %v3087 = vpop.f32.mrb[0].mxu0
        %3088 = vmatprep.mubr.f32.mxu0 0.0
        %3089 = vmatmul.mubr.f32.gmra.mrb[0].mxu0 %v2387
        %v3090 = vpop.f32.mrb[0].mxu0
        %v3091 = vadd.f32 %v2413, %v3090
        %v3092 = vpop.f32.mrb[0].mxu0
        %3093 = vmatprep.mubr.f32.mxu0 0.0
        %3094 = vmatmul.mubr.f32.gmra.mrb[0].mxu0 %v2388
        %v3095 = vpop.f32.mrb[0].mxu0
        %v3096 = vadd.f32 %v2413, %v3095
        %v3097 = vpop.f32.mrb[0].mxu0
        %3098 = vmatprep.mubr.f32.mxu0 0.0
        %3099 = vmatmul.mubr.f32.gmra.mrb[0].mxu0 %v2389
        %v3100 = vpop.f32.mrb[0].mxu0
        %v3101 = vadd.f32 %v2413, %v3100
        %v3102 = vpop.f32.mrb[0].mxu0
        %3103 = vmatprep.mubr.f32.mxu0 0.0
        %3104 = vmatmul.mubr.f32.gmra.mrb[0].mxu0 %v2390
        %v3105 = vpop.f32.mrb[0].mxu0
        %v3106 = vadd.f32 %v2413, %v3105
        %v3107 = vpop.f32.mrb[0].mxu0
        %3108 = vmatprep.mubr.f32.mxu0 0.0
        %3109 = vmatmul.mubr.f32.gmra.mrb[0].mxu0 %v2391
        %v3110 = vpop.f32.mrb[0].mxu0
        %v3111 = vadd.f32 %v2413, %v3110
        %v3112 = vpop.f32.mrb[0].mxu0
        %3113 = vmatprep.mubr.f32.mxu0 0.0
        %3114 = vmatmul.mubr.f32.gmra.mrb[0].mxu0 %v2392
        %v3115 = vpop.f32.mrb[0].mxu0
        %v3116 = vadd.f32 %v2413, %v3115
        %v3117 = vpop.f32.mrb[0].mxu0
        %3118 = vdwg.mxu0
        %vm3119 = vcmp.gt.f32.partialorder %v2481, 0.0
        %vm3120 = vcmp.gt.f32.partialorder %v2486, 0.0
        %vm3121 = vcmp.gt.f32.partialorder %v2491, 0.0
        %vm3122 = vcmp.gt.f32.partialorder %v2496, 0.0
        %vm3123 = vcmp.gt.f32.partialorder %v2501, 0.0
        %vm3124 = vcmp.gt.f32.partialorder %v2506, 0.0
        %vm3125 = vcmp.gt.f32.partialorder %v2511, 0.0
        %vm3126 = vcmp.gt.f32.partialorder %v2516, 0.0
        %vm3127 = vcmp.gt.f32.partialorder %v2521, 0.0
        %vm3128 = vcmp.gt.f32.partialorder %v2526, 0.0
        %vm3129 = vcmp.gt.f32.partialorder %v2531, 0.0
        %vm3130 = vcmp.gt.f32.partialorder %v2536, 0.0
        %vm3131 = vcmp.gt.f32.partialorder %v2541, 0.0
        %vm3132 = vcmp.gt.f32.partialorder %v2546, 0.0
        %vm3133 = vcmp.gt.f32.partialorder %v2551, 0.0
        %vm3134 = vcmp.gt.f32.partialorder %v2556, 0.0
        %vm3135 = vcmp.gt.f32.partialorder %v2561, 0.0
        %vm3136 = vcmp.gt.f32.partialorder %v2566, 0.0
        %vm3137 = vcmp.gt.f32.partialorder %v2571, 0.0
        %vm3138 = vcmp.gt.f32.partialorder %v2576, 0.0
        %vm3139 = vcmp.gt.f32.partialorder %v2581, 0.0
        %vm3140 = vcmp.gt.f32.partialorder %v2586, 0.0
        %vm3141 = vcmp.gt.f32.partialorder %v2591, 0.0
        %vm3142 = vcmp.gt.f32.partialorder %v2596, 0.0
        %vm3143 = vcmp.gt.f32.partialorder %v2601, 0.0
        %vm3144 = vcmp.gt.f32.partialorder %v2606, 0.0
        %vm3145 = vcmp.gt.f32.partialorder %v2611, 0.0
        %vm3146 = vcmp.gt.f32.partialorder %v2616, 0.0
        %vm3147 = vcmp.gt.f32.partialorder %v2621, 0.0
        %vm3148 = vcmp.gt.f32.partialorder %v2626, 0.0
        %vm3149 = vcmp.gt.f32.partialorder %v2631, 0.0
        %vm3150 = vcmp.gt.f32.partialorder %v2636, 0.0
        %vm3151 = vcmp.gt.f32.partialorder %v2641, 0.0
        %vm3152 = vcmp.gt.f32.partialorder %v2646, 0.0
        %vm3153 = vcmp.gt.f32.partialorder %v2651, 0.0
        %vm3154 = vcmp.gt.f32.partialorder %v2656, 0.0
        %vm3155 = vcmp.gt.f32.partialorder %v2661, 0.0
        %vm3156 = vcmp.gt.f32.partialorder %v2666, 0.0
        %vm3157 = vcmp.gt.f32.partialorder %v2671, 0.0
        %vm3158 = vcmp.gt.f32.partialorder %v2676, 0.0
        %vm3159 = vcmp.gt.f32.partialorder %v2681, 0.0
        %vm3160 = vcmp.gt.f32.partialorder %v2686, 0.0
        %vm3161 = vcmp.gt.f32.partialorder %v2691, 0.0
        %vm3162 = vcmp.gt.f32.partialorder %v2696, 0.0
        %vm3163 = vcmp.gt.f32.partialorder %v2701, 0.0
        %vm3164 = vcmp.gt.f32.partialorder %v2706, 0.0
        %vm3165 = vcmp.gt.f32.partialorder %v2711, 0.0
        %vm3166 = vcmp.gt.f32.partialorder %v2716, 0.0
        %vm3167 = vcmp.gt.f32.partialorder %v2721, 0.0
        %vm3168 = vcmp.gt.f32.partialorder %v2726, 0.0
        %vm3169 = vcmp.gt.f32.partialorder %v2731, 0.0
        %vm3170 = vcmp.gt.f32.partialorder %v2736, 0.0
        %vm3171 = vcmp.gt.f32.partialorder %v2741, 0.0
        %vm3172 = vcmp.gt.f32.partialorder %v2746, 0.0
        %vm3173 = vcmp.gt.f32.partialorder %v2751, 0.0
        %vm3174 = vcmp.gt.f32.partialorder %v2756, 0.0
        %vm3175 = vcmp.gt.f32.partialorder %v2761, 0.0
        %vm3176 = vcmp.gt.f32.partialorder %v2766, 0.0
        %vm3177 = vcmp.gt.f32.partialorder %v2771, 0.0
        %vm3178 = vcmp.gt.f32.partialorder %v2776, 0.0
        %vm3179 = vcmp.gt.f32.partialorder %v2781, 0.0
        %vm3180 = vcmp.gt.f32.partialorder %v2786, 0.0
        %vm3181 = vcmp.gt.f32.partialorder %v2791, 0.0
        %vm3182 = vcmp.gt.f32.partialorder %v2796, 0.0
        %vm3183 = vcmp.gt.f32.partialorder %v2801, 0.0
        %vm3184 = vcmp.gt.f32.partialorder %v2806, 0.0
        %vm3185 = vcmp.gt.f32.partialorder %v2811, 0.0
        %vm3186 = vcmp.gt.f32.partialorder %v2816, 0.0
        %vm3187 = vcmp.gt.f32.partialorder %v2821, 0.0
        %vm3188 = vcmp.gt.f32.partialorder %v2826, 0.0
        %vm3189 = vcmp.gt.f32.partialorder %v2831, 0.0
        %vm3190 = vcmp.gt.f32.partialorder %v2836, 0.0
        %vm3191 = vcmp.gt.f32.partialorder %v2841, 0.0
        %vm3192 = vcmp.gt.f32.partialorder %v2846, 0.0
        %vm3193 = vcmp.gt.f32.partialorder %v2851, 0.0
        %vm3194 = vcmp.gt.f32.partialorder %v2856, 0.0
        %vm3195 = vcmp.gt.f32.partialorder %v2861, 0.0
        %vm3196 = vcmp.gt.f32.partialorder %v2866, 0.0
        %vm3197 = vcmp.gt.f32.partialorder %v2871, 0.0
        %vm3198 = vcmp.gt.f32.partialorder %v2876, 0.0
        %vm3199 = vcmp.gt.f32.partialorder %v2881, 0.0
        %vm3200 = vcmp.gt.f32.partialorder %v2886, 0.0
        %vm3201 = vcmp.gt.f32.partialorder %v2891, 0.0
        %vm3202 = vcmp.gt.f32.partialorder %v2896, 0.0
        %vm3203 = vcmp.gt.f32.partialorder %v2901, 0.0
        %vm3204 = vcmp.gt.f32.partialorder %v2906, 0.0
        %vm3205 = vcmp.gt.f32.partialorder %v2911, 0.0
        %vm3206 = vcmp.gt.f32.partialorder %v2916, 0.0
        %vm3207 = vcmp.gt.f32.partialorder %v2921, 0.0
        %vm3208 = vcmp.gt.f32.partialorder %v2926, 0.0
        %vm3209 = vcmp.gt.f32.partialorder %v2931, 0.0
        %vm3210 = vcmp.gt.f32.partialorder %v2936, 0.0
        %vm3211 = vcmp.gt.f32.partialorder %v2941, 0.0
        %vm3212 = vcmp.gt.f32.partialorder %v2946, 0.0
        %vm3213 = vcmp.gt.f32.partialorder %v2951, 0.0
        %vm3214 = vcmp.gt.f32.partialorder %v2956, 0.0
        %vm3215 = vcmp.gt.f32.partialorder %v2961, 0.0
        %vm3216 = vcmp.gt.f32.partialorder %v2966, 0.0
        %vm3217 = vcmp.gt.f32.partialorder %v2971, 0.0
        %vm3218 = vcmp.gt.f32.partialorder %v2976, 0.0
        %vm3219 = vcmp.gt.f32.partialorder %v2981, 0.0
        %vm3220 = vcmp.gt.f32.partialorder %v2986, 0.0
        %vm3221 = vcmp.gt.f32.partialorder %v2991, 0.0
        %vm3222 = vcmp.gt.f32.partialorder %v2996, 0.0
        %vm3223 = vcmp.gt.f32.partialorder %v3001, 0.0
        %vm3224 = vcmp.gt.f32.partialorder %v3006, 0.0
        %vm3225 = vcmp.gt.f32.partialorder %v3011, 0.0
        %vm3226 = vcmp.gt.f32.partialorder %v3016, 0.0
        %vm3227 = vcmp.gt.f32.partialorder %v3021, 0.0
        %vm3228 = vcmp.gt.f32.partialorder %v3026, 0.0
        %vm3229 = vcmp.gt.f32.partialorder %v3031, 0.0
        %vm3230 = vcmp.gt.f32.partialorder %v3036, 0.0
        %vm3231 = vcmp.gt.f32.partialorder %v3041, 0.0
        %vm3232 = vcmp.gt.f32.partialorder %v3046, 0.0
        %vm3233 = vcmp.gt.f32.partialorder %v3051, 0.0
        %vm3234 = vcmp.gt.f32.partialorder %v3056, 0.0
        %vm3235 = vcmp.gt.f32.partialorder %v3061, 0.0
        %vm3236 = vcmp.gt.f32.partialorder %v3066, 0.0
        %vm3237 = vcmp.gt.f32.partialorder %v3071, 0.0
        %vm3238 = vcmp.gt.f32.partialorder %v3076, 0.0
        %vm3239 = vcmp.gt.f32.partialorder %v3081, 0.0
        %vm3240 = vcmp.gt.f32.partialorder %v3086, 0.0
        %vm3241 = vcmp.gt.f32.partialorder %v3091, 0.0
        %vm3242 = vcmp.gt.f32.partialorder %v3096, 0.0
        %vm3243 = vcmp.gt.f32.partialorder %v3101, 0.0
        %vm3244 = vcmp.gt.f32.partialorder %v3106, 0.0
        %vm3245 = vcmp.gt.f32.partialorder %v3111, 0.0
        %vm3246 = vcmp.gt.f32.partialorder %v3116, 0.0
        %v3247 = vmin.f32 %v2481, 0.0
        %v3248 = vmin.f32 %v2486, 0.0
        %v3249 = vmin.f32 %v2491, 0.0
        %v3250 = vmin.f32 %v2496, 0.0
        %v3251 = vmin.f32 %v2501, 0.0
        %v3252 = vmin.f32 %v2506, 0.0
        %v3253 = vmin.f32 %v2511, 0.0
        %v3254 = vmin.f32 %v2516, 0.0
        %v3255 = vmin.f32 %v2521, 0.0
        %v3256 = vmin.f32 %v2526, 0.0
        %v3257 = vmin.f32 %v2531, 0.0
        %v3258 = vmin.f32 %v2536, 0.0
        %v3259 = vmin.f32 %v2541, 0.0
        %v3260 = vmin.f32 %v2546, 0.0
        %v3261 = vmin.f32 %v2551, 0.0
        %v3262 = vmin.f32 %v2556, 0.0
        %v3263 = vmin.f32 %v2561, 0.0
        %v3264 = vmin.f32 %v2566, 0.0
        %v3265 = vmin.f32 %v2571, 0.0
        %v3266 = vmin.f32 %v2576, 0.0
        %v3267 = vmin.f32 %v2581, 0.0
        %v3268 = vmin.f32 %v2586, 0.0
        %v3269 = vmin.f32 %v2591, 0.0
        %v3270 = vmin.f32 %v2596, 0.0
        %v3271 = vmin.f32 %v2601, 0.0
        %v3272 = vmin.f32 %v2606, 0.0
        %v3273 = vmin.f32 %v2611, 0.0
        %v3274 = vmin.f32 %v2616, 0.0
        %v3275 = vmin.f32 %v2621, 0.0
        %v3276 = vmin.f32 %v2626, 0.0
        %v3277 = vmin.f32 %v2631, 0.0
        %v3278 = vmin.f32 %v2636, 0.0
        %v3279 = vmin.f32 %v2641, 0.0
        %v3280 = vmin.f32 %v2646, 0.0
        %v3281 = vmin.f32 %v2651, 0.0
        %v3282 = vmin.f32 %v2656, 0.0
        %v3283 = vmin.f32 %v2661, 0.0
        %v3284 = vmin.f32 %v2666, 0.0
        %v3285 = vmin.f32 %v2671, 0.0
        %v3286 = vmin.f32 %v2676, 0.0
        %v3287 = vmin.f32 %v2681, 0.0
        %v3288 = vmin.f32 %v2686, 0.0
        %v3289 = vmin.f32 %v2691, 0.0
        %v3290 = vmin.f32 %v2696, 0.0
        %v3291 = vmin.f32 %v2701, 0.0
        %v3292 = vmin.f32 %v2706, 0.0
        %v3293 = vmin.f32 %v2711, 0.0
        %v3294 = vmin.f32 %v2716, 0.0
        %v3295 = vmin.f32 %v2721, 0.0
        %v3296 = vmin.f32 %v2726, 0.0
        %v3297 = vmin.f32 %v2731, 0.0
        %v3298 = vmin.f32 %v2736, 0.0
        %v3299 = vmin.f32 %v2741, 0.0
        %v3300 = vmin.f32 %v2746, 0.0
        %v3301 = vmin.f32 %v2751, 0.0
        %v3302 = vmin.f32 %v2756, 0.0
        %v3303 = vmin.f32 %v2761, 0.0
        %v3304 = vmin.f32 %v2766, 0.0
        %v3305 = vmin.f32 %v2771, 0.0
        %v3306 = vmin.f32 %v2776, 0.0
        %v3307 = vmin.f32 %v2781, 0.0
        %v3308 = vmin.f32 %v2786, 0.0
        %v3309 = vmin.f32 %v2791, 0.0
        %v3310 = vmin.f32 %v2796, 0.0
        %v3311 = vmin.f32 %v2801, 0.0
        %v3312 = vmin.f32 %v2806, 0.0
        %v3313 = vmin.f32 %v2811, 0.0
        %v3314 = vmin.f32 %v2816, 0.0
        %v3315 = vmin.f32 %v2821, 0.0
        %v3316 = vmin.f32 %v2826, 0.0
        %v3317 = vmin.f32 %v2831, 0.0
        %v3318 = vmin.f32 %v2836, 0.0
        %v3319 = vmin.f32 %v2841, 0.0
        %v3320 = vmin.f32 %v2846, 0.0
        %v3321 = vmin.f32 %v2851, 0.0
        %v3322 = vmin.f32 %v2856, 0.0
        %v3323 = vmin.f32 %v2861, 0.0
        %v3324 = vmin.f32 %v2866, 0.0
        %v3325 = vmin.f32 %v2871, 0.0
        %v3326 = vmin.f32 %v2876, 0.0
        %v3327 = vmin.f32 %v2881, 0.0
        %v3328 = vmin.f32 %v2886, 0.0
        %v3329 = vmin.f32 %v2891, 0.0
        %v3330 = vmin.f32 %v2896, 0.0
        %v3331 = vmin.f32 %v2901, 0.0
        %v3332 = vmin.f32 %v2906, 0.0
        %v3333 = vmin.f32 %v2911, 0.0
        %v3334 = vmin.f32 %v2916, 0.0
        %v3335 = vmin.f32 %v2921, 0.0
        %v3336 = vmin.f32 %v2926, 0.0
        %v3337 = vmin.f32 %v2931, 0.0
        %v3338 = vmin.f32 %v2936, 0.0
        %v3339 = vmin.f32 %v2941, 0.0
        %v3340 = vmin.f32 %v2946, 0.0
        %v3341 = vmin.f32 %v2951, 0.0
        %v3342 = vmin.f32 %v2956, 0.0
        %v3343 = vmin.f32 %v2961, 0.0
        %v3344 = vmin.f32 %v2966, 0.0
        %v3345 = vmin.f32 %v2971, 0.0
        %v3346 = vmin.f32 %v2976, 0.0
        %v3347 = vmin.f32 %v2981, 0.0
        %v3348 = vmin.f32 %v2986, 0.0
        %v3349 = vmin.f32 %v2991, 0.0
        %v3350 = vmin.f32 %v2996, 0.0
        %v3351 = vmin.f32 %v3001, 0.0
        %v3352 = vmin.f32 %v3006, 0.0
        %v3353 = vmin.f32 %v3011, 0.0
        %v3354 = vmin.f32 %v3016, 0.0
        %v3355 = vmin.f32 %v3021, 0.0
        %v3356 = vmin.f32 %v3026, 0.0
        %v3357 = vmin.f32 %v3031, 0.0
        %v3358 = vmin.f32 %v3036, 0.0
        %v3359 = vmin.f32 %v3041, 0.0
        %v3360 = vmin.f32 %v3046, 0.0
        %v3361 = vmin.f32 %v3051, 0.0
        %v3362 = vmin.f32 %v3056, 0.0
        %v3363 = vmin.f32 %v3061, 0.0
        %v3364 = vmin.f32 %v3066, 0.0
        %v3365 = vmin.f32 %v3071, 0.0
        %v3366 = vmin.f32 %v3076, 0.0
        %v3367 = vmin.f32 %v3081, 0.0
        %v3368 = vmin.f32 %v3086, 0.0
        %v3369 = vmin.f32 %v3091, 0.0
        %v3370 = vmin.f32 %v3096, 0.0
        %v3371 = vmin.f32 %v3101, 0.0
        %v3372 = vmin.f32 %v3106, 0.0
        %v3373 = vmin.f32 %v3111, 0.0
        %v3374 = vmin.f32 %v3116, 0.0
        %v3375 = vmul.f32 %v3247, 1.442695
        %v3376 = vpow.pop %v3375
        %v3377 = vmul.f32 %v3248, 1.442695
        %v3378 = vpow.pop %v3377
        %v3379 = vmul.f32 %v3249, 1.442695
        %v3380 = vpow.pop %v3379
        %v3381 = vmul.f32 %v3250, 1.442695
        %v3382 = vpow.pop %v3381
        %v3383 = vmul.f32 %v3251, 1.442695
        %v3384 = vpow.pop %v3383
        %v3385 = vmul.f32 %v3252, 1.442695
        %v3386 = vpow.pop %v3385
        %v3387 = vmul.f32 %v3253, 1.442695
        %v3388 = vpow.pop %v3387
        %v3389 = vmul.f32 %v3254, 1.442695
        %v3390 = vpow.pop %v3389
        %v3391 = vmul.f32 %v3255, 1.442695
        %v3392 = vpow.pop %v3391
        %v3393 = vmul.f32 %v3256, 1.442695
        %v3394 = vpow.pop %v3393
        %v3395 = vmul.f32 %v3257, 1.442695
        %v3396 = vpow.pop %v3395
        %v3397 = vmul.f32 %v3258, 1.442695
        %v3398 = vpow.pop %v3397
        %v3399 = vmul.f32 %v3259, 1.442695
        %v3400 = vpow.pop %v3399
        %v3401 = vmul.f32 %v3260, 1.442695
        %v3402 = vpow.pop %v3401
        %v3403 = vmul.f32 %v3261, 1.442695
        %v3404 = vpow.pop %v3403
        %v3405 = vmul.f32 %v3262, 1.442695
        %v3406 = vpow.pop %v3405
        %v3407 = vmul.f32 %v3263, 1.442695
        %v3408 = vpow.pop %v3407
        %v3409 = vmul.f32 %v3264, 1.442695
        %v3410 = vpow.pop %v3409
        %v3411 = vmul.f32 %v3265, 1.442695
        %v3412 = vpow.pop %v3411
        %v3413 = vmul.f32 %v3266, 1.442695
        %v3414 = vpow.pop %v3413
        %v3415 = vmul.f32 %v3267, 1.442695
        %v3416 = vpow.pop %v3415
        %v3417 = vmul.f32 %v3268, 1.442695
        %v3418 = vpow.pop %v3417
        %v3419 = vmul.f32 %v3269, 1.442695
        %v3420 = vpow.pop %v3419
        %v3421 = vmul.f32 %v3270, 1.442695
        %v3422 = vpow.pop %v3421
        %v3423 = vmul.f32 %v3271, 1.442695
        %v3424 = vpow.pop %v3423
        %v3425 = vmul.f32 %v3272, 1.442695
        %v3426 = vpow.pop %v3425
        %v3427 = vmul.f32 %v3273, 1.442695
        %v3428 = vpow.pop %v3427
        %v3429 = vmul.f32 %v3274, 1.442695
        %v3430 = vpow.pop %v3429
        %v3431 = vmul.f32 %v3275, 1.442695
        %v3432 = vpow.pop %v3431
        %v3433 = vmul.f32 %v3276, 1.442695
        %v3434 = vpow.pop %v3433
        %v3435 = vmul.f32 %v3277, 1.442695
        %v3436 = vpow.pop %v3435
        %v3437 = vmul.f32 %v3278, 1.442695
        %v3438 = vpow.pop %v3437
        %v3439 = vmul.f32 %v3279, 1.442695
        %v3440 = vpow.pop %v3439
        %v3441 = vmul.f32 %v3280, 1.442695
        %v3442 = vpow.pop %v3441
        %v3443 = vmul.f32 %v3281, 1.442695
        %v3444 = vpow.pop %v3443
        %v3445 = vmul.f32 %v3282, 1.442695
        %v3446 = vpow.pop %v3445
        %v3447 = vmul.f32 %v3283, 1.442695
        %v3448 = vpow.pop %v3447
        %v3449 = vmul.f32 %v3284, 1.442695
        %v3450 = vpow.pop %v3449
        %v3451 = vmul.f32 %v3285, 1.442695
        %v3452 = vpow.pop %v3451
        %v3453 = vmul.f32 %v3286, 1.442695
        %v3454 = vpow.pop %v3453
        %v3455 = vmul.f32 %v3287, 1.442695
        %v3456 = vpow.pop %v3455
        %v3457 = vmul.f32 %v3288, 1.442695
        %v3458 = vpow.pop %v3457
        %v3459 = vmul.f32 %v3289, 1.442695
        %v3460 = vpow.pop %v3459
        %v3461 = vmul.f32 %v3290, 1.442695
        %v3462 = vpow.pop %v3461
        %v3463 = vmul.f32 %v3291, 1.442695
        %v3464 = vpow.pop %v3463
        %v3465 = vmul.f32 %v3292, 1.442695
        %v3466 = vpow.pop %v3465
        %v3467 = vmul.f32 %v3293, 1.442695
        %v3468 = vpow.pop %v3467
        %v3469 = vmul.f32 %v3294, 1.442695
        %v3470 = vpow.pop %v3469
        %v3471 = vmul.f32 %v3295, 1.442695
        %v3472 = vpow.pop %v3471
        %v3473 = vmul.f32 %v3296, 1.442695
        %v3474 = vpow.pop %v3473
        %v3475 = vmul.f32 %v3297, 1.442695
        %v3476 = vpow.pop %v3475
        %v3477 = vmul.f32 %v3298, 1.442695
        %v3478 = vpow.pop %v3477
        %v3479 = vmul.f32 %v3299, 1.442695
        %v3480 = vpow.pop %v3479
        %v3481 = vmul.f32 %v3300, 1.442695
        %v3482 = vpow.pop %v3481
        %v3483 = vmul.f32 %v3301, 1.442695
        %v3484 = vpow.pop %v3483
        %v3485 = vmul.f32 %v3302, 1.442695
        %v3486 = vpow.pop %v3485
        %v3487 = vmul.f32 %v3303, 1.442695
        %v3488 = vpow.pop %v3487
        %v3489 = vmul.f32 %v3304, 1.442695
        %v3490 = vpow.pop %v3489
        %v3491 = vmul.f32 %v3305, 1.442695
        %v3492 = vpow.pop %v3491
        %v3493 = vmul.f32 %v3306, 1.442695
        %v3494 = vpow.pop %v3493
        %v3495 = vmul.f32 %v3307, 1.442695
        %v3496 = vpow.pop %v3495
        %v3497 = vmul.f32 %v3308, 1.442695
        %v3498 = vpow.pop %v3497
        %v3499 = vmul.f32 %v3309, 1.442695
        %v3500 = vpow.pop %v3499
        %v3501 = vmul.f32 %v3310, 1.442695
        %v3502 = vpow.pop %v3501
        %v3503 = vmul.f32 %v3311, 1.442695
        %v3504 = vpow.pop %v3503
        %v3505 = vmul.f32 %v3312, 1.442695
        %v3506 = vpow.pop %v3505
        %v3507 = vmul.f32 %v3313, 1.442695
        %v3508 = vpow.pop %v3507
        %v3509 = vmul.f32 %v3314, 1.442695
        %v3510 = vpow.pop %v3509
        %v3511 = vmul.f32 %v3315, 1.442695
        %v3512 = vpow.pop %v3511
        %v3513 = vmul.f32 %v3316, 1.442695
        %v3514 = vpow.pop %v3513
        %v3515 = vmul.f32 %v3317, 1.442695
        %v3516 = vpow.pop %v3515
        %v3517 = vmul.f32 %v3318, 1.442695
        %v3518 = vpow.pop %v3517
        %v3519 = vmul.f32 %v3319, 1.442695
        %v3520 = vpow.pop %v3519
        %v3521 = vmul.f32 %v3320, 1.442695
        %v3522 = vpow.pop %v3521
        %v3523 = vmul.f32 %v3321, 1.442695
        %v3524 = vpow.pop %v3523
        %v3525 = vmul.f32 %v3322, 1.442695
        %v3526 = vpow.pop %v3525
        %v3527 = vmul.f32 %v3323, 1.442695
        %v3528 = vpow.pop %v3527
        %v3529 = vmul.f32 %v3324, 1.442695
        %v3530 = vpow.pop %v3529
        %v3531 = vmul.f32 %v3325, 1.442695
        %v3532 = vpow.pop %v3531
        %v3533 = vmul.f32 %v3326, 1.442695
        %v3534 = vpow.pop %v3533
        %v3535 = vmul.f32 %v3327, 1.442695
        %v3536 = vpow.pop %v3535
        %v3537 = vmul.f32 %v3328, 1.442695
        %v3538 = vpow.pop %v3537
        %v3539 = vmul.f32 %v3329, 1.442695
        %v3540 = vpow.pop %v3539
        %v3541 = vmul.f32 %v3330, 1.442695
        %v3542 = vpow.pop %v3541
        %v3543 = vmul.f32 %v3331, 1.442695
        %v3544 = vpow.pop %v3543
        %v3545 = vmul.f32 %v3332, 1.442695
        %v3546 = vpow.pop %v3545
        %v3547 = vmul.f32 %v3333, 1.442695
        %v3548 = vpow.pop %v3547
        %v3549 = vmul.f32 %v3334, 1.442695
        %v3550 = vpow.pop %v3549
        %v3551 = vmul.f32 %v3335, 1.442695
        %v3552 = vpow.pop %v3551
        %v3553 = vmul.f32 %v3336, 1.442695
        %v3554 = vpow.pop %v3553
        %v3555 = vmul.f32 %v3337, 1.442695
        %v3556 = vpow.pop %v3555
        %v3557 = vmul.f32 %v3338, 1.442695
        %v3558 = vpow.pop %v3557
        %v3559 = vmul.f32 %v3339, 1.442695
        %v3560 = vpow.pop %v3559
        %v3561 = vmul.f32 %v3340, 1.442695
        %v3562 = vpow.pop %v3561
        %v3563 = vmul.f32 %v3341, 1.442695
        %v3564 = vpow.pop %v3563
        %v3565 = vmul.f32 %v3342, 1.442695
        %v3566 = vpow.pop %v3565
        %v3567 = vmul.f32 %v3343, 1.442695
        %v3568 = vpow.pop %v3567
        %v3569 = vmul.f32 %v3344, 1.442695
        %v3570 = vpow.pop %v3569
        %v3571 = vmul.f32 %v3345, 1.442695
        %v3572 = vpow.pop %v3571
        %v3573 = vmul.f32 %v3346, 1.442695
        %v3574 = vpow.pop %v3573
        %v3575 = vmul.f32 %v3347, 1.442695
        %v3576 = vpow.pop %v3575
        %v3577 = vmul.f32 %v3348, 1.442695
        %v3578 = vpow.pop %v3577
        %v3579 = vmul.f32 %v3349, 1.442695
        %v3580 = vpow.pop %v3579
        %v3581 = vmul.f32 %v3350, 1.442695
        %v3582 = vpow.pop %v3581
        %v3583 = vmul.f32 %v3351, 1.442695
        %v3584 = vpow.pop %v3583
        %v3585 = vmul.f32 %v3352, 1.442695
        %v3586 = vpow.pop %v3585
        %v3587 = vmul.f32 %v3353, 1.442695
        %v3588 = vpow.pop %v3587
        %v3589 = vmul.f32 %v3354, 1.442695
        %v3590 = vpow.pop %v3589
        %v3591 = vmul.f32 %v3355, 1.442695
        %v3592 = vpow.pop %v3591
        %v3593 = vmul.f32 %v3356, 1.442695
        %v3594 = vpow.pop %v3593
        %v3595 = vmul.f32 %v3357, 1.442695
        %v3596 = vpow.pop %v3595
        %v3597 = vmul.f32 %v3358, 1.442695
        %v3598 = vpow.pop %v3597
        %v3599 = vmul.f32 %v3359, 1.442695
        %v3600 = vpow.pop %v3599
        %v3601 = vmul.f32 %v3360, 1.442695
        %v3602 = vpow.pop %v3601
        %v3603 = vmul.f32 %v3361, 1.442695
        %v3604 = vpow.pop %v3603
        %v3605 = vmul.f32 %v3362, 1.442695
        %v3606 = vpow.pop %v3605
        %v3607 = vmul.f32 %v3363, 1.442695
        %v3608 = vpow.pop %v3607
        %v3609 = vmul.f32 %v3364, 1.442695
        %v3610 = vpow.pop %v3609
        %v3611 = vmul.f32 %v3365, 1.442695
        %v3612 = vpow.pop %v3611
        %v3613 = vmul.f32 %v3366, 1.442695
        %v3614 = vpow.pop %v3613
        %v3615 = vmul.f32 %v3367, 1.442695
        %v3616 = vpow.pop %v3615
        %v3617 = vmul.f32 %v3368, 1.442695
        %v3618 = vpow.pop %v3617
        %v3619 = vmul.f32 %v3369, 1.442695
        %v3620 = vpow.pop %v3619
        %v3621 = vmul.f32 %v3370, 1.442695
        %v3622 = vpow.pop %v3621
        %v3623 = vmul.f32 %v3371, 1.442695
        %v3624 = vpow.pop %v3623
        %v3625 = vmul.f32 %v3372, 1.442695
        %v3626 = vpow.pop %v3625
        %v3627 = vmul.f32 %v3373, 1.442695
        %v3628 = vpow.pop %v3627
        %v3629 = vmul.f32 %v3374, 1.442695
        %v3630 = vpow.pop %v3629
        %v3631 = vsub.f32 %v3376, 1.0
        %v3632 = vsub.f32 %v3378, 1.0
        %v3633 = vsub.f32 %v3380, 1.0
        %v3634 = vsub.f32 %v3382, 1.0
        %v3635 = vsub.f32 %v3384, 1.0
        %v3636 = vsub.f32 %v3386, 1.0
        %v3637 = vsub.f32 %v3388, 1.0
        %v3638 = vsub.f32 %v3390, 1.0
        %v3639 = vsub.f32 %v3392, 1.0
        %v3640 = vsub.f32 %v3394, 1.0
        %v3641 = vsub.f32 %v3396, 1.0
        %v3642 = vsub.f32 %v3398, 1.0
        %v3643 = vsub.f32 %v3400, 1.0
        %v3644 = vsub.f32 %v3402, 1.0
        %v3645 = vsub.f32 %v3404, 1.0
        %v3646 = vsub.f32 %v3406, 1.0
        %v3647 = vsub.f32 %v3408, 1.0
        %v3648 = vsub.f32 %v3410, 1.0
        %v3649 = vsub.f32 %v3412, 1.0
        %v3650 = vsub.f32 %v3414, 1.0
        %v3651 = vsub.f32 %v3416, 1.0
        %v3652 = vsub.f32 %v3418, 1.0
        %v3653 = vsub.f32 %v3420, 1.0
        %v3654 = vsub.f32 %v3422, 1.0
        %v3655 = vsub.f32 %v3424, 1.0
        %v3656 = vsub.f32 %v3426, 1.0
        %v3657 = vsub.f32 %v3428, 1.0
        %v3658 = vsub.f32 %v3430, 1.0
        %v3659 = vsub.f32 %v3432, 1.0
        %v3660 = vsub.f32 %v3434, 1.0
        %v3661 = vsub.f32 %v3436, 1.0
        %v3662 = vsub.f32 %v3438, 1.0
        %v3663 = vsub.f32 %v3440, 1.0
        %v3664 = vsub.f32 %v3442, 1.0
        %v3665 = vsub.f32 %v3444, 1.0
        %v3666 = vsub.f32 %v3446, 1.0
        %v3667 = vsub.f32 %v3448, 1.0
        %v3668 = vsub.f32 %v3450, 1.0
        %v3669 = vsub.f32 %v3452, 1.0
        %v3670 = vsub.f32 %v3454, 1.0
        %v3671 = vsub.f32 %v3456, 1.0
        %v3672 = vsub.f32 %v3458, 1.0
        %v3673 = vsub.f32 %v3460, 1.0
        %v3674 = vsub.f32 %v3462, 1.0
        %v3675 = vsub.f32 %v3464, 1.0
        %v3676 = vsub.f32 %v3466, 1.0
        %v3677 = vsub.f32 %v3468, 1.0
        %v3678 = vsub.f32 %v3470, 1.0
        %v3679 = vsub.f32 %v3472, 1.0
        %v3680 = vsub.f32 %v3474, 1.0
        %v3681 = vsub.f32 %v3476, 1.0
        %v3682 = vsub.f32 %v3478, 1.0
        %v3683 = vsub.f32 %v3480, 1.0
        %v3684 = vsub.f32 %v3482, 1.0
        %v3685 = vsub.f32 %v3484, 1.0
        %v3686 = vsub.f32 %v3486, 1.0
        %v3687 = vsub.f32 %v3488, 1.0
        %v3688 = vsub.f32 %v3490, 1.0
        %v3689 = vsub.f32 %v3492, 1.0
        %v3690 = vsub.f32 %v3494, 1.0
        %v3691 = vsub.f32 %v3496, 1.0
        %v3692 = vsub.f32 %v3498, 1.0
        %v3693 = vsub.f32 %v3500, 1.0
        %v3694 = vsub.f32 %v3502, 1.0
        %v3695 = vsub.f32 %v3504, 1.0
        %v3696 = vsub.f32 %v3506, 1.0
        %v3697 = vsub.f32 %v3508, 1.0
        %v3698 = vsub.f32 %v3510, 1.0
        %v3699 = vsub.f32 %v3512, 1.0
        %v3700 = vsub.f32 %v3514, 1.0
        %v3701 = vsub.f32 %v3516, 1.0
        %v3702 = vsub.f32 %v3518, 1.0
        %v3703 = vsub.f32 %v3520, 1.0
        %v3704 = vsub.f32 %v3522, 1.0
        %v3705 = vsub.f32 %v3524, 1.0
        %v3706 = vsub.f32 %v3526, 1.0
        %v3707 = vsub.f32 %v3528, 1.0
        %v3708 = vsub.f32 %v3530, 1.0
        %v3709 = vsub.f32 %v3532, 1.0
        %v3710 = vsub.f32 %v3534, 1.0
        %v3711 = vsub.f32 %v3536, 1.0
        %v3712 = vsub.f32 %v3538, 1.0
        %v3713 = vsub.f32 %v3540, 1.0
        %v3714 = vsub.f32 %v3542, 1.0
        %v3715 = vsub.f32 %v3544, 1.0
        %v3716 = vsub.f32 %v3546, 1.0
        %v3717 = vsub.f32 %v3548, 1.0
        %v3718 = vsub.f32 %v3550, 1.0
        %v3719 = vsub.f32 %v3552, 1.0
        %v3720 = vsub.f32 %v3554, 1.0
        %v3721 = vsub.f32 %v3556, 1.0
        %v3722 = vsub.f32 %v3558, 1.0
        %v3723 = vsub.f32 %v3560, 1.0
        %v3724 = vsub.f32 %v3562, 1.0
        %v3725 = vsub.f32 %v3564, 1.0
        %v3726 = vsub.f32 %v3566, 1.0
        %v3727 = vsub.f32 %v3568, 1.0
        %v3728 = vsub.f32 %v3570, 1.0
        %v3729 = vsub.f32 %v3572, 1.0
        %v3730 = vsub.f32 %v3574, 1.0
        %v3731 = vsub.f32 %v3576, 1.0
        %v3732 = vsub.f32 %v3578, 1.0
        %v3733 = vsub.f32 %v3580, 1.0
        %v3734 = vsub.f32 %v3582, 1.0
        %v3735 = vsub.f32 %v3584, 1.0
        %v3736 = vsub.f32 %v3586, 1.0
        %v3737 = vsub.f32 %v3588, 1.0
        %v3738 = vsub.f32 %v3590, 1.0
        %v3739 = vsub.f32 %v3592, 1.0
        %v3740 = vsub.f32 %v3594, 1.0
        %v3741 = vsub.f32 %v3596, 1.0
        %v3742 = vsub.f32 %v3598, 1.0
        %v3743 = vsub.f32 %v3600, 1.0
        %v3744 = vsub.f32 %v3602, 1.0
        %v3745 = vsub.f32 %v3604, 1.0
        %v3746 = vsub.f32 %v3606, 1.0
        %v3747 = vsub.f32 %v3608, 1.0
        %v3748 = vsub.f32 %v3610, 1.0
        %v3749 = vsub.f32 %v3612, 1.0
        %v3750 = vsub.f32 %v3614, 1.0
        %v3751 = vsub.f32 %v3616, 1.0
        %v3752 = vsub.f32 %v3618, 1.0
        %v3753 = vsub.f32 %v3620, 1.0
        %v3754 = vsub.f32 %v3622, 1.0
        %v3755 = vsub.f32 %v3624, 1.0
        %v3756 = vsub.f32 %v3626, 1.0
        %v3757 = vsub.f32 %v3628, 1.0
        %v3758 = vsub.f32 %v3630, 1.0
        %v3759 = vsel %vm3119, %v2481, %v3631
        %v3760 = vsel %vm3120, %v2486, %v3632
        %v3761 = vsel %vm3121, %v2491, %v3633
        %v3762 = vsel %vm3122, %v2496, %v3634
        %v3763 = vsel %vm3123, %v2501, %v3635
        %v3764 = vsel %vm3124, %v2506, %v3636
        %v3765 = vsel %vm3125, %v2511, %v3637
        %v3766 = vsel %vm3126, %v2516, %v3638
        %v3767 = vsel %vm3127, %v2521, %v3639
        %v3768 = vsel %vm3128, %v2526, %v3640
        %v3769 = vsel %vm3129, %v2531, %v3641
        %v3770 = vsel %vm3130, %v2536, %v3642
        %v3771 = vsel %vm3131, %v2541, %v3643
        %v3772 = vsel %vm3132, %v2546, %v3644
        %v3773 = vsel %vm3133, %v2551, %v3645
        %v3774 = vsel %vm3134, %v2556, %v3646
        %v3775 = vsel %vm3135, %v2561, %v3647
        %v3776 = vsel %vm3136, %v2566, %v3648
        %v3777 = vsel %vm3137, %v2571, %v3649
        %v3778 = vsel %vm3138, %v2576, %v3650
        %v3779 = vsel %vm3139, %v2581, %v3651
        %v3780 = vsel %vm3140, %v2586, %v3652
        %v3781 = vsel %vm3141, %v2591, %v3653
        %v3782 = vsel %vm3142, %v2596, %v3654
        %v3783 = vsel %vm3143, %v2601, %v3655
        %v3784 = vsel %vm3144, %v2606, %v3656
        %v3785 = vsel %vm3145, %v2611, %v3657
        %v3786 = vsel %vm3146, %v2616, %v3658
        %v3787 = vsel %vm3147, %v2621, %v3659
        %v3788 = vsel %vm3148, %v2626, %v3660
        %v3789 = vsel %vm3149, %v2631, %v3661
        %v3790 = vsel %vm3150, %v2636, %v3662
        %v3791 = vsel %vm3151, %v2641, %v3663
        %v3792 = vsel %vm3152, %v2646, %v3664
        %v3793 = vsel %vm3153, %v2651, %v3665
        %v3794 = vsel %vm3154, %v2656, %v3666
        %v3795 = vsel %vm3155, %v2661, %v3667
        %v3796 = vsel %vm3156, %v2666, %v3668
        %v3797 = vsel %vm3157, %v2671, %v3669
        %v3798 = vsel %vm3158, %v2676, %v3670
        %v3799 = vsel %vm3159, %v2681, %v3671
        %v3800 = vsel %vm3160, %v2686, %v3672
        %v3801 = vsel %vm3161, %v2691, %v3673
        %v3802 = vsel %vm3162, %v2696, %v3674
        %v3803 = vsel %vm3163, %v2701, %v3675
        %v3804 = vsel %vm3164, %v2706, %v3676
        %v3805 = vsel %vm3165, %v2711, %v3677
        %v3806 = vsel %vm3166, %v2716, %v3678
        %v3807 = vsel %vm3167, %v2721, %v3679
        %v3808 = vsel %vm3168, %v2726, %v3680
        %v3809 = vsel %vm3169, %v2731, %v3681
        %v3810 = vsel %vm3170, %v2736, %v3682
        %v3811 = vsel %vm3171, %v2741, %v3683
        %v3812 = vsel %vm3172, %v2746, %v3684
        %v3813 = vsel %vm3173, %v2751, %v3685
        %v3814 = vsel %vm3174, %v2756, %v3686
        %v3815 = vsel %vm3175, %v2761, %v3687
        %v3816 = vsel %vm3176, %v2766, %v3688
        %v3817 = vsel %vm3177, %v2771, %v3689
        %v3818 = vsel %vm3178, %v2776, %v3690
        %v3819 = vsel %vm3179, %v2781, %v3691
        %v3820 = vsel %vm3180, %v2786, %v3692
        %v3821 = vsel %vm3181, %v2791, %v3693
        %v3822 = vsel %vm3182, %v2796, %v3694
        %v3823 = vsel %vm3183, %v2801, %v3695
        %v3824 = vsel %vm3184, %v2806, %v3696
        %v3825 = vsel %vm3185, %v2811, %v3697
        %v3826 = vsel %vm3186, %v2816, %v3698
        %v3827 = vsel %vm3187, %v2821, %v3699
        %v3828 = vsel %vm3188, %v2826, %v3700
        %v3829 = vsel %vm3189, %v2831, %v3701
        %v3830 = vsel %vm3190, %v2836, %v3702
        %v3831 = vsel %vm3191, %v2841, %v3703
        %v3832 = vsel %vm3192, %v2846, %v3704
        %v3833 = vsel %vm3193, %v2851, %v3705
        %v3834 = vsel %vm3194, %v2856, %v3706
        %v3835 = vsel %vm3195, %v2861, %v3707
        %v3836 = vsel %vm3196, %v2866, %v3708
        %v3837 = vsel %vm3197, %v2871, %v3709
        %v3838 = vsel %vm3198, %v2876, %v3710
        %v3839 = vsel %vm3199, %v2881, %v3711
        %v3840 = vsel %vm3200, %v2886, %v3712
        %v3841 = vsel %vm3201, %v2891, %v3713
        %v3842 = vsel %vm3202, %v2896, %v3714
        %v3843 = vsel %vm3203, %v2901, %v3715
        %v3844 = vsel %vm3204, %v2906, %v3716
        %v3845 = vsel %vm3205, %v2911, %v3717
        %v3846 = vsel %vm3206, %v2916, %v3718
        %v3847 = vsel %vm3207, %v2921, %v3719
        %v3848 = vsel %vm3208, %v2926, %v3720
        %v3849 = vsel %vm3209, %v2931, %v3721
        %v3850 = vsel %vm3210, %v2936, %v3722
        %v3851 = vsel %vm3211, %v2941, %v3723
        %v3852 = vsel %vm3212, %v2946, %v3724
        %v3853 = vsel %vm3213, %v2951, %v3725
        %v3854 = vsel %vm3214, %v2956, %v3726
        %v3855 = vsel %vm3215, %v2961, %v3727
        %v3856 = vsel %vm3216, %v2966, %v3728
        %v3857 = vsel %vm3217, %v2971, %v3729
        %v3858 = vsel %vm3218, %v2976, %v3730
        %v3859 = vsel %vm3219, %v2981, %v3731
        %v3860 = vsel %vm3220, %v2986, %v3732
        %v3861 = vsel %vm3221, %v2991, %v3733
        %v3862 = vsel %vm3222, %v2996, %v3734
        %v3863 = vsel %vm3223, %v3001, %v3735
        %v3864 = vsel %vm3224, %v3006, %v3736
        %v3865 = vsel %vm3225, %v3011, %v3737
        %v3866 = vsel %vm3226, %v3016, %v3738
        %v3867 = vsel %vm3227, %v3021, %v3739
        %v3868 = vsel %vm3228, %v3026, %v3740
        %v3869 = vsel %vm3229, %v3031, %v3741
        %v3870 = vsel %vm3230, %v3036, %v3742
        %v3871 = vsel %vm3231, %v3041, %v3743
        %v3872 = vsel %vm3232, %v3046, %v3744
        %v3873 = vsel %vm3233, %v3051, %v3745
        %v3874 = vsel %vm3234, %v3056, %v3746
        %v3875 = vsel %vm3235, %v3061, %v3747
        %v3876 = vsel %vm3236, %v3066, %v3748
        %v3877 = vsel %vm3237, %v3071, %v3749
        %v3878 = vsel %vm3238, %v3076, %v3750
        %v3879 = vsel %vm3239, %v3081, %v3751
        %v3880 = vsel %vm3240, %v3086, %v3752
        %v3881 = vsel %vm3241, %v3091, %v3753
        %v3882 = vsel %vm3242, %v3096, %v3754
        %v3883 = vsel %vm3243, %v3101, %v3755
        %v3884 = vsel %vm3244, %v3106, %v3756
        %v3885 = vsel %vm3245, %v3111, %v3757
        %v3886 = vsel %vm3246, %v3116, %v3758
        %s3887 = scalar_lea.vmem [#allocation8], 128
        %v3888 = vld [vmem:[%s3887] sm:$0xff]
        %v3889 = vld [vmem:[%s3887 + $0x8] sm:$0xff]
        %v3890 = vld [vmem:[%s3887 + $0x10] sm:$0xff]
        %v3891 = vld [vmem:[%s3887 + $0x18] sm:$0xff]
        %v3892 = vld [vmem:[%s3887 + $0x20] sm:$0xff]
        %v3893 = vld [vmem:[%s3887 + $0x28] sm:$0xff]
        %v3894 = vld [vmem:[%s3887 + $0x30] sm:$0xff]
        %v3895 = vld [vmem:[%s3887 + $0x38] sm:$0xff]
        %v3896 = vld [vmem:[%s3887 + $0x40] sm:$0xff]
        %v3897 = vld [vmem:[%s3887 + $0x48] sm:$0xff]
        %v3898 = vld [vmem:[%s3887 + $0x50] sm:$0xff]
        %v3899 = vld [vmem:[%s3887 + $0x58] sm:$0xff]
        %v3900 = vld [vmem:[%s3887 + $0x60] sm:$0xff]
        %v3901 = vld [vmem:[%s3887 + $0x68] sm:$0xff]
        %v3902 = vld [vmem:[%s3887 + $0x70] sm:$0xff]
        %v3903 = vld [vmem:[%s3887 + $0x78] sm:$0xff]
        %v3904 = vld [vmem:[%s5 + $0x1] sm:$0x1]
        %v3905 = vlaneseq
        %v3906 = vshrl.u32 %v3905, 7
        %v3907 = vsub.s32 0, %v3906
        %v3908 = vrot.slane %v3904, %v3907
        %3909 = vmatprep.subr.mxu0 0.0
        %3910 = vmatpush1.msra.mxu0 %v3888
        %3911 = vmatprep.subr.mxu0 0.0
        %3912 = vmatpush1.msra.mxu0 %v3889
        %3913 = vmatprep.subr.mxu0 0.0
        %3914 = vmatpush1.msra.mxu0 %v3890
        %3915 = vmatprep.subr.mxu0 0.0
        %3916 = vmatpush1.msra.mxu0 %v3891
        %3917 = vmatprep.subr.mxu0 0.0
        %3918 = vmatpush1.msra.mxu0 %v3892
        %3919 = vmatprep.subr.mxu0 0.0
        %3920 = vmatpush1.msra.mxu0 %v3893
        %3921 = vmatprep.subr.mxu0 0.0
        %3922 = vmatpush1.msra.mxu0 %v3894
        %3923 = vmatprep.subr.mxu0 0.0
        %3924 = vmatpush1.msra.mxu0 %v3895
        %3925 = vmatprep.subr.mxu0 0.0
        %3926 = vmatpush1.msra.mxu0 %v3896
        %3927 = vmatprep.subr.mxu0 0.0
        %3928 = vmatpush1.msra.mxu0 %v3897
        %3929 = vmatprep.subr.mxu0 0.0
        %3930 = vmatpush1.msra.mxu0 %v3898
        %3931 = vmatprep.subr.mxu0 0.0
        %3932 = vmatpush1.msra.mxu0 %v3899
        %3933 = vmatprep.subr.mxu0 0.0
        %3934 = vmatpush1.msra.mxu0 %v3900
        %3935 = vmatprep.subr.mxu0 0.0
        %3936 = vmatpush1.msra.mxu0 %v3901
        %3937 = vmatprep.subr.mxu0 0.0
        %3938 = vmatpush1.msra.mxu0 %v3902
        %3939 = vmatprep.subr.mxu0 0.0
        %3940 = vmatpush1.msra.mxu0 %v3903
        %3941 = vmatprep.subr.mxu0 0.0
        %3942 = vmatpush1.msra.mxu0 0.0
        %3943 = vmatprep.subr.mxu0 0.0
        %3944 = vmatpush1.msra.mxu0 0.0
        %3945 = vmatprep.subr.mxu0 0.0
        %3946 = vmatpush1.msra.mxu0 0.0
        %3947 = vmatprep.subr.mxu0 0.0
        %3948 = vmatpush1.msra.mxu0 0.0
        %3949 = vmatprep.subr.mxu0 0.0
        %3950 = vmatpush1.msra.mxu0 0.0
        %3951 = vmatprep.subr.mxu0 0.0
        %3952 = vmatpush1.msra.mxu0 0.0
        %3953 = vmatprep.subr.mxu0 0.0
        %3954 = vmatpush1.msra.mxu0 0.0
        %3955 = vmatprep.subr.mxu0 0.0
        %3956 = vmatpush1.msra.mxu0 0.0
        %3957 = vmatprep.subr.mxu0 0.0
        %3958 = vmatpush1.msra.mxu0 0.0
        %3959 = vmatprep.subr.mxu0 0.0
        %3960 = vmatpush1.msra.mxu0 0.0
        %3961 = vmatprep.subr.mxu0 0.0
        %3962 = vmatpush1.msra.mxu0 0.0
        %3963 = vmatprep.subr.mxu0 0.0
        %3964 = vmatpush1.msra.mxu0 0.0
        %3965 = vmatprep.subr.mxu0 0.0
        %3966 = vmatpush1.msra.mxu0 0.0
        %3967 = vmatprep.subr.mxu0 0.0
        %3968 = vmatpush1.msra.mxu0 0.0
        %3969 = vmatprep.subr.mxu0 0.0
        %3970 = vmatpush1.msra.mxu0 0.0
        %3971 = vmatprep.subr.mxu0 0.0
        %3972 = vmatpush1.msra.mxu0 0.0
        %3973 = vmatprep.mubr.f32.mxu0 0.0
        %3974 = vmatmul.mubr.f32.gmra.mrb[0].mxu0 %v3759
        %v3975 = vpop.f32.mrb[0].mxu0
        %v3976 = vadd.f32 %v3908, %v3975
        %v3977 = vpop.f32.mrb[0].mxu0
        %3978 = vmatprep.mubr.f32.mxu0 0.0
        %3979 = vmatmul.mubr.f32.gmra.mrb[0].mxu0 %v3760
        %v3980 = vpop.f32.mrb[0].mxu0
        %v3981 = vadd.f32 %v3908, %v3980
        %v3982 = vpop.f32.mrb[0].mxu0
        %3983 = vmatprep.mubr.f32.mxu0 0.0
        %3984 = vmatmul.mubr.f32.gmra.mrb[0].mxu0 %v3761
        %v3985 = vpop.f32.mrb[0].mxu0
        %v3986 = vadd.f32 %v3908, %v3985
        %v3987 = vpop.f32.mrb[0].mxu0
        %3988 = vmatprep.mubr.f32.mxu0 0.0
        %3989 = vmatmul.mubr.f32.gmra.mrb[0].mxu0 %v3762
        %v3990 = vpop.f32.mrb[0].mxu0
        %v3991 = vadd.f32 %v3908, %v3990
        %v3992 = vpop.f32.mrb[0].mxu0
        %3993 = vmatprep.mubr.f32.mxu0 0.0
        %3994 = vmatmul.mubr.f32.gmra.mrb[0].mxu0 %v3763
        %v3995 = vpop.f32.mrb[0].mxu0
        %v3996 = vadd.f32 %v3908, %v3995
        %v3997 = vpop.f32.mrb[0].mxu0
        %3998 = vmatprep.mubr.f32.mxu0 0.0
        %3999 = vmatmul.mubr.f32.gmra.mrb[0].mxu0 %v3764
        %v4000 = vpop.f32.mrb[0].mxu0
        %v4001 = vadd.f32 %v3908, %v4000
        %v4002 = vpop.f32.mrb[0].mxu0
        %4003 = vmatprep.mubr.f32.mxu0 0.0
        %4004 = vmatmul.mubr.f32.gmra.mrb[0].mxu0 %v3765
        %v4005 = vpop.f32.mrb[0].mxu0
        %v4006 = vadd.f32 %v3908, %v4005
        %v4007 = vpop.f32.mrb[0].mxu0
        %4008 = vmatprep.mubr.f32.mxu0 0.0
        %4009 = vmatmul.mubr.f32.gmra.mrb[0].mxu0 %v3766
        %v4010 = vpop.f32.mrb[0].mxu0
        %v4011 = vadd.f32 %v3908, %v4010
        %v4012 = vpop.f32.mrb[0].mxu0
        %4013 = vmatprep.mubr.f32.mxu0 0.0
        %4014 = vmatmul.mubr.f32.gmra.mrb[0].mxu0 %v3767
        %v4015 = vpop.f32.mrb[0].mxu0
        %v4016 = vadd.f32 %v3908, %v4015
        %v4017 = vpop.f32.mrb[0].mxu0
        %4018 = vmatprep.mubr.f32.mxu0 0.0
        %4019 = vmatmul.mubr.f32.gmra.mrb[0].mxu0 %v3768
        %v4020 = vpop.f32.mrb[0].mxu0
        %v4021 = vadd.f32 %v3908, %v4020
        %v4022 = vpop.f32.mrb[0].mxu0
        %4023 = vmatprep.mubr.f32.mxu0 0.0
        %4024 = vmatmul.mubr.f32.gmra.mrb[0].mxu0 %v3769
        %v4025 = vpop.f32.mrb[0].mxu0
        %v4026 = vadd.f32 %v3908, %v4025
        %v4027 = vpop.f32.mrb[0].mxu0
        %4028 = vmatprep.mubr.f32.mxu0 0.0
        %4029 = vmatmul.mubr.f32.gmra.mrb[0].mxu0 %v3770
        %v4030 = vpop.f32.mrb[0].mxu0
        %v4031 = vadd.f32 %v3908, %v4030
        %v4032 = vpop.f32.mrb[0].mxu0
        %4033 = vmatprep.mubr.f32.mxu0 0.0
        %4034 = vmatmul.mubr.f32.gmra.mrb[0].mxu0 %v3771
        %v4035 = vpop.f32.mrb[0].mxu0
        %v4036 = vadd.f32 %v3908, %v4035
        %v4037 = vpop.f32.mrb[0].mxu0
        %4038 = vmatprep.mubr.f32.mxu0 0.0
        %4039 = vmatmul.mubr.f32.gmra.mrb[0].mxu0 %v3772
        %v4040 = vpop.f32.mrb[0].mxu0
        %v4041 = vadd.f32 %v3908, %v4040
        %v4042 = vpop.f32.mrb[0].mxu0
        %4043 = vmatprep.mubr.f32.mxu0 0.0
        %4044 = vmatmul.mubr.f32.gmra.mrb[0].mxu0 %v3773
        %v4045 = vpop.f32.mrb[0].mxu0
        %v4046 = vadd.f32 %v3908, %v4045
        %v4047 = vpop.f32.mrb[0].mxu0
        %4048 = vmatprep.mubr.f32.mxu0 0.0
        %4049 = vmatmul.mubr.f32.gmra.mrb[0].mxu0 %v3774
        %v4050 = vpop.f32.mrb[0].mxu0
        %v4051 = vadd.f32 %v3908, %v4050
        %v4052 = vpop.f32.mrb[0].mxu0
        %4053 = vmatprep.mubr.f32.mxu0 0.0
        %4054 = vmatmul.mubr.f32.gmra.mrb[0].mxu0 %v3775
        %v4055 = vpop.f32.mrb[0].mxu0
        %v4056 = vadd.f32 %v3908, %v4055
        %v4057 = vpop.f32.mrb[0].mxu0
        %4058 = vmatprep.mubr.f32.mxu0 0.0
        %4059 = vmatmul.mubr.f32.gmra.mrb[0].mxu0 %v3776
        %v4060 = vpop.f32.mrb[0].mxu0
        %v4061 = vadd.f32 %v3908, %v4060
        %v4062 = vpop.f32.mrb[0].mxu0
        %4063 = vmatprep.mubr.f32.mxu0 0.0
        %4064 = vmatmul.mubr.f32.gmra.mrb[0].mxu0 %v3777
        %v4065 = vpop.f32.mrb[0].mxu0
        %v4066 = vadd.f32 %v3908, %v4065
        %v4067 = vpop.f32.mrb[0].mxu0
        %4068 = vmatprep.mubr.f32.mxu0 0.0
        %4069 = vmatmul.mubr.f32.gmra.mrb[0].mxu0 %v3778
        %v4070 = vpop.f32.mrb[0].mxu0
        %v4071 = vadd.f32 %v3908, %v4070
        %v4072 = vpop.f32.mrb[0].mxu0
        %4073 = vmatprep.mubr.f32.mxu0 0.0
        %4074 = vmatmul.mubr.f32.gmra.mrb[0].mxu0 %v3779
        %v4075 = vpop.f32.mrb[0].mxu0
        %v4076 = vadd.f32 %v3908, %v4075
        %v4077 = vpop.f32.mrb[0].mxu0
        %4078 = vmatprep.mubr.f32.mxu0 0.0
        %4079 = vmatmul.mubr.f32.gmra.mrb[0].mxu0 %v3780
        %v4080 = vpop.f32.mrb[0].mxu0
        %v4081 = vadd.f32 %v3908, %v4080
        %v4082 = vpop.f32.mrb[0].mxu0
        %4083 = vmatprep.mubr.f32.mxu0 0.0
        %4084 = vmatmul.mubr.f32.gmra.mrb[0].mxu0 %v3781
        %v4085 = vpop.f32.mrb[0].mxu0
        %v4086 = vadd.f32 %v3908, %v4085
        %v4087 = vpop.f32.mrb[0].mxu0
        %4088 = vmatprep.mubr.f32.mxu0 0.0
        %4089 = vmatmul.mubr.f32.gmra.mrb[0].mxu0 %v3782
        %v4090 = vpop.f32.mrb[0].mxu0
        %v4091 = vadd.f32 %v3908, %v4090
        %v4092 = vpop.f32.mrb[0].mxu0
        %4093 = vmatprep.mubr.f32.mxu0 0.0
        %4094 = vmatmul.mubr.f32.gmra.mrb[0].mxu0 %v3783
        %v4095 = vpop.f32.mrb[0].mxu0
        %v4096 = vadd.f32 %v3908, %v4095
        %v4097 = vpop.f32.mrb[0].mxu0
        %4098 = vmatprep.mubr.f32.mxu0 0.0
        %4099 = vmatmul.mubr.f32.gmra.mrb[0].mxu0 %v3784
        %v4100 = vpop.f32.mrb[0].mxu0
        %v4101 = vadd.f32 %v3908, %v4100
        %v4102 = vpop.f32.mrb[0].mxu0
        %4103 = vmatprep.mubr.f32.mxu0 0.0
        %4104 = vmatmul.mubr.f32.gmra.mrb[0].mxu0 %v3785
        %v4105 = vpop.f32.mrb[0].mxu0
        %v4106 = vadd.f32 %v3908, %v4105
        %v4107 = vpop.f32.mrb[0].mxu0
        %4108 = vmatprep.mubr.f32.mxu0 0.0
        %4109 = vmatmul.mubr.f32.gmra.mrb[0].mxu0 %v3786
        %v4110 = vpop.f32.mrb[0].mxu0
        %v4111 = vadd.f32 %v3908, %v4110
        %v4112 = vpop.f32.mrb[0].mxu0
        %4113 = vmatprep.mubr.f32.mxu0 0.0
        %4114 = vmatmul.mubr.f32.gmra.mrb[0].mxu0 %v3787
        %v4115 = vpop.f32.mrb[0].mxu0
        %v4116 = vadd.f32 %v3908, %v4115
        %v4117 = vpop.f32.mrb[0].mxu0
        %4118 = vmatprep.mubr.f32.mxu0 0.0
        %4119 = vmatmul.mubr.f32.gmra.mrb[0].mxu0 %v3788
        %v4120 = vpop.f32.mrb[0].mxu0
        %v4121 = vadd.f32 %v3908, %v4120
        %v4122 = vpop.f32.mrb[0].mxu0
        %4123 = vmatprep.mubr.f32.mxu0 0.0
        %4124 = vmatmul.mubr.f32.gmra.mrb[0].mxu0 %v3789
        %v4125 = vpop.f32.mrb[0].mxu0
        %v4126 = vadd.f32 %v3908, %v4125
        %v4127 = vpop.f32.mrb[0].mxu0
        %4128 = vmatprep.mubr.f32.mxu0 0.0
        %4129 = vmatmul.mubr.f32.gmra.mrb[0].mxu0 %v3790
        %v4130 = vpop.f32.mrb[0].mxu0
        %v4131 = vadd.f32 %v3908, %v4130
        %v4132 = vpop.f32.mrb[0].mxu0
        %4133 = vmatprep.mubr.f32.mxu0 0.0
        %4134 = vmatmul.mubr.f32.gmra.mrb[0].mxu0 %v3791
        %v4135 = vpop.f32.mrb[0].mxu0
        %v4136 = vadd.f32 %v3908, %v4135
        %v4137 = vpop.f32.mrb[0].mxu0
        %4138 = vmatprep.mubr.f32.mxu0 0.0
        %4139 = vmatmul.mubr.f32.gmra.mrb[0].mxu0 %v3792
        %v4140 = vpop.f32.mrb[0].mxu0
        %v4141 = vadd.f32 %v3908, %v4140
        %v4142 = vpop.f32.mrb[0].mxu0
        %4143 = vmatprep.mubr.f32.mxu0 0.0
        %4144 = vmatmul.mubr.f32.gmra.mrb[0].mxu0 %v3793
        %v4145 = vpop.f32.mrb[0].mxu0
        %v4146 = vadd.f32 %v3908, %v4145
        %v4147 = vpop.f32.mrb[0].mxu0
        %4148 = vmatprep.mubr.f32.mxu0 0.0
        %4149 = vmatmul.mubr.f32.gmra.mrb[0].mxu0 %v3794
        %v4150 = vpop.f32.mrb[0].mxu0
        %v4151 = vadd.f32 %v3908, %v4150
        %v4152 = vpop.f32.mrb[0].mxu0
        %4153 = vmatprep.mubr.f32.mxu0 0.0
        %4154 = vmatmul.mubr.f32.gmra.mrb[0].mxu0 %v3795
        %v4155 = vpop.f32.mrb[0].mxu0
        %v4156 = vadd.f32 %v3908, %v4155
        %v4157 = vpop.f32.mrb[0].mxu0
        %4158 = vmatprep.mubr.f32.mxu0 0.0
        %4159 = vmatmul.mubr.f32.gmra.mrb[0].mxu0 %v3796
        %v4160 = vpop.f32.mrb[0].mxu0
        %v4161 = vadd.f32 %v3908, %v4160
        %v4162 = vpop.f32.mrb[0].mxu0
        %4163 = vmatprep.mubr.f32.mxu0 0.0
        %4164 = vmatmul.mubr.f32.gmra.mrb[0].mxu0 %v3797
        %v4165 = vpop.f32.mrb[0].mxu0
        %v4166 = vadd.f32 %v3908, %v4165
        %v4167 = vpop.f32.mrb[0].mxu0
        %4168 = vmatprep.mubr.f32.mxu0 0.0
        %4169 = vmatmul.mubr.f32.gmra.mrb[0].mxu0 %v3798
        %v4170 = vpop.f32.mrb[0].mxu0
        %v4171 = vadd.f32 %v3908, %v4170
        %v4172 = vpop.f32.mrb[0].mxu0
        %4173 = vmatprep.mubr.f32.mxu0 0.0
        %4174 = vmatmul.mubr.f32.gmra.mrb[0].mxu0 %v3799
        %v4175 = vpop.f32.mrb[0].mxu0
        %v4176 = vadd.f32 %v3908, %v4175
        %v4177 = vpop.f32.mrb[0].mxu0
        %4178 = vmatprep.mubr.f32.mxu0 0.0
        %4179 = vmatmul.mubr.f32.gmra.mrb[0].mxu0 %v3800
        %v4180 = vpop.f32.mrb[0].mxu0
        %v4181 = vadd.f32 %v3908, %v4180
        %v4182 = vpop.f32.mrb[0].mxu0
        %4183 = vmatprep.mubr.f32.mxu0 0.0
        %4184 = vmatmul.mubr.f32.gmra.mrb[0].mxu0 %v3801
        %v4185 = vpop.f32.mrb[0].mxu0
        %v4186 = vadd.f32 %v3908, %v4185
        %v4187 = vpop.f32.mrb[0].mxu0
        %4188 = vmatprep.mubr.f32.mxu0 0.0
        %4189 = vmatmul.mubr.f32.gmra.mrb[0].mxu0 %v3802
        %v4190 = vpop.f32.mrb[0].mxu0
        %v4191 = vadd.f32 %v3908, %v4190
        %v4192 = vpop.f32.mrb[0].mxu0
        %4193 = vmatprep.mubr.f32.mxu0 0.0
        %4194 = vmatmul.mubr.f32.gmra.mrb[0].mxu0 %v3803
        %v4195 = vpop.f32.mrb[0].mxu0
        %v4196 = vadd.f32 %v3908, %v4195
        %v4197 = vpop.f32.mrb[0].mxu0
        %4198 = vmatprep.mubr.f32.mxu0 0.0
        %4199 = vmatmul.mubr.f32.gmra.mrb[0].mxu0 %v3804
        %v4200 = vpop.f32.mrb[0].mxu0
        %v4201 = vadd.f32 %v3908, %v4200
        %v4202 = vpop.f32.mrb[0].mxu0
        %4203 = vmatprep.mubr.f32.mxu0 0.0
        %4204 = vmatmul.mubr.f32.gmra.mrb[0].mxu0 %v3805
        %v4205 = vpop.f32.mrb[0].mxu0
        %v4206 = vadd.f32 %v3908, %v4205
        %v4207 = vpop.f32.mrb[0].mxu0
        %4208 = vmatprep.mubr.f32.mxu0 0.0
        %4209 = vmatmul.mubr.f32.gmra.mrb[0].mxu0 %v3806
        %v4210 = vpop.f32.mrb[0].mxu0
        %v4211 = vadd.f32 %v3908, %v4210
        %v4212 = vpop.f32.mrb[0].mxu0
        %4213 = vmatprep.mubr.f32.mxu0 0.0
        %4214 = vmatmul.mubr.f32.gmra.mrb[0].mxu0 %v3807
        %v4215 = vpop.f32.mrb[0].mxu0
        %v4216 = vadd.f32 %v3908, %v4215
        %v4217 = vpop.f32.mrb[0].mxu0
        %4218 = vmatprep.mubr.f32.mxu0 0.0
        %4219 = vmatmul.mubr.f32.gmra.mrb[0].mxu0 %v3808
        %v4220 = vpop.f32.mrb[0].mxu0
        %v4221 = vadd.f32 %v3908, %v4220
        %v4222 = vpop.f32.mrb[0].mxu0
        %4223 = vmatprep.mubr.f32.mxu0 0.0
        %4224 = vmatmul.mubr.f32.gmra.mrb[0].mxu0 %v3809
        %v4225 = vpop.f32.mrb[0].mxu0
        %v4226 = vadd.f32 %v3908, %v4225
        %v4227 = vpop.f32.mrb[0].mxu0
        %4228 = vmatprep.mubr.f32.mxu0 0.0
        %4229 = vmatmul.mubr.f32.gmra.mrb[0].mxu0 %v3810
        %v4230 = vpop.f32.mrb[0].mxu0
        %v4231 = vadd.f32 %v3908, %v4230
        %v4232 = vpop.f32.mrb[0].mxu0
        %4233 = vmatprep.mubr.f32.mxu0 0.0
        %4234 = vmatmul.mubr.f32.gmra.mrb[0].mxu0 %v3811
        %v4235 = vpop.f32.mrb[0].mxu0
        %v4236 = vadd.f32 %v3908, %v4235
        %v4237 = vpop.f32.mrb[0].mxu0
        %4238 = vmatprep.mubr.f32.mxu0 0.0
        %4239 = vmatmul.mubr.f32.gmra.mrb[0].mxu0 %v3812
        %v4240 = vpop.f32.mrb[0].mxu0
        %v4241 = vadd.f32 %v3908, %v4240
        %v4242 = vpop.f32.mrb[0].mxu0
        %4243 = vmatprep.mubr.f32.mxu0 0.0
        %4244 = vmatmul.mubr.f32.gmra.mrb[0].mxu0 %v3813
        %v4245 = vpop.f32.mrb[0].mxu0
        %v4246 = vadd.f32 %v3908, %v4245
        %v4247 = vpop.f32.mrb[0].mxu0
        %4248 = vmatprep.mubr.f32.mxu0 0.0
        %4249 = vmatmul.mubr.f32.gmra.mrb[0].mxu0 %v3814
        %v4250 = vpop.f32.mrb[0].mxu0
        %v4251 = vadd.f32 %v3908, %v4250
        %v4252 = vpop.f32.mrb[0].mxu0
        %4253 = vmatprep.mubr.f32.mxu0 0.0
        %4254 = vmatmul.mubr.f32.gmra.mrb[0].mxu0 %v3815
        %v4255 = vpop.f32.mrb[0].mxu0
        %v4256 = vadd.f32 %v3908, %v4255
        %v4257 = vpop.f32.mrb[0].mxu0
        %4258 = vmatprep.mubr.f32.mxu0 0.0
        %4259 = vmatmul.mubr.f32.gmra.mrb[0].mxu0 %v3816
        %v4260 = vpop.f32.mrb[0].mxu0
        %v4261 = vadd.f32 %v3908, %v4260
        %v4262 = vpop.f32.mrb[0].mxu0
        %4263 = vmatprep.mubr.f32.mxu0 0.0
        %4264 = vmatmul.mubr.f32.gmra.mrb[0].mxu0 %v3817
        %v4265 = vpop.f32.mrb[0].mxu0
        %v4266 = vadd.f32 %v3908, %v4265
        %v4267 = vpop.f32.mrb[0].mxu0
        %4268 = vmatprep.mubr.f32.mxu0 0.0
        %4269 = vmatmul.mubr.f32.gmra.mrb[0].mxu0 %v3818
        %v4270 = vpop.f32.mrb[0].mxu0
        %v4271 = vadd.f32 %v3908, %v4270
        %v4272 = vpop.f32.mrb[0].mxu0
        %4273 = vmatprep.mubr.f32.mxu0 0.0
        %4274 = vmatmul.mubr.f32.gmra.mrb[0].mxu0 %v3819
        %v4275 = vpop.f32.mrb[0].mxu0
        %v4276 = vadd.f32 %v3908, %v4275
        %v4277 = vpop.f32.mrb[0].mxu0
        %4278 = vmatprep.mubr.f32.mxu0 0.0
        %4279 = vmatmul.mubr.f32.gmra.mrb[0].mxu0 %v3820
        %v4280 = vpop.f32.mrb[0].mxu0
        %v4281 = vadd.f32 %v3908, %v4280
        %v4282 = vpop.f32.mrb[0].mxu0
        %4283 = vmatprep.mubr.f32.mxu0 0.0
        %4284 = vmatmul.mubr.f32.gmra.mrb[0].mxu0 %v3821
        %v4285 = vpop.f32.mrb[0].mxu0
        %v4286 = vadd.f32 %v3908, %v4285
        %v4287 = vpop.f32.mrb[0].mxu0
        %4288 = vmatprep.mubr.f32.mxu0 0.0
        %4289 = vmatmul.mubr.f32.gmra.mrb[0].mxu0 %v3822
        %v4290 = vpop.f32.mrb[0].mxu0
        %v4291 = vadd.f32 %v3908, %v4290
        %v4292 = vpop.f32.mrb[0].mxu0
        %4293 = vmatprep.mubr.f32.mxu0 0.0
        %4294 = vmatmul.mubr.f32.gmra.mrb[0].mxu0 %v3823
        %v4295 = vpop.f32.mrb[0].mxu0
        %v4296 = vadd.f32 %v3908, %v4295
        %v4297 = vpop.f32.mrb[0].mxu0
        %4298 = vmatprep.mubr.f32.mxu0 0.0
        %4299 = vmatmul.mubr.f32.gmra.mrb[0].mxu0 %v3824
        %v4300 = vpop.f32.mrb[0].mxu0
        %v4301 = vadd.f32 %v3908, %v4300
        %v4302 = vpop.f32.mrb[0].mxu0
        %4303 = vmatprep.mubr.f32.mxu0 0.0
        %4304 = vmatmul.mubr.f32.gmra.mrb[0].mxu0 %v3825
        %v4305 = vpop.f32.mrb[0].mxu0
        %v4306 = vadd.f32 %v3908, %v4305
        %v4307 = vpop.f32.mrb[0].mxu0
        %4308 = vmatprep.mubr.f32.mxu0 0.0
        %4309 = vmatmul.mubr.f32.gmra.mrb[0].mxu0 %v3826
        %v4310 = vpop.f32.mrb[0].mxu0
        %v4311 = vadd.f32 %v3908, %v4310
        %v4312 = vpop.f32.mrb[0].mxu0
        %4313 = vmatprep.mubr.f32.mxu0 0.0
        %4314 = vmatmul.mubr.f32.gmra.mrb[0].mxu0 %v3827
        %v4315 = vpop.f32.mrb[0].mxu0
        %v4316 = vadd.f32 %v3908, %v4315
        %v4317 = vpop.f32.mrb[0].mxu0
        %4318 = vmatprep.mubr.f32.mxu0 0.0
        %4319 = vmatmul.mubr.f32.gmra.mrb[0].mxu0 %v3828
        %v4320 = vpop.f32.mrb[0].mxu0
        %v4321 = vadd.f32 %v3908, %v4320
        %v4322 = vpop.f32.mrb[0].mxu0
        %4323 = vmatprep.mubr.f32.mxu0 0.0
        %4324 = vmatmul.mubr.f32.gmra.mrb[0].mxu0 %v3829
        %v4325 = vpop.f32.mrb[0].mxu0
        %v4326 = vadd.f32 %v3908, %v4325
        %v4327 = vpop.f32.mrb[0].mxu0
        %4328 = vmatprep.mubr.f32.mxu0 0.0
        %4329 = vmatmul.mubr.f32.gmra.mrb[0].mxu0 %v3830
        %v4330 = vpop.f32.mrb[0].mxu0
        %v4331 = vadd.f32 %v3908, %v4330
        %v4332 = vpop.f32.mrb[0].mxu0
        %4333 = vmatprep.mubr.f32.mxu0 0.0
        %4334 = vmatmul.mubr.f32.gmra.mrb[0].mxu0 %v3831
        %v4335 = vpop.f32.mrb[0].mxu0
        %v4336 = vadd.f32 %v3908, %v4335
        %v4337 = vpop.f32.mrb[0].mxu0
        %4338 = vmatprep.mubr.f32.mxu0 0.0
        %4339 = vmatmul.mubr.f32.gmra.mrb[0].mxu0 %v3832
        %v4340 = vpop.f32.mrb[0].mxu0
        %v4341 = vadd.f32 %v3908, %v4340
        %v4342 = vpop.f32.mrb[0].mxu0
        %4343 = vmatprep.mubr.f32.mxu0 0.0
        %4344 = vmatmul.mubr.f32.gmra.mrb[0].mxu0 %v3833
        %v4345 = vpop.f32.mrb[0].mxu0
        %v4346 = vadd.f32 %v3908, %v4345
        %v4347 = vpop.f32.mrb[0].mxu0
        %4348 = vmatprep.mubr.f32.mxu0 0.0
        %4349 = vmatmul.mubr.f32.gmra.mrb[0].mxu0 %v3834
        %v4350 = vpop.f32.mrb[0].mxu0
        %v4351 = vadd.f32 %v3908, %v4350
        %v4352 = vpop.f32.mrb[0].mxu0
        %4353 = vmatprep.mubr.f32.mxu0 0.0
        %4354 = vmatmul.mubr.f32.gmra.mrb[0].mxu0 %v3835
        %v4355 = vpop.f32.mrb[0].mxu0
        %v4356 = vadd.f32 %v3908, %v4355
        %v4357 = vpop.f32.mrb[0].mxu0
        %4358 = vmatprep.mubr.f32.mxu0 0.0
        %4359 = vmatmul.mubr.f32.gmra.mrb[0].mxu0 %v3836
        %v4360 = vpop.f32.mrb[0].mxu0
        %v4361 = vadd.f32 %v3908, %v4360
        %v4362 = vpop.f32.mrb[0].mxu0
        %4363 = vmatprep.mubr.f32.mxu0 0.0
        %4364 = vmatmul.mubr.f32.gmra.mrb[0].mxu0 %v3837
        %v4365 = vpop.f32.mrb[0].mxu0
        %v4366 = vadd.f32 %v3908, %v4365
        %v4367 = vpop.f32.mrb[0].mxu0
        %4368 = vmatprep.mubr.f32.mxu0 0.0
        %4369 = vmatmul.mubr.f32.gmra.mrb[0].mxu0 %v3838
        %v4370 = vpop.f32.mrb[0].mxu0
        %v4371 = vadd.f32 %v3908, %v4370
        %v4372 = vpop.f32.mrb[0].mxu0
        %4373 = vmatprep.mubr.f32.mxu0 0.0
        %4374 = vmatmul.mubr.f32.gmra.mrb[0].mxu0 %v3839
        %v4375 = vpop.f32.mrb[0].mxu0
        %v4376 = vadd.f32 %v3908, %v4375
        %v4377 = vpop.f32.mrb[0].mxu0
        %4378 = vmatprep.mubr.f32.mxu0 0.0
        %4379 = vmatmul.mubr.f32.gmra.mrb[0].mxu0 %v3840
        %v4380 = vpop.f32.mrb[0].mxu0
        %v4381 = vadd.f32 %v3908, %v4380
        %v4382 = vpop.f32.mrb[0].mxu0
        %4383 = vmatprep.mubr.f32.mxu0 0.0
        %4384 = vmatmul.mubr.f32.gmra.mrb[0].mxu0 %v3841
        %v4385 = vpop.f32.mrb[0].mxu0
        %v4386 = vadd.f32 %v3908, %v4385
        %v4387 = vpop.f32.mrb[0].mxu0
        %4388 = vmatprep.mubr.f32.mxu0 0.0
        %4389 = vmatmul.mubr.f32.gmra.mrb[0].mxu0 %v3842
        %v4390 = vpop.f32.mrb[0].mxu0
        %v4391 = vadd.f32 %v3908, %v4390
        %v4392 = vpop.f32.mrb[0].mxu0
        %4393 = vmatprep.mubr.f32.mxu0 0.0
        %4394 = vmatmul.mubr.f32.gmra.mrb[0].mxu0 %v3843
        %v4395 = vpop.f32.mrb[0].mxu0
        %v4396 = vadd.f32 %v3908, %v4395
        %v4397 = vpop.f32.mrb[0].mxu0
        %4398 = vmatprep.mubr.f32.mxu0 0.0
        %4399 = vmatmul.mubr.f32.gmra.mrb[0].mxu0 %v3844
        %v4400 = vpop.f32.mrb[0].mxu0
        %v4401 = vadd.f32 %v3908, %v4400
        %v4402 = vpop.f32.mrb[0].mxu0
        %4403 = vmatprep.mubr.f32.mxu0 0.0
        %4404 = vmatmul.mubr.f32.gmra.mrb[0].mxu0 %v3845
        %v4405 = vpop.f32.mrb[0].mxu0
        %v4406 = vadd.f32 %v3908, %v4405
        %v4407 = vpop.f32.mrb[0].mxu0
        %4408 = vmatprep.mubr.f32.mxu0 0.0
        %4409 = vmatmul.mubr.f32.gmra.mrb[0].mxu0 %v3846
        %v4410 = vpop.f32.mrb[0].mxu0
        %v4411 = vadd.f32 %v3908, %v4410
        %v4412 = vpop.f32.mrb[0].mxu0
        %4413 = vmatprep.mubr.f32.mxu0 0.0
        %4414 = vmatmul.mubr.f32.gmra.mrb[0].mxu0 %v3847
        %v4415 = vpop.f32.mrb[0].mxu0
        %v4416 = vadd.f32 %v3908, %v4415
        %v4417 = vpop.f32.mrb[0].mxu0
        %4418 = vmatprep.mubr.f32.mxu0 0.0
        %4419 = vmatmul.mubr.f32.gmra.mrb[0].mxu0 %v3848
        %v4420 = vpop.f32.mrb[0].mxu0
        %v4421 = vadd.f32 %v3908, %v4420
        %v4422 = vpop.f32.mrb[0].mxu0
        %4423 = vmatprep.mubr.f32.mxu0 0.0
        %4424 = vmatmul.mubr.f32.gmra.mrb[0].mxu0 %v3849
        %v4425 = vpop.f32.mrb[0].mxu0
        %v4426 = vadd.f32 %v3908, %v4425
        %v4427 = vpop.f32.mrb[0].mxu0
        %4428 = vmatprep.mubr.f32.mxu0 0.0
        %4429 = vmatmul.mubr.f32.gmra.mrb[0].mxu0 %v3850
        %v4430 = vpop.f32.mrb[0].mxu0
        %v4431 = vadd.f32 %v3908, %v4430
        %v4432 = vpop.f32.mrb[0].mxu0
        %4433 = vmatprep.mubr.f32.mxu0 0.0
        %4434 = vmatmul.mubr.f32.gmra.mrb[0].mxu0 %v3851
        %v4435 = vpop.f32.mrb[0].mxu0
        %v4436 = vadd.f32 %v3908, %v4435
        %v4437 = vpop.f32.mrb[0].mxu0
        %4438 = vmatprep.mubr.f32.mxu0 0.0
        %4439 = vmatmul.mubr.f32.gmra.mrb[0].mxu0 %v3852
        %v4440 = vpop.f32.mrb[0].mxu0
        %v4441 = vadd.f32 %v3908, %v4440
        %v4442 = vpop.f32.mrb[0].mxu0
        %4443 = vmatprep.mubr.f32.mxu0 0.0
        %4444 = vmatmul.mubr.f32.gmra.mrb[0].mxu0 %v3853
        %v4445 = vpop.f32.mrb[0].mxu0
        %v4446 = vadd.f32 %v3908, %v4445
        %v4447 = vpop.f32.mrb[0].mxu0
        %4448 = vmatprep.mubr.f32.mxu0 0.0
        %4449 = vmatmul.mubr.f32.gmra.mrb[0].mxu0 %v3854
        %v4450 = vpop.f32.mrb[0].mxu0
        %v4451 = vadd.f32 %v3908, %v4450
        %v4452 = vpop.f32.mrb[0].mxu0
        %4453 = vmatprep.mubr.f32.mxu0 0.0
        %4454 = vmatmul.mubr.f32.gmra.mrb[0].mxu0 %v3855
        %v4455 = vpop.f32.mrb[0].mxu0
        %v4456 = vadd.f32 %v3908, %v4455
        %v4457 = vpop.f32.mrb[0].mxu0
        %4458 = vmatprep.mubr.f32.mxu0 0.0
        %4459 = vmatmul.mubr.f32.gmra.mrb[0].mxu0 %v3856
        %v4460 = vpop.f32.mrb[0].mxu0
        %v4461 = vadd.f32 %v3908, %v4460
        %v4462 = vpop.f32.mrb[0].mxu0
        %4463 = vmatprep.mubr.f32.mxu0 0.0
        %4464 = vmatmul.mubr.f32.gmra.mrb[0].mxu0 %v3857
        %v4465 = vpop.f32.mrb[0].mxu0
        %v4466 = vadd.f32 %v3908, %v4465
        %v4467 = vpop.f32.mrb[0].mxu0
        %4468 = vmatprep.mubr.f32.mxu0 0.0
        %4469 = vmatmul.mubr.f32.gmra.mrb[0].mxu0 %v3858
        %v4470 = vpop.f32.mrb[0].mxu0
        %v4471 = vadd.f32 %v3908, %v4470
        %v4472 = vpop.f32.mrb[0].mxu0
        %4473 = vmatprep.mubr.f32.mxu0 0.0
        %4474 = vmatmul.mubr.f32.gmra.mrb[0].mxu0 %v3859
        %v4475 = vpop.f32.mrb[0].mxu0
        %v4476 = vadd.f32 %v3908, %v4475
        %v4477 = vpop.f32.mrb[0].mxu0
        %4478 = vmatprep.mubr.f32.mxu0 0.0
        %4479 = vmatmul.mubr.f32.gmra.mrb[0].mxu0 %v3860
        %v4480 = vpop.f32.mrb[0].mxu0
        %v4481 = vadd.f32 %v3908, %v4480
        %v4482 = vpop.f32.mrb[0].mxu0
        %4483 = vmatprep.mubr.f32.mxu0 0.0
        %4484 = vmatmul.mubr.f32.gmra.mrb[0].mxu0 %v3861
        %v4485 = vpop.f32.mrb[0].mxu0
        %v4486 = vadd.f32 %v3908, %v4485
        %v4487 = vpop.f32.mrb[0].mxu0
        %4488 = vmatprep.mubr.f32.mxu0 0.0
        %4489 = vmatmul.mubr.f32.gmra.mrb[0].mxu0 %v3862
        %v4490 = vpop.f32.mrb[0].mxu0
        %v4491 = vadd.f32 %v3908, %v4490
        %v4492 = vpop.f32.mrb[0].mxu0
        %4493 = vmatprep.mubr.f32.mxu0 0.0
        %4494 = vmatmul.mubr.f32.gmra.mrb[0].mxu0 %v3863
        %v4495 = vpop.f32.mrb[0].mxu0
        %v4496 = vadd.f32 %v3908, %v4495
        %v4497 = vpop.f32.mrb[0].mxu0
        %4498 = vmatprep.mubr.f32.mxu0 0.0
        %4499 = vmatmul.mubr.f32.gmra.mrb[0].mxu0 %v3864
        %v4500 = vpop.f32.mrb[0].mxu0
        %v4501 = vadd.f32 %v3908, %v4500
        %v4502 = vpop.f32.mrb[0].mxu0
        %4503 = vmatprep.mubr.f32.mxu0 0.0
        %4504 = vmatmul.mubr.f32.gmra.mrb[0].mxu0 %v3865
        %v4505 = vpop.f32.mrb[0].mxu0
        %v4506 = vadd.f32 %v3908, %v4505
        %v4507 = vpop.f32.mrb[0].mxu0
        %4508 = vmatprep.mubr.f32.mxu0 0.0
        %4509 = vmatmul.mubr.f32.gmra.mrb[0].mxu0 %v3866
        %v4510 = vpop.f32.mrb[0].mxu0
        %v4511 = vadd.f32 %v3908, %v4510
        %v4512 = vpop.f32.mrb[0].mxu0
        %4513 = vmatprep.mubr.f32.mxu0 0.0
        %4514 = vmatmul.mubr.f32.gmra.mrb[0].mxu0 %v3867
        %v4515 = vpop.f32.mrb[0].mxu0
        %v4516 = vadd.f32 %v3908, %v4515
        %v4517 = vpop.f32.mrb[0].mxu0
        %4518 = vmatprep.mubr.f32.mxu0 0.0
        %4519 = vmatmul.mubr.f32.gmra.mrb[0].mxu0 %v3868
        %v4520 = vpop.f32.mrb[0].mxu0
        %v4521 = vadd.f32 %v3908, %v4520
        %v4522 = vpop.f32.mrb[0].mxu0
        %4523 = vmatprep.mubr.f32.mxu0 0.0
        %4524 = vmatmul.mubr.f32.gmra.mrb[0].mxu0 %v3869
        %v4525 = vpop.f32.mrb[0].mxu0
        %v4526 = vadd.f32 %v3908, %v4525
        %v4527 = vpop.f32.mrb[0].mxu0
        %4528 = vmatprep.mubr.f32.mxu0 0.0
        %4529 = vmatmul.mubr.f32.gmra.mrb[0].mxu0 %v3870
        %v4530 = vpop.f32.mrb[0].mxu0
        %v4531 = vadd.f32 %v3908, %v4530
        %v4532 = vpop.f32.mrb[0].mxu0
        %4533 = vmatprep.mubr.f32.mxu0 0.0
        %4534 = vmatmul.mubr.f32.gmra.mrb[0].mxu0 %v3871
        %v4535 = vpop.f32.mrb[0].mxu0
        %v4536 = vadd.f32 %v3908, %v4535
        %v4537 = vpop.f32.mrb[0].mxu0
        %4538 = vmatprep.mubr.f32.mxu0 0.0
        %4539 = vmatmul.mubr.f32.gmra.mrb[0].mxu0 %v3872
        %v4540 = vpop.f32.mrb[0].mxu0
        %v4541 = vadd.f32 %v3908, %v4540
        %v4542 = vpop.f32.mrb[0].mxu0
        %4543 = vmatprep.mubr.f32.mxu0 0.0
        %4544 = vmatmul.mubr.f32.gmra.mrb[0].mxu0 %v3873
        %v4545 = vpop.f32.mrb[0].mxu0
        %v4546 = vadd.f32 %v3908, %v4545
        %v4547 = vpop.f32.mrb[0].mxu0
        %4548 = vmatprep.mubr.f32.mxu0 0.0
        %4549 = vmatmul.mubr.f32.gmra.mrb[0].mxu0 %v3874
        %v4550 = vpop.f32.mrb[0].mxu0
        %v4551 = vadd.f32 %v3908, %v4550
        %v4552 = vpop.f32.mrb[0].mxu0
        %4553 = vmatprep.mubr.f32.mxu0 0.0
        %4554 = vmatmul.mubr.f32.gmra.mrb[0].mxu0 %v3875
        %v4555 = vpop.f32.mrb[0].mxu0
        %v4556 = vadd.f32 %v3908, %v4555
        %v4557 = vpop.f32.mrb[0].mxu0
        %4558 = vmatprep.mubr.f32.mxu0 0.0
        %4559 = vmatmul.mubr.f32.gmra.mrb[0].mxu0 %v3876
        %v4560 = vpop.f32.mrb[0].mxu0
        %v4561 = vadd.f32 %v3908, %v4560
        %v4562 = vpop.f32.mrb[0].mxu0
        %4563 = vmatprep.mubr.f32.mxu0 0.0
        %4564 = vmatmul.mubr.f32.gmra.mrb[0].mxu0 %v3877
        %v4565 = vpop.f32.mrb[0].mxu0
        %v4566 = vadd.f32 %v3908, %v4565
        %v4567 = vpop.f32.mrb[0].mxu0
        %4568 = vmatprep.mubr.f32.mxu0 0.0
        %4569 = vmatmul.mubr.f32.gmra.mrb[0].mxu0 %v3878
        %v4570 = vpop.f32.mrb[0].mxu0
        %v4571 = vadd.f32 %v3908, %v4570
        %v4572 = vpop.f32.mrb[0].mxu0
        %4573 = vmatprep.mubr.f32.mxu0 0.0
        %4574 = vmatmul.mubr.f32.gmra.mrb[0].mxu0 %v3879
        %v4575 = vpop.f32.mrb[0].mxu0
        %v4576 = vadd.f32 %v3908, %v4575
        %v4577 = vpop.f32.mrb[0].mxu0
        %4578 = vmatprep.mubr.f32.mxu0 0.0
        %4579 = vmatmul.mubr.f32.gmra.mrb[0].mxu0 %v3880
        %v4580 = vpop.f32.mrb[0].mxu0
        %v4581 = vadd.f32 %v3908, %v4580
        %v4582 = vpop.f32.mrb[0].mxu0
        %4583 = vmatprep.mubr.f32.mxu0 0.0
        %4584 = vmatmul.mubr.f32.gmra.mrb[0].mxu0 %v3881
        %v4585 = vpop.f32.mrb[0].mxu0
        %v4586 = vadd.f32 %v3908, %v4585
        %v4587 = vpop.f32.mrb[0].mxu0
        %4588 = vmatprep.mubr.f32.mxu0 0.0
        %4589 = vmatmul.mubr.f32.gmra.mrb[0].mxu0 %v3882
        %v4590 = vpop.f32.mrb[0].mxu0
        %v4591 = vadd.f32 %v3908, %v4590
        %v4592 = vpop.f32.mrb[0].mxu0
        %4593 = vmatprep.mubr.f32.mxu0 0.0
        %4594 = vmatmul.mubr.f32.gmra.mrb[0].mxu0 %v3883
        %v4595 = vpop.f32.mrb[0].mxu0
        %v4596 = vadd.f32 %v3908, %v4595
        %v4597 = vpop.f32.mrb[0].mxu0
        %4598 = vmatprep.mubr.f32.mxu0 0.0
        %4599 = vmatmul.mubr.f32.gmra.mrb[0].mxu0 %v3884
        %v4600 = vpop.f32.mrb[0].mxu0
        %v4601 = vadd.f32 %v3908, %v4600
        %v4602 = vpop.f32.mrb[0].mxu0
        %4603 = vmatprep.mubr.f32.mxu0 0.0
        %4604 = vmatmul.mubr.f32.gmra.mrb[0].mxu0 %v3885
        %v4605 = vpop.f32.mrb[0].mxu0
        %v4606 = vadd.f32 %v3908, %v4605
        %v4607 = vpop.f32.mrb[0].mxu0
        %4608 = vmatprep.mubr.f32.mxu0 0.0
        %4609 = vmatmul.mubr.f32.gmra.mrb[0].mxu0 %v3886
        %v4610 = vpop.f32.mrb[0].mxu0
        %v4611 = vadd.f32 %v3908, %v4610
        %v4612 = vpop.f32.mrb[0].mxu0
        %4613 = vdwg.mxu0
        %vm4614 = vcmp.gt.f32.partialorder %v3976, 0.0
        %vm4615 = vcmp.gt.f32.partialorder %v3981, 0.0
        %vm4616 = vcmp.gt.f32.partialorder %v3986, 0.0
        %vm4617 = vcmp.gt.f32.partialorder %v3991, 0.0
        %vm4618 = vcmp.gt.f32.partialorder %v3996, 0.0
        %vm4619 = vcmp.gt.f32.partialorder %v4001, 0.0
        %vm4620 = vcmp.gt.f32.partialorder %v4006, 0.0
        %vm4621 = vcmp.gt.f32.partialorder %v4011, 0.0
        %vm4622 = vcmp.gt.f32.partialorder %v4016, 0.0
        %vm4623 = vcmp.gt.f32.partialorder %v4021, 0.0
        %vm4624 = vcmp.gt.f32.partialorder %v4026, 0.0
        %vm4625 = vcmp.gt.f32.partialorder %v4031, 0.0
        %vm4626 = vcmp.gt.f32.partialorder %v4036, 0.0
        %vm4627 = vcmp.gt.f32.partialorder %v4041, 0.0
        %vm4628 = vcmp.gt.f32.partialorder %v4046, 0.0
        %vm4629 = vcmp.gt.f32.partialorder %v4051, 0.0
        %vm4630 = vcmp.gt.f32.partialorder %v4056, 0.0
        %vm4631 = vcmp.gt.f32.partialorder %v4061, 0.0
        %vm4632 = vcmp.gt.f32.partialorder %v4066, 0.0
        %vm4633 = vcmp.gt.f32.partialorder %v4071, 0.0
        %vm4634 = vcmp.gt.f32.partialorder %v4076, 0.0
        %vm4635 = vcmp.gt.f32.partialorder %v4081, 0.0
        %vm4636 = vcmp.gt.f32.partialorder %v4086, 0.0
        %vm4637 = vcmp.gt.f32.partialorder %v4091, 0.0
        %vm4638 = vcmp.gt.f32.partialorder %v4096, 0.0
        %vm4639 = vcmp.gt.f32.partialorder %v4101, 0.0
        %vm4640 = vcmp.gt.f32.partialorder %v4106, 0.0
        %vm4641 = vcmp.gt.f32.partialorder %v4111, 0.0
        %vm4642 = vcmp.gt.f32.partialorder %v4116, 0.0
        %vm4643 = vcmp.gt.f32.partialorder %v4121, 0.0
        %vm4644 = vcmp.gt.f32.partialorder %v4126, 0.0
        %vm4645 = vcmp.gt.f32.partialorder %v4131, 0.0
        %vm4646 = vcmp.gt.f32.partialorder %v4136, 0.0
        %vm4647 = vcmp.gt.f32.partialorder %v4141, 0.0
        %vm4648 = vcmp.gt.f32.partialorder %v4146, 0.0
        %vm4649 = vcmp.gt.f32.partialorder %v4151, 0.0
        %vm4650 = vcmp.gt.f32.partialorder %v4156, 0.0
        %vm4651 = vcmp.gt.f32.partialorder %v4161, 0.0
        %vm4652 = vcmp.gt.f32.partialorder %v4166, 0.0
        %vm4653 = vcmp.gt.f32.partialorder %v4171, 0.0
        %vm4654 = vcmp.gt.f32.partialorder %v4176, 0.0
        %vm4655 = vcmp.gt.f32.partialorder %v4181, 0.0
        %vm4656 = vcmp.gt.f32.partialorder %v4186, 0.0
        %vm4657 = vcmp.gt.f32.partialorder %v4191, 0.0
        %vm4658 = vcmp.gt.f32.partialorder %v4196, 0.0
        %vm4659 = vcmp.gt.f32.partialorder %v4201, 0.0
        %vm4660 = vcmp.gt.f32.partialorder %v4206, 0.0
        %vm4661 = vcmp.gt.f32.partialorder %v4211, 0.0
        %vm4662 = vcmp.gt.f32.partialorder %v4216, 0.0
        %vm4663 = vcmp.gt.f32.partialorder %v4221, 0.0
        %vm4664 = vcmp.gt.f32.partialorder %v4226, 0.0
        %vm4665 = vcmp.gt.f32.partialorder %v4231, 0.0
        %vm4666 = vcmp.gt.f32.partialorder %v4236, 0.0
        %vm4667 = vcmp.gt.f32.partialorder %v4241, 0.0
        %vm4668 = vcmp.gt.f32.partialorder %v4246, 0.0
        %vm4669 = vcmp.gt.f32.partialorder %v4251, 0.0
        %vm4670 = vcmp.gt.f32.partialorder %v4256, 0.0
        %vm4671 = vcmp.gt.f32.partialorder %v4261, 0.0
        %vm4672 = vcmp.gt.f32.partialorder %v4266, 0.0
        %vm4673 = vcmp.gt.f32.partialorder %v4271, 0.0
        %vm4674 = vcmp.gt.f32.partialorder %v4276, 0.0
        %vm4675 = vcmp.gt.f32.partialorder %v4281, 0.0
        %vm4676 = vcmp.gt.f32.partialorder %v4286, 0.0
        %vm4677 = vcmp.gt.f32.partialorder %v4291, 0.0
        %vm4678 = vcmp.gt.f32.partialorder %v4296, 0.0
        %vm4679 = vcmp.gt.f32.partialorder %v4301, 0.0
        %vm4680 = vcmp.gt.f32.partialorder %v4306, 0.0
        %vm4681 = vcmp.gt.f32.partialorder %v4311, 0.0
        %vm4682 = vcmp.gt.f32.partialorder %v4316, 0.0
        %vm4683 = vcmp.gt.f32.partialorder %v4321, 0.0
        %vm4684 = vcmp.gt.f32.partialorder %v4326, 0.0
        %vm4685 = vcmp.gt.f32.partialorder %v4331, 0.0
        %vm4686 = vcmp.gt.f32.partialorder %v4336, 0.0
        %vm4687 = vcmp.gt.f32.partialorder %v4341, 0.0
        %vm4688 = vcmp.gt.f32.partialorder %v4346, 0.0
        %vm4689 = vcmp.gt.f32.partialorder %v4351, 0.0
        %vm4690 = vcmp.gt.f32.partialorder %v4356, 0.0
        %vm4691 = vcmp.gt.f32.partialorder %v4361, 0.0
        %vm4692 = vcmp.gt.f32.partialorder %v4366, 0.0
        %vm4693 = vcmp.gt.f32.partialorder %v4371, 0.0
        %vm4694 = vcmp.gt.f32.partialorder %v4376, 0.0
        %vm4695 = vcmp.gt.f32.partialorder %v4381, 0.0
        %vm4696 = vcmp.gt.f32.partialorder %v4386, 0.0
        %vm4697 = vcmp.gt.f32.partialorder %v4391, 0.0
        %vm4698 = vcmp.gt.f32.partialorder %v4396, 0.0
        %vm4699 = vcmp.gt.f32.partialorder %v4401, 0.0
        %vm4700 = vcmp.gt.f32.partialorder %v4406, 0.0
        %vm4701 = vcmp.gt.f32.partialorder %v4411, 0.0
        %vm4702 = vcmp.gt.f32.partialorder %v4416, 0.0
        %vm4703 = vcmp.gt.f32.partialorder %v4421, 0.0
        %vm4704 = vcmp.gt.f32.partialorder %v4426, 0.0
        %vm4705 = vcmp.gt.f32.partialorder %v4431, 0.0
        %vm4706 = vcmp.gt.f32.partialorder %v4436, 0.0
        %vm4707 = vcmp.gt.f32.partialorder %v4441, 0.0
        %vm4708 = vcmp.gt.f32.partialorder %v4446, 0.0
        %vm4709 = vcmp.gt.f32.partialorder %v4451, 0.0
        %vm4710 = vcmp.gt.f32.partialorder %v4456, 0.0
        %vm4711 = vcmp.gt.f32.partialorder %v4461, 0.0
        %vm4712 = vcmp.gt.f32.partialorder %v4466, 0.0
        %vm4713 = vcmp.gt.f32.partialorder %v4471, 0.0
        %vm4714 = vcmp.gt.f32.partialorder %v4476, 0.0
        %vm4715 = vcmp.gt.f32.partialorder %v4481, 0.0
        %vm4716 = vcmp.gt.f32.partialorder %v4486, 0.0
        %vm4717 = vcmp.gt.f32.partialorder %v4491, 0.0
        %vm4718 = vcmp.gt.f32.partialorder %v4496, 0.0
        %vm4719 = vcmp.gt.f32.partialorder %v4501, 0.0
        %vm4720 = vcmp.gt.f32.partialorder %v4506, 0.0
        %vm4721 = vcmp.gt.f32.partialorder %v4511, 0.0
        %vm4722 = vcmp.gt.f32.partialorder %v4516, 0.0
        %vm4723 = vcmp.gt.f32.partialorder %v4521, 0.0
        %vm4724 = vcmp.gt.f32.partialorder %v4526, 0.0
        %vm4725 = vcmp.gt.f32.partialorder %v4531, 0.0
        %vm4726 = vcmp.gt.f32.partialorder %v4536, 0.0
        %vm4727 = vcmp.gt.f32.partialorder %v4541, 0.0
        %vm4728 = vcmp.gt.f32.partialorder %v4546, 0.0
        %vm4729 = vcmp.gt.f32.partialorder %v4551, 0.0
        %vm4730 = vcmp.gt.f32.partialorder %v4556, 0.0
        %vm4731 = vcmp.gt.f32.partialorder %v4561, 0.0
        %vm4732 = vcmp.gt.f32.partialorder %v4566, 0.0
        %vm4733 = vcmp.gt.f32.partialorder %v4571, 0.0
        %vm4734 = vcmp.gt.f32.partialorder %v4576, 0.0
        %vm4735 = vcmp.gt.f32.partialorder %v4581, 0.0
        %vm4736 = vcmp.gt.f32.partialorder %v4586, 0.0
        %vm4737 = vcmp.gt.f32.partialorder %v4591, 0.0
        %vm4738 = vcmp.gt.f32.partialorder %v4596, 0.0
        %vm4739 = vcmp.gt.f32.partialorder %v4601, 0.0
        %vm4740 = vcmp.gt.f32.partialorder %v4606, 0.0
        %vm4741 = vcmp.gt.f32.partialorder %v4611, 0.0
        %v4742 = vmin.f32 %v3976, 0.0
        %v4743 = vmin.f32 %v3981, 0.0
        %v4744 = vmin.f32 %v3986, 0.0
        %v4745 = vmin.f32 %v3991, 0.0
        %v4746 = vmin.f32 %v3996, 0.0
        %v4747 = vmin.f32 %v4001, 0.0
        %v4748 = vmin.f32 %v4006, 0.0
        %v4749 = vmin.f32 %v4011, 0.0
        %v4750 = vmin.f32 %v4016, 0.0
        %v4751 = vmin.f32 %v4021, 0.0
        %v4752 = vmin.f32 %v4026, 0.0
        %v4753 = vmin.f32 %v4031, 0.0
        %v4754 = vmin.f32 %v4036, 0.0
        %v4755 = vmin.f32 %v4041, 0.0
        %v4756 = vmin.f32 %v4046, 0.0
        %v4757 = vmin.f32 %v4051, 0.0
        %v4758 = vmin.f32 %v4056, 0.0
        %v4759 = vmin.f32 %v4061, 0.0
        %v4760 = vmin.f32 %v4066, 0.0
        %v4761 = vmin.f32 %v4071, 0.0
        %v4762 = vmin.f32 %v4076, 0.0
        %v4763 = vmin.f32 %v4081, 0.0
        %v4764 = vmin.f32 %v4086, 0.0
        %v4765 = vmin.f32 %v4091, 0.0
        %v4766 = vmin.f32 %v4096, 0.0
        %v4767 = vmin.f32 %v4101, 0.0
        %v4768 = vmin.f32 %v4106, 0.0
        %v4769 = vmin.f32 %v4111, 0.0
        %v4770 = vmin.f32 %v4116, 0.0
        %v4771 = vmin.f32 %v4121, 0.0
        %v4772 = vmin.f32 %v4126, 0.0
        %v4773 = vmin.f32 %v4131, 0.0
        %v4774 = vmin.f32 %v4136, 0.0
        %v4775 = vmin.f32 %v4141, 0.0
        %v4776 = vmin.f32 %v4146, 0.0
        %v4777 = vmin.f32 %v4151, 0.0
        %v4778 = vmin.f32 %v4156, 0.0
        %v4779 = vmin.f32 %v4161, 0.0
        %v4780 = vmin.f32 %v4166, 0.0
        %v4781 = vmin.f32 %v4171, 0.0
        %v4782 = vmin.f32 %v4176, 0.0
        %v4783 = vmin.f32 %v4181, 0.0
        %v4784 = vmin.f32 %v4186, 0.0
        %v4785 = vmin.f32 %v4191, 0.0
        %v4786 = vmin.f32 %v4196, 0.0
        %v4787 = vmin.f32 %v4201, 0.0
        %v4788 = vmin.f32 %v4206, 0.0
        %v4789 = vmin.f32 %v4211, 0.0
        %v4790 = vmin.f32 %v4216, 0.0
        %v4791 = vmin.f32 %v4221, 0.0
        %v4792 = vmin.f32 %v4226, 0.0
        %v4793 = vmin.f32 %v4231, 0.0
        %v4794 = vmin.f32 %v4236, 0.0
        %v4795 = vmin.f32 %v4241, 0.0
        %v4796 = vmin.f32 %v4246, 0.0
        %v4797 = vmin.f32 %v4251, 0.0
        %v4798 = vmin.f32 %v4256, 0.0
        %v4799 = vmin.f32 %v4261, 0.0
        %v4800 = vmin.f32 %v4266, 0.0
        %v4801 = vmin.f32 %v4271, 0.0
        %v4802 = vmin.f32 %v4276, 0.0
        %v4803 = vmin.f32 %v4281, 0.0
        %v4804 = vmin.f32 %v4286, 0.0
        %v4805 = vmin.f32 %v4291, 0.0
        %v4806 = vmin.f32 %v4296, 0.0
        %v4807 = vmin.f32 %v4301, 0.0
        %v4808 = vmin.f32 %v4306, 0.0
        %v4809 = vmin.f32 %v4311, 0.0
        %v4810 = vmin.f32 %v4316, 0.0
        %v4811 = vmin.f32 %v4321, 0.0
        %v4812 = vmin.f32 %v4326, 0.0
        %v4813 = vmin.f32 %v4331, 0.0
        %v4814 = vmin.f32 %v4336, 0.0
        %v4815 = vmin.f32 %v4341, 0.0
        %v4816 = vmin.f32 %v4346, 0.0
        %v4817 = vmin.f32 %v4351, 0.0
        %v4818 = vmin.f32 %v4356, 0.0
        %v4819 = vmin.f32 %v4361, 0.0
        %v4820 = vmin.f32 %v4366, 0.0
        %v4821 = vmin.f32 %v4371, 0.0
        %v4822 = vmin.f32 %v4376, 0.0
        %v4823 = vmin.f32 %v4381, 0.0
        %v4824 = vmin.f32 %v4386, 0.0
        %v4825 = vmin.f32 %v4391, 0.0
        %v4826 = vmin.f32 %v4396, 0.0
        %v4827 = vmin.f32 %v4401, 0.0
        %v4828 = vmin.f32 %v4406, 0.0
        %v4829 = vmin.f32 %v4411, 0.0
        %v4830 = vmin.f32 %v4416, 0.0
        %v4831 = vmin.f32 %v4421, 0.0
        %v4832 = vmin.f32 %v4426, 0.0
        %v4833 = vmin.f32 %v4431, 0.0
        %v4834 = vmin.f32 %v4436, 0.0
        %v4835 = vmin.f32 %v4441, 0.0
        %v4836 = vmin.f32 %v4446, 0.0
        %v4837 = vmin.f32 %v4451, 0.0
        %v4838 = vmin.f32 %v4456, 0.0
        %v4839 = vmin.f32 %v4461, 0.0
        %v4840 = vmin.f32 %v4466, 0.0
        %v4841 = vmin.f32 %v4471, 0.0
        %v4842 = vmin.f32 %v4476, 0.0
        %v4843 = vmin.f32 %v4481, 0.0
        %v4844 = vmin.f32 %v4486, 0.0
        %v4845 = vmin.f32 %v4491, 0.0
        %v4846 = vmin.f32 %v4496, 0.0
        %v4847 = vmin.f32 %v4501, 0.0
        %v4848 = vmin.f32 %v4506, 0.0
        %v4849 = vmin.f32 %v4511, 0.0
        %v4850 = vmin.f32 %v4516, 0.0
        %v4851 = vmin.f32 %v4521, 0.0
        %v4852 = vmin.f32 %v4526, 0.0
        %v4853 = vmin.f32 %v4531, 0.0
        %v4854 = vmin.f32 %v4536, 0.0
        %v4855 = vmin.f32 %v4541, 0.0
        %v4856 = vmin.f32 %v4546, 0.0
        %v4857 = vmin.f32 %v4551, 0.0
        %v4858 = vmin.f32 %v4556, 0.0
        %v4859 = vmin.f32 %v4561, 0.0
        %v4860 = vmin.f32 %v4566, 0.0
        %v4861 = vmin.f32 %v4571, 0.0
        %v4862 = vmin.f32 %v4576, 0.0
        %v4863 = vmin.f32 %v4581, 0.0
        %v4864 = vmin.f32 %v4586, 0.0
        %v4865 = vmin.f32 %v4591, 0.0
        %v4866 = vmin.f32 %v4596, 0.0
        %v4867 = vmin.f32 %v4601, 0.0
        %v4868 = vmin.f32 %v4606, 0.0
        %v4869 = vmin.f32 %v4611, 0.0
        %v4870 = vmul.f32 %v4742, 1.442695
        %v4871 = vpow.pop %v4870
        %v4872 = vmul.f32 %v4743, 1.442695
        %v4873 = vpow.pop %v4872
        %v4874 = vmul.f32 %v4744, 1.442695
        %v4875 = vpow.pop %v4874
        %v4876 = vmul.f32 %v4745, 1.442695
        %v4877 = vpow.pop %v4876
        %v4878 = vmul.f32 %v4746, 1.442695
        %v4879 = vpow.pop %v4878
        %v4880 = vmul.f32 %v4747, 1.442695
        %v4881 = vpow.pop %v4880
        %v4882 = vmul.f32 %v4748, 1.442695
        %v4883 = vpow.pop %v4882
        %v4884 = vmul.f32 %v4749, 1.442695
        %v4885 = vpow.pop %v4884
        %v4886 = vmul.f32 %v4750, 1.442695
        %v4887 = vpow.pop %v4886
        %v4888 = vmul.f32 %v4751, 1.442695
        %v4889 = vpow.pop %v4888
        %v4890 = vmul.f32 %v4752, 1.442695
        %v4891 = vpow.pop %v4890
        %v4892 = vmul.f32 %v4753, 1.442695
        %v4893 = vpow.pop %v4892
        %v4894 = vmul.f32 %v4754, 1.442695
        %v4895 = vpow.pop %v4894
        %v4896 = vmul.f32 %v4755, 1.442695
        %v4897 = vpow.pop %v4896
        %v4898 = vmul.f32 %v4756, 1.442695
        %v4899 = vpow.pop %v4898
        %v4900 = vmul.f32 %v4757, 1.442695
        %v4901 = vpow.pop %v4900
        %v4902 = vmul.f32 %v4758, 1.442695
        %v4903 = vpow.pop %v4902
        %v4904 = vmul.f32 %v4759, 1.442695
        %v4905 = vpow.pop %v4904
        %v4906 = vmul.f32 %v4760, 1.442695
        %v4907 = vpow.pop %v4906
        %v4908 = vmul.f32 %v4761, 1.442695
        %v4909 = vpow.pop %v4908
        %v4910 = vmul.f32 %v4762, 1.442695
        %v4911 = vpow.pop %v4910
        %v4912 = vmul.f32 %v4763, 1.442695
        %v4913 = vpow.pop %v4912
        %v4914 = vmul.f32 %v4764, 1.442695
        %v4915 = vpow.pop %v4914
        %v4916 = vmul.f32 %v4765, 1.442695
        %v4917 = vpow.pop %v4916
        %v4918 = vmul.f32 %v4766, 1.442695
        %v4919 = vpow.pop %v4918
        %v4920 = vmul.f32 %v4767, 1.442695
        %v4921 = vpow.pop %v4920
        %v4922 = vmul.f32 %v4768, 1.442695
        %v4923 = vpow.pop %v4922
        %v4924 = vmul.f32 %v4769, 1.442695
        %v4925 = vpow.pop %v4924
        %v4926 = vmul.f32 %v4770, 1.442695
        %v4927 = vpow.pop %v4926
        %v4928 = vmul.f32 %v4771, 1.442695
        %v4929 = vpow.pop %v4928
        %v4930 = vmul.f32 %v4772, 1.442695
        %v4931 = vpow.pop %v4930
        %v4932 = vmul.f32 %v4773, 1.442695
        %v4933 = vpow.pop %v4932
        %v4934 = vmul.f32 %v4774, 1.442695
        %v4935 = vpow.pop %v4934
        %v4936 = vmul.f32 %v4775, 1.442695
        %v4937 = vpow.pop %v4936
        %v4938 = vmul.f32 %v4776, 1.442695
        %v4939 = vpow.pop %v4938
        %v4940 = vmul.f32 %v4777, 1.442695
        %v4941 = vpow.pop %v4940
        %v4942 = vmul.f32 %v4778, 1.442695
        %v4943 = vpow.pop %v4942
        %v4944 = vmul.f32 %v4779, 1.442695
        %v4945 = vpow.pop %v4944
        %v4946 = vmul.f32 %v4780, 1.442695
        %v4947 = vpow.pop %v4946
        %v4948 = vmul.f32 %v4781, 1.442695
        %v4949 = vpow.pop %v4948
        %v4950 = vmul.f32 %v4782, 1.442695
        %v4951 = vpow.pop %v4950
        %v4952 = vmul.f32 %v4783, 1.442695
        %v4953 = vpow.pop %v4952
        %v4954 = vmul.f32 %v4784, 1.442695
        %v4955 = vpow.pop %v4954
        %v4956 = vmul.f32 %v4785, 1.442695
        %v4957 = vpow.pop %v4956
        %v4958 = vmul.f32 %v4786, 1.442695
        %v4959 = vpow.pop %v4958
        %v4960 = vmul.f32 %v4787, 1.442695
        %v4961 = vpow.pop %v4960
        %v4962 = vmul.f32 %v4788, 1.442695
        %v4963 = vpow.pop %v4962
        %v4964 = vmul.f32 %v4789, 1.442695
        %v4965 = vpow.pop %v4964
        %v4966 = vmul.f32 %v4790, 1.442695
        %v4967 = vpow.pop %v4966
        %v4968 = vmul.f32 %v4791, 1.442695
        %v4969 = vpow.pop %v4968
        %v4970 = vmul.f32 %v4792, 1.442695
        %v4971 = vpow.pop %v4970
        %v4972 = vmul.f32 %v4793, 1.442695
        %v4973 = vpow.pop %v4972
        %v4974 = vmul.f32 %v4794, 1.442695
        %v4975 = vpow.pop %v4974
        %v4976 = vmul.f32 %v4795, 1.442695
        %v4977 = vpow.pop %v4976
        %v4978 = vmul.f32 %v4796, 1.442695
        %v4979 = vpow.pop %v4978
        %v4980 = vmul.f32 %v4797, 1.442695
        %v4981 = vpow.pop %v4980
        %v4982 = vmul.f32 %v4798, 1.442695
        %v4983 = vpow.pop %v4982
        %v4984 = vmul.f32 %v4799, 1.442695
        %v4985 = vpow.pop %v4984
        %v4986 = vmul.f32 %v4800, 1.442695
        %v4987 = vpow.pop %v4986
        %v4988 = vmul.f32 %v4801, 1.442695
        %v4989 = vpow.pop %v4988
        %v4990 = vmul.f32 %v4802, 1.442695
        %v4991 = vpow.pop %v4990
        %v4992 = vmul.f32 %v4803, 1.442695
        %v4993 = vpow.pop %v4992
        %v4994 = vmul.f32 %v4804, 1.442695
        %v4995 = vpow.pop %v4994
        %v4996 = vmul.f32 %v4805, 1.442695
        %v4997 = vpow.pop %v4996
        %v4998 = vmul.f32 %v4806, 1.442695
        %v4999 = vpow.pop %v4998
        %v5000 = vmul.f32 %v4807, 1.442695
        %v5001 = vpow.pop %v5000
        %v5002 = vmul.f32 %v4808, 1.442695
        %v5003 = vpow.pop %v5002
        %v5004 = vmul.f32 %v4809, 1.442695
        %v5005 = vpow.pop %v5004
        %v5006 = vmul.f32 %v4810, 1.442695
        %v5007 = vpow.pop %v5006
        %v5008 = vmul.f32 %v4811, 1.442695
        %v5009 = vpow.pop %v5008
        %v5010 = vmul.f32 %v4812, 1.442695
        %v5011 = vpow.pop %v5010
        %v5012 = vmul.f32 %v4813, 1.442695
        %v5013 = vpow.pop %v5012
        %v5014 = vmul.f32 %v4814, 1.442695
        %v5015 = vpow.pop %v5014
        %v5016 = vmul.f32 %v4815, 1.442695
        %v5017 = vpow.pop %v5016
        %v5018 = vmul.f32 %v4816, 1.442695
        %v5019 = vpow.pop %v5018
        %v5020 = vmul.f32 %v4817, 1.442695
        %v5021 = vpow.pop %v5020
        %v5022 = vmul.f32 %v4818, 1.442695
        %v5023 = vpow.pop %v5022
        %v5024 = vmul.f32 %v4819, 1.442695
        %v5025 = vpow.pop %v5024
        %v5026 = vmul.f32 %v4820, 1.442695
        %v5027 = vpow.pop %v5026
        %v5028 = vmul.f32 %v4821, 1.442695
        %v5029 = vpow.pop %v5028
        %v5030 = vmul.f32 %v4822, 1.442695
        %v5031 = vpow.pop %v5030
        %v5032 = vmul.f32 %v4823, 1.442695
        %v5033 = vpow.pop %v5032
        %v5034 = vmul.f32 %v4824, 1.442695
        %v5035 = vpow.pop %v5034
        %v5036 = vmul.f32 %v4825, 1.442695
        %v5037 = vpow.pop %v5036
        %v5038 = vmul.f32 %v4826, 1.442695
        %v5039 = vpow.pop %v5038
        %v5040 = vmul.f32 %v4827, 1.442695
        %v5041 = vpow.pop %v5040
        %v5042 = vmul.f32 %v4828, 1.442695
        %v5043 = vpow.pop %v5042
        %v5044 = vmul.f32 %v4829, 1.442695
        %v5045 = vpow.pop %v5044
        %v5046 = vmul.f32 %v4830, 1.442695
        %v5047 = vpow.pop %v5046
        %v5048 = vmul.f32 %v4831, 1.442695
        %v5049 = vpow.pop %v5048
        %v5050 = vmul.f32 %v4832, 1.442695
        %v5051 = vpow.pop %v5050
        %v5052 = vmul.f32 %v4833, 1.442695
        %v5053 = vpow.pop %v5052
        %v5054 = vmul.f32 %v4834, 1.442695
        %v5055 = vpow.pop %v5054
        %v5056 = vmul.f32 %v4835, 1.442695
        %v5057 = vpow.pop %v5056
        %v5058 = vmul.f32 %v4836, 1.442695
        %v5059 = vpow.pop %v5058
        %v5060 = vmul.f32 %v4837, 1.442695
        %v5061 = vpow.pop %v5060
        %v5062 = vmul.f32 %v4838, 1.442695
        %v5063 = vpow.pop %v5062
        %v5064 = vmul.f32 %v4839, 1.442695
        %v5065 = vpow.pop %v5064
        %v5066 = vmul.f32 %v4840, 1.442695
        %v5067 = vpow.pop %v5066
        %v5068 = vmul.f32 %v4841, 1.442695
        %v5069 = vpow.pop %v5068
        %v5070 = vmul.f32 %v4842, 1.442695
        %v5071 = vpow.pop %v5070
        %v5072 = vmul.f32 %v4843, 1.442695
        %v5073 = vpow.pop %v5072
        %v5074 = vmul.f32 %v4844, 1.442695
        %v5075 = vpow.pop %v5074
        %v5076 = vmul.f32 %v4845, 1.442695
        %v5077 = vpow.pop %v5076
        %v5078 = vmul.f32 %v4846, 1.442695
        %v5079 = vpow.pop %v5078
        %v5080 = vmul.f32 %v4847, 1.442695
        %v5081 = vpow.pop %v5080
        %v5082 = vmul.f32 %v4848, 1.442695
        %v5083 = vpow.pop %v5082
        %v5084 = vmul.f32 %v4849, 1.442695
        %v5085 = vpow.pop %v5084
        %v5086 = vmul.f32 %v4850, 1.442695
        %v5087 = vpow.pop %v5086
        %v5088 = vmul.f32 %v4851, 1.442695
        %v5089 = vpow.pop %v5088
        %v5090 = vmul.f32 %v4852, 1.442695
        %v5091 = vpow.pop %v5090
        %v5092 = vmul.f32 %v4853, 1.442695
        %v5093 = vpow.pop %v5092
        %v5094 = vmul.f32 %v4854, 1.442695
        %v5095 = vpow.pop %v5094
        %v5096 = vmul.f32 %v4855, 1.442695
        %v5097 = vpow.pop %v5096
        %v5098 = vmul.f32 %v4856, 1.442695
        %v5099 = vpow.pop %v5098
        %v5100 = vmul.f32 %v4857, 1.442695
        %v5101 = vpow.pop %v5100
        %v5102 = vmul.f32 %v4858, 1.442695
        %v5103 = vpow.pop %v5102
        %v5104 = vmul.f32 %v4859, 1.442695
        %v5105 = vpow.pop %v5104
        %v5106 = vmul.f32 %v4860, 1.442695
        %v5107 = vpow.pop %v5106
        %v5108 = vmul.f32 %v4861, 1.442695
        %v5109 = vpow.pop %v5108
        %v5110 = vmul.f32 %v4862, 1.442695
        %v5111 = vpow.pop %v5110
        %v5112 = vmul.f32 %v4863, 1.442695
        %v5113 = vpow.pop %v5112
        %v5114 = vmul.f32 %v4864, 1.442695
        %v5115 = vpow.pop %v5114
        %v5116 = vmul.f32 %v4865, 1.442695
        %v5117 = vpow.pop %v5116
        %v5118 = vmul.f32 %v4866, 1.442695
        %v5119 = vpow.pop %v5118
        %v5120 = vmul.f32 %v4867, 1.442695
        %v5121 = vpow.pop %v5120
        %v5122 = vmul.f32 %v4868, 1.442695
        %v5123 = vpow.pop %v5122
        %v5124 = vmul.f32 %v4869, 1.442695
        %v5125 = vpow.pop %v5124
        %v5126 = vsub.f32 %v4871, 1.0
        %v5127 = vsub.f32 %v4873, 1.0
        %v5128 = vsub.f32 %v4875, 1.0
        %v5129 = vsub.f32 %v4877, 1.0
        %v5130 = vsub.f32 %v4879, 1.0
        %v5131 = vsub.f32 %v4881, 1.0
        %v5132 = vsub.f32 %v4883, 1.0
        %v5133 = vsub.f32 %v4885, 1.0
        %v5134 = vsub.f32 %v4887, 1.0
        %v5135 = vsub.f32 %v4889, 1.0
        %v5136 = vsub.f32 %v4891, 1.0
        %v5137 = vsub.f32 %v4893, 1.0
        %v5138 = vsub.f32 %v4895, 1.0
        %v5139 = vsub.f32 %v4897, 1.0
        %v5140 = vsub.f32 %v4899, 1.0
        %v5141 = vsub.f32 %v4901, 1.0
        %v5142 = vsub.f32 %v4903, 1.0
        %v5143 = vsub.f32 %v4905, 1.0
        %v5144 = vsub.f32 %v4907, 1.0
        %v5145 = vsub.f32 %v4909, 1.0
        %v5146 = vsub.f32 %v4911, 1.0
        %v5147 = vsub.f32 %v4913, 1.0
        %v5148 = vsub.f32 %v4915, 1.0
        %v5149 = vsub.f32 %v4917, 1.0
        %v5150 = vsub.f32 %v4919, 1.0
        %v5151 = vsub.f32 %v4921, 1.0
        %v5152 = vsub.f32 %v4923, 1.0
        %v5153 = vsub.f32 %v4925, 1.0
        %v5154 = vsub.f32 %v4927, 1.0
        %v5155 = vsub.f32 %v4929, 1.0
        %v5156 = vsub.f32 %v4931, 1.0
        %v5157 = vsub.f32 %v4933, 1.0
        %v5158 = vsub.f32 %v4935, 1.0
        %v5159 = vsub.f32 %v4937, 1.0
        %v5160 = vsub.f32 %v4939, 1.0
        %v5161 = vsub.f32 %v4941, 1.0
        %v5162 = vsub.f32 %v4943, 1.0
        %v5163 = vsub.f32 %v4945, 1.0
        %v5164 = vsub.f32 %v4947, 1.0
        %v5165 = vsub.f32 %v4949, 1.0
        %v5166 = vsub.f32 %v4951, 1.0
        %v5167 = vsub.f32 %v4953, 1.0
        %v5168 = vsub.f32 %v4955, 1.0
        %v5169 = vsub.f32 %v4957, 1.0
        %v5170 = vsub.f32 %v4959, 1.0
        %v5171 = vsub.f32 %v4961, 1.0
        %v5172 = vsub.f32 %v4963, 1.0
        %v5173 = vsub.f32 %v4965, 1.0
        %v5174 = vsub.f32 %v4967, 1.0
        %v5175 = vsub.f32 %v4969, 1.0
        %v5176 = vsub.f32 %v4971, 1.0
        %v5177 = vsub.f32 %v4973, 1.0
        %v5178 = vsub.f32 %v4975, 1.0
        %v5179 = vsub.f32 %v4977, 1.0
        %v5180 = vsub.f32 %v4979, 1.0
        %v5181 = vsub.f32 %v4981, 1.0
        %v5182 = vsub.f32 %v4983, 1.0
        %v5183 = vsub.f32 %v4985, 1.0
        %v5184 = vsub.f32 %v4987, 1.0
        %v5185 = vsub.f32 %v4989, 1.0
        %v5186 = vsub.f32 %v4991, 1.0
        %v5187 = vsub.f32 %v4993, 1.0
        %v5188 = vsub.f32 %v4995, 1.0
        %v5189 = vsub.f32 %v4997, 1.0
        %v5190 = vsub.f32 %v4999, 1.0
        %v5191 = vsub.f32 %v5001, 1.0
        %v5192 = vsub.f32 %v5003, 1.0
        %v5193 = vsub.f32 %v5005, 1.0
        %v5194 = vsub.f32 %v5007, 1.0
        %v5195 = vsub.f32 %v5009, 1.0
        %v5196 = vsub.f32 %v5011, 1.0
        %v5197 = vsub.f32 %v5013, 1.0
        %v5198 = vsub.f32 %v5015, 1.0
        %v5199 = vsub.f32 %v5017, 1.0
        %v5200 = vsub.f32 %v5019, 1.0
        %v5201 = vsub.f32 %v5021, 1.0
        %v5202 = vsub.f32 %v5023, 1.0
        %v5203 = vsub.f32 %v5025, 1.0
        %v5204 = vsub.f32 %v5027, 1.0
        %v5205 = vsub.f32 %v5029, 1.0
        %v5206 = vsub.f32 %v5031, 1.0
        %v5207 = vsub.f32 %v5033, 1.0
        %v5208 = vsub.f32 %v5035, 1.0
        %v5209 = vsub.f32 %v5037, 1.0
        %v5210 = vsub.f32 %v5039, 1.0
        %v5211 = vsub.f32 %v5041, 1.0
        %v5212 = vsub.f32 %v5043, 1.0
        %v5213 = vsub.f32 %v5045, 1.0
        %v5214 = vsub.f32 %v5047, 1.0
        %v5215 = vsub.f32 %v5049, 1.0
        %v5216 = vsub.f32 %v5051, 1.0
        %v5217 = vsub.f32 %v5053, 1.0
        %v5218 = vsub.f32 %v5055, 1.0
        %v5219 = vsub.f32 %v5057, 1.0
        %v5220 = vsub.f32 %v5059, 1.0
        %v5221 = vsub.f32 %v5061, 1.0
        %v5222 = vsub.f32 %v5063, 1.0
        %v5223 = vsub.f32 %v5065, 1.0
        %v5224 = vsub.f32 %v5067, 1.0
        %v5225 = vsub.f32 %v5069, 1.0
        %v5226 = vsub.f32 %v5071, 1.0
        %v5227 = vsub.f32 %v5073, 1.0
        %v5228 = vsub.f32 %v5075, 1.0
        %v5229 = vsub.f32 %v5077, 1.0
        %v5230 = vsub.f32 %v5079, 1.0
        %v5231 = vsub.f32 %v5081, 1.0
        %v5232 = vsub.f32 %v5083, 1.0
        %v5233 = vsub.f32 %v5085, 1.0
        %v5234 = vsub.f32 %v5087, 1.0
        %v5235 = vsub.f32 %v5089, 1.0
        %v5236 = vsub.f32 %v5091, 1.0
        %v5237 = vsub.f32 %v5093, 1.0
        %v5238 = vsub.f32 %v5095, 1.0
        %v5239 = vsub.f32 %v5097, 1.0
        %v5240 = vsub.f32 %v5099, 1.0
        %v5241 = vsub.f32 %v5101, 1.0
        %v5242 = vsub.f32 %v5103, 1.0
        %v5243 = vsub.f32 %v5105, 1.0
        %v5244 = vsub.f32 %v5107, 1.0
        %v5245 = vsub.f32 %v5109, 1.0
        %v5246 = vsub.f32 %v5111, 1.0
        %v5247 = vsub.f32 %v5113, 1.0
        %v5248 = vsub.f32 %v5115, 1.0
        %v5249 = vsub.f32 %v5117, 1.0
        %v5250 = vsub.f32 %v5119, 1.0
        %v5251 = vsub.f32 %v5121, 1.0
        %v5252 = vsub.f32 %v5123, 1.0
        %v5253 = vsub.f32 %v5125, 1.0
        %v5254 = vsel %vm4614, %v3976, %v5126
        %v5255 = vsel %vm4615, %v3981, %v5127
        %v5256 = vsel %vm4616, %v3986, %v5128
        %v5257 = vsel %vm4617, %v3991, %v5129
        %v5258 = vsel %vm4618, %v3996, %v5130
        %v5259 = vsel %vm4619, %v4001, %v5131
        %v5260 = vsel %vm4620, %v4006, %v5132
        %v5261 = vsel %vm4621, %v4011, %v5133
        %v5262 = vsel %vm4622, %v4016, %v5134
        %v5263 = vsel %vm4623, %v4021, %v5135
        %v5264 = vsel %vm4624, %v4026, %v5136
        %v5265 = vsel %vm4625, %v4031, %v5137
        %v5266 = vsel %vm4626, %v4036, %v5138
        %v5267 = vsel %vm4627, %v4041, %v5139
        %v5268 = vsel %vm4628, %v4046, %v5140
        %v5269 = vsel %vm4629, %v4051, %v5141
        %v5270 = vsel %vm4630, %v4056, %v5142
        %v5271 = vsel %vm4631, %v4061, %v5143
        %v5272 = vsel %vm4632, %v4066, %v5144
        %v5273 = vsel %vm4633, %v4071, %v5145
        %v5274 = vsel %vm4634, %v4076, %v5146
        %v5275 = vsel %vm4635, %v4081, %v5147
        %v5276 = vsel %vm4636, %v4086, %v5148
        %v5277 = vsel %vm4637, %v4091, %v5149
        %v5278 = vsel %vm4638, %v4096, %v5150
        %v5279 = vsel %vm4639, %v4101, %v5151
        %v5280 = vsel %vm4640, %v4106, %v5152
        %v5281 = vsel %vm4641, %v4111, %v5153
        %v5282 = vsel %vm4642, %v4116, %v5154
        %v5283 = vsel %vm4643, %v4121, %v5155
        %v5284 = vsel %vm4644, %v4126, %v5156
        %v5285 = vsel %vm4645, %v4131, %v5157
        %v5286 = vsel %vm4646, %v4136, %v5158
        %v5287 = vsel %vm4647, %v4141, %v5159
        %v5288 = vsel %vm4648, %v4146, %v5160
        %v5289 = vsel %vm4649, %v4151, %v5161
        %v5290 = vsel %vm4650, %v4156, %v5162
        %v5291 = vsel %vm4651, %v4161, %v5163
        %v5292 = vsel %vm4652, %v4166, %v5164
        %v5293 = vsel %vm4653, %v4171, %v5165
        %v5294 = vsel %vm4654, %v4176, %v5166
        %v5295 = vsel %vm4655, %v4181, %v5167
        %v5296 = vsel %vm4656, %v4186, %v5168
        %v5297 = vsel %vm4657, %v4191, %v5169
        %v5298 = vsel %vm4658, %v4196, %v5170
        %v5299 = vsel %vm4659, %v4201, %v5171
        %v5300 = vsel %vm4660, %v4206, %v5172
        %v5301 = vsel %vm4661, %v4211, %v5173
        %v5302 = vsel %vm4662, %v4216, %v5174
        %v5303 = vsel %vm4663, %v4221, %v5175
        %v5304 = vsel %vm4664, %v4226, %v5176
        %v5305 = vsel %vm4665, %v4231, %v5177
        %v5306 = vsel %vm4666, %v4236, %v5178
        %v5307 = vsel %vm4667, %v4241, %v5179
        %v5308 = vsel %vm4668, %v4246, %v5180
        %v5309 = vsel %vm4669, %v4251, %v5181
        %v5310 = vsel %vm4670, %v4256, %v5182
        %v5311 = vsel %vm4671, %v4261, %v5183
        %v5312 = vsel %vm4672, %v4266, %v5184
        %v5313 = vsel %vm4673, %v4271, %v5185
        %v5314 = vsel %vm4674, %v4276, %v5186
        %v5315 = vsel %vm4675, %v4281, %v5187
        %v5316 = vsel %vm4676, %v4286, %v5188
        %v5317 = vsel %vm4677, %v4291, %v5189
        %v5318 = vsel %vm4678, %v4296, %v5190
        %v5319 = vsel %vm4679, %v4301, %v5191
        %v5320 = vsel %vm4680, %v4306, %v5192
        %v5321 = vsel %vm4681, %v4311, %v5193
        %v5322 = vsel %vm4682, %v4316, %v5194
        %v5323 = vsel %vm4683, %v4321, %v5195
        %v5324 = vsel %vm4684, %v4326, %v5196
        %v5325 = vsel %vm4685, %v4331, %v5197
        %v5326 = vsel %vm4686, %v4336, %v5198
        %v5327 = vsel %vm4687, %v4341, %v5199
        %v5328 = vsel %vm4688, %v4346, %v5200
        %v5329 = vsel %vm4689, %v4351, %v5201
        %v5330 = vsel %vm4690, %v4356, %v5202
        %v5331 = vsel %vm4691, %v4361, %v5203
        %v5332 = vsel %vm4692, %v4366, %v5204
        %v5333 = vsel %vm4693, %v4371, %v5205
        %v5334 = vsel %vm4694, %v4376, %v5206
        %v5335 = vsel %vm4695, %v4381, %v5207
        %v5336 = vsel %vm4696, %v4386, %v5208
        %v5337 = vsel %vm4697, %v4391, %v5209
        %v5338 = vsel %vm4698, %v4396, %v5210
        %v5339 = vsel %vm4699, %v4401, %v5211
        %v5340 = vsel %vm4700, %v4406, %v5212
        %v5341 = vsel %vm4701, %v4411, %v5213
        %v5342 = vsel %vm4702, %v4416, %v5214
        %v5343 = vsel %vm4703, %v4421, %v5215
        %v5344 = vsel %vm4704, %v4426, %v5216
        %v5345 = vsel %vm4705, %v4431, %v5217
        %v5346 = vsel %vm4706, %v4436, %v5218
        %v5347 = vsel %vm4707, %v4441, %v5219
        %v5348 = vsel %vm4708, %v4446, %v5220
        %v5349 = vsel %vm4709, %v4451, %v5221
        %v5350 = vsel %vm4710, %v4456, %v5222
        %v5351 = vsel %vm4711, %v4461, %v5223
        %v5352 = vsel %vm4712, %v4466, %v5224
        %v5353 = vsel %vm4713, %v4471, %v5225
        %v5354 = vsel %vm4714, %v4476, %v5226
        %v5355 = vsel %vm4715, %v4481, %v5227
        %v5356 = vsel %vm4716, %v4486, %v5228
        %v5357 = vsel %vm4717, %v4491, %v5229
        %v5358 = vsel %vm4718, %v4496, %v5230
        %v5359 = vsel %vm4719, %v4501, %v5231
        %v5360 = vsel %vm4720, %v4506, %v5232
        %v5361 = vsel %vm4721, %v4511, %v5233
        %v5362 = vsel %vm4722, %v4516, %v5234
        %v5363 = vsel %vm4723, %v4521, %v5235
        %v5364 = vsel %vm4724, %v4526, %v5236
        %v5365 = vsel %vm4725, %v4531, %v5237
        %v5366 = vsel %vm4726, %v4536, %v5238
        %v5367 = vsel %vm4727, %v4541, %v5239
        %v5368 = vsel %vm4728, %v4546, %v5240
        %v5369 = vsel %vm4729, %v4551, %v5241
        %v5370 = vsel %vm4730, %v4556, %v5242
        %v5371 = vsel %vm4731, %v4561, %v5243
        %v5372 = vsel %vm4732, %v4566, %v5244
        %v5373 = vsel %vm4733, %v4571, %v5245
        %v5374 = vsel %vm4734, %v4576, %v5246
        %v5375 = vsel %vm4735, %v4581, %v5247
        %v5376 = vsel %vm4736, %v4586, %v5248
        %v5377 = vsel %vm4737, %v4591, %v5249
        %v5378 = vsel %vm4738, %v4596, %v5250
        %v5379 = vsel %vm4739, %v4601, %v5251
        %v5380 = vsel %vm4740, %v4606, %v5252
        %v5381 = vsel %vm4741, %v4611, %v5253
        %v5382 = vld [vmem:[%s408] sm:$0xff]
        %v5383 = vld [vmem:[%s408 + $0x8] sm:$0xff]
        %v5384 = vld [vmem:[%s408 + $0x10] sm:$0xff]
        %v5385 = vld [vmem:[%s408 + $0x18] sm:$0xff]
        %v5386 = vld [vmem:[%s408 + $0x20] sm:$0xff]
        %v5387 = vld [vmem:[%s408 + $0x28] sm:$0xff]
        %v5388 = vld [vmem:[%s408 + $0x30] sm:$0xff]
        %v5389 = vld [vmem:[%s408 + $0x38] sm:$0xff]
        %v5390 = vld [vmem:[%s408 + $0x40] sm:$0xff]
        %v5391 = vld [vmem:[%s408 + $0x48] sm:$0xff]
        %v5392 = vld [vmem:[%s408 + $0x50] sm:$0xff]
        %v5393 = vld [vmem:[%s408 + $0x58] sm:$0xff]
        %v5394 = vld [vmem:[%s408 + $0x60] sm:$0xff]
        %v5395 = vld [vmem:[%s408 + $0x68] sm:$0xff]
        %v5396 = vld [vmem:[%s408 + $0x70] sm:$0xff]
        %v5397 = vld [vmem:[%s408 + $0x78] sm:$0xff]
        %v5398 = vmul.f32 %v5254, %v5382
        %v5399 = vmul.f32 %v5255, %v5383
        %v5400 = vmul.f32 %v5256, %v5384
        %v5401 = vmul.f32 %v5257, %v5385
        %v5402 = vmul.f32 %v5258, %v5386
        %v5403 = vmul.f32 %v5259, %v5387
        %v5404 = vmul.f32 %v5260, %v5388
        %v5405 = vmul.f32 %v5261, %v5389
        %v5406 = vmul.f32 %v5262, %v5390
        %v5407 = vmul.f32 %v5263, %v5391
        %v5408 = vmul.f32 %v5264, %v5392
        %v5409 = vmul.f32 %v5265, %v5393
        %v5410 = vmul.f32 %v5266, %v5394
        %v5411 = vmul.f32 %v5267, %v5395
        %v5412 = vmul.f32 %v5268, %v5396
        %v5413 = vmul.f32 %v5269, %v5397
        %v5414 = vmul.f32 %v5270, %v5382
        %v5415 = vmul.f32 %v5271, %v5383
        %v5416 = vmul.f32 %v5272, %v5384
        %v5417 = vmul.f32 %v5273, %v5385
        %v5418 = vmul.f32 %v5274, %v5386
        %v5419 = vmul.f32 %v5275, %v5387
        %v5420 = vmul.f32 %v5276, %v5388
        %v5421 = vmul.f32 %v5277, %v5389
        %v5422 = vmul.f32 %v5278, %v5390
        %v5423 = vmul.f32 %v5279, %v5391
        %v5424 = vmul.f32 %v5280, %v5392
        %v5425 = vmul.f32 %v5281, %v5393
        %v5426 = vmul.f32 %v5282, %v5394
        %v5427 = vmul.f32 %v5283, %v5395
        %v5428 = vmul.f32 %v5284, %v5396
        %v5429 = vmul.f32 %v5285, %v5397
        %v5430 = vmul.f32 %v5286, %v5382
        %v5431 = vmul.f32 %v5287, %v5383
        %v5432 = vmul.f32 %v5288, %v5384
        %v5433 = vmul.f32 %v5289, %v5385
        %v5434 = vmul.f32 %v5290, %v5386
        %v5435 = vmul.f32 %v5291, %v5387
        %v5436 = vmul.f32 %v5292, %v5388
        %v5437 = vmul.f32 %v5293, %v5389
        %v5438 = vmul.f32 %v5294, %v5390
        %v5439 = vmul.f32 %v5295, %v5391
        %v5440 = vmul.f32 %v5296, %v5392
        %v5441 = vmul.f32 %v5297, %v5393
        %v5442 = vmul.f32 %v5298, %v5394
        %v5443 = vmul.f32 %v5299, %v5395
        %v5444 = vmul.f32 %v5300, %v5396
        %v5445 = vmul.f32 %v5301, %v5397
        %v5446 = vmul.f32 %v5302, %v5382
        %v5447 = vmul.f32 %v5303, %v5383
        %v5448 = vmul.f32 %v5304, %v5384
        %v5449 = vmul.f32 %v5305, %v5385
        %v5450 = vmul.f32 %v5306, %v5386
        %v5451 = vmul.f32 %v5307, %v5387
        %v5452 = vmul.f32 %v5308, %v5388
        %v5453 = vmul.f32 %v5309, %v5389
        %v5454 = vmul.f32 %v5310, %v5390
        %v5455 = vmul.f32 %v5311, %v5391
        %v5456 = vmul.f32 %v5312, %v5392
        %v5457 = vmul.f32 %v5313, %v5393
        %v5458 = vmul.f32 %v5314, %v5394
        %v5459 = vmul.f32 %v5315, %v5395
        %v5460 = vmul.f32 %v5316, %v5396
        %v5461 = vmul.f32 %v5317, %v5397
        %v5462 = vmul.f32 %v5318, %v5382
        %v5463 = vmul.f32 %v5319, %v5383
        %v5464 = vmul.f32 %v5320, %v5384
        %v5465 = vmul.f32 %v5321, %v5385
        %v5466 = vmul.f32 %v5322, %v5386
        %v5467 = vmul.f32 %v5323, %v5387
        %v5468 = vmul.f32 %v5324, %v5388
        %v5469 = vmul.f32 %v5325, %v5389
        %v5470 = vmul.f32 %v5326, %v5390
        %v5471 = vmul.f32 %v5327, %v5391
        %v5472 = vmul.f32 %v5328, %v5392
        %v5473 = vmul.f32 %v5329, %v5393
        %v5474 = vmul.f32 %v5330, %v5394
        %v5475 = vmul.f32 %v5331, %v5395
        %v5476 = vmul.f32 %v5332, %v5396
        %v5477 = vmul.f32 %v5333, %v5397
        %v5478 = vmul.f32 %v5334, %v5382
        %v5479 = vmul.f32 %v5335, %v5383
        %v5480 = vmul.f32 %v5336, %v5384
        %v5481 = vmul.f32 %v5337, %v5385
        %v5482 = vmul.f32 %v5338, %v5386
        %v5483 = vmul.f32 %v5339, %v5387
        %v5484 = vmul.f32 %v5340, %v5388
        %v5485 = vmul.f32 %v5341, %v5389
        %v5486 = vmul.f32 %v5342, %v5390
        %v5487 = vmul.f32 %v5343, %v5391
        %v5488 = vmul.f32 %v5344, %v5392
        %v5489 = vmul.f32 %v5345, %v5393
        %v5490 = vmul.f32 %v5346, %v5394
        %v5491 = vmul.f32 %v5347, %v5395
        %v5492 = vmul.f32 %v5348, %v5396
        %v5493 = vmul.f32 %v5349, %v5397
        %v5494 = vmul.f32 %v5350, %v5382
        %v5495 = vmul.f32 %v5351, %v5383
        %v5496 = vmul.f32 %v5352, %v5384
        %v5497 = vmul.f32 %v5353, %v5385
        %v5498 = vmul.f32 %v5354, %v5386
        %v5499 = vmul.f32 %v5355, %v5387
        %v5500 = vmul.f32 %v5356, %v5388
        %v5501 = vmul.f32 %v5357, %v5389
        %v5502 = vmul.f32 %v5358, %v5390
        %v5503 = vmul.f32 %v5359, %v5391
        %v5504 = vmul.f32 %v5360, %v5392
        %v5505 = vmul.f32 %v5361, %v5393
        %v5506 = vmul.f32 %v5362, %v5394
        %v5507 = vmul.f32 %v5363, %v5395
        %v5508 = vmul.f32 %v5364, %v5396
        %v5509 = vmul.f32 %v5365, %v5397
        %v5510 = vmul.f32 %v5366, %v5382
        %v5511 = vmul.f32 %v5367, %v5383
        %v5512 = vmul.f32 %v5368, %v5384
        %v5513 = vmul.f32 %v5369, %v5385
        %v5514 = vmul.f32 %v5370, %v5386
        %v5515 = vmul.f32 %v5371, %v5387
        %v5516 = vmul.f32 %v5372, %v5388
        %v5517 = vmul.f32 %v5373, %v5389
        %v5518 = vmul.f32 %v5374, %v5390
        %v5519 = vmul.f32 %v5375, %v5391
        %v5520 = vmul.f32 %v5376, %v5392
        %v5521 = vmul.f32 %v5377, %v5393
        %v5522 = vmul.f32 %v5378, %v5394
        %v5523 = vmul.f32 %v5379, %v5395
        %v5524 = vmul.f32 %v5380, %v5396
        %v5525 = vmul.f32 %v5381, %v5397
        %5526 = vadd.xlane.f32.xlu0 %v5398
        %v5527 = vpop.xlane.xlu0 %5526
        %5528 = vadd.xlane.f32.xlu0 %v5399
        %v5529 = vpop.xlane.xlu0 %5528
        %5530 = vadd.xlane.f32.xlu0 %v5400
        %v5531 = vpop.xlane.xlu0 %5530
        %5532 = vadd.xlane.f32.xlu0 %v5401
        %v5533 = vpop.xlane.xlu0 %5532
        %5534 = vadd.xlane.f32.xlu0 %v5402
        %v5535 = vpop.xlane.xlu0 %5534
        %5536 = vadd.xlane.f32.xlu0 %v5403
        %v5537 = vpop.xlane.xlu0 %5536
        %5538 = vadd.xlane.f32.xlu0 %v5404
        %v5539 = vpop.xlane.xlu0 %5538
        %5540 = vadd.xlane.f32.xlu0 %v5405
        %v5541 = vpop.xlane.xlu0 %5540
        %5542 = vadd.xlane.f32.xlu0 %v5406
        %v5543 = vpop.xlane.xlu0 %5542
        %5544 = vadd.xlane.f32.xlu0 %v5407
        %v5545 = vpop.xlane.xlu0 %5544
        %5546 = vadd.xlane.f32.xlu0 %v5408
        %v5547 = vpop.xlane.xlu0 %5546
        %5548 = vadd.xlane.f32.xlu0 %v5409
        %v5549 = vpop.xlane.xlu0 %5548
        %5550 = vadd.xlane.f32.xlu0 %v5410
        %v5551 = vpop.xlane.xlu0 %5550
        %5552 = vadd.xlane.f32.xlu0 %v5411
        %v5553 = vpop.xlane.xlu0 %5552
        %5554 = vadd.xlane.f32.xlu0 %v5412
        %v5555 = vpop.xlane.xlu0 %5554
        %5556 = vadd.xlane.f32.xlu0 %v5413
        %v5557 = vpop.xlane.xlu0 %5556
        %5558 = vadd.xlane.f32.xlu0 %v5414
        %v5559 = vpop.xlane.xlu0 %5558
        %5560 = vadd.xlane.f32.xlu0 %v5415
        %v5561 = vpop.xlane.xlu0 %5560
        %5562 = vadd.xlane.f32.xlu0 %v5416
        %v5563 = vpop.xlane.xlu0 %5562
        %5564 = vadd.xlane.f32.xlu0 %v5417
        %v5565 = vpop.xlane.xlu0 %5564
        %5566 = vadd.xlane.f32.xlu0 %v5418
        %v5567 = vpop.xlane.xlu0 %5566
        %5568 = vadd.xlane.f32.xlu0 %v5419
        %v5569 = vpop.xlane.xlu0 %5568
        %5570 = vadd.xlane.f32.xlu0 %v5420
        %v5571 = vpop.xlane.xlu0 %5570
        %5572 = vadd.xlane.f32.xlu0 %v5421
        %v5573 = vpop.xlane.xlu0 %5572
        %5574 = vadd.xlane.f32.xlu0 %v5422
        %v5575 = vpop.xlane.xlu0 %5574
        %5576 = vadd.xlane.f32.xlu0 %v5423
        %v5577 = vpop.xlane.xlu0 %5576
        %5578 = vadd.xlane.f32.xlu0 %v5424
        %v5579 = vpop.xlane.xlu0 %5578
        %5580 = vadd.xlane.f32.xlu0 %v5425
        %v5581 = vpop.xlane.xlu0 %5580
        %5582 = vadd.xlane.f32.xlu0 %v5426
        %v5583 = vpop.xlane.xlu0 %5582
        %5584 = vadd.xlane.f32.xlu0 %v5427
        %v5585 = vpop.xlane.xlu0 %5584
        %5586 = vadd.xlane.f32.xlu0 %v5428
        %v5587 = vpop.xlane.xlu0 %5586
        %5588 = vadd.xlane.f32.xlu0 %v5429
        %v5589 = vpop.xlane.xlu0 %5588
        %5590 = vadd.xlane.f32.xlu0 %v5430
        %v5591 = vpop.xlane.xlu0 %5590
        %5592 = vadd.xlane.f32.xlu0 %v5431
        %v5593 = vpop.xlane.xlu0 %5592
        %5594 = vadd.xlane.f32.xlu0 %v5432
        %v5595 = vpop.xlane.xlu0 %5594
        %5596 = vadd.xlane.f32.xlu0 %v5433
        %v5597 = vpop.xlane.xlu0 %5596
        %5598 = vadd.xlane.f32.xlu0 %v5434
        %v5599 = vpop.xlane.xlu0 %5598
        %5600 = vadd.xlane.f32.xlu0 %v5435
        %v5601 = vpop.xlane.xlu0 %5600
        %5602 = vadd.xlane.f32.xlu0 %v5436
        %v5603 = vpop.xlane.xlu0 %5602
        %5604 = vadd.xlane.f32.xlu0 %v5437
        %v5605 = vpop.xlane.xlu0 %5604
        %5606 = vadd.xlane.f32.xlu0 %v5438
        %v5607 = vpop.xlane.xlu0 %5606
        %5608 = vadd.xlane.f32.xlu0 %v5439
        %v5609 = vpop.xlane.xlu0 %5608
        %5610 = vadd.xlane.f32.xlu0 %v5440
        %v5611 = vpop.xlane.xlu0 %5610
        %5612 = vadd.xlane.f32.xlu0 %v5441
        %v5613 = vpop.xlane.xlu0 %5612
        %5614 = vadd.xlane.f32.xlu0 %v5442
        %v5615 = vpop.xlane.xlu0 %5614
        %5616 = vadd.xlane.f32.xlu0 %v5443
        %v5617 = vpop.xlane.xlu0 %5616
        %5618 = vadd.xlane.f32.xlu0 %v5444
        %v5619 = vpop.xlane.xlu0 %5618
        %5620 = vadd.xlane.f32.xlu0 %v5445
        %v5621 = vpop.xlane.xlu0 %5620
        %5622 = vadd.xlane.f32.xlu0 %v5446
        %v5623 = vpop.xlane.xlu0 %5622
        %5624 = vadd.xlane.f32.xlu0 %v5447
        %v5625 = vpop.xlane.xlu0 %5624
        %5626 = vadd.xlane.f32.xlu0 %v5448
        %v5627 = vpop.xlane.xlu0 %5626
        %5628 = vadd.xlane.f32.xlu0 %v5449
        %v5629 = vpop.xlane.xlu0 %5628
        %5630 = vadd.xlane.f32.xlu0 %v5450
        %v5631 = vpop.xlane.xlu0 %5630
        %5632 = vadd.xlane.f32.xlu0 %v5451
        %v5633 = vpop.xlane.xlu0 %5632
        %5634 = vadd.xlane.f32.xlu0 %v5452
        %v5635 = vpop.xlane.xlu0 %5634
        %5636 = vadd.xlane.f32.xlu0 %v5453
        %v5637 = vpop.xlane.xlu0 %5636
        %5638 = vadd.xlane.f32.xlu0 %v5454
        %v5639 = vpop.xlane.xlu0 %5638
        %5640 = vadd.xlane.f32.xlu0 %v5455
        %v5641 = vpop.xlane.xlu0 %5640
        %5642 = vadd.xlane.f32.xlu0 %v5456
        %v5643 = vpop.xlane.xlu0 %5642
        %5644 = vadd.xlane.f32.xlu0 %v5457
        %v5645 = vpop.xlane.xlu0 %5644
        %5646 = vadd.xlane.f32.xlu0 %v5458
        %v5647 = vpop.xlane.xlu0 %5646
        %5648 = vadd.xlane.f32.xlu0 %v5459
        %v5649 = vpop.xlane.xlu0 %5648
        %5650 = vadd.xlane.f32.xlu0 %v5460
        %v5651 = vpop.xlane.xlu0 %5650
        %5652 = vadd.xlane.f32.xlu0 %v5461
        %v5653 = vpop.xlane.xlu0 %5652
        %5654 = vadd.xlane.f32.xlu0 %v5462
        %v5655 = vpop.xlane.xlu0 %5654
        %5656 = vadd.xlane.f32.xlu0 %v5463
        %v5657 = vpop.xlane.xlu0 %5656
        %5658 = vadd.xlane.f32.xlu0 %v5464
        %v5659 = vpop.xlane.xlu0 %5658
        %5660 = vadd.xlane.f32.xlu0 %v5465
        %v5661 = vpop.xlane.xlu0 %5660
        %5662 = vadd.xlane.f32.xlu0 %v5466
        %v5663 = vpop.xlane.xlu0 %5662
        %5664 = vadd.xlane.f32.xlu0 %v5467
        %v5665 = vpop.xlane.xlu0 %5664
        %5666 = vadd.xlane.f32.xlu0 %v5468
        %v5667 = vpop.xlane.xlu0 %5666
        %5668 = vadd.xlane.f32.xlu0 %v5469
        %v5669 = vpop.xlane.xlu0 %5668
        %5670 = vadd.xlane.f32.xlu0 %v5470
        %v5671 = vpop.xlane.xlu0 %5670
        %5672 = vadd.xlane.f32.xlu0 %v5471
        %v5673 = vpop.xlane.xlu0 %5672
        %5674 = vadd.xlane.f32.xlu0 %v5472
        %v5675 = vpop.xlane.xlu0 %5674
        %5676 = vadd.xlane.f32.xlu0 %v5473
        %v5677 = vpop.xlane.xlu0 %5676
        %5678 = vadd.xlane.f32.xlu0 %v5474
        %v5679 = vpop.xlane.xlu0 %5678
        %5680 = vadd.xlane.f32.xlu0 %v5475
        %v5681 = vpop.xlane.xlu0 %5680
        %5682 = vadd.xlane.f32.xlu0 %v5476
        %v5683 = vpop.xlane.xlu0 %5682
        %5684 = vadd.xlane.f32.xlu0 %v5477
        %v5685 = vpop.xlane.xlu0 %5684
        %5686 = vadd.xlane.f32.xlu0 %v5478
        %v5687 = vpop.xlane.xlu0 %5686
        %5688 = vadd.xlane.f32.xlu0 %v5479
        %v5689 = vpop.xlane.xlu0 %5688
        %5690 = vadd.xlane.f32.xlu0 %v5480
        %v5691 = vpop.xlane.xlu0 %5690
        %5692 = vadd.xlane.f32.xlu0 %v5481
        %v5693 = vpop.xlane.xlu0 %5692
        %5694 = vadd.xlane.f32.xlu0 %v5482
        %v5695 = vpop.xlane.xlu0 %5694
        %5696 = vadd.xlane.f32.xlu0 %v5483
        %v5697 = vpop.xlane.xlu0 %5696
        %5698 = vadd.xlane.f32.xlu0 %v5484
        %v5699 = vpop.xlane.xlu0 %5698
        %5700 = vadd.xlane.f32.xlu0 %v5485
        %v5701 = vpop.xlane.xlu0 %5700
        %5702 = vadd.xlane.f32.xlu0 %v5486
        %v5703 = vpop.xlane.xlu0 %5702
        %5704 = vadd.xlane.f32.xlu0 %v5487
        %v5705 = vpop.xlane.xlu0 %5704
        %5706 = vadd.xlane.f32.xlu0 %v5488
        %v5707 = vpop.xlane.xlu0 %5706
        %5708 = vadd.xlane.f32.xlu0 %v5489
        %v5709 = vpop.xlane.xlu0 %5708
        %5710 = vadd.xlane.f32.xlu0 %v5490
        %v5711 = vpop.xlane.xlu0 %5710
        %5712 = vadd.xlane.f32.xlu0 %v5491
        %v5713 = vpop.xlane.xlu0 %5712
        %5714 = vadd.xlane.f32.xlu0 %v5492
        %v5715 = vpop.xlane.xlu0 %5714
        %5716 = vadd.xlane.f32.xlu0 %v5493
        %v5717 = vpop.xlane.xlu0 %5716
        %5718 = vadd.xlane.f32.xlu0 %v5494
        %v5719 = vpop.xlane.xlu0 %5718
        %5720 = vadd.xlane.f32.xlu0 %v5495
        %v5721 = vpop.xlane.xlu0 %5720
        %5722 = vadd.xlane.f32.xlu0 %v5496
        %v5723 = vpop.xlane.xlu0 %5722
        %5724 = vadd.xlane.f32.xlu0 %v5497
        %v5725 = vpop.xlane.xlu0 %5724
        %5726 = vadd.xlane.f32.xlu0 %v5498
        %v5727 = vpop.xlane.xlu0 %5726
        %5728 = vadd.xlane.f32.xlu0 %v5499
        %v5729 = vpop.xlane.xlu0 %5728
        %5730 = vadd.xlane.f32.xlu0 %v5500
        %v5731 = vpop.xlane.xlu0 %5730
        %5732 = vadd.xlane.f32.xlu0 %v5501
        %v5733 = vpop.xlane.xlu0 %5732
        %5734 = vadd.xlane.f32.xlu0 %v5502
        %v5735 = vpop.xlane.xlu0 %5734
        %5736 = vadd.xlane.f32.xlu0 %v5503
        %v5737 = vpop.xlane.xlu0 %5736
        %5738 = vadd.xlane.f32.xlu0 %v5504
        %v5739 = vpop.xlane.xlu0 %5738
        %5740 = vadd.xlane.f32.xlu0 %v5505
        %v5741 = vpop.xlane.xlu0 %5740
        %5742 = vadd.xlane.f32.xlu0 %v5506
        %v5743 = vpop.xlane.xlu0 %5742
        %5744 = vadd.xlane.f32.xlu0 %v5507
        %v5745 = vpop.xlane.xlu0 %5744
        %5746 = vadd.xlane.f32.xlu0 %v5508
        %v5747 = vpop.xlane.xlu0 %5746
        %5748 = vadd.xlane.f32.xlu0 %v5509
        %v5749 = vpop.xlane.xlu0 %5748
        %5750 = vadd.xlane.f32.xlu0 %v5510
        %v5751 = vpop.xlane.xlu0 %5750
        %5752 = vadd.xlane.f32.xlu0 %v5511
        %v5753 = vpop.xlane.xlu0 %5752
        %5754 = vadd.xlane.f32.xlu0 %v5512
        %v5755 = vpop.xlane.xlu0 %5754
        %5756 = vadd.xlane.f32.xlu0 %v5513
        %v5757 = vpop.xlane.xlu0 %5756
        %5758 = vadd.xlane.f32.xlu0 %v5514
        %v5759 = vpop.xlane.xlu0 %5758
        %5760 = vadd.xlane.f32.xlu0 %v5515
        %v5761 = vpop.xlane.xlu0 %5760
        %5762 = vadd.xlane.f32.xlu0 %v5516
        %v5763 = vpop.xlane.xlu0 %5762
        %5764 = vadd.xlane.f32.xlu0 %v5517
        %v5765 = vpop.xlane.xlu0 %5764
        %5766 = vadd.xlane.f32.xlu0 %v5518
        %v5767 = vpop.xlane.xlu0 %5766
        %5768 = vadd.xlane.f32.xlu0 %v5519
        %v5769 = vpop.xlane.xlu0 %5768
        %5770 = vadd.xlane.f32.xlu0 %v5520
        %v5771 = vpop.xlane.xlu0 %5770
        %5772 = vadd.xlane.f32.xlu0 %v5521
        %v5773 = vpop.xlane.xlu0 %5772
        %5774 = vadd.xlane.f32.xlu0 %v5522
        %v5775 = vpop.xlane.xlu0 %5774
        %5776 = vadd.xlane.f32.xlu0 %v5523
        %v5777 = vpop.xlane.xlu0 %5776
        %5778 = vadd.xlane.f32.xlu0 %v5524
        %v5779 = vpop.xlane.xlu0 %5778
        %5780 = vadd.xlane.f32.xlu0 %v5525
        %v5781 = vpop.xlane.xlu0 %5780
        %v5782 = vld [vmem:[%s458] sm:$0x1]
        %v5784 = vlaneseq
        %v5785 = vshrl.u32 %v5784, 7
        %v5786 = vsub.s32 0, %v5785
        %v5787 = vrot.slane %v5782, %v5786
        %5789 = vbcast.lane.b32.xlu0 %v5787, 256
        %v5790 = vpop.permute.xlu0 %5789
        %s5792 = sor.u32 256, 8
        %5793 = vbcast.lane.b32.xlu0 %v5787, %s5792
        %v5794 = vpop.permute.xlu0 %5793
        %s5796 = sor.u32 256, 16
        %5797 = vbcast.lane.b32.xlu0 %v5787, %s5796
        %v5798 = vpop.permute.xlu0 %5797
        %s5800 = sor.u32 256, 24
        %5801 = vbcast.lane.b32.xlu0 %v5787, %s5800
        %v5802 = vpop.permute.xlu0 %5801
        %s5804 = sor.u32 256, 32
        %5805 = vbcast.lane.b32.xlu0 %v5787, %s5804
        %v5806 = vpop.permute.xlu0 %5805
        %s5808 = sor.u32 256, 40
        %5809 = vbcast.lane.b32.xlu0 %v5787, %s5808
        %v5810 = vpop.permute.xlu0 %5809
        %s5812 = sor.u32 256, 48
        %5813 = vbcast.lane.b32.xlu0 %v5787, %s5812
        %v5814 = vpop.permute.xlu0 %5813
        %s5816 = sor.u32 256, 56
        %5817 = vbcast.lane.b32.xlu0 %v5787, %s5816
        %v5818 = vpop.permute.xlu0 %5817
        %s5820 = sor.u32 256, 64
        %5821 = vbcast.lane.b32.xlu0 %v5787, %s5820
        %v5822 = vpop.permute.xlu0 %5821
        %s5824 = sor.u32 256, 72
        %5825 = vbcast.lane.b32.xlu0 %v5787, %s5824
        %v5826 = vpop.permute.xlu0 %5825
        %s5828 = sor.u32 256, 80
        %5829 = vbcast.lane.b32.xlu0 %v5787, %s5828
        %v5830 = vpop.permute.xlu0 %5829
        %s5832 = sor.u32 256, 88
        %5833 = vbcast.lane.b32.xlu0 %v5787, %s5832
        %v5834 = vpop.permute.xlu0 %5833
        %s5836 = sor.u32 256, 96
        %5837 = vbcast.lane.b32.xlu0 %v5787, %s5836
        %v5838 = vpop.permute.xlu0 %5837
        %s5840 = sor.u32 256, 104
        %5841 = vbcast.lane.b32.xlu0 %v5787, %s5840
        %v5842 = vpop.permute.xlu0 %5841
        %s5844 = sor.u32 256, 112
        %5845 = vbcast.lane.b32.xlu0 %v5787, %s5844
        %v5846 = vpop.permute.xlu0 %5845
        %s5848 = sor.u32 256, 120
        %5849 = vbcast.lane.b32.xlu0 %v5787, %s5848
        %v5850 = vpop.permute.xlu0 %5849
        %v5867 = vadd.f32 %v5527, %v5790
        %v5868 = vadd.f32 %v5529, %v5794
        %v5869 = vadd.f32 %v5531, %v5798
        %v5870 = vadd.f32 %v5533, %v5802
        %v5871 = vadd.f32 %v5535, %v5806
        %v5872 = vadd.f32 %v5537, %v5810
        %v5873 = vadd.f32 %v5539, %v5814
        %v5874 = vadd.f32 %v5541, %v5818
        %v5875 = vadd.f32 %v5543, %v5822
        %v5876 = vadd.f32 %v5545, %v5826
        %v5877 = vadd.f32 %v5547, %v5830
        %v5878 = vadd.f32 %v5549, %v5834
        %v5879 = vadd.f32 %v5551, %v5838
        %v5880 = vadd.f32 %v5553, %v5842
        %v5881 = vadd.f32 %v5555, %v5846
        %v5882 = vadd.f32 %v5557, %v5850
        %v5883 = vadd.f32 %v5559, %v5790
        %v5884 = vadd.f32 %v5561, %v5794
        %v5885 = vadd.f32 %v5563, %v5798
        %v5886 = vadd.f32 %v5565, %v5802
        %v5887 = vadd.f32 %v5567, %v5806
        %v5888 = vadd.f32 %v5569, %v5810
        %v5889 = vadd.f32 %v5571, %v5814
        %v5890 = vadd.f32 %v5573, %v5818
        %v5891 = vadd.f32 %v5575, %v5822
        %v5892 = vadd.f32 %v5577, %v5826
        %v5893 = vadd.f32 %v5579, %v5830
        %v5894 = vadd.f32 %v5581, %v5834
        %v5895 = vadd.f32 %v5583, %v5838
        %v5896 = vadd.f32 %v5585, %v5842
        %v5897 = vadd.f32 %v5587, %v5846
        %v5898 = vadd.f32 %v5589, %v5850
        %v5899 = vadd.f32 %v5591, %v5790
        %v5900 = vadd.f32 %v5593, %v5794
        %v5901 = vadd.f32 %v5595, %v5798
        %v5902 = vadd.f32 %v5597, %v5802
        %v5903 = vadd.f32 %v5599, %v5806
        %v5904 = vadd.f32 %v5601, %v5810
        %v5905 = vadd.f32 %v5603, %v5814
        %v5906 = vadd.f32 %v5605, %v5818
        %v5907 = vadd.f32 %v5607, %v5822
        %v5908 = vadd.f32 %v5609, %v5826
        %v5909 = vadd.f32 %v5611, %v5830
        %v5910 = vadd.f32 %v5613, %v5834
        %v5911 = vadd.f32 %v5615, %v5838
        %v5912 = vadd.f32 %v5617, %v5842
        %v5913 = vadd.f32 %v5619, %v5846
        %v5914 = vadd.f32 %v5621, %v5850
        %v5915 = vadd.f32 %v5623, %v5790
        %v5916 = vadd.f32 %v5625, %v5794
        %v5917 = vadd.f32 %v5627, %v5798
        %v5918 = vadd.f32 %v5629, %v5802
        %v5919 = vadd.f32 %v5631, %v5806
        %v5920 = vadd.f32 %v5633, %v5810
        %v5921 = vadd.f32 %v5635, %v5814
        %v5922 = vadd.f32 %v5637, %v5818
        %v5923 = vadd.f32 %v5639, %v5822
        %v5924 = vadd.f32 %v5641, %v5826
        %v5925 = vadd.f32 %v5643, %v5830
        %v5926 = vadd.f32 %v5645, %v5834
        %v5927 = vadd.f32 %v5647, %v5838
        %v5928 = vadd.f32 %v5649, %v5842
        %v5929 = vadd.f32 %v5651, %v5846
        %v5930 = vadd.f32 %v5653, %v5850
        %v5931 = vadd.f32 %v5655, %v5790
        %v5932 = vadd.f32 %v5657, %v5794
        %v5933 = vadd.f32 %v5659, %v5798
        %v5934 = vadd.f32 %v5661, %v5802
        %v5935 = vadd.f32 %v5663, %v5806
        %v5936 = vadd.f32 %v5665, %v5810
        %v5937 = vadd.f32 %v5667, %v5814
        %v5938 = vadd.f32 %v5669, %v5818
        %v5939 = vadd.f32 %v5671, %v5822
        %v5940 = vadd.f32 %v5673, %v5826
        %v5941 = vadd.f32 %v5675, %v5830
        %v5942 = vadd.f32 %v5677, %v5834
        %v5943 = vadd.f32 %v5679, %v5838
        %v5944 = vadd.f32 %v5681, %v5842
        %v5945 = vadd.f32 %v5683, %v5846
        %v5946 = vadd.f32 %v5685, %v5850
        %v5947 = vadd.f32 %v5687, %v5790
        %v5948 = vadd.f32 %v5689, %v5794
        %v5949 = vadd.f32 %v5691, %v5798
        %v5950 = vadd.f32 %v5693, %v5802
        %v5951 = vadd.f32 %v5695, %v5806
        %v5952 = vadd.f32 %v5697, %v5810
        %v5953 = vadd.f32 %v5699, %v5814
        %v5954 = vadd.f32 %v5701, %v5818
        %v5955 = vadd.f32 %v5703, %v5822
        %v5956 = vadd.f32 %v5705, %v5826
        %v5957 = vadd.f32 %v5707, %v5830
        %v5958 = vadd.f32 %v5709, %v5834
        %v5959 = vadd.f32 %v5711, %v5838
        %v5960 = vadd.f32 %v5713, %v5842
        %v5961 = vadd.f32 %v5715, %v5846
        %v5962 = vadd.f32 %v5717, %v5850
        %v5963 = vadd.f32 %v5719, %v5790
        %v5964 = vadd.f32 %v5721, %v5794
        %v5965 = vadd.f32 %v5723, %v5798
        %v5966 = vadd.f32 %v5725, %v5802
        %v5967 = vadd.f32 %v5727, %v5806
        %v5968 = vadd.f32 %v5729, %v5810
        %v5969 = vadd.f32 %v5731, %v5814
        %v5970 = vadd.f32 %v5733, %v5818
        %v5971 = vadd.f32 %v5735, %v5822
        %v5972 = vadd.f32 %v5737, %v5826
        %v5973 = vadd.f32 %v5739, %v5830
        %v5974 = vadd.f32 %v5741, %v5834
        %v5975 = vadd.f32 %v5743, %v5838
        %v5976 = vadd.f32 %v5745, %v5842
        %v5977 = vadd.f32 %v5747, %v5846
        %v5978 = vadd.f32 %v5749, %v5850
        %v5979 = vadd.f32 %v5751, %v5790
        %v5980 = vadd.f32 %v5753, %v5794
        %v5981 = vadd.f32 %v5755, %v5798
        %v5982 = vadd.f32 %v5757, %v5802
        %v5983 = vadd.f32 %v5759, %v5806
        %v5984 = vadd.f32 %v5761, %v5810
        %v5985 = vadd.f32 %v5763, %v5814
        %v5986 = vadd.f32 %v5765, %v5818
        %v5987 = vadd.f32 %v5767, %v5822
        %v5988 = vadd.f32 %v5769, %v5826
        %v5989 = vadd.f32 %v5771, %v5830
        %v5990 = vadd.f32 %v5773, %v5834
        %v5991 = vadd.f32 %v5775, %v5838
        %v5992 = vadd.f32 %v5777, %v5842
        %v5993 = vadd.f32 %v5779, %v5846
        %v5994 = vadd.f32 %v5781, %v5850
        %6123 = vset.pattern.permute.xlu0 0
        %6124 = vperm.xlu0 %6123, %v5867
        %v6125 = vpop.permute.xlu0 %6124
        %6126 = vset.pattern.permute.xlu0 0
        %6127 = vperm.xlu0 %6126, %v5868
        %v6128 = vpop.permute.xlu0 %6127
        %6129 = vset.pattern.permute.xlu0 0
        %6130 = vperm.xlu0 %6129, %v5869
        %v6131 = vpop.permute.xlu0 %6130
        %6132 = vset.pattern.permute.xlu0 0
        %6133 = vperm.xlu0 %6132, %v5870
        %v6134 = vpop.permute.xlu0 %6133
        %6135 = vset.pattern.permute.xlu0 0
        %6136 = vperm.xlu0 %6135, %v5871
        %v6137 = vpop.permute.xlu0 %6136
        %6138 = vset.pattern.permute.xlu0 0
        %6139 = vperm.xlu0 %6138, %v5872
        %v6140 = vpop.permute.xlu0 %6139
        %6141 = vset.pattern.permute.xlu0 0
        %6142 = vperm.xlu0 %6141, %v5873
        %v6143 = vpop.permute.xlu0 %6142
        %6144 = vset.pattern.permute.xlu0 0
        %6145 = vperm.xlu0 %6144, %v5874
        %v6146 = vpop.permute.xlu0 %6145
        %6147 = vset.pattern.permute.xlu0 0
        %6148 = vperm.xlu0 %6147, %v5875
        %v6149 = vpop.permute.xlu0 %6148
        %6150 = vset.pattern.permute.xlu0 0
        %6151 = vperm.xlu0 %6150, %v5876
        %v6152 = vpop.permute.xlu0 %6151
        %6153 = vset.pattern.permute.xlu0 0
        %6154 = vperm.xlu0 %6153, %v5877
        %v6155 = vpop.permute.xlu0 %6154
        %6156 = vset.pattern.permute.xlu0 0
        %6157 = vperm.xlu0 %6156, %v5878
        %v6158 = vpop.permute.xlu0 %6157
        %6159 = vset.pattern.permute.xlu0 0
        %6160 = vperm.xlu0 %6159, %v5879
        %v6161 = vpop.permute.xlu0 %6160
        %6162 = vset.pattern.permute.xlu0 0
        %6163 = vperm.xlu0 %6162, %v5880
        %v6164 = vpop.permute.xlu0 %6163
        %6165 = vset.pattern.permute.xlu0 0
        %6166 = vperm.xlu0 %6165, %v5881
        %v6167 = vpop.permute.xlu0 %6166
        %6168 = vset.pattern.permute.xlu0 0
        %6169 = vperm.xlu0 %6168, %v5882
        %v6170 = vpop.permute.xlu0 %6169
        %6171 = vset.pattern.permute.xlu0 0
        %6172 = vperm.xlu0 %6171, %v5883
        %v6173 = vpop.permute.xlu0 %6172
        %6174 = vset.pattern.permute.xlu0 0
        %6175 = vperm.xlu0 %6174, %v5884
        %v6176 = vpop.permute.xlu0 %6175
        %6177 = vset.pattern.permute.xlu0 0
        %6178 = vperm.xlu0 %6177, %v5885
        %v6179 = vpop.permute.xlu0 %6178
        %6180 = vset.pattern.permute.xlu0 0
        %6181 = vperm.xlu0 %6180, %v5886
        %v6182 = vpop.permute.xlu0 %6181
        %6183 = vset.pattern.permute.xlu0 0
        %6184 = vperm.xlu0 %6183, %v5887
        %v6185 = vpop.permute.xlu0 %6184
        %6186 = vset.pattern.permute.xlu0 0
        %6187 = vperm.xlu0 %6186, %v5888
        %v6188 = vpop.permute.xlu0 %6187
        %6189 = vset.pattern.permute.xlu0 0
        %6190 = vperm.xlu0 %6189, %v5889
        %v6191 = vpop.permute.xlu0 %6190
        %6192 = vset.pattern.permute.xlu0 0
        %6193 = vperm.xlu0 %6192, %v5890
        %v6194 = vpop.permute.xlu0 %6193
        %6195 = vset.pattern.permute.xlu0 0
        %6196 = vperm.xlu0 %6195, %v5891
        %v6197 = vpop.permute.xlu0 %6196
        %6198 = vset.pattern.permute.xlu0 0
        %6199 = vperm.xlu0 %6198, %v5892
        %v6200 = vpop.permute.xlu0 %6199
        %6201 = vset.pattern.permute.xlu0 0
        %6202 = vperm.xlu0 %6201, %v5893
        %v6203 = vpop.permute.xlu0 %6202
        %6204 = vset.pattern.permute.xlu0 0
        %6205 = vperm.xlu0 %6204, %v5894
        %v6206 = vpop.permute.xlu0 %6205
        %6207 = vset.pattern.permute.xlu0 0
        %6208 = vperm.xlu0 %6207, %v5895
        %v6209 = vpop.permute.xlu0 %6208
        %6210 = vset.pattern.permute.xlu0 0
        %6211 = vperm.xlu0 %6210, %v5896
        %v6212 = vpop.permute.xlu0 %6211
        %6213 = vset.pattern.permute.xlu0 0
        %6214 = vperm.xlu0 %6213, %v5897
        %v6215 = vpop.permute.xlu0 %6214
        %6216 = vset.pattern.permute.xlu0 0
        %6217 = vperm.xlu0 %6216, %v5898
        %v6218 = vpop.permute.xlu0 %6217
        %6219 = vset.pattern.permute.xlu0 0
        %6220 = vperm.xlu0 %6219, %v5899
        %v6221 = vpop.permute.xlu0 %6220
        %6222 = vset.pattern.permute.xlu0 0
        %6223 = vperm.xlu0 %6222, %v5900
        %v6224 = vpop.permute.xlu0 %6223
        %6225 = vset.pattern.permute.xlu0 0
        %6226 = vperm.xlu0 %6225, %v5901
        %v6227 = vpop.permute.xlu0 %6226
        %6228 = vset.pattern.permute.xlu0 0
        %6229 = vperm.xlu0 %6228, %v5902
        %v6230 = vpop.permute.xlu0 %6229
        %6231 = vset.pattern.permute.xlu0 0
        %6232 = vperm.xlu0 %6231, %v5903
        %v6233 = vpop.permute.xlu0 %6232
        %6234 = vset.pattern.permute.xlu0 0
        %6235 = vperm.xlu0 %6234, %v5904
        %v6236 = vpop.permute.xlu0 %6235
        %6237 = vset.pattern.permute.xlu0 0
        %6238 = vperm.xlu0 %6237, %v5905
        %v6239 = vpop.permute.xlu0 %6238
        %6240 = vset.pattern.permute.xlu0 0
        %6241 = vperm.xlu0 %6240, %v5906
        %v6242 = vpop.permute.xlu0 %6241
        %6243 = vset.pattern.permute.xlu0 0
        %6244 = vperm.xlu0 %6243, %v5907
        %v6245 = vpop.permute.xlu0 %6244
        %6246 = vset.pattern.permute.xlu0 0
        %6247 = vperm.xlu0 %6246, %v5908
        %v6248 = vpop.permute.xlu0 %6247
        %6249 = vset.pattern.permute.xlu0 0
        %6250 = vperm.xlu0 %6249, %v5909
        %v6251 = vpop.permute.xlu0 %6250
        %6252 = vset.pattern.permute.xlu0 0
        %6253 = vperm.xlu0 %6252, %v5910
        %v6254 = vpop.permute.xlu0 %6253
        %6255 = vset.pattern.permute.xlu0 0
        %6256 = vperm.xlu0 %6255, %v5911
        %v6257 = vpop.permute.xlu0 %6256
        %6258 = vset.pattern.permute.xlu0 0
        %6259 = vperm.xlu0 %6258, %v5912
        %v6260 = vpop.permute.xlu0 %6259
        %6261 = vset.pattern.permute.xlu0 0
        %6262 = vperm.xlu0 %6261, %v5913
        %v6263 = vpop.permute.xlu0 %6262
        %6264 = vset.pattern.permute.xlu0 0
        %6265 = vperm.xlu0 %6264, %v5914
        %v6266 = vpop.permute.xlu0 %6265
        %6267 = vset.pattern.permute.xlu0 0
        %6268 = vperm.xlu0 %6267, %v5915
        %v6269 = vpop.permute.xlu0 %6268
        %6270 = vset.pattern.permute.xlu0 0
        %6271 = vperm.xlu0 %6270, %v5916
        %v6272 = vpop.permute.xlu0 %6271
        %6273 = vset.pattern.permute.xlu0 0
        %6274 = vperm.xlu0 %6273, %v5917
        %v6275 = vpop.permute.xlu0 %6274
        %6276 = vset.pattern.permute.xlu0 0
        %6277 = vperm.xlu0 %6276, %v5918
        %v6278 = vpop.permute.xlu0 %6277
        %6279 = vset.pattern.permute.xlu0 0
        %6280 = vperm.xlu0 %6279, %v5919
        %v6281 = vpop.permute.xlu0 %6280
        %6282 = vset.pattern.permute.xlu0 0
        %6283 = vperm.xlu0 %6282, %v5920
        %v6284 = vpop.permute.xlu0 %6283
        %6285 = vset.pattern.permute.xlu0 0
        %6286 = vperm.xlu0 %6285, %v5921
        %v6287 = vpop.permute.xlu0 %6286
        %6288 = vset.pattern.permute.xlu0 0
        %6289 = vperm.xlu0 %6288, %v5922
        %v6290 = vpop.permute.xlu0 %6289
        %6291 = vset.pattern.permute.xlu0 0
        %6292 = vperm.xlu0 %6291, %v5923
        %v6293 = vpop.permute.xlu0 %6292
        %6294 = vset.pattern.permute.xlu0 0
        %6295 = vperm.xlu0 %6294, %v5924
        %v6296 = vpop.permute.xlu0 %6295
        %6297 = vset.pattern.permute.xlu0 0
        %6298 = vperm.xlu0 %6297, %v5925
        %v6299 = vpop.permute.xlu0 %6298
        %6300 = vset.pattern.permute.xlu0 0
        %6301 = vperm.xlu0 %6300, %v5926
        %v6302 = vpop.permute.xlu0 %6301
        %6303 = vset.pattern.permute.xlu0 0
        %6304 = vperm.xlu0 %6303, %v5927
        %v6305 = vpop.permute.xlu0 %6304
        %6306 = vset.pattern.permute.xlu0 0
        %6307 = vperm.xlu0 %6306, %v5928
        %v6308 = vpop.permute.xlu0 %6307
        %6309 = vset.pattern.permute.xlu0 0
        %6310 = vperm.xlu0 %6309, %v5929
        %v6311 = vpop.permute.xlu0 %6310
        %6312 = vset.pattern.permute.xlu0 0
        %6313 = vperm.xlu0 %6312, %v5930
        %v6314 = vpop.permute.xlu0 %6313
        %6315 = vset.pattern.permute.xlu0 0
        %6316 = vperm.xlu0 %6315, %v5931
        %v6317 = vpop.permute.xlu0 %6316
        %6318 = vset.pattern.permute.xlu0 0
        %6319 = vperm.xlu0 %6318, %v5932
        %v6320 = vpop.permute.xlu0 %6319
        %6321 = vset.pattern.permute.xlu0 0
        %6322 = vperm.xlu0 %6321, %v5933
        %v6323 = vpop.permute.xlu0 %6322
        %6324 = vset.pattern.permute.xlu0 0
        %6325 = vperm.xlu0 %6324, %v5934
        %v6326 = vpop.permute.xlu0 %6325
        %6327 = vset.pattern.permute.xlu0 0
        %6328 = vperm.xlu0 %6327, %v5935
        %v6329 = vpop.permute.xlu0 %6328
        %6330 = vset.pattern.permute.xlu0 0
        %6331 = vperm.xlu0 %6330, %v5936
        %v6332 = vpop.permute.xlu0 %6331
        %6333 = vset.pattern.permute.xlu0 0
        %6334 = vperm.xlu0 %6333, %v5937
        %v6335 = vpop.permute.xlu0 %6334
        %6336 = vset.pattern.permute.xlu0 0
        %6337 = vperm.xlu0 %6336, %v5938
        %v6338 = vpop.permute.xlu0 %6337
        %6339 = vset.pattern.permute.xlu0 0
        %6340 = vperm.xlu0 %6339, %v5939
        %v6341 = vpop.permute.xlu0 %6340
        %6342 = vset.pattern.permute.xlu0 0
        %6343 = vperm.xlu0 %6342, %v5940
        %v6344 = vpop.permute.xlu0 %6343
        %6345 = vset.pattern.permute.xlu0 0
        %6346 = vperm.xlu0 %6345, %v5941
        %v6347 = vpop.permute.xlu0 %6346
        %6348 = vset.pattern.permute.xlu0 0
        %6349 = vperm.xlu0 %6348, %v5942
        %v6350 = vpop.permute.xlu0 %6349
        %6351 = vset.pattern.permute.xlu0 0
        %6352 = vperm.xlu0 %6351, %v5943
        %v6353 = vpop.permute.xlu0 %6352
        %6354 = vset.pattern.permute.xlu0 0
        %6355 = vperm.xlu0 %6354, %v5944
        %v6356 = vpop.permute.xlu0 %6355
        %6357 = vset.pattern.permute.xlu0 0
        %6358 = vperm.xlu0 %6357, %v5945
        %v6359 = vpop.permute.xlu0 %6358
        %6360 = vset.pattern.permute.xlu0 0
        %6361 = vperm.xlu0 %6360, %v5946
        %v6362 = vpop.permute.xlu0 %6361
        %6363 = vset.pattern.permute.xlu0 0
        %6364 = vperm.xlu0 %6363, %v5947
        %v6365 = vpop.permute.xlu0 %6364
        %6366 = vset.pattern.permute.xlu0 0
        %6367 = vperm.xlu0 %6366, %v5948
        %v6368 = vpop.permute.xlu0 %6367
        %6369 = vset.pattern.permute.xlu0 0
        %6370 = vperm.xlu0 %6369, %v5949
        %v6371 = vpop.permute.xlu0 %6370
        %6372 = vset.pattern.permute.xlu0 0
        %6373 = vperm.xlu0 %6372, %v5950
        %v6374 = vpop.permute.xlu0 %6373
        %6375 = vset.pattern.permute.xlu0 0
        %6376 = vperm.xlu0 %6375, %v5951
        %v6377 = vpop.permute.xlu0 %6376
        %6378 = vset.pattern.permute.xlu0 0
        %6379 = vperm.xlu0 %6378, %v5952
        %v6380 = vpop.permute.xlu0 %6379
        %6381 = vset.pattern.permute.xlu0 0
        %6382 = vperm.xlu0 %6381, %v5953
        %v6383 = vpop.permute.xlu0 %6382
        %6384 = vset.pattern.permute.xlu0 0
        %6385 = vperm.xlu0 %6384, %v5954
        %v6386 = vpop.permute.xlu0 %6385
        %6387 = vset.pattern.permute.xlu0 0
        %6388 = vperm.xlu0 %6387, %v5955
        %v6389 = vpop.permute.xlu0 %6388
        %6390 = vset.pattern.permute.xlu0 0
        %6391 = vperm.xlu0 %6390, %v5956
        %v6392 = vpop.permute.xlu0 %6391
        %6393 = vset.pattern.permute.xlu0 0
        %6394 = vperm.xlu0 %6393, %v5957
        %v6395 = vpop.permute.xlu0 %6394
        %6396 = vset.pattern.permute.xlu0 0
        %6397 = vperm.xlu0 %6396, %v5958
        %v6398 = vpop.permute.xlu0 %6397
        %6399 = vset.pattern.permute.xlu0 0
        %6400 = vperm.xlu0 %6399, %v5959
        %v6401 = vpop.permute.xlu0 %6400
        %6402 = vset.pattern.permute.xlu0 0
        %6403 = vperm.xlu0 %6402, %v5960
        %v6404 = vpop.permute.xlu0 %6403
        %6405 = vset.pattern.permute.xlu0 0
        %6406 = vperm.xlu0 %6405, %v5961
        %v6407 = vpop.permute.xlu0 %6406
        %6408 = vset.pattern.permute.xlu0 0
        %6409 = vperm.xlu0 %6408, %v5962
        %v6410 = vpop.permute.xlu0 %6409
        %6411 = vset.pattern.permute.xlu0 0
        %6412 = vperm.xlu0 %6411, %v5963
        %v6413 = vpop.permute.xlu0 %6412
        %6414 = vset.pattern.permute.xlu0 0
        %6415 = vperm.xlu0 %6414, %v5964
        %v6416 = vpop.permute.xlu0 %6415
        %6417 = vset.pattern.permute.xlu0 0
        %6418 = vperm.xlu0 %6417, %v5965
        %v6419 = vpop.permute.xlu0 %6418
        %6420 = vset.pattern.permute.xlu0 0
        %6421 = vperm.xlu0 %6420, %v5966
        %v6422 = vpop.permute.xlu0 %6421
        %6423 = vset.pattern.permute.xlu0 0
        %6424 = vperm.xlu0 %6423, %v5967
        %v6425 = vpop.permute.xlu0 %6424
        %6426 = vset.pattern.permute.xlu0 0
        %6427 = vperm.xlu0 %6426, %v5968
        %v6428 = vpop.permute.xlu0 %6427
        %6429 = vset.pattern.permute.xlu0 0
        %6430 = vperm.xlu0 %6429, %v5969
        %v6431 = vpop.permute.xlu0 %6430
        %6432 = vset.pattern.permute.xlu0 0
        %6433 = vperm.xlu0 %6432, %v5970
        %v6434 = vpop.permute.xlu0 %6433
        %6435 = vset.pattern.permute.xlu0 0
        %6436 = vperm.xlu0 %6435, %v5971
        %v6437 = vpop.permute.xlu0 %6436
        %6438 = vset.pattern.permute.xlu0 0
        %6439 = vperm.xlu0 %6438, %v5972
        %v6440 = vpop.permute.xlu0 %6439
        %6441 = vset.pattern.permute.xlu0 0
        %6442 = vperm.xlu0 %6441, %v5973
        %v6443 = vpop.permute.xlu0 %6442
        %6444 = vset.pattern.permute.xlu0 0
        %6445 = vperm.xlu0 %6444, %v5974
        %v6446 = vpop.permute.xlu0 %6445
        %6447 = vset.pattern.permute.xlu0 0
        %6448 = vperm.xlu0 %6447, %v5975
        %v6449 = vpop.permute.xlu0 %6448
        %6450 = vset.pattern.permute.xlu0 0
        %6451 = vperm.xlu0 %6450, %v5976
        %v6452 = vpop.permute.xlu0 %6451
        %6453 = vset.pattern.permute.xlu0 0
        %6454 = vperm.xlu0 %6453, %v5977
        %v6455 = vpop.permute.xlu0 %6454
        %6456 = vset.pattern.permute.xlu0 0
        %6457 = vperm.xlu0 %6456, %v5978
        %v6458 = vpop.permute.xlu0 %6457
        %6459 = vset.pattern.permute.xlu0 0
        %6460 = vperm.xlu0 %6459, %v5979
        %v6461 = vpop.permute.xlu0 %6460
        %6462 = vset.pattern.permute.xlu0 0
        %6463 = vperm.xlu0 %6462, %v5980
        %v6464 = vpop.permute.xlu0 %6463
        %6465 = vset.pattern.permute.xlu0 0
        %6466 = vperm.xlu0 %6465, %v5981
        %v6467 = vpop.permute.xlu0 %6466
        %6468 = vset.pattern.permute.xlu0 0
        %6469 = vperm.xlu0 %6468, %v5982
        %v6470 = vpop.permute.xlu0 %6469
        %6471 = vset.pattern.permute.xlu0 0
        %6472 = vperm.xlu0 %6471, %v5983
        %v6473 = vpop.permute.xlu0 %6472
        %6474 = vset.pattern.permute.xlu0 0
        %6475 = vperm.xlu0 %6474, %v5984
        %v6476 = vpop.permute.xlu0 %6475
        %6477 = vset.pattern.permute.xlu0 0
        %6478 = vperm.xlu0 %6477, %v5985
        %v6479 = vpop.permute.xlu0 %6478
        %6480 = vset.pattern.permute.xlu0 0
        %6481 = vperm.xlu0 %6480, %v5986
        %v6482 = vpop.permute.xlu0 %6481
        %6483 = vset.pattern.permute.xlu0 0
        %6484 = vperm.xlu0 %6483, %v5987
        %v6485 = vpop.permute.xlu0 %6484
        %6486 = vset.pattern.permute.xlu0 0
        %6487 = vperm.xlu0 %6486, %v5988
        %v6488 = vpop.permute.xlu0 %6487
        %6489 = vset.pattern.permute.xlu0 0
        %6490 = vperm.xlu0 %6489, %v5989
        %v6491 = vpop.permute.xlu0 %6490
        %6492 = vset.pattern.permute.xlu0 0
        %6493 = vperm.xlu0 %6492, %v5990
        %v6494 = vpop.permute.xlu0 %6493
        %6495 = vset.pattern.permute.xlu0 0
        %6496 = vperm.xlu0 %6495, %v5991
        %v6497 = vpop.permute.xlu0 %6496
        %6498 = vset.pattern.permute.xlu0 0
        %6499 = vperm.xlu0 %6498, %v5992
        %v6500 = vpop.permute.xlu0 %6499
        %6501 = vset.pattern.permute.xlu0 0
        %6502 = vperm.xlu0 %6501, %v5993
        %v6503 = vpop.permute.xlu0 %6502
        %6504 = vset.pattern.permute.xlu0 0
        %6505 = vperm.xlu0 %6504, %v5994
        %v6506 = vpop.permute.xlu0 %6505
        %v6507 = vlaneseq
        %v6508 = vand.u32 %v6507, 127
        %v6509 = vlaneseq
        %v6510 = vshrl.u32 %v6509, 7
        %v6511 = vsub.s32 %v6508, %v6510
        %v6512 = vrot.slane %v6125, %v6511
        %v6513 = vadd.s32 %v6508, 4294967288
        %v6514 = vlaneseq
        %v6515 = vshrl.u32 %v6514, 7
        %v6516 = vsub.s32 %v6513, %v6515
        %v6517 = vrot.slane %v6128, %v6516
        %vm6518 = vcmask 130112
        %v6519 = vsel %vm6518, %v6517, %v6512
        %v6520 = vadd.s32 %v6508, 4294967280
        %v6521 = vlaneseq
        %v6522 = vshrl.u32 %v6521, 7
        %v6523 = vsub.s32 %v6520, %v6522
        %v6524 = vrot.slane %v6131, %v6523
        %vm6525 = vcmask 195712
        %v6526 = vsel %vm6525, %v6524, %v6519
        %v6527 = vadd.s32 %v6508, 4294967272
        %v6528 = vlaneseq
        %v6529 = vshrl.u32 %v6528, 7
        %v6530 = vsub.s32 %v6527, %v6529
        %v6531 = vrot.slane %v6134, %v6530
        %vm6532 = vcmask 261312
        %v6533 = vsel %vm6532, %v6531, %v6526
        %v6534 = vadd.s32 %v6508, 4294967264
        %v6535 = vlaneseq
        %v6536 = vshrl.u32 %v6535, 7
        %v6537 = vsub.s32 %v6534, %v6536
        %v6538 = vrot.slane %v6137, %v6537
        %vm6539 = vcmask 326912
        %v6540 = vsel %vm6539, %v6538, %v6533
        %v6541 = vadd.s32 %v6508, 4294967256
        %v6542 = vlaneseq
        %v6543 = vshrl.u32 %v6542, 7
        %v6544 = vsub.s32 %v6541, %v6543
        %v6545 = vrot.slane %v6140, %v6544
        %vm6546 = vcmask 392512
        %v6547 = vsel %vm6546, %v6545, %v6540
        %v6548 = vadd.s32 %v6508, 4294967248
        %v6549 = vlaneseq
        %v6550 = vshrl.u32 %v6549, 7
        %v6551 = vsub.s32 %v6548, %v6550
        %v6552 = vrot.slane %v6143, %v6551
        %vm6553 = vcmask 458112
        %v6554 = vsel %vm6553, %v6552, %v6547
        %v6555 = vadd.s32 %v6508, 4294967240
        %v6556 = vlaneseq
        %v6557 = vshrl.u32 %v6556, 7
        %v6558 = vsub.s32 %v6555, %v6557
        %v6559 = vrot.slane %v6146, %v6558
        %vm6560 = vcmask 523712
        %v6561 = vsel %vm6560, %v6559, %v6554
        %v6562 = vadd.s32 %v6508, 4294967232
        %v6563 = vlaneseq
        %v6564 = vshrl.u32 %v6563, 7
        %v6565 = vsub.s32 %v6562, %v6564
        %v6566 = vrot.slane %v6149, %v6565
        %vm6567 = vcmask 589312
        %v6568 = vsel %vm6567, %v6566, %v6561
        %v6569 = vadd.s32 %v6508, 4294967224
        %v6570 = vlaneseq
        %v6571 = vshrl.u32 %v6570, 7
        %v6572 = vsub.s32 %v6569, %v6571
        %v6573 = vrot.slane %v6152, %v6572
        %vm6574 = vcmask 654912
        %v6575 = vsel %vm6574, %v6573, %v6568
        %v6576 = vadd.s32 %v6508, 4294967216
        %v6577 = vlaneseq
        %v6578 = vshrl.u32 %v6577, 7
        %v6579 = vsub.s32 %v6576, %v6578
        %v6580 = vrot.slane %v6155, %v6579
        %vm6581 = vcmask 720512
        %v6582 = vsel %vm6581, %v6580, %v6575
        %v6583 = vadd.s32 %v6508, 4294967208
        %v6584 = vlaneseq
        %v6585 = vshrl.u32 %v6584, 7
        %v6586 = vsub.s32 %v6583, %v6585
        %v6587 = vrot.slane %v6158, %v6586
        %vm6588 = vcmask 786112
        %v6589 = vsel %vm6588, %v6587, %v6582
        %v6590 = vadd.s32 %v6508, 4294967200
        %v6591 = vlaneseq
        %v6592 = vshrl.u32 %v6591, 7
        %v6593 = vsub.s32 %v6590, %v6592
        %v6594 = vrot.slane %v6161, %v6593
        %vm6595 = vcmask 851712
        %v6596 = vsel %vm6595, %v6594, %v6589
        %v6597 = vadd.s32 %v6508, 4294967192
        %v6598 = vlaneseq
        %v6599 = vshrl.u32 %v6598, 7
        %v6600 = vsub.s32 %v6597, %v6599
        %v6601 = vrot.slane %v6164, %v6600
        %vm6602 = vcmask 917312
        %v6603 = vsel %vm6602, %v6601, %v6596
        %v6604 = vadd.s32 %v6508, 4294967184
        %v6605 = vlaneseq
        %v6606 = vshrl.u32 %v6605, 7
        %v6607 = vsub.s32 %v6604, %v6606
        %v6608 = vrot.slane %v6167, %v6607
        %vm6609 = vcmask 982912
        %v6610 = vsel %vm6609, %v6608, %v6603
        %v6611 = vadd.s32 %v6508, 4294967176
        %v6612 = vlaneseq
        %v6613 = vshrl.u32 %v6612, 7
        %v6614 = vsub.s32 %v6611, %v6613
        %v6615 = vrot.slane %v6170, %v6614
        %vm6616 = vcmask 1048512
        %v6617 = vsel %vm6616, %v6615, %v6610
        %v6618 = vlaneseq
        %v6619 = vshrl.u32 %v6618, 7
        %v6620 = vsub.s32 %v6508, %v6619
        %v6621 = vrot.slane %v6173, %v6620
        %v6622 = vlaneseq
        %v6623 = vshrl.u32 %v6622, 7
        %v6624 = vsub.s32 %v6513, %v6623
        %v6625 = vrot.slane %v6176, %v6624
        %v6626 = vsel %vm6518, %v6625, %v6621
        %v6627 = vlaneseq
        %v6628 = vshrl.u32 %v6627, 7
        %v6629 = vsub.s32 %v6520, %v6628
        %v6630 = vrot.slane %v6179, %v6629
        %v6631 = vsel %vm6525, %v6630, %v6626
        %v6632 = vlaneseq
        %v6633 = vshrl.u32 %v6632, 7
        %v6634 = vsub.s32 %v6527, %v6633
        %v6635 = vrot.slane %v6182, %v6634
        %v6636 = vsel %vm6532, %v6635, %v6631
        %v6637 = vlaneseq
        %v6638 = vshrl.u32 %v6637, 7
        %v6639 = vsub.s32 %v6534, %v6638
        %v6640 = vrot.slane %v6185, %v6639
        %v6641 = vsel %vm6539, %v6640, %v6636
        %v6642 = vlaneseq
        %v6643 = vshrl.u32 %v6642, 7
        %v6644 = vsub.s32 %v6541, %v6643
        %v6645 = vrot.slane %v6188, %v6644
        %v6646 = vsel %vm6546, %v6645, %v6641
        %v6647 = vlaneseq
        %v6648 = vshrl.u32 %v6647, 7
        %v6649 = vsub.s32 %v6548, %v6648
        %v6650 = vrot.slane %v6191, %v6649
        %v6651 = vsel %vm6553, %v6650, %v6646
        %v6652 = vlaneseq
        %v6653 = vshrl.u32 %v6652, 7
        %v6654 = vsub.s32 %v6555, %v6653
        %v6655 = vrot.slane %v6194, %v6654
        %v6656 = vsel %vm6560, %v6655, %v6651
        %v6657 = vlaneseq
        %v6658 = vshrl.u32 %v6657, 7
        %v6659 = vsub.s32 %v6562, %v6658
        %v6660 = vrot.slane %v6197, %v6659
        %v6661 = vsel %vm6567, %v6660, %v6656
        %v6662 = vlaneseq
        %v6663 = vshrl.u32 %v6662, 7
        %v6664 = vsub.s32 %v6569, %v6663
        %v6665 = vrot.slane %v6200, %v6664
        %v6666 = vsel %vm6574, %v6665, %v6661
        %v6667 = vlaneseq
        %v6668 = vshrl.u32 %v6667, 7
        %v6669 = vsub.s32 %v6576, %v6668
        %v6670 = vrot.slane %v6203, %v6669
        %v6671 = vsel %vm6581, %v6670, %v6666
        %v6672 = vlaneseq
        %v6673 = vshrl.u32 %v6672, 7
        %v6674 = vsub.s32 %v6583, %v6673
        %v6675 = vrot.slane %v6206, %v6674
        %v6676 = vsel %vm6588, %v6675, %v6671
        %v6677 = vlaneseq
        %v6678 = vshrl.u32 %v6677, 7
        %v6679 = vsub.s32 %v6590, %v6678
        %v6680 = vrot.slane %v6209, %v6679
        %v6681 = vsel %vm6595, %v6680, %v6676
        %v6682 = vlaneseq
        %v6683 = vshrl.u32 %v6682, 7
        %v6684 = vsub.s32 %v6597, %v6683
        %v6685 = vrot.slane %v6212, %v6684
        %v6686 = vsel %vm6602, %v6685, %v6681
        %v6687 = vlaneseq
        %v6688 = vshrl.u32 %v6687, 7
        %v6689 = vsub.s32 %v6604, %v6688
        %v6690 = vrot.slane %v6215, %v6689
        %v6691 = vsel %vm6609, %v6690, %v6686
        %v6692 = vlaneseq
        %v6693 = vshrl.u32 %v6692, 7
        %v6694 = vsub.s32 %v6611, %v6693
        %v6695 = vrot.slane %v6218, %v6694
        %v6696 = vsel %vm6616, %v6695, %v6691
        %v6697 = vlaneseq
        %v6698 = vshrl.u32 %v6697, 7
        %v6699 = vsub.s32 %v6508, %v6698
        %v6700 = vrot.slane %v6221, %v6699
        %v6701 = vlaneseq
        %v6702 = vshrl.u32 %v6701, 7
        %v6703 = vsub.s32 %v6513, %v6702
        %v6704 = vrot.slane %v6224, %v6703
        %v6705 = vsel %vm6518, %v6704, %v6700
        %v6706 = vlaneseq
        %v6707 = vshrl.u32 %v6706, 7
        %v6708 = vsub.s32 %v6520, %v6707
        %v6709 = vrot.slane %v6227, %v6708
        %v6710 = vsel %vm6525, %v6709, %v6705
        %v6711 = vlaneseq
        %v6712 = vshrl.u32 %v6711, 7
        %v6713 = vsub.s32 %v6527, %v6712
        %v6714 = vrot.slane %v6230, %v6713
        %v6715 = vsel %vm6532, %v6714, %v6710
        %v6716 = vlaneseq
        %v6717 = vshrl.u32 %v6716, 7
        %v6718 = vsub.s32 %v6534, %v6717
        %v6719 = vrot.slane %v6233, %v6718
        %v6720 = vsel %vm6539, %v6719, %v6715
        %v6721 = vlaneseq
        %v6722 = vshrl.u32 %v6721, 7
        %v6723 = vsub.s32 %v6541, %v6722
        %v6724 = vrot.slane %v6236, %v6723
        %v6725 = vsel %vm6546, %v6724, %v6720
        %v6726 = vlaneseq
        %v6727 = vshrl.u32 %v6726, 7
        %v6728 = vsub.s32 %v6548, %v6727
        %v6729 = vrot.slane %v6239, %v6728
        %v6730 = vsel %vm6553, %v6729, %v6725
        %v6731 = vlaneseq
        %v6732 = vshrl.u32 %v6731, 7
        %v6733 = vsub.s32 %v6555, %v6732
        %v6734 = vrot.slane %v6242, %v6733
        %v6735 = vsel %vm6560, %v6734, %v6730
        %v6736 = vlaneseq
        %v6737 = vshrl.u32 %v6736, 7
        %v6738 = vsub.s32 %v6562, %v6737
        %v6739 = vrot.slane %v6245, %v6738
        %v6740 = vsel %vm6567, %v6739, %v6735
        %v6741 = vlaneseq
        %v6742 = vshrl.u32 %v6741, 7
        %v6743 = vsub.s32 %v6569, %v6742
        %v6744 = vrot.slane %v6248, %v6743
        %v6745 = vsel %vm6574, %v6744, %v6740
        %v6746 = vlaneseq
        %v6747 = vshrl.u32 %v6746, 7
        %v6748 = vsub.s32 %v6576, %v6747
        %v6749 = vrot.slane %v6251, %v6748
        %v6750 = vsel %vm6581, %v6749, %v6745
        %v6751 = vlaneseq
        %v6752 = vshrl.u32 %v6751, 7
        %v6753 = vsub.s32 %v6583, %v6752
        %v6754 = vrot.slane %v6254, %v6753
        %v6755 = vsel %vm6588, %v6754, %v6750
        %v6756 = vlaneseq
        %v6757 = vshrl.u32 %v6756, 7
        %v6758 = vsub.s32 %v6590, %v6757
        %v6759 = vrot.slane %v6257, %v6758
        %v6760 = vsel %vm6595, %v6759, %v6755
        %v6761 = vlaneseq
        %v6762 = vshrl.u32 %v6761, 7
        %v6763 = vsub.s32 %v6597, %v6762
        %v6764 = vrot.slane %v6260, %v6763
        %v6765 = vsel %vm6602, %v6764, %v6760
        %v6766 = vlaneseq
        %v6767 = vshrl.u32 %v6766, 7
        %v6768 = vsub.s32 %v6604, %v6767
        %v6769 = vrot.slane %v6263, %v6768
        %v6770 = vsel %vm6609, %v6769, %v6765
        %v6771 = vlaneseq
        %v6772 = vshrl.u32 %v6771, 7
        %v6773 = vsub.s32 %v6611, %v6772
        %v6774 = vrot.slane %v6266, %v6773
        %v6775 = vsel %vm6616, %v6774, %v6770
        %v6776 = vlaneseq
        %v6777 = vshrl.u32 %v6776, 7
        %v6778 = vsub.s32 %v6508, %v6777
        %v6779 = vrot.slane %v6269, %v6778
        %v6780 = vlaneseq
        %v6781 = vshrl.u32 %v6780, 7
        %v6782 = vsub.s32 %v6513, %v6781
        %v6783 = vrot.slane %v6272, %v6782
        %v6784 = vsel %vm6518, %v6783, %v6779
        %v6785 = vlaneseq
        %v6786 = vshrl.u32 %v6785, 7
        %v6787 = vsub.s32 %v6520, %v6786
        %v6788 = vrot.slane %v6275, %v6787
        %v6789 = vsel %vm6525, %v6788, %v6784
        %v6790 = vlaneseq
        %v6791 = vshrl.u32 %v6790, 7
        %v6792 = vsub.s32 %v6527, %v6791
        %v6793 = vrot.slane %v6278, %v6792
        %v6794 = vsel %vm6532, %v6793, %v6789
        %v6795 = vlaneseq
        %v6796 = vshrl.u32 %v6795, 7
        %v6797 = vsub.s32 %v6534, %v6796
        %v6798 = vrot.slane %v6281, %v6797
        %v6799 = vsel %vm6539, %v6798, %v6794
        %v6800 = vlaneseq
        %v6801 = vshrl.u32 %v6800, 7
        %v6802 = vsub.s32 %v6541, %v6801
        %v6803 = vrot.slane %v6284, %v6802
        %v6804 = vsel %vm6546, %v6803, %v6799
        %v6805 = vlaneseq
        %v6806 = vshrl.u32 %v6805, 7
        %v6807 = vsub.s32 %v6548, %v6806
        %v6808 = vrot.slane %v6287, %v6807
        %v6809 = vsel %vm6553, %v6808, %v6804
        %v6810 = vlaneseq
        %v6811 = vshrl.u32 %v6810, 7
        %v6812 = vsub.s32 %v6555, %v6811
        %v6813 = vrot.slane %v6290, %v6812
        %v6814 = vsel %vm6560, %v6813, %v6809
        %v6815 = vlaneseq
        %v6816 = vshrl.u32 %v6815, 7
        %v6817 = vsub.s32 %v6562, %v6816
        %v6818 = vrot.slane %v6293, %v6817
        %v6819 = vsel %vm6567, %v6818, %v6814
        %v6820 = vlaneseq
        %v6821 = vshrl.u32 %v6820, 7
        %v6822 = vsub.s32 %v6569, %v6821
        %v6823 = vrot.slane %v6296, %v6822
        %v6824 = vsel %vm6574, %v6823, %v6819
        %v6825 = vlaneseq
        %v6826 = vshrl.u32 %v6825, 7
        %v6827 = vsub.s32 %v6576, %v6826
        %v6828 = vrot.slane %v6299, %v6827
        %v6829 = vsel %vm6581, %v6828, %v6824
        %v6830 = vlaneseq
        %v6831 = vshrl.u32 %v6830, 7
        %v6832 = vsub.s32 %v6583, %v6831
        %v6833 = vrot.slane %v6302, %v6832
        %v6834 = vsel %vm6588, %v6833, %v6829
        %v6835 = vlaneseq
        %v6836 = vshrl.u32 %v6835, 7
        %v6837 = vsub.s32 %v6590, %v6836
        %v6838 = vrot.slane %v6305, %v6837
        %v6839 = vsel %vm6595, %v6838, %v6834
        %v6840 = vlaneseq
        %v6841 = vshrl.u32 %v6840, 7
        %v6842 = vsub.s32 %v6597, %v6841
        %v6843 = vrot.slane %v6308, %v6842
        %v6844 = vsel %vm6602, %v6843, %v6839
        %v6845 = vlaneseq
        %v6846 = vshrl.u32 %v6845, 7
        %v6847 = vsub.s32 %v6604, %v6846
        %v6848 = vrot.slane %v6311, %v6847
        %v6849 = vsel %vm6609, %v6848, %v6844
        %v6850 = vlaneseq
        %v6851 = vshrl.u32 %v6850, 7
        %v6852 = vsub.s32 %v6611, %v6851
        %v6853 = vrot.slane %v6314, %v6852
        %v6854 = vsel %vm6616, %v6853, %v6849
        %v6855 = vlaneseq
        %v6856 = vshrl.u32 %v6855, 7
        %v6857 = vsub.s32 %v6508, %v6856
        %v6858 = vrot.slane %v6317, %v6857
        %v6859 = vlaneseq
        %v6860 = vshrl.u32 %v6859, 7
        %v6861 = vsub.s32 %v6513, %v6860
        %v6862 = vrot.slane %v6320, %v6861
        %v6863 = vsel %vm6518, %v6862, %v6858
        %v6864 = vlaneseq
        %v6865 = vshrl.u32 %v6864, 7
        %v6866 = vsub.s32 %v6520, %v6865
        %v6867 = vrot.slane %v6323, %v6866
        %v6868 = vsel %vm6525, %v6867, %v6863
        %v6869 = vlaneseq
        %v6870 = vshrl.u32 %v6869, 7
        %v6871 = vsub.s32 %v6527, %v6870
        %v6872 = vrot.slane %v6326, %v6871
        %v6873 = vsel %vm6532, %v6872, %v6868
        %v6874 = vlaneseq
        %v6875 = vshrl.u32 %v6874, 7
        %v6876 = vsub.s32 %v6534, %v6875
        %v6877 = vrot.slane %v6329, %v6876
        %v6878 = vsel %vm6539, %v6877, %v6873
        %v6879 = vlaneseq
        %v6880 = vshrl.u32 %v6879, 7
        %v6881 = vsub.s32 %v6541, %v6880
        %v6882 = vrot.slane %v6332, %v6881
        %v6883 = vsel %vm6546, %v6882, %v6878
        %v6884 = vlaneseq
        %v6885 = vshrl.u32 %v6884, 7
        %v6886 = vsub.s32 %v6548, %v6885
        %v6887 = vrot.slane %v6335, %v6886
        %v6888 = vsel %vm6553, %v6887, %v6883
        %v6889 = vlaneseq
        %v6890 = vshrl.u32 %v6889, 7
        %v6891 = vsub.s32 %v6555, %v6890
        %v6892 = vrot.slane %v6338, %v6891
        %v6893 = vsel %vm6560, %v6892, %v6888
        %v6894 = vlaneseq
        %v6895 = vshrl.u32 %v6894, 7
        %v6896 = vsub.s32 %v6562, %v6895
        %v6897 = vrot.slane %v6341, %v6896
        %v6898 = vsel %vm6567, %v6897, %v6893
        %v6899 = vlaneseq
        %v6900 = vshrl.u32 %v6899, 7
        %v6901 = vsub.s32 %v6569, %v6900
        %v6902 = vrot.slane %v6344, %v6901
        %v6903 = vsel %vm6574, %v6902, %v6898
        %v6904 = vlaneseq
        %v6905 = vshrl.u32 %v6904, 7
        %v6906 = vsub.s32 %v6576, %v6905
        %v6907 = vrot.slane %v6347, %v6906
        %v6908 = vsel %vm6581, %v6907, %v6903
        %v6909 = vlaneseq
        %v6910 = vshrl.u32 %v6909, 7
        %v6911 = vsub.s32 %v6583, %v6910
        %v6912 = vrot.slane %v6350, %v6911
        %v6913 = vsel %vm6588, %v6912, %v6908
        %v6914 = vlaneseq
        %v6915 = vshrl.u32 %v6914, 7
        %v6916 = vsub.s32 %v6590, %v6915
        %v6917 = vrot.slane %v6353, %v6916
        %v6918 = vsel %vm6595, %v6917, %v6913
        %v6919 = vlaneseq
        %v6920 = vshrl.u32 %v6919, 7
        %v6921 = vsub.s32 %v6597, %v6920
        %v6922 = vrot.slane %v6356, %v6921
        %v6923 = vsel %vm6602, %v6922, %v6918
        %v6924 = vlaneseq
        %v6925 = vshrl.u32 %v6924, 7
        %v6926 = vsub.s32 %v6604, %v6925
        %v6927 = vrot.slane %v6359, %v6926
        %v6928 = vsel %vm6609, %v6927, %v6923
        %v6929 = vlaneseq
        %v6930 = vshrl.u32 %v6929, 7
        %v6931 = vsub.s32 %v6611, %v6930
        %v6932 = vrot.slane %v6362, %v6931
        %v6933 = vsel %vm6616, %v6932, %v6928
        %v6934 = vlaneseq
        %v6935 = vshrl.u32 %v6934, 7
        %v6936 = vsub.s32 %v6508, %v6935
        %v6937 = vrot.slane %v6365, %v6936
        %v6938 = vlaneseq
        %v6939 = vshrl.u32 %v6938, 7
        %v6940 = vsub.s32 %v6513, %v6939
        %v6941 = vrot.slane %v6368, %v6940
        %v6942 = vsel %vm6518, %v6941, %v6937
        %v6943 = vlaneseq
        %v6944 = vshrl.u32 %v6943, 7
        %v6945 = vsub.s32 %v6520, %v6944
        %v6946 = vrot.slane %v6371, %v6945
        %v6947 = vsel %vm6525, %v6946, %v6942
        %v6948 = vlaneseq
        %v6949 = vshrl.u32 %v6948, 7
        %v6950 = vsub.s32 %v6527, %v6949
        %v6951 = vrot.slane %v6374, %v6950
        %v6952 = vsel %vm6532, %v6951, %v6947
        %v6953 = vlaneseq
        %v6954 = vshrl.u32 %v6953, 7
        %v6955 = vsub.s32 %v6534, %v6954
        %v6956 = vrot.slane %v6377, %v6955
        %v6957 = vsel %vm6539, %v6956, %v6952
        %v6958 = vlaneseq
        %v6959 = vshrl.u32 %v6958, 7
        %v6960 = vsub.s32 %v6541, %v6959
        %v6961 = vrot.slane %v6380, %v6960
        %v6962 = vsel %vm6546, %v6961, %v6957
        %v6963 = vlaneseq
        %v6964 = vshrl.u32 %v6963, 7
        %v6965 = vsub.s32 %v6548, %v6964
        %v6966 = vrot.slane %v6383, %v6965
        %v6967 = vsel %vm6553, %v6966, %v6962
        %v6968 = vlaneseq
        %v6969 = vshrl.u32 %v6968, 7
        %v6970 = vsub.s32 %v6555, %v6969
        %v6971 = vrot.slane %v6386, %v6970
        %v6972 = vsel %vm6560, %v6971, %v6967
        %v6973 = vlaneseq
        %v6974 = vshrl.u32 %v6973, 7
        %v6975 = vsub.s32 %v6562, %v6974
        %v6976 = vrot.slane %v6389, %v6975
        %v6977 = vsel %vm6567, %v6976, %v6972
        %v6978 = vlaneseq
        %v6979 = vshrl.u32 %v6978, 7
        %v6980 = vsub.s32 %v6569, %v6979
        %v6981 = vrot.slane %v6392, %v6980
        %v6982 = vsel %vm6574, %v6981, %v6977
        %v6983 = vlaneseq
        %v6984 = vshrl.u32 %v6983, 7
        %v6985 = vsub.s32 %v6576, %v6984
        %v6986 = vrot.slane %v6395, %v6985
        %v6987 = vsel %vm6581, %v6986, %v6982
        %v6988 = vlaneseq
        %v6989 = vshrl.u32 %v6988, 7
        %v6990 = vsub.s32 %v6583, %v6989
        %v6991 = vrot.slane %v6398, %v6990
        %v6992 = vsel %vm6588, %v6991, %v6987
        %v6993 = vlaneseq
        %v6994 = vshrl.u32 %v6993, 7
        %v6995 = vsub.s32 %v6590, %v6994
        %v6996 = vrot.slane %v6401, %v6995
        %v6997 = vsel %vm6595, %v6996, %v6992
        %v6998 = vlaneseq
        %v6999 = vshrl.u32 %v6998, 7
        %v7000 = vsub.s32 %v6597, %v6999
        %v7001 = vrot.slane %v6404, %v7000
        %v7002 = vsel %vm6602, %v7001, %v6997
        %v7003 = vlaneseq
        %v7004 = vshrl.u32 %v7003, 7
        %v7005 = vsub.s32 %v6604, %v7004
        %v7006 = vrot.slane %v6407, %v7005
        %v7007 = vsel %vm6609, %v7006, %v7002
        %v7008 = vlaneseq
        %v7009 = vshrl.u32 %v7008, 7
        %v7010 = vsub.s32 %v6611, %v7009
        %v7011 = vrot.slane %v6410, %v7010
        %v7012 = vsel %vm6616, %v7011, %v7007
        %v7013 = vlaneseq
        %v7014 = vshrl.u32 %v7013, 7
        %v7015 = vsub.s32 %v6508, %v7014
        %v7016 = vrot.slane %v6413, %v7015
        %v7017 = vlaneseq
        %v7018 = vshrl.u32 %v7017, 7
        %v7019 = vsub.s32 %v6513, %v7018
        %v7020 = vrot.slane %v6416, %v7019
        %v7021 = vsel %vm6518, %v7020, %v7016
        %v7022 = vlaneseq
        %v7023 = vshrl.u32 %v7022, 7
        %v7024 = vsub.s32 %v6520, %v7023
        %v7025 = vrot.slane %v6419, %v7024
        %v7026 = vsel %vm6525, %v7025, %v7021
        %v7027 = vlaneseq
        %v7028 = vshrl.u32 %v7027, 7
        %v7029 = vsub.s32 %v6527, %v7028
        %v7030 = vrot.slane %v6422, %v7029
        %v7031 = vsel %vm6532, %v7030, %v7026
        %v7032 = vlaneseq
        %v7033 = vshrl.u32 %v7032, 7
        %v7034 = vsub.s32 %v6534, %v7033
        %v7035 = vrot.slane %v6425, %v7034
        %v7036 = vsel %vm6539, %v7035, %v7031
        %v7037 = vlaneseq
        %v7038 = vshrl.u32 %v7037, 7
        %v7039 = vsub.s32 %v6541, %v7038
        %v7040 = vrot.slane %v6428, %v7039
        %v7041 = vsel %vm6546, %v7040, %v7036
        %v7042 = vlaneseq
        %v7043 = vshrl.u32 %v7042, 7
        %v7044 = vsub.s32 %v6548, %v7043
        %v7045 = vrot.slane %v6431, %v7044
        %v7046 = vsel %vm6553, %v7045, %v7041
        %v7047 = vlaneseq
        %v7048 = vshrl.u32 %v7047, 7
        %v7049 = vsub.s32 %v6555, %v7048
        %v7050 = vrot.slane %v6434, %v7049
        %v7051 = vsel %vm6560, %v7050, %v7046
        %v7052 = vlaneseq
        %v7053 = vshrl.u32 %v7052, 7
        %v7054 = vsub.s32 %v6562, %v7053
        %v7055 = vrot.slane %v6437, %v7054
        %v7056 = vsel %vm6567, %v7055, %v7051
        %v7057 = vlaneseq
        %v7058 = vshrl.u32 %v7057, 7
        %v7059 = vsub.s32 %v6569, %v7058
        %v7060 = vrot.slane %v6440, %v7059
        %v7061 = vsel %vm6574, %v7060, %v7056
        %v7062 = vlaneseq
        %v7063 = vshrl.u32 %v7062, 7
        %v7064 = vsub.s32 %v6576, %v7063
        %v7065 = vrot.slane %v6443, %v7064
        %v7066 = vsel %vm6581, %v7065, %v7061
        %v7067 = vlaneseq
        %v7068 = vshrl.u32 %v7067, 7
        %v7069 = vsub.s32 %v6583, %v7068
        %v7070 = vrot.slane %v6446, %v7069
        %v7071 = vsel %vm6588, %v7070, %v7066
        %v7072 = vlaneseq
        %v7073 = vshrl.u32 %v7072, 7
        %v7074 = vsub.s32 %v6590, %v7073
        %v7075 = vrot.slane %v6449, %v7074
        %v7076 = vsel %vm6595, %v7075, %v7071
        %v7077 = vlaneseq
        %v7078 = vshrl.u32 %v7077, 7
        %v7079 = vsub.s32 %v6597, %v7078
        %v7080 = vrot.slane %v6452, %v7079
        %v7081 = vsel %vm6602, %v7080, %v7076
        %v7082 = vlaneseq
        %v7083 = vshrl.u32 %v7082, 7
        %v7084 = vsub.s32 %v6604, %v7083
        %v7085 = vrot.slane %v6455, %v7084
        %v7086 = vsel %vm6609, %v7085, %v7081
        %v7087 = vlaneseq
        %v7088 = vshrl.u32 %v7087, 7
        %v7089 = vsub.s32 %v6611, %v7088
        %v7090 = vrot.slane %v6458, %v7089
        %v7091 = vsel %vm6616, %v7090, %v7086
        %v7092 = vlaneseq
        %v7093 = vshrl.u32 %v7092, 7
        %v7094 = vsub.s32 %v6508, %v7093
        %v7095 = vrot.slane %v6461, %v7094
        %v7096 = vlaneseq
        %v7097 = vshrl.u32 %v7096, 7
        %v7098 = vsub.s32 %v6513, %v7097
        %v7099 = vrot.slane %v6464, %v7098
        %v7100 = vsel %vm6518, %v7099, %v7095
        %v7101 = vlaneseq
        %v7102 = vshrl.u32 %v7101, 7
        %v7103 = vsub.s32 %v6520, %v7102
        %v7104 = vrot.slane %v6467, %v7103
        %v7105 = vsel %vm6525, %v7104, %v7100
        %v7106 = vlaneseq
        %v7107 = vshrl.u32 %v7106, 7
        %v7108 = vsub.s32 %v6527, %v7107
        %v7109 = vrot.slane %v6470, %v7108
        %v7110 = vsel %vm6532, %v7109, %v7105
        %v7111 = vlaneseq
        %v7112 = vshrl.u32 %v7111, 7
        %v7113 = vsub.s32 %v6534, %v7112
        %v7114 = vrot.slane %v6473, %v7113
        %v7115 = vsel %vm6539, %v7114, %v7110
        %v7116 = vlaneseq
        %v7117 = vshrl.u32 %v7116, 7
        %v7118 = vsub.s32 %v6541, %v7117
        %v7119 = vrot.slane %v6476, %v7118
        %v7120 = vsel %vm6546, %v7119, %v7115
        %v7121 = vlaneseq
        %v7122 = vshrl.u32 %v7121, 7
        %v7123 = vsub.s32 %v6548, %v7122
        %v7124 = vrot.slane %v6479, %v7123
        %v7125 = vsel %vm6553, %v7124, %v7120
        %v7126 = vlaneseq
        %v7127 = vshrl.u32 %v7126, 7
        %v7128 = vsub.s32 %v6555, %v7127
        %v7129 = vrot.slane %v6482, %v7128
        %v7130 = vsel %vm6560, %v7129, %v7125
        %v7131 = vlaneseq
        %v7132 = vshrl.u32 %v7131, 7
        %v7133 = vsub.s32 %v6562, %v7132
        %v7134 = vrot.slane %v6485, %v7133
        %v7135 = vsel %vm6567, %v7134, %v7130
        %v7136 = vlaneseq
        %v7137 = vshrl.u32 %v7136, 7
        %v7138 = vsub.s32 %v6569, %v7137
        %v7139 = vrot.slane %v6488, %v7138
        %v7140 = vsel %vm6574, %v7139, %v7135
        %v7141 = vlaneseq
        %v7142 = vshrl.u32 %v7141, 7
        %v7143 = vsub.s32 %v6576, %v7142
        %v7144 = vrot.slane %v6491, %v7143
        %v7145 = vsel %vm6581, %v7144, %v7140
        %v7146 = vlaneseq
        %v7147 = vshrl.u32 %v7146, 7
        %v7148 = vsub.s32 %v6583, %v7147
        %v7149 = vrot.slane %v6494, %v7148
        %v7150 = vsel %vm6588, %v7149, %v7145
        %v7151 = vlaneseq
        %v7152 = vshrl.u32 %v7151, 7
        %v7153 = vsub.s32 %v6590, %v7152
        %v7154 = vrot.slane %v6497, %v7153
        %v7155 = vsel %vm6595, %v7154, %v7150
        %v7156 = vlaneseq
        %v7157 = vshrl.u32 %v7156, 7
        %v7158 = vsub.s32 %v6597, %v7157
        %v7159 = vrot.slane %v6500, %v7158
        %v7160 = vsel %vm6602, %v7159, %v7155
        %v7161 = vlaneseq
        %v7162 = vshrl.u32 %v7161, 7
        %v7163 = vsub.s32 %v6604, %v7162
        %v7164 = vrot.slane %v6503, %v7163
        %v7165 = vsel %vm6609, %v7164, %v7160
        %v7166 = vlaneseq
        %v7167 = vshrl.u32 %v7166, 7
        %v7168 = vsub.s32 %v6611, %v7167
        %v7169 = vrot.slane %v6506, %v7168
        %v7170 = vsel %vm6616, %v7169, %v7165
        %vm7171 = vcmask 1041409
        %v7172 = vsel %vm7171, %v6696, %v6617
        %vm7173 = vcmask 1042434
        %v7174 = vsel %vm7173, %v6775, %v7172
        %vm7175 = vcmask 1043459
        %v7176 = vsel %vm7175, %v6854, %v7174
        %vm7177 = vcmask 1044484
        %v7178 = vsel %vm7177, %v6933, %v7176
        %vm7179 = vcmask 1045509
        %v7180 = vsel %vm7179, %v7012, %v7178
        %vm7181 = vcmask 1046534
        %v7182 = vsel %vm7181, %v7091, %v7180
        %vm7183 = vcmask 1047559
        %v7184 = vsel %vm7183, %v7170, %v7182
        %7186 = vst [vmem:[%s453] sm:$0xff] %v7184
        %s7187 = sand.u32 %s239, 1
        %s7188 = scalar_lea.sflag [#allocation4], %s7187
        %s7189 = sand.u32 %s239, 1
        %s7190 = smul.addr %s7189, 8
        %s7191 = scalar_lea.vmem [#allocation11], %s7190
        // Predicated region
        $region73: #{tpu_custom_call.1} parent=51 // pred_check
          %p7192 = pneg %p249
        $region74: #{tpu_custom_call.1} parent=51 // pred_check_branch
          %7194 = sbr.rel (%p7192) target = $region76
        $region75: #{tpu_custom_call.1} parent=51 // pred_region
          %s7196 = ssub.s32 128, 128
          %7197 = vsyncadd %s7188, %s7196
          %s7198 = smul.addr %s34, 2
          %s7199 = sadd.s32 %s33, %s7198
          %s7200 = smul.addr %s7199, 128
          %s7201 = scalar_lea.hbm %s8, %s7200
          %s7203 = sshll.u32 %s7191, 4
          %s7204 = int_to_ptr.vmem [resolvable:$true] %s7203
          %7206 = dma.vmem_to_hbm [thread:$0]  %s7204, 128, %s7201, %s7188
        $region76: #{tpu_custom_call.1} parent=51 // pred_fallthru
          _
      $region52: #{tpu_custom_call.1} parent=5 // pred_fallthru
        _
      %p7207 = scmp.le.s32.totalorder 2, %s24
      // Predicated region
      $region77: #{tpu_custom_call.1} parent=5 // pred_check
        %p7208 = pneg %p7207
      $region78: #{tpu_custom_call.1} parent=5 // pred_check_branch
        %7210 = sbr.rel (%p7208) target = $region80
      $region79: #{tpu_custom_call.1} parent=5 // pred_region
        %s7211 = ssub.s32 %s24, 2
        // Predicated region
        $region81: #{tpu_custom_call.1} parent=79 // pred_check
          %p7212 = pneg %p255
        $region82: #{tpu_custom_call.1} parent=79 // pred_check_branch
          %7214 = sbr.rel (%p7212) target = $region84
        $region83: #{tpu_custom_call.1} parent=79 // pred_region
          %s7215 = sand.u32 %s240, 1
          %s7216 = scalar_lea.sflag [#allocation4], %s7215
          %s7217 = sand.u32 %s240, 1
          %s7218 = smul.addr %s7217, 8
          %s7219 = scalar_lea.vmem [#allocation11], %s7218
          %7220 = dma.done %s7216, 128
        $region84: #{tpu_custom_call.1} parent=79 // pred_fallthru
          _
      $region80: #{tpu_custom_call.1} parent=5 // pred_fallthru
        _
    $region6: #{tpu_custom_call.1} parent=1 // loop_footer
      %s28 = sadd.s32 1, %s24
    $region7: #{tpu_custom_call.1} parent=1 // loop_footer_branch
      %23 = sbr.rel target = $region3
    $region8: #{tpu_custom_call.1} parent=1 // loop_exit
      _
    %7221 = vsyncpa [#allocation3], 1
    %s7222 = scalar_lea.sflag [#allocation3], 1
    %7223 = vsyncpa %s7222, 1
    %7224 = vsyncpa [#allocation6], 1
    %s7225 = scalar_lea.sflag [#allocation6], 1
    %7226 = vsyncpa %s7225, 1
    %7227 = vsyncpa [#allocation9], 1
    %7228 = vsyncpa [#allocation4], 1
    %s7229 = scalar_lea.sflag [#allocation4], 1
    %7230 = vsyncpa %s7229, 1

</llo_original>
